<compile_context>
chip_gen: v5e
topology: v5e:2x2
jax: 0.10.0
libtpu: 0.0.40
codegen_flags: <defaults>
</compile_context>

<pallas_src>
import functools

import jax
import jax.numpy as jnp
from jax import lax
from jax.experimental import pallas as pl
from jax.experimental.pallas import tpu as pltpu

LANE = 128


def _round_up(x, m):
    return (x + m - 1) // m * m


def _pad_axis(a, axis, target):
    if a.shape[axis] == target:
        return a
    cfg = [(0, 0)] * a.ndim
    cfg[axis] = (0, target - a.shape[axis])
    return jnp.pad(a, cfg)


# --------------------------------------------------------------------------- #
# Pallas kernels
# --------------------------------------------------------------------------- #
def _fused_conv3x3_kernel(x_ref, in_scale_ref, in_shift_ref, w_ref, b_ref,
                          y_ref, stats_ref, xpad_ref, *, apply_input_act):
    """(optional fused input BN+ReLU) -> 3x3 'same' conv + bias, plus per-tile
    partial BN statistics of this layer's output.

      x_ref       : (H, W, Cin)       input tile, channel-padded, f32
      in_scale_ref: (1, Cin)          fused input-BN scale (unused if no act)
      in_shift_ref: (1, Cin)          fused input-BN shift
      w_ref       : (3, 3, Cin, Cout) bf16 weights, channel-padded
      b_ref       : (1, Cout)         f32 bias
      y_ref       : (H, W, Cout)      conv output (pre-BN), f32
      stats_ref   : (2, Cout)         per-batch-element [sum, sum_sq]
      xpad_ref    : (H+2, W+2, Cin)   bf16 VMEM scratch (zero-padded tile)
    """
    H, W, Cout = y_ref.shape
    Cin = x_ref.shape[-1]

    x = x_ref[...]
    if apply_input_act:
        # Previous layer's BatchNorm + ReLU, fused into this conv's input path.
        x = jnp.maximum(x * in_scale_ref[...] + in_shift_ref[...], 0.0)
    x = x.astype(jnp.bfloat16)

    # Build the zero-padded tile in VMEM (after the activation, so the halo is
    # exactly zero).
    xpad_ref[...] = jnp.zeros(xpad_ref.shape, xpad_ref.dtype)
    xpad_ref[1:H + 1, 1:W + 1, :] = x

    # im2col: one (H*W, 9*Cin) patch matrix -> single MXU matmul (bf16 in, f32 acc).
    slabs = [xpad_ref[kh:kh + H, kw:kw + W, :]
             for kh in range(3) for kw in range(3)]
    patch = jnp.concatenate(slabs, axis=-1).reshape(H * W, 9 * Cin)
    wmat = w_ref[...].reshape(9 * Cin, Cout)   # (kh, kw, cin) order matches slabs
    acc = jnp.dot(patch, wmat, preferred_element_type=jnp.float32)
    acc = acc + b_ref[...]                     # (1, Cout) broadcast

    y_ref[...] = acc.reshape(H, W, Cout).astype(y_ref.dtype)

    # Per-tile partial statistics, reduced over the batch axis in plain JAX.
    stats_ref[0:1, :] = jnp.sum(acc, axis=0, keepdims=True)
    stats_ref[1:2, :] = jnp.sum(acc * acc, axis=0, keepdims=True)


def _bn_relu_kernel(x_ref, scale_ref, shift_ref, o_ref):
    # Final-layer BatchNorm + ReLU (no consuming conv to fuse it into).
    y = x_ref[...] * scale_ref[...] + shift_ref[...]
    o_ref[...] = jnp.maximum(y, 0.0).astype(o_ref.dtype)


# --------------------------------------------------------------------------- #
# Wrappers
# --------------------------------------------------------------------------- #
def fused_conv3x3(x_p, in_scale_p, in_shift_p, w_p, b_p, *, apply_input_act):
    """3x3 'same' conv on channel-padded NHWC input, optionally fusing the
    previous layer's BN+ReLU into the input path.  Returns (y, per-batch stats)."""
    N, H, W, Cin = x_p.shape
    Cout = w_p.shape[-1]
    kernel = functools.partial(_fused_conv3x3_kernel,
                               apply_input_act=apply_input_act)
    return pl.pallas_call(
        kernel,
        out_shape=(
            jax.ShapeDtypeStruct((N, H, W, Cout), jnp.float32),
            jax.ShapeDtypeStruct((N, 2, Cout), jnp.float32),
        ),
        grid=(N,),
        in_specs=[
            pl.BlockSpec((None, H, W, Cin), lambda n: (n, 0, 0, 0)),
            pl.BlockSpec((1, Cin), lambda n: (0, 0)),
            pl.BlockSpec((1, Cin), lambda n: (0, 0)),
            pl.BlockSpec((3, 3, Cin, Cout), lambda n: (0, 0, 0, 0)),
            pl.BlockSpec((1, Cout), lambda n: (0, 0)),
        ],
        out_specs=(
            pl.BlockSpec((None, H, W, Cout), lambda n: (n, 0, 0, 0)),
            pl.BlockSpec((None, 2, Cout), lambda n: (n, 0, 0)),
        ),
        scratch_shapes=[pltpu.VMEM((H + 2, W + 2, Cin), jnp.bfloat16)],
        compiler_params=pltpu.CompilerParams(
            dimension_semantics=("parallel",),
            vmem_limit_bytes=32 * 1024 * 1024),
    )(x_p, in_scale_p, in_shift_p, w_p, b_p)


def bn_relu(x_p, scale_p, shift_p):
    N, H, W, C = x_p.shape
    return pl.pallas_call(
        _bn_relu_kernel,
        out_shape=jax.ShapeDtypeStruct((N, H, W, C), jnp.float32),
        grid=(N,),
        in_specs=[
            pl.BlockSpec((None, H, W, C), lambda n: (n, 0, 0, 0)),
            pl.BlockSpec((1, C), lambda n: (0, 0)),
            pl.BlockSpec((1, C), lambda n: (0, 0)),
        ],
        out_specs=pl.BlockSpec((None, H, W, C), lambda n: (n, 0, 0, 0)),
        compiler_params=pltpu.CompilerParams(
            dimension_semantics=("parallel",)),
    )(x_p, scale_p, shift_p)


def double_conv_bn_forward(x_nchw, params, eps=1e-5):
    """Forward pass matching the PyTorch module (training-mode BatchNorm)."""
    x = jnp.transpose(x_nchw, (0, 2, 3, 1)).astype(jnp.float32)  # NCHW -> NHWC
    N, H, W, Cin = x.shape
    Cout = params["b1"].shape[0]
    count = float(N * H * W)

    cp_in = _round_up(Cin, LANE)      # lane-dense padded channel counts
    cp_out = _round_up(Cout, LANE)

    def pad_layer(i, cin_p):
        w = _pad_axis(_pad_axis(params[f"w{i}"], 2, cin_p), 3, cp_out)
        b = _pad_axis(params[f"b{i}"], 0, cp_out).reshape(1, cp_out)
        gamma = _pad_axis(params[f"gamma{i}"], 0, cp_out)
        beta = _pad_axis(params[f"beta{i}"], 0, cp_out)
        return (w.astype(jnp.bfloat16), b.astype(jnp.float32),
                gamma.astype(jnp.float32), beta.astype(jnp.float32))

    w1, b1, g1, be1 = pad_layer(1, cp_in)
    w2, b2, g2, be2 = pad_layer(2, cp_out)

    def bn_scale_shift(stats, gamma, beta):
        # stats: (N, 2, Cp) per-batch-element partial [sum, sum_sq]
        tot = jnp.sum(stats, axis=0)
        mean = tot[0] / count
        var = jnp.maximum(tot[1] / count - mean * mean, 0.0)   # biased (PyTorch BN fwd)
        scale = gamma / jnp.sqrt(var + eps)
        shift = beta - mean * scale
        return scale.reshape(1, -1), shift.reshape(1, -1)

    x_p = _pad_axis(x, 3, cp_in)                       # pad channels once
    dummy = jnp.zeros((1, cp_in), jnp.float32)

    # layer 1: conv1 + BN1 statistics (BN1+ReLU is fused into conv2 below)
    y1, s1 = fused_conv3x3(x_p, dummy, dummy, w1, b1, apply_input_act=False)
    scale1, shift1 = bn_scale_shift(s1, g1, be1)

    # layer 2: fused [BN1 + ReLU] -> conv2 + BN2 statistics
    y2, s2 = fused_conv3x3(y1, scale1, shift1, w2, b2, apply_input_act=True)
    scale2, shift2 = bn_scale_shift(s2, g2, be2)

    # final BN2 + ReLU
    out = bn_relu(y2, scale2, shift2)

    out = out[..., :Cout]                              # drop channel padding
    return jnp.transpose(out, (0, 3, 1, 2))            # NHWC -> NCHW


# --------------------------------------------------------------------------- #
# Pure-JAX reference (for correctness checking only)
# --------------------------------------------------------------------------- #
def reference_forward(x_nchw, params, eps=1e-5):
    x = jnp.transpose(x_nchw, (0, 2, 3, 1)).astype(jnp.float32)
    for i in (1, 2):
        w, b = params[f"w{i}"], params[f"b{i}"]
        gamma, beta = params[f"gamma{i}"], params[f"beta{i}"]
        y = lax.conv_general_dilated(
            x, w, window_strides=(1, 1), padding="SAME",
            dimension_numbers=("NHWC", "HWIO", "NHWC"),
            precision=lax.Precision.HIGHEST,
        ) + b
        mean = jnp.mean(y, axis=(0, 1, 2))
        var = jnp.mean((y - mean) ** 2, axis=(0, 1, 2))
        y = (y - mean) / jnp.sqrt(var + eps) * gamma + beta
        x = jnp.maximum(y, 0.0)
    return jnp.transpose(x, (0, 3, 1, 2))


# --------------------------------------------------------------------------- #
# Deterministic parameter init (shapes from the module's __init__)
# --------------------------------------------------------------------------- #
def init_params(key, in_chans, filters):
    k1, k2, k3, k4 = jax.random.split(key, 4)

    def he_uniform(k, kh, kw, cin, cout):
        bound = jnp.sqrt(6.0 / (kh * kw * cin))
        return jax.random.uniform(k, (kh, kw, cin, cout), jnp.float32,
                                  minval=-bound, maxval=bound)

    return {
        # conv1: in_chans -> filters, 3x3
        "w1": he_uniform(k1, 3, 3, in_chans, filters),
        "b1": jax.random.uniform(k2, (filters,), jnp.float32, -0.1, 0.1),
        "gamma1": jnp.ones((filters,), jnp.float32),   # PyTorch BN defaults
        "beta1": jnp.zeros((filters,), jnp.float32),
        # conv2: filters -> filters, 3x3
        "w2": he_uniform(k3, 3, 3, filters, filters),
        "b2": jax.random.uniform(k4, (filters,), jnp.float32, -0.1, 0.1),
        "gamma2": jnp.ones((filters,), jnp.float32),
        "beta2": jnp.zeros((filters,), jnp.float32),
    }


# --------------------------------------------------------------------------- #
if __name__ == "__main__":
    N, Cin, H, W = 2, 4, 16, 16
    filters = 8

    key = jax.random.PRNGKey(0)
    kx, kp = jax.random.split(key)
    x = jax.random.normal(kx, (N, Cin, H, W), jnp.float32)   # NCHW, PyTorch input
    params = init_params(kp, Cin, filters)

    out = jax.jit(functools.partial(double_conv_bn_forward, params=params))(x)
    out = jax.block_until_ready(out)

    ref = jax.block_until_ready(reference_forward(x, params))
    assert out.shape == (N, filters, H, W), out.shape
    # Tolerance accounts for bf16 MXU operands (f32 accumulation) vs. the
    # f32 HIGHEST-precision reference convolution.
    assert jnp.allclose(out, ref, rtol=2e-2, atol=3e-2), (
        float(jnp.max(jnp.abs(out - ref))))

    print("KERNEL_OK")
</pallas_src>

<mosaic_0001>
module attributes {stable_mosaic.version = 11 : i64} {
  func.func @_fused_conv3x3_kernel(%arg0: i32, %arg1: memref<1x16x16x128xf32, #tpu.memory_space<vmem>>, %arg2: memref<1x128xf32, #tpu.memory_space<vmem>>, %arg3: memref<1x128xf32, #tpu.memory_space<vmem>>, %arg4: memref<3x3x128x128xbf16, #tpu.memory_space<vmem>>, %arg5: memref<1x128xf32, #tpu.memory_space<vmem>>, %arg6: memref<1x16x16x128xf32, #tpu.memory_space<vmem>>, %arg7: memref<1x2x128xf32, #tpu.memory_space<vmem>>, %arg8: memref<18x18x128xbf16, #tpu.memory_space<vmem>>) attributes {dimension_semantics = [#tpu.dimension_semantics<parallel>], iteration_bounds = array<i64: 2>, scalar_prefetch = 0 : i64, scratch_operands = 1 : i64, tpu.core_type = #tpu.core_type<tc>, window_params = [{transform_indices = @transform_0, window_bounds = array<i64: 1, 16, 16, 128>}, {pipeline_mode = #tpu.pipeline_mode<synchronous>, transform_indices = @transform_1, window_bounds = array<i64: 1, 128>}, {pipeline_mode = #tpu.pipeline_mode<synchronous>, transform_indices = @transform_2, window_bounds = array<i64: 1, 128>}, {pipeline_mode = #tpu.pipeline_mode<synchronous>, transform_indices = @transform_3, window_bounds = array<i64: 3, 3, 128, 128>}, {pipeline_mode = #tpu.pipeline_mode<synchronous>, transform_indices = @transform_4, window_bounds = array<i64: 1, 128>}, {transform_indices = @transform_5, window_bounds = array<i64: 1, 16, 16, 128>}, {transform_indices = @transform_6, window_bounds = array<i64: 1, 2, 128>}]} {
    %c0 = arith.constant 0 : index
    %c0_0 = arith.constant 0 : index
    %c0_1 = arith.constant 0 : index
    %c0_2 = arith.constant 0 : index
    %0 = vector.load %arg1[%c0, %c0_0, %c0_1, %c0_2] : memref<1x16x16x128xf32, #tpu.memory_space<vmem>>, vector<1x16x16x128xf32>
    %1 = vector.shape_cast %0 : vector<1x16x16x128xf32> to vector<16x16x128xf32>
    %2 = arith.truncf %1 : vector<16x16x128xf32> to vector<16x16x128xbf16>
    %cst = arith.constant 0.000000e+00 : bf16
    %3 = vector.broadcast %cst : bf16 to vector<18x18x128xbf16>
    %c0_3 = arith.constant 0 : index
    %c0_4 = arith.constant 0 : index
    %c0_5 = arith.constant 0 : index
    %4 = vector.load %arg8[%c0_3, %c0_4, %c0_5] : memref<18x18x128xbf16, #tpu.memory_space<vmem>>, vector<18x18x128xbf16>
    tpu.vector_store %arg8[%c0_3, %c0_4, %c0_5], %3 {strides = array<i32>} : memref<18x18x128xbf16, #tpu.memory_space<vmem>>, vector<18x18x128xbf16>,
    %c1 = arith.constant 1 : index
    %c1_6 = arith.constant 1 : index
    %c0_7 = arith.constant 0 : index
    %5 = vector.load %arg8[%c1, %c1_6, %c0_7] : memref<18x18x128xbf16, #tpu.memory_space<vmem>>, vector<16x16x128xbf16>
    tpu.vector_store %arg8[%c1, %c1_6, %c0_7], %2 {strides = array<i32>} : memref<18x18x128xbf16, #tpu.memory_space<vmem>>, vector<16x16x128xbf16>,
    %c0_8 = arith.constant 0 : index
    %c0_9 = arith.constant 0 : index
    %c0_10 = arith.constant 0 : index
    %6 = vector.load %arg8[%c0_8, %c0_9, %c0_10] : memref<18x18x128xbf16, #tpu.memory_space<vmem>>, vector<16x16x128xbf16>
    %c0_11 = arith.constant 0 : index
    %c1_12 = arith.constant 1 : index
    %c0_13 = arith.constant 0 : index
    %7 = vector.load %arg8[%c0_11, %c1_12, %c0_13] : memref<18x18x128xbf16, #tpu.memory_space<vmem>>, vector<16x16x128xbf16>
    %c0_14 = arith.constant 0 : index
    %c2 = arith.constant 2 : index
    %c0_15 = arith.constant 0 : index
    %8 = vector.load %arg8[%c0_14, %c2, %c0_15] : memref<18x18x128xbf16, #tpu.memory_space<vmem>>, vector<16x16x128xbf16>
    %c1_16 = arith.constant 1 : index
    %c0_17 = arith.constant 0 : index
    %c0_18 = arith.constant 0 : index
    %9 = vector.load %arg8[%c1_16, %c0_17, %c0_18] : memref<18x18x128xbf16, #tpu.memory_space<vmem>>, vector<16x16x128xbf16>
    %c1_19 = arith.constant 1 : index
    %c1_20 = arith.constant 1 : index
    %c0_21 = arith.constant 0 : index
    %10 = vector.load %arg8[%c1_19, %c1_20, %c0_21] : memref<18x18x128xbf16, #tpu.memory_space<vmem>>, vector<16x16x128xbf16>
    %c1_22 = arith.constant 1 : index
    %c2_23 = arith.constant 2 : index
    %c0_24 = arith.constant 0 : index
    %11 = vector.load %arg8[%c1_22, %c2_23, %c0_24] : memref<18x18x128xbf16, #tpu.memory_space<vmem>>, vector<16x16x128xbf16>
    %c2_25 = arith.constant 2 : index
    %c0_26 = arith.constant 0 : index
    %c0_27 = arith.constant 0 : index
    %12 = vector.load %arg8[%c2_25, %c0_26, %c0_27] : memref<18x18x128xbf16, #tpu.memory_space<vmem>>, vector<16x16x128xbf16>
    %c2_28 = arith.constant 2 : index
    %c1_29 = arith.constant 1 : index
    %c0_30 = arith.constant 0 : index
    %13 = vector.load %arg8[%c2_28, %c1_29, %c0_30] : memref<18x18x128xbf16, #tpu.memory_space<vmem>>, vector<16x16x128xbf16>
    %c2_31 = arith.constant 2 : index
    %c2_32 = arith.constant 2 : index
    %c0_33 = arith.constant 0 : index
    %14 = vector.load %arg8[%c2_31, %c2_32, %c0_33] : memref<18x18x128xbf16, #tpu.memory_space<vmem>>, vector<16x16x128xbf16>
    %15 = tpu.concatenate %6, %7, %8, %9, %10, %11, %12, %13, %14 in 2 : vector<16x16x128xbf16>, vector<16x16x128xbf16>, vector<16x16x128xbf16>, vector<16x16x128xbf16>, vector<16x16x128xbf16>, vector<16x16x128xbf16>, vector<16x16x128xbf16>, vector<16x16x128xbf16>, vector<16x16x128xbf16> -> vector<16x16x1152xbf16>
    %16 = vector.shape_cast %15 : vector<16x16x1152xbf16> to vector<256x1152xbf16>
    %c0_34 = arith.constant 0 : index
    %c0_35 = arith.constant 0 : index
    %c0_36 = arith.constant 0 : index
    %c0_37 = arith.constant 0 : index
    %17 = vector.load %arg4[%c0_34, %c0_35, %c0_36, %c0_37] : memref<3x3x128x128xbf16, #tpu.memory_space<vmem>>, vector<3x3x128x128xbf16>
    %18 = vector.shape_cast %17 : vector<3x3x128x128xbf16> to vector<1152x128xbf16>
    %cst_38 = arith.constant dense<0.000000e+00> : vector<256x128xf32>
    %19 = tpu.matmul %16, %18, %cst_38 {dimension_numbers = #tpu.dot_dimension_numbers<[1], [0], [0], [1], [0, 0, 1, 1], [], []>} : vector<256x1152xbf16>, vector<1152x128xbf16>, vector<256x128xf32> -> vector<256x128xf32>
    %c0_39 = arith.constant 0 : index
    %c0_40 = arith.constant 0 : index
    %20 = vector.load %arg5[%c0_39, %c0_40] : memref<1x128xf32, #tpu.memory_space<vmem>>, vector<1x128xf32>
    %21 = vector.broadcast %20 : vector<1x128xf32> to vector<256x128xf32>
    %22 = arith.addf %19, %21 : vector<256x128xf32>
    %23 = vector.shape_cast %22 : vector<256x128xf32> to vector<16x16x128xf32>
    %c0_41 = arith.constant 0 : index
    %c0_42 = arith.constant 0 : index
    %c0_43 = arith.constant 0 : index
    %c0_44 = arith.constant 0 : index
    %24 = vector.load %arg6[%c0_41, %c0_42, %c0_43, %c0_44] : memref<1x16x16x128xf32, #tpu.memory_space<vmem>>, vector<1x16x16x128xf32>
    %25 = vector.shape_cast %24 : vector<1x16x16x128xf32> to vector<16x16x128xf32>
    %26 = vector.shape_cast %23 : vector<16x16x128xf32> to vector<1x16x16x128xf32>
    tpu.vector_store %arg6[%c0_41, %c0_42, %c0_43, %c0_44], %26 {strides = array<i32>} : memref<1x16x16x128xf32, #tpu.memory_space<vmem>>, vector<1x16x16x128xf32>,
    %cst_45 = arith.constant dense<0.000000e+00> : vector<128xf32>
    %27 = vector.multi_reduction <add>, %22, %cst_45 [0] : vector<256x128xf32> to vector<128xf32>
    %28 = vector.shape_cast %27 : vector<128xf32> to vector<1x128xf32>
    %c0_46 = arith.constant 0 : index
    %c0_47 = arith.constant 0 : index
    %c0_48 = arith.constant 0 : index
    %29 = vector.load %arg7[%c0_46, %c0_47, %c0_48] : memref<1x2x128xf32, #tpu.memory_space<vmem>>, vector<1x1x128xf32>
    %30 = vector.shape_cast %29 : vector<1x1x128xf32> to vector<1x128xf32>
    %31 = vector.shape_cast %28 : vector<1x128xf32> to vector<1x1x128xf32>
    tpu.vector_store %arg7[%c0_46, %c0_47, %c0_48], %31 {strides = array<i32>} : memref<1x2x128xf32, #tpu.memory_space<vmem>>, vector<1x1x128xf32>,
    %32 = arith.mulf %22, %22 : vector<256x128xf32>
    %cst_49 = arith.constant dense<0.000000e+00> : vector<128xf32>
    %33 = vector.multi_reduction <add>, %32, %cst_49 [0] : vector<256x128xf32> to vector<128xf32>
    %34 = vector.shape_cast %33 : vector<128xf32> to vector<1x128xf32>
    %c0_50 = arith.constant 0 : index
    %c1_51 = arith.constant 1 : index
    %c0_52 = arith.constant 0 : index
    %35 = vector.load %arg7[%c0_50, %c1_51, %c0_52] : memref<1x2x128xf32, #tpu.memory_space<vmem>>, vector<1x1x128xf32>
    %36 = vector.shape_cast %35 : vector<1x1x128xf32> to vector<1x128xf32>
    %37 = vector.shape_cast %34 : vector<1x128xf32> to vector<1x1x128xf32>
    tpu.vector_store %arg7[%c0_50, %c1_51, %c0_52], %37 {strides = array<i32>} : memref<1x2x128xf32, #tpu.memory_space<vmem>>, vector<1x1x128xf32>,
    return
  }
  func.func @transform_0(%arg0: i32) -> (i32, i32, i32, i32) {
    %c0_i32 = arith.constant 0 : i32
    %c0_i32_0 = arith.constant 0 : i32
    %c0_i32_1 = arith.constant 0 : i32
    %c0_i32_2 = arith.constant 0 : i32
    return %arg0, %c0_i32, %c0_i32_0, %c0_i32_1 : i32, i32, i32, i32
  }
  func.func @transform_1(%arg0: i32) -> (i32, i32) {
    %c0_i32 = arith.constant 0 : i32
    %c0_i32_0 = arith.constant 0 : i32
    %c0_i32_1 = arith.constant 0 : i32
    return %c0_i32, %c0_i32_0 : i32, i32
  }
  func.func @transform_2(%arg0: i32) -> (i32, i32) {
    %c0_i32 = arith.constant 0 : i32
    %c0_i32_0 = arith.constant 0 : i32
    %c0_i32_1 = arith.constant 0 : i32
    return %c0_i32, %c0_i32_0 : i32, i32
  }
  func.func @transform_3(%arg0: i32) -> (i32, i32, i32, i32) {
    %c0_i32 = arith.constant 0 : i32
    %c0_i32_0 = arith.constant 0 : i32
    %c0_i32_1 = arith.constant 0 : i32
    %c0_i32_2 = arith.constant 0 : i32
    %c0_i32_3 = arith.constant 0 : i32
    return %c0_i32, %c0_i32_0, %c0_i32_1, %c0_i32_2 : i32, i32, i32, i32
  }
  func.func @transform_4(%arg0: i32) -> (i32, i32) {
    %c0_i32 = arith.constant 0 : i32
    %c0_i32_0 = arith.constant 0 : i32
    %c0_i32_1 = arith.constant 0 : i32
    return %c0_i32, %c0_i32_0 : i32, i32
  }
  func.func @transform_5(%arg0: i32) -> (i32, i32, i32, i32) {
    %c0_i32 = arith.constant 0 : i32
    %c0_i32_0 = arith.constant 0 : i32
    %c0_i32_1 = arith.constant 0 : i32
    %c0_i32_2 = arith.constant 0 : i32
    return %arg0, %c0_i32, %c0_i32_0, %c0_i32_1 : i32, i32, i32, i32
  }
  func.func @transform_6(%arg0: i32) -> (i32, i32, i32) {
    %c0_i32 = arith.constant 0 : i32
    %c0_i32_0 = arith.constant 0 : i32
    %c0_i32_1 = arith.constant 0 : i32
    return %arg0, %c0_i32, %c0_i32_0 : i32, i32, i32
  }
}

module attributes {stable_mosaic.version = 11 : i64} {
  func.func @_bn_relu_kernel(%arg0: i32, %arg1: memref<1x16x16x128xf32, #tpu.memory_space<vmem>>, %arg2: memref<1x128xf32, #tpu.memory_space<vmem>>, %arg3: memref<1x128xf32, #tpu.memory_space<vmem>>, %arg4: memref<1x16x16x128xf32, #tpu.memory_space<vmem>>) attributes {dimension_semantics = [#tpu.dimension_semantics<parallel>], iteration_bounds = array<i64: 2>, scalar_prefetch = 0 : i64, scratch_operands = 0 : i64, tpu.core_type = #tpu.core_type<tc>, window_params = [{transform_indices = @transform_0, window_bounds = array<i64: 1, 16, 16, 128>}, {pipeline_mode = #tpu.pipeline_mode<synchronous>, transform_indices = @transform_1, window_bounds = array<i64: 1, 128>}, {pipeline_mode = #tpu.pipeline_mode<synchronous>, transform_indices = @transform_2, window_bounds = array<i64: 1, 128>}, {transform_indices = @transform_3, window_bounds = array<i64: 1, 16, 16, 128>}]} {
    %c0 = arith.constant 0 : index
    %c0_0 = arith.constant 0 : index
    %c0_1 = arith.constant 0 : index
    %c0_2 = arith.constant 0 : index
    %0 = vector.load %arg1[%c0, %c0_0, %c0_1, %c0_2] : memref<1x16x16x128xf32, #tpu.memory_space<vmem>>, vector<1x16x16x128xf32>
    %1 = vector.shape_cast %0 : vector<1x16x16x128xf32> to vector<16x16x128xf32>
    %c0_3 = arith.constant 0 : index
    %c0_4 = arith.constant 0 : index
    %2 = vector.load %arg2[%c0_3, %c0_4] : memref<1x128xf32, #tpu.memory_space<vmem>>, vector<1x128xf32>
    %3 = vector.shape_cast %2 : vector<1x128xf32> to vector<1x1x128xf32>
    %4 = vector.broadcast %3 : vector<1x1x128xf32> to vector<16x16x128xf32>
    %5 = arith.mulf %1, %4 : vector<16x16x128xf32>
    %c0_5 = arith.constant 0 : index
    %c0_6 = arith.constant 0 : index
    %6 = vector.load %arg3[%c0_5, %c0_6] : memref<1x128xf32, #tpu.memory_space<vmem>>, vector<1x128xf32>
    %7 = vector.shape_cast %6 : vector<1x128xf32> to vector<1x1x128xf32>
    %8 = vector.broadcast %7 : vector<1x1x128xf32> to vector<16x16x128xf32>
    %9 = arith.addf %5, %8 : vector<16x16x128xf32>
    %cst = arith.constant 0.000000e+00 : f32
    %10 = vector.broadcast %cst : f32 to vector<16x16x128xf32>
    %11 = arith.maximumf %9, %10 : vector<16x16x128xf32>
    %c0_7 = arith.constant 0 : index
    %c0_8 = arith.constant 0 : index
    %c0_9 = arith.constant 0 : index
    %c0_10 = arith.constant 0 : index
    %12 = vector.load %arg4[%c0_7, %c0_8, %c0_9, %c0_10] : memref<1x16x16x128xf32, #tpu.memory_space<vmem>>, vector<1x16x16x128xf32>
    %13 = vector.shape_cast %12 : vector<1x16x16x128xf32> to vector<16x16x128xf32>
    %14 = vector.shape_cast %11 : vector<16x16x128xf32> to vector<1x16x16x128xf32>
    tpu.vector_store %arg4[%c0_7, %c0_8, %c0_9, %c0_10], %14 {strides = array<i32>} : memref<1x16x16x128xf32, #tpu.memory_space<vmem>>, vector<1x16x16x128xf32>,
    return
  }
  func.func @transform_0(%arg0: i32) -> (i32, i32, i32, i32) {
    %c0_i32 = arith.constant 0 : i32
    %c0_i32_0 = arith.constant 0 : i32
    %c0_i32_1 = arith.constant 0 : i32
    %c0_i32_2 = arith.constant 0 : i32
    return %arg0, %c0_i32, %c0_i32_0, %c0_i32_1 : i32, i32, i32, i32
  }
  func.func @transform_1(%arg0: i32) -> (i32, i32) {
    %c0_i32 = arith.constant 0 : i32
    %c0_i32_0 = arith.constant 0 : i32
    %c0_i32_1 = arith.constant 0 : i32
    return %c0_i32, %c0_i32_0 : i32, i32
  }
  func.func @transform_2(%arg0: i32) -> (i32, i32) {
    %c0_i32 = arith.constant 0 : i32
    %c0_i32_0 = arith.constant 0 : i32
    %c0_i32_1 = arith.constant 0 : i32
    return %c0_i32, %c0_i32_0 : i32, i32
  }
  func.func @transform_3(%arg0: i32) -> (i32, i32, i32, i32) {
    %c0_i32 = arith.constant 0 : i32
    %c0_i32_0 = arith.constant 0 : i32
    %c0_i32_1 = arith.constant 0 : i32
    %c0_i32_2 = arith.constant 0 : i32
    return %arg0, %c0_i32, %c0_i32_0, %c0_i32_1 : i32, i32, i32, i32
  }
}

module attributes {stable_mosaic.version = 11 : i64} {
  func.func @_fused_conv3x3_kernel(%arg0: i32, %arg1: memref<1x16x16x128xf32, #tpu.memory_space<vmem>>, %arg2: memref<1x128xf32, #tpu.memory_space<vmem>>, %arg3: memref<1x128xf32, #tpu.memory_space<vmem>>, %arg4: memref<3x3x128x128xbf16, #tpu.memory_space<vmem>>, %arg5: memref<1x128xf32, #tpu.memory_space<vmem>>, %arg6: memref<1x16x16x128xf32, #tpu.memory_space<vmem>>, %arg7: memref<1x2x128xf32, #tpu.memory_space<vmem>>, %arg8: memref<18x18x128xbf16, #tpu.memory_space<vmem>>) attributes {dimension_semantics = [#tpu.dimension_semantics<parallel>], iteration_bounds = array<i64: 2>, scalar_prefetch = 0 : i64, scratch_operands = 1 : i64, tpu.core_type = #tpu.core_type<tc>, window_params = [{transform_indices = @transform_0, window_bounds = array<i64: 1, 16, 16, 128>}, {pipeline_mode = #tpu.pipeline_mode<synchronous>, transform_indices = @transform_1, window_bounds = array<i64: 1, 128>}, {pipeline_mode = #tpu.pipeline_mode<synchronous>, transform_indices = @transform_2, window_bounds = array<i64: 1, 128>}, {pipeline_mode = #tpu.pipeline_mode<synchronous>, transform_indices = @transform_3, window_bounds = array<i64: 3, 3, 128, 128>}, {pipeline_mode = #tpu.pipeline_mode<synchronous>, transform_indices = @transform_4, window_bounds = array<i64: 1, 128>}, {transform_indices = @transform_5, window_bounds = array<i64: 1, 16, 16, 128>}, {transform_indices = @transform_6, window_bounds = array<i64: 1, 2, 128>}]} {
    %c0 = arith.constant 0 : index
    %c0_0 = arith.constant 0 : index
    %c0_1 = arith.constant 0 : index
    %c0_2 = arith.constant 0 : index
    %0 = vector.load %arg1[%c0, %c0_0, %c0_1, %c0_2] : memref<1x16x16x128xf32, #tpu.memory_space<vmem>>, vector<1x16x16x128xf32>
    %1 = vector.shape_cast %0 : vector<1x16x16x128xf32> to vector<16x16x128xf32>
    %c0_3 = arith.constant 0 : index
    %c0_4 = arith.constant 0 : index
    %2 = vector.load %arg2[%c0_3, %c0_4] : memref<1x128xf32, #tpu.memory_space<vmem>>, vector<1x128xf32>
    %3 = vector.shape_cast %2 : vector<1x128xf32> to vector<1x1x128xf32>
    %4 = vector.broadcast %3 : vector<1x1x128xf32> to vector<16x16x128xf32>
    %5 = arith.mulf %1, %4 : vector<16x16x128xf32>
    %c0_5 = arith.constant 0 : index
    %c0_6 = arith.constant 0 : index
    %6 = vector.load %arg3[%c0_5, %c0_6] : memref<1x128xf32, #tpu.memory_space<vmem>>, vector<1x128xf32>
    %7 = vector.shape_cast %6 : vector<1x128xf32> to vector<1x1x128xf32>
    %8 = vector.broadcast %7 : vector<1x1x128xf32> to vector<16x16x128xf32>
    %9 = arith.addf %5, %8 : vector<16x16x128xf32>
    %cst = arith.constant 0.000000e+00 : f32
    %10 = vector.broadcast %cst : f32 to vector<16x16x128xf32>
    %11 = arith.maximumf %9, %10 : vector<16x16x128xf32>
    %12 = arith.truncf %11 : vector<16x16x128xf32> to vector<16x16x128xbf16>
    %cst_7 = arith.constant 0.000000e+00 : bf16
    %13 = vector.broadcast %cst_7 : bf16 to vector<18x18x128xbf16>
    %c0_8 = arith.constant 0 : index
    %c0_9 = arith.constant 0 : index
    %c0_10 = arith.constant 0 : index
    %14 = vector.load %arg8[%c0_8, %c0_9, %c0_10] : memref<18x18x128xbf16, #tpu.memory_space<vmem>>, vector<18x18x128xbf16>
    tpu.vector_store %arg8[%c0_8, %c0_9, %c0_10], %13 {strides = array<i32>} : memref<18x18x128xbf16, #tpu.memory_space<vmem>>, vector<18x18x128xbf16>,
    %c1 = arith.constant 1 : index
    %c1_11 = arith.constant 1 : index
    %c0_12 = arith.constant 0 : index
    %15 = vector.load %arg8[%c1, %c1_11, %c0_12] : memref<18x18x128xbf16, #tpu.memory_space<vmem>>, vector<16x16x128xbf16>
    tpu.vector_store %arg8[%c1, %c1_11, %c0_12], %12 {strides = array<i32>} : memref<18x18x128xbf16, #tpu.memory_space<vmem>>, vector<16x16x128xbf16>,
    %c0_13 = arith.constant 0 : index
    %c0_14 = arith.constant 0 : index
    %c0_15 = arith.constant 0 : index
    %16 = vector.load %arg8[%c0_13, %c0_14, %c0_15] : memref<18x18x128xbf16, #tpu.memory_space<vmem>>, vector<16x16x128xbf16>
    %c0_16 = arith.constant 0 : index
    %c1_17 = arith.constant 1 : index
    %c0_18 = arith.constant 0 : index
    %17 = vector.load %arg8[%c0_16, %c1_17, %c0_18] : memref<18x18x128xbf16, #tpu.memory_space<vmem>>, vector<16x16x128xbf16>
    %c0_19 = arith.constant 0 : index
    %c2 = arith.constant 2 : index
    %c0_20 = arith.constant 0 : index
    %18 = vector.load %arg8[%c0_19, %c2, %c0_20] : memref<18x18x128xbf16, #tpu.memory_space<vmem>>, vector<16x16x128xbf16>
    %c1_21 = arith.constant 1 : index
    %c0_22 = arith.constant 0 : index
    %c0_23 = arith.constant 0 : index
    %19 = vector.load %arg8[%c1_21, %c0_22, %c0_23] : memref<18x18x128xbf16, #tpu.memory_space<vmem>>, vector<16x16x128xbf16>
    %c1_24 = arith.constant 1 : index
    %c1_25 = arith.constant 1 : index
    %c0_26 = arith.constant 0 : index
    %20 = vector.load %arg8[%c1_24, %c1_25, %c0_26] : memref<18x18x128xbf16, #tpu.memory_space<vmem>>, vector<16x16x128xbf16>
    %c1_27 = arith.constant 1 : index
    %c2_28 = arith.constant 2 : index
    %c0_29 = arith.constant 0 : index
    %21 = vector.load %arg8[%c1_27, %c2_28, %c0_29] : memref<18x18x128xbf16, #tpu.memory_space<vmem>>, vector<16x16x128xbf16>
    %c2_30 = arith.constant 2 : index
    %c0_31 = arith.constant 0 : index
    %c0_32 = arith.constant 0 : index
    %22 = vector.load %arg8[%c2_30, %c0_31, %c0_32] : memref<18x18x128xbf16, #tpu.memory_space<vmem>>, vector<16x16x128xbf16>
    %c2_33 = arith.constant 2 : index
    %c1_34 = arith.constant 1 : index
    %c0_35 = arith.constant 0 : index
    %23 = vector.load %arg8[%c2_33, %c1_34, %c0_35] : memref<18x18x128xbf16, #tpu.memory_space<vmem>>, vector<16x16x128xbf16>
    %c2_36 = arith.constant 2 : index
    %c2_37 = arith.constant 2 : index
    %c0_38 = arith.constant 0 : index
    %24 = vector.load %arg8[%c2_36, %c2_37, %c0_38] : memref<18x18x128xbf16, #tpu.memory_space<vmem>>, vector<16x16x128xbf16>
    %25 = tpu.concatenate %16, %17, %18, %19, %20, %21, %22, %23, %24 in 2 : vector<16x16x128xbf16>, vector<16x16x128xbf16>, vector<16x16x128xbf16>, vector<16x16x128xbf16>, vector<16x16x128xbf16>, vector<16x16x128xbf16>, vector<16x16x128xbf16>, vector<16x16x128xbf16>, vector<16x16x128xbf16> -> vector<16x16x1152xbf16>
    %26 = vector.shape_cast %25 : vector<16x16x1152xbf16> to vector<256x1152xbf16>
    %c0_39 = arith.constant 0 : index
    %c0_40 = arith.constant 0 : index
    %c0_41 = arith.constant 0 : index
    %c0_42 = arith.constant 0 : index
    %27 = vector.load %arg4[%c0_39, %c0_40, %c0_41, %c0_42] : memref<3x3x128x128xbf16, #tpu.memory_space<vmem>>, vector<3x3x128x128xbf16>
    %28 = vector.shape_cast %27 : vector<3x3x128x128xbf16> to vector<1152x128xbf16>
    %cst_43 = arith.constant dense<0.000000e+00> : vector<256x128xf32>
    %29 = tpu.matmul %26, %28, %cst_43 {dimension_numbers = #tpu.dot_dimension_numbers<[1], [0], [0], [1], [0, 0, 1, 1], [], []>} : vector<256x1152xbf16>, vector<1152x128xbf16>, vector<256x128xf32> -> vector<256x128xf32>
    %c0_44 = arith.constant 0 : index
    %c0_45 = arith.constant 0 : index
    %30 = vector.load %arg5[%c0_44, %c0_45] : memref<1x128xf32, #tpu.memory_space<vmem>>, vector<1x128xf32>
    %31 = vector.broadcast %30 : vector<1x128xf32> to vector<256x128xf32>
    %32 = arith.addf %29, %31 : vector<256x128xf32>
    %33 = vector.shape_cast %32 : vector<256x128xf32> to vector<16x16x128xf32>
    %c0_46 = arith.constant 0 : index
    %c0_47 = arith.constant 0 : index
    %c0_48 = arith.constant 0 : index
    %c0_49 = arith.constant 0 : index
    %34 = vector.load %arg6[%c0_46, %c0_47, %c0_48, %c0_49] : memref<1x16x16x128xf32, #tpu.memory_space<vmem>>, vector<1x16x16x128xf32>
    %35 = vector.shape_cast %34 : vector<1x16x16x128xf32> to vector<16x16x128xf32>
    %36 = vector.shape_cast %33 : vector<16x16x128xf32> to vector<1x16x16x128xf32>
    tpu.vector_store %arg6[%c0_46, %c0_47, %c0_48, %c0_49], %36 {strides = array<i32>} : memref<1x16x16x128xf32, #tpu.memory_space<vmem>>, vector<1x16x16x128xf32>,
    %cst_50 = arith.constant dense<0.000000e+00> : vector<128xf32>
    %37 = vector.multi_reduction <add>, %32, %cst_50 [0] : vector<256x128xf32> to vector<128xf32>
    %38 = vector.shape_cast %37 : vector<128xf32> to vector<1x128xf32>
    %c0_51 = arith.constant 0 : index
    %c0_52 = arith.constant 0 : index
    %c0_53 = arith.constant 0 : index
    %39 = vector.load %arg7[%c0_51, %c0_52, %c0_53] : memref<1x2x128xf32, #tpu.memory_space<vmem>>, vector<1x1x128xf32>
    %40 = vector.shape_cast %39 : vector<1x1x128xf32> to vector<1x128xf32>
    %41 = vector.shape_cast %38 : vector<1x128xf32> to vector<1x1x128xf32>
    tpu.vector_store %arg7[%c0_51, %c0_52, %c0_53], %41 {strides = array<i32>} : memref<1x2x128xf32, #tpu.memory_space<vmem>>, vector<1x1x128xf32>,
    %42 = arith.mulf %32, %32 : vector<256x128xf32>
    %cst_54 = arith.constant dense<0.000000e+00> : vector<128xf32>
    %43 = vector.multi_reduction <add>, %42, %cst_54 [0] : vector<256x128xf32> to vector<128xf32>
    %44 = vector.shape_cast %43 : vector<128xf32> to vector<1x128xf32>
    %c0_55 = arith.constant 0 : index
    %c1_56 = arith.constant 1 : index
    %c0_57 = arith.constant 0 : index
    %45 = vector.load %arg7[%c0_55, %c1_56, %c0_57] : memref<1x2x128xf32, #tpu.memory_space<vmem>>, vector<1x1x128xf32>
    %46 = vector.shape_cast %45 : vector<1x1x128xf32> to vector<1x128xf32>
    %47 = vector.shape_cast %44 : vector<1x128xf32> to vector<1x1x128xf32>
    tpu.vector_store %arg7[%c0_55, %c1_56, %c0_57], %47 {strides = array<i32>} : memref<1x2x128xf32, #tpu.memory_space<vmem>>, vector<1x1x128xf32>,
    return
  }
  func.func @transform_0(%arg0: i32) -> (i32, i32, i32, i32) {
    %c0_i32 = arith.constant 0 : i32
    %c0_i32_0 = arith.constant 0 : i32
    %c0_i32_1 = arith.constant 0 : i32
    %c0_i32_2 = arith.constant 0 : i32
    return %arg0, %c0_i32, %c0_i32_0, %c0_i32_1 : i32, i32, i32, i32
  }
  func.func @transform_1(%arg0: i32) -> (i32, i32) {
    %c0_i32 = arith.constant 0 : i32
    %c0_i32_0 = arith.constant 0 : i32
    %c0_i32_1 = arith.constant 0 : i32
    return %c0_i32, %c0_i32_0 : i32, i32
  }
  func.func @transform_2(%arg0: i32) -> (i32, i32) {
    %c0_i32 = arith.constant 0 : i32
    %c0_i32_0 = arith.constant 0 : i32
    %c0_i32_1 = arith.constant 0 : i32
    return %c0_i32, %c0_i32_0 : i32, i32
  }
  func.func @transform_3(%arg0: i32) -> (i32, i32, i32, i32) {
    %c0_i32 = arith.constant 0 : i32
    %c0_i32_0 = arith.constant 0 : i32
    %c0_i32_1 = arith.constant 0 : i32
    %c0_i32_2 = arith.constant 0 : i32
    %c0_i32_3 = arith.constant 0 : i32
    return %c0_i32, %c0_i32_0, %c0_i32_1, %c0_i32_2 : i32, i32, i32, i32
  }
  func.func @transform_4(%arg0: i32) -> (i32, i32) {
    %c0_i32 = arith.constant 0 : i32
    %c0_i32_0 = arith.constant 0 : i32
    %c0_i32_1 = arith.constant 0 : i32
    return %c0_i32, %c0_i32_0 : i32, i32
  }
  func.func @transform_5(%arg0: i32) -> (i32, i32, i32, i32) {
    %c0_i32 = arith.constant 0 : i32
    %c0_i32_0 = arith.constant 0 : i32
    %c0_i32_1 = arith.constant 0 : i32
    %c0_i32_2 = arith.constant 0 : i32
    return %arg0, %c0_i32, %c0_i32_0, %c0_i32_1 : i32, i32, i32, i32
  }
  func.func @transform_6(%arg0: i32) -> (i32, i32, i32) {
    %c0_i32 = arith.constant 0 : i32
    %c0_i32_0 = arith.constant 0 : i32
    %c0_i32_1 = arith.constant 0 : i32
    return %arg0, %c0_i32, %c0_i32_0 : i32, i32, i32
  }
}

</mosaic_0001>

<llo_original>
// kernel: double_conv_bn_forward.5
$region0: #{double_conv_bn_forward.5}
  #allocation0 [shape = 'u32[]', space=smem, size = 0x4, offset = 0x4, fixed_abs, tag = 'smem constant byte address 0x4 - core index']
  #allocation1 [shape = 'u32[72,128]{1,0:T(1,128)}', space=vmem, size = 0x9000, scoped, tag = 'internal scratch']
  %s0 = inlined_call_operand.vmem [shape: f32[2,16,16,128], index: 0, kind: input, shape index: {}]
  %s1 = inlined_call_operand.vmem [shape: f32[1,128], index: 1, kind: input, shape index: {}]
  %s2 = inlined_call_operand.vmem [shape: f32[1,128], index: 2, kind: input, shape index: {}]
  %s3 = inlined_call_operand.vmem [shape: f32[2,16,16,128], index: 3, kind: output, shape index: {}]
  %s4 = sld [smem:[#allocation0]]
  $region45: #{double_conv_bn_forward.5} parent=0
    _
  %s6 = ssub.s32 1, %s4
  %s7 = scalar_select 0, %s6, %s4
  loop: start=0, step=1, limit=4
  $region2: #{double_conv_bn_forward.5} parent=0 // loop_pre_header
    _
  $region3: #{double_conv_bn_forward.5} parent=0 // loop_header
    %s9 = sphi 0, %s13
    %p10 = scmp.ge.s32.totalorder %s9, 4
    %s19 = sphi 0, %s21
    %s22 = sphi 0, %s19
    %s23 = sphi 0, %s22
    %s39 = sphi 0, %s23
    %s43 = sphi 0, %s43
    %s45 = sphi 0, %s43
    %s46 = sphi 0, %s45
    %s60 = sphi 0, %s46
    %s64 = sphi 0, %s64
    %s66 = sphi 0, %s64
    %s67 = sphi 0, %s66
    %s81 = sphi 0, %s67
    %s87 = sphi 0, %s89
    %s90 = sphi 0, %s87
    %s91 = sphi 0, %s90
    %s107 = sphi 0, %s91
  $region4: #{double_conv_bn_forward.5} parent=0 // loop_header_branch
    %12 = sbr.rel (%p10) target = $region8
  $region5: #{double_conv_bn_forward.5} parent=0 // loop_body
    %s14 = ssub.s32 %s9, 1
    %s15 = ssub.s32 %s9, 2
    %s16 = sadd.s32 %s9, 1
    %s17 = ssub.s32 %s9, %s16
    %p18 = scmp.eq.s32.totalorder %s17, 0
    %s20 = sadd.s32 %s19, 1
    %s21 = scalar_select %p18, %s19, %s20
    %p24 = pneg %p18
    %p25 = scmp.eq.s32.totalorder %s9, 1
    %p26 = por %p24, %p25
    %p27 = scmp.ne.s32.totalorder %s19, %s22
    %p28 = scmp.eq.s32.totalorder %s9, 0
    %p29 = por %p27, %p28
    %p30 = scmp.ne.s32.totalorder %s19, %s22
    %p31 = scmp.eq.s32.totalorder %s14, 1
    %p32 = por %p30, %p31
    %p33 = scmp.ne.s32.totalorder %s22, %s23
    %p34 = scmp.eq.s32.totalorder %s14, 0
    %p35 = por %p33, %p34
    %p36 = scmp.ne.s32.totalorder %s22, %s23
    %p37 = scmp.eq.s32.totalorder %s15, 1
    %p38 = por %p36, %p37
    %p40 = scmp.ne.s32.totalorder %s23, %s39
    %p41 = scmp.eq.s32.totalorder %s15, 0
    %p42 = por %p40, %p41
    %s44 = sadd.s32 %s43, 1
    %p47 = scmp.eq.s32.totalorder %s9, 1
    %p48 = scmp.ne.s32.totalorder %s43, %s45
    %p49 = scmp.eq.s32.totalorder %s9, 0
    %p50 = por %p48, %p49
    %p51 = scmp.ne.s32.totalorder %s43, %s45
    %p52 = scmp.eq.s32.totalorder %s14, 1
    %p53 = por %p51, %p52
    %p54 = scmp.ne.s32.totalorder %s45, %s46
    %p55 = scmp.eq.s32.totalorder %s14, 0
    %p56 = por %p54, %p55
    %p57 = scmp.ne.s32.totalorder %s45, %s46
    %p58 = scmp.eq.s32.totalorder %s15, 1
    %p59 = por %p57, %p58
    %p61 = scmp.ne.s32.totalorder %s46, %s60
    %p62 = scmp.eq.s32.totalorder %s15, 0
    %p63 = por %p61, %p62
    %s65 = sadd.s32 %s64, 1
    %p68 = scmp.eq.s32.totalorder %s9, 1
    %p69 = scmp.ne.s32.totalorder %s64, %s66
    %p70 = scmp.eq.s32.totalorder %s9, 0
    %p71 = por %p69, %p70
    %p72 = scmp.ne.s32.totalorder %s64, %s66
    %p73 = scmp.eq.s32.totalorder %s14, 1
    %p74 = por %p72, %p73
    %p75 = scmp.ne.s32.totalorder %s66, %s67
    %p76 = scmp.eq.s32.totalorder %s14, 0
    %p77 = por %p75, %p76
    %p78 = scmp.ne.s32.totalorder %s66, %s67
    %p79 = scmp.eq.s32.totalorder %s15, 1
    %p80 = por %p78, %p79
    %p82 = scmp.ne.s32.totalorder %s67, %s81
    %p83 = scmp.eq.s32.totalorder %s15, 0
    %p84 = por %p82, %p83
    %s85 = ssub.s32 %s9, %s16
    %p86 = scmp.eq.s32.totalorder %s85, 0
    %s88 = sadd.s32 %s87, 1
    %s89 = scalar_select %p86, %s87, %s88
    %p92 = pneg %p86
    %p93 = scmp.eq.s32.totalorder %s9, 1
    %p94 = por %p92, %p93
    %p95 = scmp.ne.s32.totalorder %s87, %s90
    %p96 = scmp.eq.s32.totalorder %s9, 0
    %p97 = por %p95, %p96
    %p98 = scmp.ne.s32.totalorder %s87, %s90
    %p99 = scmp.eq.s32.totalorder %s14, 1
    %p100 = por %p98, %p99
    %p101 = scmp.ne.s32.totalorder %s90, %s91
    %p102 = scmp.eq.s32.totalorder %s14, 0
    %p103 = por %p101, %p102
    %p104 = scmp.ne.s32.totalorder %s90, %s91
    %p105 = scmp.eq.s32.totalorder %s15, 1
    %p106 = por %p104, %p105
    %p108 = scmp.ne.s32.totalorder %s91, %s107
    %p109 = scmp.eq.s32.totalorder %s15, 0
    %p110 = por %p108, %p109
    %p111 = scmp.le.s32.totalorder 1, %s9
    %p112 = scmp.lt.s32.totalorder %s9, 3
    %p113 = pnand %p111, %p112
    %p114 = pneg %p113
    // Predicated region
    $region9: #{double_conv_bn_forward.5} parent=5 // pred_check
      _
    $region10: #{double_conv_bn_forward.5} parent=5 // pred_check_branch
      %116 = sbr.rel (%p113) target = $region12
    $region11: #{double_conv_bn_forward.5} parent=5 // pred_region
      %s117 = ssub.s32 %s9, 1
      // Predicated region
      $region13: #{double_conv_bn_forward.5} parent=11 // pred_check
        %p118 = pneg %p56
      $region14: #{double_conv_bn_forward.5} parent=11 // pred_check_branch
        %120 = sbr.rel (%p118) target = $region16
      $region15: #{double_conv_bn_forward.5} parent=11 // pred_region
        _
      $region16: #{double_conv_bn_forward.5} parent=11 // pred_fallthru
        _
      // Predicated region
      $region17: #{double_conv_bn_forward.5} parent=11 // pred_check
        %p121 = pneg %p77
      $region18: #{double_conv_bn_forward.5} parent=11 // pred_check_branch
        %123 = sbr.rel (%p121) target = $region20
      $region19: #{double_conv_bn_forward.5} parent=11 // pred_region
        _
      $region20: #{double_conv_bn_forward.5} parent=11 // pred_fallthru
        _
    $region12: #{double_conv_bn_forward.5} parent=5 // pred_fallthru
      _
    %p124 = scmp.lt.s32.totalorder %s9, 2
    // Predicated region
    $region21: #{double_conv_bn_forward.5} parent=5 // pred_check
      %p125 = pneg %p124
    $region22: #{double_conv_bn_forward.5} parent=5 // pred_check_branch
      %127 = sbr.rel (%p125) target = $region24
    $region23: #{double_conv_bn_forward.5} parent=5 // pred_region
      // Predicated region
      $region25: #{double_conv_bn_forward.5} parent=23 // pred_check
        %p128 = pneg %p29
      $region26: #{double_conv_bn_forward.5} parent=23 // pred_check_branch
        %130 = sbr.rel (%p128) target = $region28
      $region27: #{double_conv_bn_forward.5} parent=23 // pred_region
        %p131 = scmp.lt.s32.totalorder %s9, 1
        %s132 = scalar_select %p131, %s9, 1
        %s133 = smul.addr %s132, 32
        %s134 = smul.addr %s133, 8
        %s135 = scalar_lea.vmem %s0, %s134
      $region28: #{double_conv_bn_forward.5} parent=23 // pred_fallthru
        _
    $region24: #{double_conv_bn_forward.5} parent=5 // pred_fallthru
      _
    %p136 = scmp.le.s32.totalorder 1, %s9
    %p137 = scmp.lt.s32.totalorder %s9, 3
    %p138 = pnand %p136, %p137
    %p139 = pneg %p138
    // Predicated region
    $region29: #{double_conv_bn_forward.5} parent=5 // pred_check
      _
    $region30: #{double_conv_bn_forward.5} parent=5 // pred_check_branch
      %141 = sbr.rel (%p138) target = $region32
    $region31: #{double_conv_bn_forward.5} parent=5 // pred_region
      %s142 = ssub.s32 %s9, 1
      %p143 = scmp.lt.s32.totalorder %s14, 1
      %s144 = scalar_select %p143, %s14, 1
      %s145 = smul.addr %s144, 32
      %s146 = smul.addr %s145, 8
      %s147 = scalar_lea.vmem %s0, %s146
      %p148 = pneg %p35
      %p149 = pneg %p32
      %p150 = pneg %p56
      %p151 = pneg %p53
      %p152 = pneg %p77
      %p153 = pneg %p74
      %p154 = pneg %p103
      %p155 = pneg %p100
      %p156 = scmp.lt.s32.totalorder %s14, 1
      %s157 = scalar_select %p156, %s14, 1
      %s158 = smul.addr %s157, 32
      %s159 = smul.addr %s158, 8
      %s160 = scalar_lea.vmem %s3, %s159
      %p161 = scmp.lt.s32.totalorder %s14, 1
      %s162 = scalar_select %p161, %s14, 1
      %s163 = smul.addr %s162, 32
      %s164 = smul.addr %s163, 8
      %s165 = scalar_lea.vmem %s0, %s164
      %p166 = scmp.lt.s32.totalorder %s14, 1
      %s167 = scalar_select %p166, %s14, 1
      %s168 = smul.addr %s167, 32
      %s169 = smul.addr %s168, 8
      %s170 = scalar_lea.vmem %s3, %s169
      %v171 = vld [vmem:[%s165] sm:$0xff]
      %v172 = vld [vmem:[%s165 + $0x8] sm:$0xff]
      %v173 = vld [vmem:[%s165 + $0x10] sm:$0xff]
      %v174 = vld [vmem:[%s165 + $0x18] sm:$0xff]
      %v175 = vld [vmem:[%s165 + $0x20] sm:$0xff]
      %v176 = vld [vmem:[%s165 + $0x28] sm:$0xff]
      %v177 = vld [vmem:[%s165 + $0x30] sm:$0xff]
      %v178 = vld [vmem:[%s165 + $0x38] sm:$0xff]
      %v179 = vld [vmem:[%s165 + $0x40] sm:$0xff]
      %v180 = vld [vmem:[%s165 + $0x48] sm:$0xff]
      %v181 = vld [vmem:[%s165 + $0x50] sm:$0xff]
      %v182 = vld [vmem:[%s165 + $0x58] sm:$0xff]
      %v183 = vld [vmem:[%s165 + $0x60] sm:$0xff]
      %v184 = vld [vmem:[%s165 + $0x68] sm:$0xff]
      %v185 = vld [vmem:[%s165 + $0x70] sm:$0xff]
      %v186 = vld [vmem:[%s165 + $0x78] sm:$0xff]
      %v187 = vld [vmem:[%s165 + $0x80] sm:$0xff]
      %v188 = vld [vmem:[%s165 + $0x88] sm:$0xff]
      %v189 = vld [vmem:[%s165 + $0x90] sm:$0xff]
      %v190 = vld [vmem:[%s165 + $0x98] sm:$0xff]
      %v191 = vld [vmem:[%s165 + $0xa0] sm:$0xff]
      %v192 = vld [vmem:[%s165 + $0xa8] sm:$0xff]
      %v193 = vld [vmem:[%s165 + $0xb0] sm:$0xff]
      %v194 = vld [vmem:[%s165 + $0xb8] sm:$0xff]
      %v195 = vld [vmem:[%s165 + $0xc0] sm:$0xff]
      %v196 = vld [vmem:[%s165 + $0xc8] sm:$0xff]
      %v197 = vld [vmem:[%s165 + $0xd0] sm:$0xff]
      %v198 = vld [vmem:[%s165 + $0xd8] sm:$0xff]
      %v199 = vld [vmem:[%s165 + $0xe0] sm:$0xff]
      %v200 = vld [vmem:[%s165 + $0xe8] sm:$0xff]
      %v201 = vld [vmem:[%s165 + $0xf0] sm:$0xff]
      %v202 = vld [vmem:[%s165 + $0xf8] sm:$0xff]
      %v203 = vld [vmem:[%s1] sm:$0x1]
      %v205 = vperm.slane %v203, 0
      %v207 = vmul.f32 %v171, %v205
      %v208 = vmul.f32 %v172, %v205
      %v209 = vmul.f32 %v173, %v205
      %v210 = vmul.f32 %v174, %v205
      %v211 = vmul.f32 %v175, %v205
      %v212 = vmul.f32 %v176, %v205
      %v213 = vmul.f32 %v177, %v205
      %v214 = vmul.f32 %v178, %v205
      %v215 = vmul.f32 %v179, %v205
      %v216 = vmul.f32 %v180, %v205
      %v217 = vmul.f32 %v181, %v205
      %v218 = vmul.f32 %v182, %v205
      %v219 = vmul.f32 %v183, %v205
      %v220 = vmul.f32 %v184, %v205
      %v221 = vmul.f32 %v185, %v205
      %v222 = vmul.f32 %v186, %v205
      %v223 = vmul.f32 %v187, %v205
      %v224 = vmul.f32 %v188, %v205
      %v225 = vmul.f32 %v189, %v205
      %v226 = vmul.f32 %v190, %v205
      %v227 = vmul.f32 %v191, %v205
      %v228 = vmul.f32 %v192, %v205
      %v229 = vmul.f32 %v193, %v205
      %v230 = vmul.f32 %v194, %v205
      %v231 = vmul.f32 %v195, %v205
      %v232 = vmul.f32 %v196, %v205
      %v233 = vmul.f32 %v197, %v205
      %v234 = vmul.f32 %v198, %v205
      %v235 = vmul.f32 %v199, %v205
      %v236 = vmul.f32 %v200, %v205
      %v237 = vmul.f32 %v201, %v205
      %v238 = vmul.f32 %v202, %v205
      %v239 = vld [vmem:[%s2] sm:$0x1]
      %v241 = vperm.slane %v239, 0
      %v243 = vadd.f32 %v207, %v241
      %v244 = vadd.f32 %v208, %v241
      %v245 = vadd.f32 %v209, %v241
      %v246 = vadd.f32 %v210, %v241
      %v247 = vadd.f32 %v211, %v241
      %v248 = vadd.f32 %v212, %v241
      %v249 = vadd.f32 %v213, %v241
      %v250 = vadd.f32 %v214, %v241
      %v251 = vadd.f32 %v215, %v241
      %v252 = vadd.f32 %v216, %v241
      %v253 = vadd.f32 %v217, %v241
      %v254 = vadd.f32 %v218, %v241
      %v255 = vadd.f32 %v219, %v241
      %v256 = vadd.f32 %v220, %v241
      %v257 = vadd.f32 %v221, %v241
      %v258 = vadd.f32 %v222, %v241
      %v259 = vadd.f32 %v223, %v241
      %v260 = vadd.f32 %v224, %v241
      %v261 = vadd.f32 %v225, %v241
      %v262 = vadd.f32 %v226, %v241
      %v263 = vadd.f32 %v227, %v241
      %v264 = vadd.f32 %v228, %v241
      %v265 = vadd.f32 %v229, %v241
      %v266 = vadd.f32 %v230, %v241
      %v267 = vadd.f32 %v231, %v241
      %v268 = vadd.f32 %v232, %v241
      %v269 = vadd.f32 %v233, %v241
      %v270 = vadd.f32 %v234, %v241
      %v271 = vadd.f32 %v235, %v241
      %v272 = vadd.f32 %v236, %v241
      %v273 = vadd.f32 %v237, %v241
      %v274 = vadd.f32 %v238, %v241
      %v275 = vmax.f32 %v243, 0.0
      %v276 = vmax.f32 %v244, 0.0
      %v277 = vmax.f32 %v245, 0.0
      %v278 = vmax.f32 %v246, 0.0
      %v279 = vmax.f32 %v247, 0.0
      %v280 = vmax.f32 %v248, 0.0
      %v281 = vmax.f32 %v249, 0.0
      %v282 = vmax.f32 %v250, 0.0
      %v283 = vmax.f32 %v251, 0.0
      %v284 = vmax.f32 %v252, 0.0
      %v285 = vmax.f32 %v253, 0.0
      %v286 = vmax.f32 %v254, 0.0
      %v287 = vmax.f32 %v255, 0.0
      %v288 = vmax.f32 %v256, 0.0
      %v289 = vmax.f32 %v257, 0.0
      %v290 = vmax.f32 %v258, 0.0
      %v291 = vmax.f32 %v259, 0.0
      %v292 = vmax.f32 %v260, 0.0
      %v293 = vmax.f32 %v261, 0.0
      %v294 = vmax.f32 %v262, 0.0
      %v295 = vmax.f32 %v263, 0.0
      %v296 = vmax.f32 %v264, 0.0
      %v297 = vmax.f32 %v265, 0.0
      %v298 = vmax.f32 %v266, 0.0
      %v299 = vmax.f32 %v267, 0.0
      %v300 = vmax.f32 %v268, 0.0
      %v301 = vmax.f32 %v269, 0.0
      %v302 = vmax.f32 %v270, 0.0
      %v303 = vmax.f32 %v271, 0.0
      %v304 = vmax.f32 %v272, 0.0
      %v305 = vmax.f32 %v273, 0.0
      %v306 = vmax.f32 %v274, 0.0
      %307 = vst [vmem:[%s170] sm:$0xff] %v275
      %308 = vst [vmem:[%s170 + $0x8] sm:$0xff] %v276
      %309 = vst [vmem:[%s170 + $0x10] sm:$0xff] %v277
      %310 = vst [vmem:[%s170 + $0x18] sm:$0xff] %v278
      %311 = vst [vmem:[%s170 + $0x20] sm:$0xff] %v279
      %312 = vst [vmem:[%s170 + $0x28] sm:$0xff] %v280
      %313 = vst [vmem:[%s170 + $0x30] sm:$0xff] %v281
      %314 = vst [vmem:[%s170 + $0x38] sm:$0xff] %v282
      %315 = vst [vmem:[%s170 + $0x40] sm:$0xff] %v283
      %316 = vst [vmem:[%s170 + $0x48] sm:$0xff] %v284
      %317 = vst [vmem:[%s170 + $0x50] sm:$0xff] %v285
      %318 = vst [vmem:[%s170 + $0x58] sm:$0xff] %v286
      %319 = vst [vmem:[%s170 + $0x60] sm:$0xff] %v287
      %320 = vst [vmem:[%s170 + $0x68] sm:$0xff] %v288
      %321 = vst [vmem:[%s170 + $0x70] sm:$0xff] %v289
      %322 = vst [vmem:[%s170 + $0x78] sm:$0xff] %v290
      %323 = vst [vmem:[%s170 + $0x80] sm:$0xff] %v291
      %324 = vst [vmem:[%s170 + $0x88] sm:$0xff] %v292
      %325 = vst [vmem:[%s170 + $0x90] sm:$0xff] %v293
      %326 = vst [vmem:[%s170 + $0x98] sm:$0xff] %v294
      %327 = vst [vmem:[%s170 + $0xa0] sm:$0xff] %v295
      %328 = vst [vmem:[%s170 + $0xa8] sm:$0xff] %v296
      %329 = vst [vmem:[%s170 + $0xb0] sm:$0xff] %v297
      %330 = vst [vmem:[%s170 + $0xb8] sm:$0xff] %v298
      %331 = vst [vmem:[%s170 + $0xc0] sm:$0xff] %v299
      %332 = vst [vmem:[%s170 + $0xc8] sm:$0xff] %v300
      %333 = vst [vmem:[%s170 + $0xd0] sm:$0xff] %v301
      %334 = vst [vmem:[%s170 + $0xd8] sm:$0xff] %v302
      %335 = vst [vmem:[%s170 + $0xe0] sm:$0xff] %v303
      %336 = vst [vmem:[%s170 + $0xe8] sm:$0xff] %v304
      %337 = vst [vmem:[%s170 + $0xf0] sm:$0xff] %v305
      %338 = vst [vmem:[%s170 + $0xf8] sm:$0xff] %v306
      %p339 = scmp.lt.s32.totalorder %s14, 1
      %s340 = scalar_select %p339, %s14, 1
      %s341 = smul.addr %s340, 32
      %s342 = smul.addr %s341, 8
      %s343 = scalar_lea.vmem %s3, %s342
      // Predicated region
      $region33: #{double_conv_bn_forward.5} parent=31 // pred_check
        %p344 = pneg %p100
      $region34: #{double_conv_bn_forward.5} parent=31 // pred_check_branch
        %346 = sbr.rel (%p344) target = $region36
      $region35: #{double_conv_bn_forward.5} parent=31 // pred_region
        _
      $region36: #{double_conv_bn_forward.5} parent=31 // pred_fallthru
        _
    $region32: #{double_conv_bn_forward.5} parent=5 // pred_fallthru
      _
    %p347 = scmp.le.s32.totalorder 2, %s9
    // Predicated region
    $region37: #{double_conv_bn_forward.5} parent=5 // pred_check
      %p348 = pneg %p347
    $region38: #{double_conv_bn_forward.5} parent=5 // pred_check_branch
      %350 = sbr.rel (%p348) target = $region40
    $region39: #{double_conv_bn_forward.5} parent=5 // pred_region
      %s351 = ssub.s32 %s9, 2
      // Predicated region
      $region41: #{double_conv_bn_forward.5} parent=39 // pred_check
        %p352 = pneg %p106
      $region42: #{double_conv_bn_forward.5} parent=39 // pred_check_branch
        %354 = sbr.rel (%p352) target = $region44
      $region43: #{double_conv_bn_forward.5} parent=39 // pred_region
        %p355 = scmp.lt.s32.totalorder %s15, 1
        %s356 = scalar_select %p355, %s15, 1
        %s357 = smul.addr %s356, 32
        %s358 = smul.addr %s357, 8
        %s359 = scalar_lea.vmem %s3, %s358
      $region44: #{double_conv_bn_forward.5} parent=39 // pred_fallthru
        _
    $region40: #{double_conv_bn_forward.5} parent=5 // pred_fallthru
      _
  $region6: #{double_conv_bn_forward.5} parent=0 // loop_footer
    %s13 = sadd.s32 1, %s9
  $region7: #{double_conv_bn_forward.5} parent=0 // loop_footer_branch
    %8 = sbr.rel target = $region3
  $region8: #{double_conv_bn_forward.5} parent=0 // loop_exit
    _

// kernel: double_conv_bn_forward.3
$region0: #{double_conv_bn_forward.3}
  #allocation0 [shape = 'u32[]', space=smem, size = 0x4, offset = 0x4, fixed_abs, tag = 'smem constant byte address 0x4 - core index']
  #allocation1 [shape = 'u32[72,128]{1,0:T(1,128)}', space=vmem, size = 0x9000, scoped, tag = 'internal scratch']
  #allocation2 [shape = 'bf16[18,18,128]{2,1,0:T(8,128)(2,1)}', space=vmem, size = 0x1b000, scoped, tag = 'scratch operand']
  %s0 = inlined_call_operand.vmem [shape: f32[2,16,16,128], index: 0, kind: input, shape index: {}]
  %s1 = inlined_call_operand.vmem [shape: f32[1,128], index: 1, kind: input, shape index: {}, may-alias: {1,2}]
  %s2 = inlined_call_operand.vmem [shape: f32[1,128], index: 2, kind: input, shape index: {}, may-alias: {1,2}]
  %s3 = inlined_call_operand.vmem [shape: bf16[3,3,128,128], index: 3, kind: input, shape index: {}]
  %s4 = inlined_call_operand.vmem [shape: f32[1,128], index: 4, kind: input, shape index: {}]
  %s5 = inlined_call_operand.vmem [shape: f32[2,16,16,128], index: 5, kind: output, shape index: {0}]
  %s6 = inlined_call_operand.vmem [shape: f32[2,2,128], index: 6, kind: output, shape index: {1}]
  %7 = xla_tuple %s5, %s6
  %s8 = sld [smem:[#allocation0]]
  $region61: #{double_conv_bn_forward.3} parent=0
    _
  %s10 = ssub.s32 1, %s8
  %s11 = scalar_select 0, %s10, %s8
  loop: start=0, step=1, limit=4
  $region2: #{double_conv_bn_forward.3} parent=0 // loop_pre_header
    _
  $region3: #{double_conv_bn_forward.3} parent=0 // loop_header
    %s13 = sphi 0, %s17
    %p14 = scmp.ge.s32.totalorder %s13, 4
    %s23 = sphi 0, %s25
    %s26 = sphi 0, %s23
    %s27 = sphi 0, %s26
    %s43 = sphi 0, %s27
    %s47 = sphi 0, %s47
    %s49 = sphi 0, %s47
    %s50 = sphi 0, %s49
    %s64 = sphi 0, %s50
    %s68 = sphi 0, %s68
    %s70 = sphi 0, %s68
    %s71 = sphi 0, %s70
    %s85 = sphi 0, %s71
    %s89 = sphi 0, %s89
    %s91 = sphi 0, %s89
    %s92 = sphi 0, %s91
    %s106 = sphi 0, %s92
    %s110 = sphi 0, %s110
    %s112 = sphi 0, %s110
    %s113 = sphi 0, %s112
    %s127 = sphi 0, %s113
    %s133 = sphi 0, %s135
    %s136 = sphi 0, %s133
    %s137 = sphi 0, %s136
    %s153 = sphi 0, %s137
    %s159 = sphi 0, %s161
    %s162 = sphi 0, %s159
    %s163 = sphi 0, %s162
    %s179 = sphi 0, %s163
  $region4: #{double_conv_bn_forward.3} parent=0 // loop_header_branch
    %16 = sbr.rel (%p14) target = $region8
  $region5: #{double_conv_bn_forward.3} parent=0 // loop_body
    %s18 = ssub.s32 %s13, 1
    %s19 = ssub.s32 %s13, 2
    %s20 = sadd.s32 %s13, 1
    %s21 = ssub.s32 %s13, %s20
    %p22 = scmp.eq.s32.totalorder %s21, 0
    %s24 = sadd.s32 %s23, 1
    %s25 = scalar_select %p22, %s23, %s24
    %p28 = pneg %p22
    %p29 = scmp.eq.s32.totalorder %s13, 1
    %p30 = por %p28, %p29
    %p31 = scmp.ne.s32.totalorder %s23, %s26
    %p32 = scmp.eq.s32.totalorder %s13, 0
    %p33 = por %p31, %p32
    %p34 = scmp.ne.s32.totalorder %s23, %s26
    %p35 = scmp.eq.s32.totalorder %s18, 1
    %p36 = por %p34, %p35
    %p37 = scmp.ne.s32.totalorder %s26, %s27
    %p38 = scmp.eq.s32.totalorder %s18, 0
    %p39 = por %p37, %p38
    %p40 = scmp.ne.s32.totalorder %s26, %s27
    %p41 = scmp.eq.s32.totalorder %s19, 1
    %p42 = por %p40, %p41
    %p44 = scmp.ne.s32.totalorder %s27, %s43
    %p45 = scmp.eq.s32.totalorder %s19, 0
    %p46 = por %p44, %p45
    %s48 = sadd.s32 %s47, 1
    %p51 = scmp.eq.s32.totalorder %s13, 1
    %p52 = scmp.ne.s32.totalorder %s47, %s49
    %p53 = scmp.eq.s32.totalorder %s13, 0
    %p54 = por %p52, %p53
    %p55 = scmp.ne.s32.totalorder %s47, %s49
    %p56 = scmp.eq.s32.totalorder %s18, 1
    %p57 = por %p55, %p56
    %p58 = scmp.ne.s32.totalorder %s49, %s50
    %p59 = scmp.eq.s32.totalorder %s18, 0
    %p60 = por %p58, %p59
    %p61 = scmp.ne.s32.totalorder %s49, %s50
    %p62 = scmp.eq.s32.totalorder %s19, 1
    %p63 = por %p61, %p62
    %p65 = scmp.ne.s32.totalorder %s50, %s64
    %p66 = scmp.eq.s32.totalorder %s19, 0
    %p67 = por %p65, %p66
    %s69 = sadd.s32 %s68, 1
    %p72 = scmp.eq.s32.totalorder %s13, 1
    %p73 = scmp.ne.s32.totalorder %s68, %s70
    %p74 = scmp.eq.s32.totalorder %s13, 0
    %p75 = por %p73, %p74
    %p76 = scmp.ne.s32.totalorder %s68, %s70
    %p77 = scmp.eq.s32.totalorder %s18, 1
    %p78 = por %p76, %p77
    %p79 = scmp.ne.s32.totalorder %s70, %s71
    %p80 = scmp.eq.s32.totalorder %s18, 0
    %p81 = por %p79, %p80
    %p82 = scmp.ne.s32.totalorder %s70, %s71
    %p83 = scmp.eq.s32.totalorder %s19, 1
    %p84 = por %p82, %p83
    %p86 = scmp.ne.s32.totalorder %s71, %s85
    %p87 = scmp.eq.s32.totalorder %s19, 0
    %p88 = por %p86, %p87
    %s90 = sadd.s32 %s89, 1
    %p93 = scmp.eq.s32.totalorder %s13, 1
    %p94 = scmp.ne.s32.totalorder %s89, %s91
    %p95 = scmp.eq.s32.totalorder %s13, 0
    %p96 = por %p94, %p95
    %p97 = scmp.ne.s32.totalorder %s89, %s91
    %p98 = scmp.eq.s32.totalorder %s18, 1
    %p99 = por %p97, %p98
    %p100 = scmp.ne.s32.totalorder %s91, %s92
    %p101 = scmp.eq.s32.totalorder %s18, 0
    %p102 = por %p100, %p101
    %p103 = scmp.ne.s32.totalorder %s91, %s92
    %p104 = scmp.eq.s32.totalorder %s19, 1
    %p105 = por %p103, %p104
    %p107 = scmp.ne.s32.totalorder %s92, %s106
    %p108 = scmp.eq.s32.totalorder %s19, 0
    %p109 = por %p107, %p108
    %s111 = sadd.s32 %s110, 1
    %p114 = scmp.eq.s32.totalorder %s13, 1
    %p115 = scmp.ne.s32.totalorder %s110, %s112
    %p116 = scmp.eq.s32.totalorder %s13, 0
    %p117 = por %p115, %p116
    %p118 = scmp.ne.s32.totalorder %s110, %s112
    %p119 = scmp.eq.s32.totalorder %s18, 1
    %p120 = por %p118, %p119
    %p121 = scmp.ne.s32.totalorder %s112, %s113
    %p122 = scmp.eq.s32.totalorder %s18, 0
    %p123 = por %p121, %p122
    %p124 = scmp.ne.s32.totalorder %s112, %s113
    %p125 = scmp.eq.s32.totalorder %s19, 1
    %p126 = por %p124, %p125
    %p128 = scmp.ne.s32.totalorder %s113, %s127
    %p129 = scmp.eq.s32.totalorder %s19, 0
    %p130 = por %p128, %p129
    %s131 = ssub.s32 %s13, %s20
    %p132 = scmp.eq.s32.totalorder %s131, 0
    %s134 = sadd.s32 %s133, 1
    %s135 = scalar_select %p132, %s133, %s134
    %p138 = pneg %p132
    %p139 = scmp.eq.s32.totalorder %s13, 1
    %p140 = por %p138, %p139
    %p141 = scmp.ne.s32.totalorder %s133, %s136
    %p142 = scmp.eq.s32.totalorder %s13, 0
    %p143 = por %p141, %p142
    %p144 = scmp.ne.s32.totalorder %s133, %s136
    %p145 = scmp.eq.s32.totalorder %s18, 1
    %p146 = por %p144, %p145
    %p147 = scmp.ne.s32.totalorder %s136, %s137
    %p148 = scmp.eq.s32.totalorder %s18, 0
    %p149 = por %p147, %p148
    %p150 = scmp.ne.s32.totalorder %s136, %s137
    %p151 = scmp.eq.s32.totalorder %s19, 1
    %p152 = por %p150, %p151
    %p154 = scmp.ne.s32.totalorder %s137, %s153
    %p155 = scmp.eq.s32.totalorder %s19, 0
    %p156 = por %p154, %p155
    %s157 = ssub.s32 %s13, %s20
    %p158 = scmp.eq.s32.totalorder %s157, 0
    %s160 = sadd.s32 %s159, 1
    %s161 = scalar_select %p158, %s159, %s160
    %p164 = pneg %p158
    %p165 = scmp.eq.s32.totalorder %s13, 1
    %p166 = por %p164, %p165
    %p167 = scmp.ne.s32.totalorder %s159, %s162
    %p168 = scmp.eq.s32.totalorder %s13, 0
    %p169 = por %p167, %p168
    %p170 = scmp.ne.s32.totalorder %s159, %s162
    %p171 = scmp.eq.s32.totalorder %s18, 1
    %p172 = por %p170, %p171
    %p173 = scmp.ne.s32.totalorder %s162, %s163
    %p174 = scmp.eq.s32.totalorder %s18, 0
    %p175 = por %p173, %p174
    %p176 = scmp.ne.s32.totalorder %s162, %s163
    %p177 = scmp.eq.s32.totalorder %s19, 1
    %p178 = por %p176, %p177
    %p180 = scmp.ne.s32.totalorder %s163, %s179
    %p181 = scmp.eq.s32.totalorder %s19, 0
    %p182 = por %p180, %p181
    %p183 = scmp.le.s32.totalorder 1, %s13
    %p184 = scmp.lt.s32.totalorder %s13, 3
    %p185 = pnand %p183, %p184
    %p186 = pneg %p185
    // Predicated region
    $region9: #{double_conv_bn_forward.3} parent=5 // pred_check
      _
    $region10: #{double_conv_bn_forward.3} parent=5 // pred_check_branch
      %188 = sbr.rel (%p185) target = $region12
    $region11: #{double_conv_bn_forward.3} parent=5 // pred_region
      %s189 = ssub.s32 %s13, 1
      // Predicated region
      $region13: #{double_conv_bn_forward.3} parent=11 // pred_check
        %p190 = pneg %p60
      $region14: #{double_conv_bn_forward.3} parent=11 // pred_check_branch
        %192 = sbr.rel (%p190) target = $region16
      $region15: #{double_conv_bn_forward.3} parent=11 // pred_region
        _
      $region16: #{double_conv_bn_forward.3} parent=11 // pred_fallthru
        _
      // Predicated region
      $region17: #{double_conv_bn_forward.3} parent=11 // pred_check
        %p193 = pneg %p81
      $region18: #{double_conv_bn_forward.3} parent=11 // pred_check_branch
        %195 = sbr.rel (%p193) target = $region20
      $region19: #{double_conv_bn_forward.3} parent=11 // pred_region
        _
      $region20: #{double_conv_bn_forward.3} parent=11 // pred_fallthru
        _
      // Predicated region
      $region21: #{double_conv_bn_forward.3} parent=11 // pred_check
        %p196 = pneg %p102
      $region22: #{double_conv_bn_forward.3} parent=11 // pred_check_branch
        %198 = sbr.rel (%p196) target = $region24
      $region23: #{double_conv_bn_forward.3} parent=11 // pred_region
        _
      $region24: #{double_conv_bn_forward.3} parent=11 // pred_fallthru
        _
      // Predicated region
      $region25: #{double_conv_bn_forward.3} parent=11 // pred_check
        %p199 = pneg %p123
      $region26: #{double_conv_bn_forward.3} parent=11 // pred_check_branch
        %201 = sbr.rel (%p199) target = $region28
      $region27: #{double_conv_bn_forward.3} parent=11 // pred_region
        _
      $region28: #{double_conv_bn_forward.3} parent=11 // pred_fallthru
        _
    $region12: #{double_conv_bn_forward.3} parent=5 // pred_fallthru
      _
    %p202 = scmp.lt.s32.totalorder %s13, 2
    // Predicated region
    $region29: #{double_conv_bn_forward.3} parent=5 // pred_check
      %p203 = pneg %p202
    $region30: #{double_conv_bn_forward.3} parent=5 // pred_check_branch
      %205 = sbr.rel (%p203) target = $region32
    $region31: #{double_conv_bn_forward.3} parent=5 // pred_region
      // Predicated region
      $region33: #{double_conv_bn_forward.3} parent=31 // pred_check
        %p206 = pneg %p33
      $region34: #{double_conv_bn_forward.3} parent=31 // pred_check_branch
        %208 = sbr.rel (%p206) target = $region36
      $region35: #{double_conv_bn_forward.3} parent=31 // pred_region
        %p209 = scmp.lt.s32.totalorder %s13, 1
        %s210 = scalar_select %p209, %s13, 1
        %s211 = smul.addr %s210, 32
        %s212 = smul.addr %s211, 8
        %s213 = scalar_lea.vmem %s0, %s212
      $region36: #{double_conv_bn_forward.3} parent=31 // pred_fallthru
        _
    $region32: #{double_conv_bn_forward.3} parent=5 // pred_fallthru
      _
    %p214 = scmp.le.s32.totalorder 1, %s13
    %p215 = scmp.lt.s32.totalorder %s13, 3
    %p216 = pnand %p214, %p215
    %p217 = pneg %p216
    // Predicated region
    $region37: #{double_conv_bn_forward.3} parent=5 // pred_check
      _
    $region38: #{double_conv_bn_forward.3} parent=5 // pred_check_branch
      %219 = sbr.rel (%p216) target = $region40
    $region39: #{double_conv_bn_forward.3} parent=5 // pred_region
      %s220 = ssub.s32 %s13, 1
      %p221 = scmp.lt.s32.totalorder %s18, 1
      %s222 = scalar_select %p221, %s18, 1
      %s223 = smul.addr %s222, 32
      %s224 = smul.addr %s223, 8
      %s225 = scalar_lea.vmem %s0, %s224
      %p226 = pneg %p39
      %p227 = pneg %p36
      %p228 = pneg %p60
      %p229 = pneg %p57
      %p230 = pneg %p81
      %p231 = pneg %p78
      %p232 = pneg %p102
      %p233 = pneg %p99
      %p234 = pneg %p123
      %p235 = pneg %p120
      %p236 = pneg %p149
      %p237 = pneg %p146
      %p238 = scmp.lt.s32.totalorder %s18, 1
      %s239 = scalar_select %p238, %s18, 1
      %s240 = smul.addr %s239, 32
      %s241 = smul.addr %s240, 8
      %s242 = scalar_lea.vmem %s5, %s241
      %p243 = pneg %p175
      %p244 = pneg %p172
      %p245 = scmp.lt.s32.totalorder %s18, 1
      %s246 = scalar_select %p245, %s18, 1
      %s247 = smul.addr %s246, 2
      %s248 = scalar_lea.vmem %s6, %s247
      %p249 = scmp.lt.s32.totalorder %s18, 1
      %s250 = scalar_select %p249, %s18, 1
      %s251 = smul.addr %s250, 32
      %s252 = smul.addr %s251, 8
      %s253 = scalar_lea.vmem %s0, %s252
      %p254 = scmp.lt.s32.totalorder %s18, 1
      %s255 = scalar_select %p254, %s18, 1
      %s256 = smul.addr %s255, 32
      %s257 = smul.addr %s256, 8
      %s258 = scalar_lea.vmem %s5, %s257
      %p259 = scmp.lt.s32.totalorder %s18, 1
      %s260 = scalar_select %p259, %s18, 1
      %s261 = smul.addr %s260, 2
      %s262 = scalar_lea.vmem %s6, %s261
      %v264 = vld [vmem:[%s253] sm:$0xff]
      %v265 = vld [vmem:[%s253 + $0x8] sm:$0xff]
      %v266 = vld [vmem:[%s253 + $0x10] sm:$0xff]
      %v267 = vld [vmem:[%s253 + $0x18] sm:$0xff]
      %v268 = vld [vmem:[%s253 + $0x20] sm:$0xff]
      %v269 = vld [vmem:[%s253 + $0x28] sm:$0xff]
      %v270 = vld [vmem:[%s253 + $0x30] sm:$0xff]
      %v271 = vld [vmem:[%s253 + $0x38] sm:$0xff]
      %v272 = vld [vmem:[%s253 + $0x40] sm:$0xff]
      %v273 = vld [vmem:[%s253 + $0x48] sm:$0xff]
      %v274 = vld [vmem:[%s253 + $0x50] sm:$0xff]
      %v275 = vld [vmem:[%s253 + $0x58] sm:$0xff]
      %v276 = vld [vmem:[%s253 + $0x60] sm:$0xff]
      %v277 = vld [vmem:[%s253 + $0x68] sm:$0xff]
      %v278 = vld [vmem:[%s253 + $0x70] sm:$0xff]
      %v279 = vld [vmem:[%s253 + $0x78] sm:$0xff]
      %v280 = vld [vmem:[%s253 + $0x80] sm:$0xff]
      %v281 = vld [vmem:[%s253 + $0x88] sm:$0xff]
      %v282 = vld [vmem:[%s253 + $0x90] sm:$0xff]
      %v283 = vld [vmem:[%s253 + $0x98] sm:$0xff]
      %v284 = vld [vmem:[%s253 + $0xa0] sm:$0xff]
      %v285 = vld [vmem:[%s253 + $0xa8] sm:$0xff]
      %v286 = vld [vmem:[%s253 + $0xb0] sm:$0xff]
      %v287 = vld [vmem:[%s253 + $0xb8] sm:$0xff]
      %v288 = vld [vmem:[%s253 + $0xc0] sm:$0xff]
      %v289 = vld [vmem:[%s253 + $0xc8] sm:$0xff]
      %v290 = vld [vmem:[%s253 + $0xd0] sm:$0xff]
      %v291 = vld [vmem:[%s253 + $0xd8] sm:$0xff]
      %v292 = vld [vmem:[%s253 + $0xe0] sm:$0xff]
      %v293 = vld [vmem:[%s253 + $0xe8] sm:$0xff]
      %v294 = vld [vmem:[%s253 + $0xf0] sm:$0xff]
      %v295 = vld [vmem:[%s253 + $0xf8] sm:$0xff]
      %v296 = vpack.c.bf16 %v264, %v264
      %v297 = vpack.c.bf16 %v265, %v265
      %v298 = vpack.c.bf16 %v266, %v266
      %v299 = vpack.c.bf16 %v267, %v267
      %v300 = vpack.c.bf16 %v268, %v268
      %v301 = vpack.c.bf16 %v269, %v269
      %v302 = vpack.c.bf16 %v270, %v270
      %v303 = vpack.c.bf16 %v271, %v271
      %v304 = vpack.c.bf16 %v272, %v272
      %v305 = vpack.c.bf16 %v273, %v273
      %v306 = vpack.c.bf16 %v274, %v274
      %v307 = vpack.c.bf16 %v275, %v275
      %v308 = vpack.c.bf16 %v276, %v276
      %v309 = vpack.c.bf16 %v277, %v277
      %v310 = vpack.c.bf16 %v278, %v278
      %v311 = vpack.c.bf16 %v279, %v279
      %v312 = vpack.c.bf16 %v280, %v280
      %v313 = vpack.c.bf16 %v281, %v281
      %v314 = vpack.c.bf16 %v282, %v282
      %v315 = vpack.c.bf16 %v283, %v283
      %v316 = vpack.c.bf16 %v284, %v284
      %v317 = vpack.c.bf16 %v285, %v285
      %v318 = vpack.c.bf16 %v286, %v286
      %v319 = vpack.c.bf16 %v287, %v287
      %v320 = vpack.c.bf16 %v288, %v288
      %v321 = vpack.c.bf16 %v289, %v289
      %v322 = vpack.c.bf16 %v290, %v290
      %v323 = vpack.c.bf16 %v291, %v291
      %v324 = vpack.c.bf16 %v292, %v292
      %v325 = vpack.c.bf16 %v293, %v293
      %v326 = vpack.c.bf16 %v294, %v294
      %v327 = vpack.c.bf16 %v295, %v295
      %328 = vst [vmem:[#allocation2] sm:$0xf] 0
      %329 = vst [vmem:[#allocation2 + $0x4] sm:$0xf] 0
      %330 = vst [vmem:[#allocation2 + $0x8] sm:$0x1] 0
      %331 = vst [vmem:[#allocation2 + $0xc] sm:$0xf] 0
      %332 = vst [vmem:[#allocation2 + $0x10] sm:$0xf] 0
      %333 = vst [vmem:[#allocation2 + $0x14] sm:$0x1] 0
      %334 = vst [vmem:[#allocation2 + $0x18] sm:$0xf] 0
      %335 = vst [vmem:[#allocation2 + $0x1c] sm:$0xf] 0
      %336 = vst [vmem:[#allocation2 + $0x20] sm:$0x1] 0
      %337 = vst [vmem:[#allocation2 + $0x24] sm:$0xf] 0
      %338 = vst [vmem:[#allocation2 + $0x28] sm:$0xf] 0
      %339 = vst [vmem:[#allocation2 + $0x2c] sm:$0x1] 0
      %340 = vst [vmem:[#allocation2 + $0x30] sm:$0xf] 0
      %341 = vst [vmem:[#allocation2 + $0x34] sm:$0xf] 0
      %342 = vst [vmem:[#allocation2 + $0x38] sm:$0x1] 0
      %343 = vst [vmem:[#allocation2 + $0x3c] sm:$0xf] 0
      %344 = vst [vmem:[#allocation2 + $0x40] sm:$0xf] 0
      %345 = vst [vmem:[#allocation2 + $0x44] sm:$0x1] 0
      %346 = vst [vmem:[#allocation2 + $0x48] sm:$0xf] 0
      %347 = vst [vmem:[#allocation2 + $0x4c] sm:$0xf] 0
      %348 = vst [vmem:[#allocation2 + $0x50] sm:$0x1] 0
      %349 = vst [vmem:[#allocation2 + $0x54] sm:$0xf] 0
      %350 = vst [vmem:[#allocation2 + $0x58] sm:$0xf] 0
      %351 = vst [vmem:[#allocation2 + $0x5c] sm:$0x1] 0
      %352 = vst [vmem:[#allocation2 + $0x60] sm:$0xf] 0
      %353 = vst [vmem:[#allocation2 + $0x64] sm:$0xf] 0
      %354 = vst [vmem:[#allocation2 + $0x68] sm:$0x1] 0
      %355 = vst [vmem:[#allocation2 + $0x6c] sm:$0xf] 0
      %356 = vst [vmem:[#allocation2 + $0x70] sm:$0xf] 0
      %357 = vst [vmem:[#allocation2 + $0x74] sm:$0x1] 0
      %358 = vst [vmem:[#allocation2 + $0x78] sm:$0xf] 0
      %359 = vst [vmem:[#allocation2 + $0x7c] sm:$0xf] 0
      %360 = vst [vmem:[#allocation2 + $0x80] sm:$0x1] 0
      %361 = vst [vmem:[#allocation2 + $0x84] sm:$0xf] 0
      %362 = vst [vmem:[#allocation2 + $0x88] sm:$0xf] 0
      %363 = vst [vmem:[#allocation2 + $0x8c] sm:$0x1] 0
      %364 = vst [vmem:[#allocation2 + $0x90] sm:$0xf] 0
      %365 = vst [vmem:[#allocation2 + $0x94] sm:$0xf] 0
      %366 = vst [vmem:[#allocation2 + $0x98] sm:$0x1] 0
      %367 = vst [vmem:[#allocation2 + $0x9c] sm:$0xf] 0
      %368 = vst [vmem:[#allocation2 + $0xa0] sm:$0xf] 0
      %369 = vst [vmem:[#allocation2 + $0xa4] sm:$0x1] 0
      %370 = vst [vmem:[#allocation2 + $0xa8] sm:$0xf] 0
      %371 = vst [vmem:[#allocation2 + $0xac] sm:$0xf] 0
      %372 = vst [vmem:[#allocation2 + $0xb0] sm:$0x1] 0
      %373 = vst [vmem:[#allocation2 + $0xb4] sm:$0xf] 0
      %374 = vst [vmem:[#allocation2 + $0xb8] sm:$0xf] 0
      %375 = vst [vmem:[#allocation2 + $0xbc] sm:$0x1] 0
      %376 = vst [vmem:[#allocation2 + $0xc0] sm:$0xf] 0
      %377 = vst [vmem:[#allocation2 + $0xc4] sm:$0xf] 0
      %378 = vst [vmem:[#allocation2 + $0xc8] sm:$0x1] 0
      %379 = vst [vmem:[#allocation2 + $0xcc] sm:$0xf] 0
      %380 = vst [vmem:[#allocation2 + $0xd0] sm:$0xf] 0
      %381 = vst [vmem:[#allocation2 + $0xd4] sm:$0x1] 0
      %vm382 = vsmask.f32 256
      %vm383 = vsmask.f32 4368
      %vm384 = vmor %vm382, %vm383
      %v386 = vshrl.u32 %v296, 16
      %v388 = vrot.slane %v386, 7
      %v389 = vshll.u32 %v296, 16
      %v391 = vor.u32 %v388, %v389
      %v392 = vrot.slane %v388, 4
      %v394 = vshrl.u32 %v297, 16
      %v396 = vrot.slane %v394, 7
      %v397 = vshll.u32 %v297, 16
      %v399 = vor.u32 %v396, %v397
      %v400 = vsel %vm384, %v392, %v399
      %v401 = vrot.slane %v396, 4
      %v403 = vshrl.u32 %v298, 16
      %v405 = vrot.slane %v403, 7
      %v406 = vshll.u32 %v298, 16
      %v408 = vor.u32 %v405, %v406
      %v409 = vrot.slane %v405, 4
      %v411 = vshrl.u32 %v299, 16
      %v413 = vrot.slane %v411, 7
      %v414 = vshll.u32 %v299, 16
      %v416 = vor.u32 %v413, %v414
      %v417 = vsel %vm384, %v409, %v416
      %v418 = vrot.slane %v413, 4
      %v420 = vshrl.u32 %v300, 16
      %v422 = vrot.slane %v420, 7
      %v423 = vshll.u32 %v300, 16
      %v425 = vor.u32 %v422, %v423
      %v426 = vrot.slane %v422, 4
      %v428 = vshrl.u32 %v301, 16
      %v430 = vrot.slane %v428, 7
      %v431 = vshll.u32 %v301, 16
      %v433 = vor.u32 %v430, %v431
      %v434 = vsel %vm384, %v426, %v433
      %v435 = vrot.slane %v430, 4
      %v437 = vshrl.u32 %v302, 16
      %v439 = vrot.slane %v437, 7
      %v440 = vshll.u32 %v302, 16
      %v442 = vor.u32 %v439, %v440
      %v443 = vrot.slane %v439, 4
      %v445 = vshrl.u32 %v303, 16
      %v447 = vrot.slane %v445, 7
      %v448 = vshll.u32 %v303, 16
      %v450 = vor.u32 %v447, %v448
      %v451 = vsel %vm384, %v443, %v450
      %v452 = vrot.slane %v447, 4
      %v454 = vshrl.u32 %v304, 16
      %v456 = vrot.slane %v454, 7
      %v457 = vshll.u32 %v304, 16
      %v459 = vor.u32 %v456, %v457
      %v460 = vrot.slane %v456, 4
      %v462 = vshrl.u32 %v305, 16
      %v464 = vrot.slane %v462, 7
      %v465 = vshll.u32 %v305, 16
      %v467 = vor.u32 %v464, %v465
      %v468 = vsel %vm384, %v460, %v467
      %v469 = vrot.slane %v464, 4
      %v471 = vshrl.u32 %v306, 16
      %v473 = vrot.slane %v471, 7
      %v474 = vshll.u32 %v306, 16
      %v476 = vor.u32 %v473, %v474
      %v477 = vrot.slane %v473, 4
      %v479 = vshrl.u32 %v307, 16
      %v481 = vrot.slane %v479, 7
      %v482 = vshll.u32 %v307, 16
      %v484 = vor.u32 %v481, %v482
      %v485 = vsel %vm384, %v477, %v484
      %v486 = vrot.slane %v481, 4
      %v488 = vshrl.u32 %v308, 16
      %v490 = vrot.slane %v488, 7
      %v491 = vshll.u32 %v308, 16
      %v493 = vor.u32 %v490, %v491
      %v494 = vrot.slane %v490, 4
      %v496 = vshrl.u32 %v309, 16
      %v498 = vrot.slane %v496, 7
      %v499 = vshll.u32 %v309, 16
      %v501 = vor.u32 %v498, %v499
      %v502 = vsel %vm384, %v494, %v501
      %v503 = vrot.slane %v498, 4
      %v505 = vshrl.u32 %v310, 16
      %v507 = vrot.slane %v505, 7
      %v508 = vshll.u32 %v310, 16
      %v510 = vor.u32 %v507, %v508
      %v511 = vrot.slane %v507, 4
      %v513 = vshrl.u32 %v311, 16
      %v515 = vrot.slane %v513, 7
      %v516 = vshll.u32 %v311, 16
      %v518 = vor.u32 %v515, %v516
      %v519 = vsel %vm384, %v511, %v518
      %v520 = vrot.slane %v515, 4
      %v522 = vshrl.u32 %v312, 16
      %v524 = vrot.slane %v522, 7
      %v525 = vshll.u32 %v312, 16
      %v527 = vor.u32 %v524, %v525
      %v528 = vrot.slane %v524, 4
      %v530 = vshrl.u32 %v313, 16
      %v532 = vrot.slane %v530, 7
      %v533 = vshll.u32 %v313, 16
      %v535 = vor.u32 %v532, %v533
      %v536 = vsel %vm384, %v528, %v535
      %v537 = vrot.slane %v532, 4
      %v539 = vshrl.u32 %v314, 16
      %v541 = vrot.slane %v539, 7
      %v542 = vshll.u32 %v314, 16
      %v544 = vor.u32 %v541, %v542
      %v545 = vrot.slane %v541, 4
      %v547 = vshrl.u32 %v315, 16
      %v549 = vrot.slane %v547, 7
      %v550 = vshll.u32 %v315, 16
      %v552 = vor.u32 %v549, %v550
      %v553 = vsel %vm384, %v545, %v552
      %v554 = vrot.slane %v549, 4
      %v556 = vshrl.u32 %v316, 16
      %v558 = vrot.slane %v556, 7
      %v559 = vshll.u32 %v316, 16
      %v561 = vor.u32 %v558, %v559
      %v562 = vrot.slane %v558, 4
      %v564 = vshrl.u32 %v317, 16
      %v566 = vrot.slane %v564, 7
      %v567 = vshll.u32 %v317, 16
      %v569 = vor.u32 %v566, %v567
      %v570 = vsel %vm384, %v562, %v569
      %v571 = vrot.slane %v566, 4
      %v573 = vshrl.u32 %v318, 16
      %v575 = vrot.slane %v573, 7
      %v576 = vshll.u32 %v318, 16
      %v578 = vor.u32 %v575, %v576
      %v579 = vrot.slane %v575, 4
      %v581 = vshrl.u32 %v319, 16
      %v583 = vrot.slane %v581, 7
      %v584 = vshll.u32 %v319, 16
      %v586 = vor.u32 %v583, %v584
      %v587 = vsel %vm384, %v579, %v586
      %v588 = vrot.slane %v583, 4
      %v590 = vshrl.u32 %v320, 16
      %v592 = vrot.slane %v590, 7
      %v593 = vshll.u32 %v320, 16
      %v595 = vor.u32 %v592, %v593
      %v596 = vrot.slane %v592, 4
      %v598 = vshrl.u32 %v321, 16
      %v600 = vrot.slane %v598, 7
      %v601 = vshll.u32 %v321, 16
      %v603 = vor.u32 %v600, %v601
      %v604 = vsel %vm384, %v596, %v603
      %v605 = vrot.slane %v600, 4
      %v607 = vshrl.u32 %v322, 16
      %v609 = vrot.slane %v607, 7
      %v610 = vshll.u32 %v322, 16
      %v612 = vor.u32 %v609, %v610
      %v613 = vrot.slane %v609, 4
      %v615 = vshrl.u32 %v323, 16
      %v617 = vrot.slane %v615, 7
      %v618 = vshll.u32 %v323, 16
      %v620 = vor.u32 %v617, %v618
      %v621 = vsel %vm384, %v613, %v620
      %v622 = vrot.slane %v617, 4
      %v624 = vshrl.u32 %v324, 16
      %v626 = vrot.slane %v624, 7
      %v627 = vshll.u32 %v324, 16
      %v629 = vor.u32 %v626, %v627
      %v630 = vrot.slane %v626, 4
      %v632 = vshrl.u32 %v325, 16
      %v634 = vrot.slane %v632, 7
      %v635 = vshll.u32 %v325, 16
      %v637 = vor.u32 %v634, %v635
      %v638 = vsel %vm384, %v630, %v637
      %v639 = vrot.slane %v634, 4
      %v641 = vshrl.u32 %v326, 16
      %v643 = vrot.slane %v641, 7
      %v644 = vshll.u32 %v326, 16
      %v646 = vor.u32 %v643, %v644
      %v647 = vrot.slane %v643, 4
      %v649 = vshrl.u32 %v327, 16
      %v651 = vrot.slane %v649, 7
      %v652 = vshll.u32 %v327, 16
      %v654 = vor.u32 %v651, %v652
      %v655 = vsel %vm384, %v647, %v654
      %v656 = vrot.slane %v651, 4
      %s705 = scalar_lea.vmem [#allocation2], 12
      %vm706 = vcmask 1043456
      %vm707 = vsmask.f32 7938
      %vm708 = vmand %vm706, %vm707
      %v709 = vld [vmem:[%s705] sm:$0xf]
      %v710 = vsel %vm708, %v391, %v709
      %711 = vst [vmem:[%s705] sm:$0xf] %v710
      %712 = vst [vmem:[%s705 + $0x4] sm:$0xf] %v400
      %vm713 = vcmask 1040384
      %vm714 = vmand %vm713, %vm382
      %v715 = vld [vmem:[%s705 + $0x8] sm:$0x1]
      %v716 = vsel %vm714, %v401, %v715
      %717 = vst [vmem:[%s705 + $0x8] sm:$0x1] %v716
      %v718 = vld [vmem:[%s705 + $0xc] sm:$0xf]
      %v719 = vsel %vm708, %v408, %v718
      %720 = vst [vmem:[%s705 + $0xc] sm:$0xf] %v719
      %721 = vst [vmem:[%s705 + $0x10] sm:$0xf] %v417
      %v722 = vld [vmem:[%s705 + $0x14] sm:$0x1]
      %v723 = vsel %vm714, %v418, %v722
      %724 = vst [vmem:[%s705 + $0x14] sm:$0x1] %v723
      %v725 = vld [vmem:[%s705 + $0x18] sm:$0xf]
      %v726 = vsel %vm708, %v425, %v725
      %727 = vst [vmem:[%s705 + $0x18] sm:$0xf] %v726
      %728 = vst [vmem:[%s705 + $0x1c] sm:$0xf] %v434
      %v729 = vld [vmem:[%s705 + $0x20] sm:$0x1]
      %v730 = vsel %vm714, %v435, %v729
      %731 = vst [vmem:[%s705 + $0x20] sm:$0x1] %v730
      %v732 = vld [vmem:[%s705 + $0x24] sm:$0xf]
      %v733 = vsel %vm708, %v442, %v732
      %734 = vst [vmem:[%s705 + $0x24] sm:$0xf] %v733
      %735 = vst [vmem:[%s705 + $0x28] sm:$0xf] %v451
      %v736 = vld [vmem:[%s705 + $0x2c] sm:$0x1]
      %v737 = vsel %vm714, %v452, %v736
      %738 = vst [vmem:[%s705 + $0x2c] sm:$0x1] %v737
      %v739 = vld [vmem:[%s705 + $0x30] sm:$0xf]
      %v740 = vsel %vm708, %v459, %v739
      %741 = vst [vmem:[%s705 + $0x30] sm:$0xf] %v740
      %742 = vst [vmem:[%s705 + $0x34] sm:$0xf] %v468
      %v743 = vld [vmem:[%s705 + $0x38] sm:$0x1]
      %v744 = vsel %vm714, %v469, %v743
      %745 = vst [vmem:[%s705 + $0x38] sm:$0x1] %v744
      %v746 = vld [vmem:[%s705 + $0x3c] sm:$0xf]
      %v747 = vsel %vm708, %v476, %v746
      %748 = vst [vmem:[%s705 + $0x3c] sm:$0xf] %v747
      %749 = vst [vmem:[%s705 + $0x40] sm:$0xf] %v485
      %v750 = vld [vmem:[%s705 + $0x44] sm:$0x1]
      %v751 = vsel %vm714, %v486, %v750
      %752 = vst [vmem:[%s705 + $0x44] sm:$0x1] %v751
      %v753 = vld [vmem:[%s705 + $0x48] sm:$0xf]
      %v754 = vsel %vm708, %v493, %v753
      %755 = vst [vmem:[%s705 + $0x48] sm:$0xf] %v754
      %756 = vst [vmem:[%s705 + $0x4c] sm:$0xf] %v502
      %v757 = vld [vmem:[%s705 + $0x50] sm:$0x1]
      %v758 = vsel %vm714, %v503, %v757
      %759 = vst [vmem:[%s705 + $0x50] sm:$0x1] %v758
      %v760 = vld [vmem:[%s705 + $0x54] sm:$0xf]
      %v761 = vsel %vm708, %v510, %v760
      %762 = vst [vmem:[%s705 + $0x54] sm:$0xf] %v761
      %763 = vst [vmem:[%s705 + $0x58] sm:$0xf] %v519
      %v764 = vld [vmem:[%s705 + $0x5c] sm:$0x1]
      %v765 = vsel %vm714, %v520, %v764
      %766 = vst [vmem:[%s705 + $0x5c] sm:$0x1] %v765
      %v767 = vld [vmem:[%s705 + $0x60] sm:$0xf]
      %v768 = vsel %vm708, %v527, %v767
      %769 = vst [vmem:[%s705 + $0x60] sm:$0xf] %v768
      %770 = vst [vmem:[%s705 + $0x64] sm:$0xf] %v536
      %v771 = vld [vmem:[%s705 + $0x68] sm:$0x1]
      %v772 = vsel %vm714, %v537, %v771
      %773 = vst [vmem:[%s705 + $0x68] sm:$0x1] %v772
      %v774 = vld [vmem:[%s705 + $0x6c] sm:$0xf]
      %v775 = vsel %vm708, %v544, %v774
      %776 = vst [vmem:[%s705 + $0x6c] sm:$0xf] %v775
      %777 = vst [vmem:[%s705 + $0x70] sm:$0xf] %v553
      %v778 = vld [vmem:[%s705 + $0x74] sm:$0x1]
      %v779 = vsel %vm714, %v554, %v778
      %780 = vst [vmem:[%s705 + $0x74] sm:$0x1] %v779
      %v781 = vld [vmem:[%s705 + $0x78] sm:$0xf]
      %v782 = vsel %vm708, %v561, %v781
      %783 = vst [vmem:[%s705 + $0x78] sm:$0xf] %v782
      %784 = vst [vmem:[%s705 + $0x7c] sm:$0xf] %v570
      %v785 = vld [vmem:[%s705 + $0x80] sm:$0x1]
      %v786 = vsel %vm714, %v571, %v785
      %787 = vst [vmem:[%s705 + $0x80] sm:$0x1] %v786
      %v788 = vld [vmem:[%s705 + $0x84] sm:$0xf]
      %v789 = vsel %vm708, %v578, %v788
      %790 = vst [vmem:[%s705 + $0x84] sm:$0xf] %v789
      %791 = vst [vmem:[%s705 + $0x88] sm:$0xf] %v587
      %v792 = vld [vmem:[%s705 + $0x8c] sm:$0x1]
      %v793 = vsel %vm714, %v588, %v792
      %794 = vst [vmem:[%s705 + $0x8c] sm:$0x1] %v793
      %v795 = vld [vmem:[%s705 + $0x90] sm:$0xf]
      %v796 = vsel %vm708, %v595, %v795
      %797 = vst [vmem:[%s705 + $0x90] sm:$0xf] %v796
      %798 = vst [vmem:[%s705 + $0x94] sm:$0xf] %v604
      %v799 = vld [vmem:[%s705 + $0x98] sm:$0x1]
      %v800 = vsel %vm714, %v605, %v799
      %801 = vst [vmem:[%s705 + $0x98] sm:$0x1] %v800
      %v802 = vld [vmem:[%s705 + $0x9c] sm:$0xf]
      %v803 = vsel %vm708, %v612, %v802
      %804 = vst [vmem:[%s705 + $0x9c] sm:$0xf] %v803
      %805 = vst [vmem:[%s705 + $0xa0] sm:$0xf] %v621
      %v806 = vld [vmem:[%s705 + $0xa4] sm:$0x1]
      %v807 = vsel %vm714, %v622, %v806
      %808 = vst [vmem:[%s705 + $0xa4] sm:$0x1] %v807
      %v809 = vld [vmem:[%s705 + $0xa8] sm:$0xf]
      %v810 = vsel %vm708, %v629, %v809
      %811 = vst [vmem:[%s705 + $0xa8] sm:$0xf] %v810
      %812 = vst [vmem:[%s705 + $0xac] sm:$0xf] %v638
      %v813 = vld [vmem:[%s705 + $0xb0] sm:$0x1]
      %v814 = vsel %vm714, %v639, %v813
      %815 = vst [vmem:[%s705 + $0xb0] sm:$0x1] %v814
      %v816 = vld [vmem:[%s705 + $0xb4] sm:$0xf]
      %v817 = vsel %vm708, %v646, %v816
      %818 = vst [vmem:[%s705 + $0xb4] sm:$0xf] %v817
      %819 = vst [vmem:[%s705 + $0xb8] sm:$0xf] %v655
      %v820 = vld [vmem:[%s705 + $0xbc] sm:$0x1]
      %v821 = vsel %vm714, %v656, %v820
      %822 = vst [vmem:[%s705 + $0xbc] sm:$0x1] %v821
      %v823 = vld [vmem:[#allocation2] sm:$0xf]
      %v824 = vld [vmem:[#allocation2 + $0x4] sm:$0xf]
      %v825 = vld [vmem:[#allocation2 + $0xc] sm:$0xf]
      %v826 = vld [vmem:[#allocation2 + $0x10] sm:$0xf]
      %v827 = vld [vmem:[#allocation2 + $0x18] sm:$0xf]
      %v828 = vld [vmem:[#allocation2 + $0x1c] sm:$0xf]
      %v829 = vld [vmem:[#allocation2 + $0x24] sm:$0xf]
      %v830 = vld [vmem:[#allocation2 + $0x28] sm:$0xf]
      %v831 = vld [vmem:[#allocation2 + $0x30] sm:$0xf]
      %v832 = vld [vmem:[#allocation2 + $0x34] sm:$0xf]
      %v833 = vld [vmem:[#allocation2 + $0x3c] sm:$0xf]
      %v834 = vld [vmem:[#allocation2 + $0x40] sm:$0xf]
      %v835 = vld [vmem:[#allocation2 + $0x48] sm:$0xf]
      %v836 = vld [vmem:[#allocation2 + $0x4c] sm:$0xf]
      %v837 = vld [vmem:[#allocation2 + $0x54] sm:$0xf]
      %v838 = vld [vmem:[#allocation2 + $0x58] sm:$0xf]
      %v839 = vld [vmem:[#allocation2 + $0x60] sm:$0xf]
      %v840 = vld [vmem:[#allocation2 + $0x64] sm:$0xf]
      %v841 = vld [vmem:[#allocation2 + $0x6c] sm:$0xf]
      %v842 = vld [vmem:[#allocation2 + $0x70] sm:$0xf]
      %v843 = vld [vmem:[#allocation2 + $0x78] sm:$0xf]
      %v844 = vld [vmem:[#allocation2 + $0x7c] sm:$0xf]
      %v845 = vld [vmem:[#allocation2 + $0x84] sm:$0xf]
      %v846 = vld [vmem:[#allocation2 + $0x88] sm:$0xf]
      %v847 = vld [vmem:[#allocation2 + $0x90] sm:$0xf]
      %v848 = vld [vmem:[#allocation2 + $0x94] sm:$0xf]
      %v849 = vld [vmem:[#allocation2 + $0x9c] sm:$0xf]
      %v850 = vld [vmem:[#allocation2 + $0xa0] sm:$0xf]
      %v851 = vld [vmem:[#allocation2 + $0xa8] sm:$0xf]
      %v852 = vld [vmem:[#allocation2 + $0xac] sm:$0xf]
      %v853 = vld [vmem:[#allocation2 + $0xb4] sm:$0xf]
      %v854 = vld [vmem:[#allocation2 + $0xb8] sm:$0xf]
      %v855 = vld [vmem:[#allocation2 + $0x8] sm:$0x1]
      %v856 = vld [vmem:[#allocation2 + $0x14] sm:$0x1]
      %v857 = vld [vmem:[#allocation2 + $0x20] sm:$0x1]
      %v858 = vld [vmem:[#allocation2 + $0x2c] sm:$0x1]
      %v859 = vld [vmem:[#allocation2 + $0x38] sm:$0x1]
      %v860 = vld [vmem:[#allocation2 + $0x44] sm:$0x1]
      %v861 = vld [vmem:[#allocation2 + $0x50] sm:$0x1]
      %v862 = vld [vmem:[#allocation2 + $0x5c] sm:$0x1]
      %v863 = vld [vmem:[#allocation2 + $0x68] sm:$0x1]
      %v864 = vld [vmem:[#allocation2 + $0x74] sm:$0x1]
      %v865 = vld [vmem:[#allocation2 + $0x80] sm:$0x1]
      %v866 = vld [vmem:[#allocation2 + $0x8c] sm:$0x1]
      %v867 = vld [vmem:[#allocation2 + $0x98] sm:$0x1]
      %v868 = vld [vmem:[#allocation2 + $0xa4] sm:$0x1]
      %v869 = vld [vmem:[#allocation2 + $0xb0] sm:$0x1]
      %v870 = vld [vmem:[#allocation2 + $0xbc] sm:$0x1]
      %v871 = vld [vmem:[#allocation2] sm:$0xe]
      %v872 = vld [vmem:[#allocation2 + $0xc] sm:$0xe]
      %v873 = vld [vmem:[#allocation2 + $0x18] sm:$0xe]
      %v874 = vld [vmem:[#allocation2 + $0x24] sm:$0xe]
      %v875 = vld [vmem:[#allocation2 + $0x30] sm:$0xe]
      %v876 = vld [vmem:[#allocation2 + $0x3c] sm:$0xe]
      %v877 = vld [vmem:[#allocation2 + $0x48] sm:$0xe]
      %v878 = vld [vmem:[#allocation2 + $0x54] sm:$0xe]
      %v879 = vld [vmem:[#allocation2 + $0x60] sm:$0xe]
      %v880 = vld [vmem:[#allocation2 + $0x6c] sm:$0xe]
      %v881 = vld [vmem:[#allocation2 + $0x78] sm:$0xe]
      %v882 = vld [vmem:[#allocation2 + $0x84] sm:$0xe]
      %v883 = vld [vmem:[#allocation2 + $0x90] sm:$0xe]
      %v884 = vld [vmem:[#allocation2 + $0x9c] sm:$0xe]
      %v885 = vld [vmem:[#allocation2 + $0xa8] sm:$0xe]
      %v886 = vld [vmem:[#allocation2 + $0xb4] sm:$0xe]
      %v887 = vld [vmem:[%s705] sm:$0xf]
      %v888 = vld [vmem:[%s705 + $0x4] sm:$0xf]
      %v889 = vld [vmem:[%s705 + $0xc] sm:$0xf]
      %v890 = vld [vmem:[%s705 + $0x10] sm:$0xf]
      %v891 = vld [vmem:[%s705 + $0x18] sm:$0xf]
      %v892 = vld [vmem:[%s705 + $0x1c] sm:$0xf]
      %v893 = vld [vmem:[%s705 + $0x24] sm:$0xf]
      %v894 = vld [vmem:[%s705 + $0x28] sm:$0xf]
      %v895 = vld [vmem:[%s705 + $0x30] sm:$0xf]
      %v896 = vld [vmem:[%s705 + $0x34] sm:$0xf]
      %v897 = vld [vmem:[%s705 + $0x3c] sm:$0xf]
      %v898 = vld [vmem:[%s705 + $0x40] sm:$0xf]
      %v899 = vld [vmem:[%s705 + $0x48] sm:$0xf]
      %v900 = vld [vmem:[%s705 + $0x4c] sm:$0xf]
      %v901 = vld [vmem:[%s705 + $0x54] sm:$0xf]
      %v902 = vld [vmem:[%s705 + $0x58] sm:$0xf]
      %v903 = vld [vmem:[%s705 + $0x60] sm:$0xf]
      %v904 = vld [vmem:[%s705 + $0x64] sm:$0xf]
      %v905 = vld [vmem:[%s705 + $0x6c] sm:$0xf]
      %v906 = vld [vmem:[%s705 + $0x70] sm:$0xf]
      %v907 = vld [vmem:[%s705 + $0x78] sm:$0xf]
      %v908 = vld [vmem:[%s705 + $0x7c] sm:$0xf]
      %v909 = vld [vmem:[%s705 + $0x84] sm:$0xf]
      %v910 = vld [vmem:[%s705 + $0x88] sm:$0xf]
      %v911 = vld [vmem:[%s705 + $0x90] sm:$0xf]
      %v912 = vld [vmem:[%s705 + $0x94] sm:$0xf]
      %v913 = vld [vmem:[%s705 + $0x9c] sm:$0xf]
      %v914 = vld [vmem:[%s705 + $0xa0] sm:$0xf]
      %v915 = vld [vmem:[%s705 + $0xa8] sm:$0xf]
      %v916 = vld [vmem:[%s705 + $0xac] sm:$0xf]
      %v917 = vld [vmem:[%s705 + $0xb4] sm:$0xf]
      %v918 = vld [vmem:[%s705 + $0xb8] sm:$0xf]
      %v919 = vld [vmem:[%s705 + $0x8] sm:$0x1]
      %v920 = vld [vmem:[%s705 + $0x14] sm:$0x1]
      %v921 = vld [vmem:[%s705 + $0x20] sm:$0x1]
      %v922 = vld [vmem:[%s705 + $0x2c] sm:$0x1]
      %v923 = vld [vmem:[%s705 + $0x38] sm:$0x1]
      %v924 = vld [vmem:[%s705 + $0x44] sm:$0x1]
      %v925 = vld [vmem:[%s705 + $0x50] sm:$0x1]
      %v926 = vld [vmem:[%s705 + $0x5c] sm:$0x1]
      %v927 = vld [vmem:[%s705 + $0x68] sm:$0x1]
      %v928 = vld [vmem:[%s705 + $0x74] sm:$0x1]
      %v929 = vld [vmem:[%s705 + $0x80] sm:$0x1]
      %v930 = vld [vmem:[%s705 + $0x8c] sm:$0x1]
      %v931 = vld [vmem:[%s705 + $0x98] sm:$0x1]
      %v932 = vld [vmem:[%s705 + $0xa4] sm:$0x1]
      %v933 = vld [vmem:[%s705 + $0xb0] sm:$0x1]
      %v934 = vld [vmem:[%s705 + $0xbc] sm:$0x1]
      %v935 = vld [vmem:[%s705] sm:$0xe]
      %v936 = vld [vmem:[%s705 + $0xc] sm:$0xe]
      %v937 = vld [vmem:[%s705 + $0x18] sm:$0xe]
      %v938 = vld [vmem:[%s705 + $0x24] sm:$0xe]
      %v939 = vld [vmem:[%s705 + $0x30] sm:$0xe]
      %v940 = vld [vmem:[%s705 + $0x3c] sm:$0xe]
      %v941 = vld [vmem:[%s705 + $0x48] sm:$0xe]
      %v942 = vld [vmem:[%s705 + $0x54] sm:$0xe]
      %v943 = vld [vmem:[%s705 + $0x60] sm:$0xe]
      %v944 = vld [vmem:[%s705 + $0x6c] sm:$0xe]
      %v945 = vld [vmem:[%s705 + $0x78] sm:$0xe]
      %v946 = vld [vmem:[%s705 + $0x84] sm:$0xe]
      %v947 = vld [vmem:[%s705 + $0x90] sm:$0xe]
      %v948 = vld [vmem:[%s705 + $0x9c] sm:$0xe]
      %v949 = vld [vmem:[%s705 + $0xa8] sm:$0xe]
      %v950 = vld [vmem:[%s705 + $0xb4] sm:$0xe]
      %s951 = scalar_lea.vmem [#allocation2], 24
      %v952 = vld [vmem:[%s951] sm:$0xf]
      %v953 = vld [vmem:[%s951 + $0x4] sm:$0xf]
      %v954 = vld [vmem:[%s951 + $0xc] sm:$0xf]
      %v955 = vld [vmem:[%s951 + $0x10] sm:$0xf]
      %v956 = vld [vmem:[%s951 + $0x18] sm:$0xf]
      %v957 = vld [vmem:[%s951 + $0x1c] sm:$0xf]
      %v958 = vld [vmem:[%s951 + $0x24] sm:$0xf]
      %v959 = vld [vmem:[%s951 + $0x28] sm:$0xf]
      %v960 = vld [vmem:[%s951 + $0x30] sm:$0xf]
      %v961 = vld [vmem:[%s951 + $0x34] sm:$0xf]
      %v962 = vld [vmem:[%s951 + $0x3c] sm:$0xf]
      %v963 = vld [vmem:[%s951 + $0x40] sm:$0xf]
      %v964 = vld [vmem:[%s951 + $0x48] sm:$0xf]
      %v965 = vld [vmem:[%s951 + $0x4c] sm:$0xf]
      %v966 = vld [vmem:[%s951 + $0x54] sm:$0xf]
      %v967 = vld [vmem:[%s951 + $0x58] sm:$0xf]
      %v968 = vld [vmem:[%s951 + $0x60] sm:$0xf]
      %v969 = vld [vmem:[%s951 + $0x64] sm:$0xf]
      %v970 = vld [vmem:[%s951 + $0x6c] sm:$0xf]
      %v971 = vld [vmem:[%s951 + $0x70] sm:$0xf]
      %v972 = vld [vmem:[%s951 + $0x78] sm:$0xf]
      %v973 = vld [vmem:[%s951 + $0x7c] sm:$0xf]
      %v974 = vld [vmem:[%s951 + $0x84] sm:$0xf]
      %v975 = vld [vmem:[%s951 + $0x88] sm:$0xf]
      %v976 = vld [vmem:[%s951 + $0x90] sm:$0xf]
      %v977 = vld [vmem:[%s951 + $0x94] sm:$0xf]
      %v978 = vld [vmem:[%s951 + $0x9c] sm:$0xf]
      %v979 = vld [vmem:[%s951 + $0xa0] sm:$0xf]
      %v980 = vld [vmem:[%s951 + $0xa8] sm:$0xf]
      %v981 = vld [vmem:[%s951 + $0xac] sm:$0xf]
      %v982 = vld [vmem:[%s951 + $0xb4] sm:$0xf]
      %v983 = vld [vmem:[%s951 + $0xb8] sm:$0xf]
      %v984 = vld [vmem:[%s951 + $0x8] sm:$0x1]
      %v985 = vld [vmem:[%s951 + $0x14] sm:$0x1]
      %v986 = vld [vmem:[%s951 + $0x20] sm:$0x1]
      %v987 = vld [vmem:[%s951 + $0x2c] sm:$0x1]
      %v988 = vld [vmem:[%s951 + $0x38] sm:$0x1]
      %v989 = vld [vmem:[%s951 + $0x44] sm:$0x1]
      %v990 = vld [vmem:[%s951 + $0x50] sm:$0x1]
      %v991 = vld [vmem:[%s951 + $0x5c] sm:$0x1]
      %v992 = vld [vmem:[%s951 + $0x68] sm:$0x1]
      %v993 = vld [vmem:[%s951 + $0x74] sm:$0x1]
      %v994 = vld [vmem:[%s951 + $0x80] sm:$0x1]
      %v995 = vld [vmem:[%s951 + $0x8c] sm:$0x1]
      %v996 = vld [vmem:[%s951 + $0x98] sm:$0x1]
      %v997 = vld [vmem:[%s951 + $0xa4] sm:$0x1]
      %v998 = vld [vmem:[%s951 + $0xb0] sm:$0x1]
      %v999 = vld [vmem:[%s951 + $0xbc] sm:$0x1]
      %v1000 = vld [vmem:[%s951] sm:$0xe]
      %v1001 = vld [vmem:[%s951 + $0xc] sm:$0xe]
      %v1002 = vld [vmem:[%s951 + $0x18] sm:$0xe]
      %v1003 = vld [vmem:[%s951 + $0x24] sm:$0xe]
      %v1004 = vld [vmem:[%s951 + $0x30] sm:$0xe]
      %v1005 = vld [vmem:[%s951 + $0x3c] sm:$0xe]
      %v1006 = vld [vmem:[%s951 + $0x48] sm:$0xe]
      %v1007 = vld [vmem:[%s951 + $0x54] sm:$0xe]
      %v1008 = vld [vmem:[%s951 + $0x60] sm:$0xe]
      %v1009 = vld [vmem:[%s951 + $0x6c] sm:$0xe]
      %v1010 = vld [vmem:[%s951 + $0x78] sm:$0xe]
      %v1011 = vld [vmem:[%s951 + $0x84] sm:$0xe]
      %v1012 = vld [vmem:[%s951 + $0x90] sm:$0xe]
      %v1013 = vld [vmem:[%s951 + $0x9c] sm:$0xe]
      %v1014 = vld [vmem:[%s951 + $0xa8] sm:$0xe]
      %v1015 = vld [vmem:[%s951 + $0xb4] sm:$0xe]
      %v1048 = vunpack.c.l.b16 %v823
      %v1049 = vunpack.c.l.b16 %v824
      %v1050 = vunpack.c.l.b16 %v825
      %v1051 = vunpack.c.l.b16 %v826
      %v1052 = vunpack.c.l.b16 %v827
      %v1053 = vunpack.c.l.b16 %v828
      %v1054 = vunpack.c.l.b16 %v829
      %v1055 = vunpack.c.l.b16 %v830
      %v1056 = vunpack.c.l.b16 %v831
      %v1057 = vunpack.c.l.b16 %v832
      %v1058 = vunpack.c.l.b16 %v833
      %v1059 = vunpack.c.l.b16 %v834
      %v1060 = vunpack.c.l.b16 %v835
      %v1061 = vunpack.c.l.b16 %v836
      %v1062 = vunpack.c.l.b16 %v837
      %v1063 = vunpack.c.l.b16 %v838
      %v1064 = vunpack.c.l.b16 %v839
      %v1065 = vunpack.c.l.b16 %v840
      %v1066 = vunpack.c.l.b16 %v841
      %v1067 = vunpack.c.l.b16 %v842
      %v1068 = vunpack.c.l.b16 %v843
      %v1069 = vunpack.c.l.b16 %v844
      %v1070 = vunpack.c.l.b16 %v845
      %v1071 = vunpack.c.l.b16 %v846
      %v1072 = vunpack.c.l.b16 %v847
      %v1073 = vunpack.c.l.b16 %v848
      %v1074 = vunpack.c.l.b16 %v849
      %v1075 = vunpack.c.l.b16 %v850
      %v1076 = vunpack.c.l.b16 %v851
      %v1077 = vunpack.c.l.b16 %v852
      %v1078 = vunpack.c.l.b16 %v853
      %v1079 = vunpack.c.l.b16 %v854
      %v1080 = vpack.c.b16 %v1049, %v1048
      %v1081 = vpack.c.b16 %v1051, %v1050
      %v1082 = vpack.c.b16 %v1053, %v1052
      %v1083 = vpack.c.b16 %v1055, %v1054
      %v1084 = vpack.c.b16 %v1057, %v1056
      %v1085 = vpack.c.b16 %v1059, %v1058
      %v1086 = vpack.c.b16 %v1061, %v1060
      %v1087 = vpack.c.b16 %v1063, %v1062
      %v1088 = vpack.c.b16 %v1065, %v1064
      %v1089 = vpack.c.b16 %v1067, %v1066
      %v1090 = vpack.c.b16 %v1069, %v1068
      %v1091 = vpack.c.b16 %v1071, %v1070
      %v1092 = vpack.c.b16 %v1073, %v1072
      %v1093 = vpack.c.b16 %v1075, %v1074
      %v1094 = vpack.c.b16 %v1077, %v1076
      %v1095 = vpack.c.b16 %v1079, %v1078
      %v1128 = vunpack.c.l.b16 %v855
      %v1129 = vunpack.c.l.b16 %v856
      %v1130 = vunpack.c.l.b16 %v857
      %v1131 = vunpack.c.l.b16 %v858
      %v1132 = vunpack.c.l.b16 %v859
      %v1133 = vunpack.c.l.b16 %v860
      %v1134 = vunpack.c.l.b16 %v861
      %v1135 = vunpack.c.l.b16 %v862
      %v1136 = vunpack.c.l.b16 %v863
      %v1137 = vunpack.c.l.b16 %v864
      %v1138 = vunpack.c.l.b16 %v865
      %v1139 = vunpack.c.l.b16 %v866
      %v1140 = vunpack.c.l.b16 %v867
      %v1141 = vunpack.c.l.b16 %v868
      %v1142 = vunpack.c.l.b16 %v869
      %v1143 = vunpack.c.l.b16 %v870
      %v1144 = vpack.c.b16 %v1128, %v1128
      %v1145 = vpack.c.b16 %v1129, %v1129
      %v1146 = vpack.c.b16 %v1130, %v1130
      %v1147 = vpack.c.b16 %v1131, %v1131
      %v1148 = vpack.c.b16 %v1132, %v1132
      %v1149 = vpack.c.b16 %v1133, %v1133
      %v1150 = vpack.c.b16 %v1134, %v1134
      %v1151 = vpack.c.b16 %v1135, %v1135
      %v1152 = vpack.c.b16 %v1136, %v1136
      %v1153 = vpack.c.b16 %v1137, %v1137
      %v1154 = vpack.c.b16 %v1138, %v1138
      %v1155 = vpack.c.b16 %v1139, %v1139
      %v1156 = vpack.c.b16 %v1140, %v1140
      %v1157 = vpack.c.b16 %v1141, %v1141
      %v1158 = vpack.c.b16 %v1142, %v1142
      %v1159 = vpack.c.b16 %v1143, %v1143
      %vm1160 = vsmask.f32 7424
      %v1162 = vshrl.u32 %v1080, 16
      %v1164 = vshll.u32 %v1080, 16
      %v1166 = vrot.slane %v1164, 1
      %v1167 = vor.u32 %v1162, %v1166
      %v1169 = vshll.u32 %v1144, 16
      %v1171 = vrot.slane %v1169, 1
      %v1172 = vsel %vm1160, %v1167, %v1171
      %v1174 = vshrl.u32 %v1081, 16
      %v1176 = vshll.u32 %v1081, 16
      %v1178 = vrot.slane %v1176, 1
      %v1179 = vor.u32 %v1174, %v1178
      %v1181 = vshll.u32 %v1145, 16
      %v1183 = vrot.slane %v1181, 1
      %v1184 = vsel %vm1160, %v1179, %v1183
      %v1186 = vshrl.u32 %v1082, 16
      %v1188 = vshll.u32 %v1082, 16
      %v1190 = vrot.slane %v1188, 1
      %v1191 = vor.u32 %v1186, %v1190
      %v1193 = vshll.u32 %v1146, 16
      %v1195 = vrot.slane %v1193, 1
      %v1196 = vsel %vm1160, %v1191, %v1195
      %v1198 = vshrl.u32 %v1083, 16
      %v1200 = vshll.u32 %v1083, 16
      %v1202 = vrot.slane %v1200, 1
      %v1203 = vor.u32 %v1198, %v1202
      %v1205 = vshll.u32 %v1147, 16
      %v1207 = vrot.slane %v1205, 1
      %v1208 = vsel %vm1160, %v1203, %v1207
      %v1210 = vshrl.u32 %v1084, 16
      %v1212 = vshll.u32 %v1084, 16
      %v1214 = vrot.slane %v1212, 1
      %v1215 = vor.u32 %v1210, %v1214
      %v1217 = vshll.u32 %v1148, 16
      %v1219 = vrot.slane %v1217, 1
      %v1220 = vsel %vm1160, %v1215, %v1219
      %v1222 = vshrl.u32 %v1085, 16
      %v1224 = vshll.u32 %v1085, 16
      %v1226 = vrot.slane %v1224, 1
      %v1227 = vor.u32 %v1222, %v1226
      %v1229 = vshll.u32 %v1149, 16
      %v1231 = vrot.slane %v1229, 1
      %v1232 = vsel %vm1160, %v1227, %v1231
      %v1234 = vshrl.u32 %v1086, 16
      %v1236 = vshll.u32 %v1086, 16
      %v1238 = vrot.slane %v1236, 1
      %v1239 = vor.u32 %v1234, %v1238
      %v1241 = vshll.u32 %v1150, 16
      %v1243 = vrot.slane %v1241, 1
      %v1244 = vsel %vm1160, %v1239, %v1243
      %v1246 = vshrl.u32 %v1087, 16
      %v1248 = vshll.u32 %v1087, 16
      %v1250 = vrot.slane %v1248, 1
      %v1251 = vor.u32 %v1246, %v1250
      %v1253 = vshll.u32 %v1151, 16
      %v1255 = vrot.slane %v1253, 1
      %v1256 = vsel %vm1160, %v1251, %v1255
      %v1258 = vshrl.u32 %v1088, 16
      %v1260 = vshll.u32 %v1088, 16
      %v1262 = vrot.slane %v1260, 1
      %v1263 = vor.u32 %v1258, %v1262
      %v1265 = vshll.u32 %v1152, 16
      %v1267 = vrot.slane %v1265, 1
      %v1268 = vsel %vm1160, %v1263, %v1267
      %v1270 = vshrl.u32 %v1089, 16
      %v1272 = vshll.u32 %v1089, 16
      %v1274 = vrot.slane %v1272, 1
      %v1275 = vor.u32 %v1270, %v1274
      %v1277 = vshll.u32 %v1153, 16
      %v1279 = vrot.slane %v1277, 1
      %v1280 = vsel %vm1160, %v1275, %v1279
      %v1282 = vshrl.u32 %v1090, 16
      %v1284 = vshll.u32 %v1090, 16
      %v1286 = vrot.slane %v1284, 1
      %v1287 = vor.u32 %v1282, %v1286
      %v1289 = vshll.u32 %v1154, 16
      %v1291 = vrot.slane %v1289, 1
      %v1292 = vsel %vm1160, %v1287, %v1291
      %v1294 = vshrl.u32 %v1091, 16
      %v1296 = vshll.u32 %v1091, 16
      %v1298 = vrot.slane %v1296, 1
      %v1299 = vor.u32 %v1294, %v1298
      %v1301 = vshll.u32 %v1155, 16
      %v1303 = vrot.slane %v1301, 1
      %v1304 = vsel %vm1160, %v1299, %v1303
      %v1306 = vshrl.u32 %v1092, 16
      %v1308 = vshll.u32 %v1092, 16
      %v1310 = vrot.slane %v1308, 1
      %v1311 = vor.u32 %v1306, %v1310
      %v1313 = vshll.u32 %v1156, 16
      %v1315 = vrot.slane %v1313, 1
      %v1316 = vsel %vm1160, %v1311, %v1315
      %v1318 = vshrl.u32 %v1093, 16
      %v1320 = vshll.u32 %v1093, 16
      %v1322 = vrot.slane %v1320, 1
      %v1323 = vor.u32 %v1318, %v1322
      %v1325 = vshll.u32 %v1157, 16
      %v1327 = vrot.slane %v1325, 1
      %v1328 = vsel %vm1160, %v1323, %v1327
      %v1330 = vshrl.u32 %v1094, 16
      %v1332 = vshll.u32 %v1094, 16
      %v1334 = vrot.slane %v1332, 1
      %v1335 = vor.u32 %v1330, %v1334
      %v1337 = vshll.u32 %v1158, 16
      %v1339 = vrot.slane %v1337, 1
      %v1340 = vsel %vm1160, %v1335, %v1339
      %v1342 = vshrl.u32 %v1095, 16
      %v1344 = vshll.u32 %v1095, 16
      %v1346 = vrot.slane %v1344, 1
      %v1347 = vor.u32 %v1342, %v1346
      %v1349 = vshll.u32 %v1159, 16
      %v1351 = vrot.slane %v1349, 1
      %v1352 = vsel %vm1160, %v1347, %v1351
      %v1385 = vunpack.c.l.b16 %v871
      %v1386 = vunpack.c.l.b16 %v872
      %v1387 = vunpack.c.l.b16 %v873
      %v1388 = vunpack.c.l.b16 %v874
      %v1389 = vunpack.c.l.b16 %v875
      %v1390 = vunpack.c.l.b16 %v876
      %v1391 = vunpack.c.l.b16 %v877
      %v1392 = vunpack.c.l.b16 %v878
      %v1393 = vunpack.c.l.b16 %v879
      %v1394 = vunpack.c.l.b16 %v880
      %v1395 = vunpack.c.l.b16 %v881
      %v1396 = vunpack.c.l.b16 %v882
      %v1397 = vunpack.c.l.b16 %v883
      %v1398 = vunpack.c.l.b16 %v884
      %v1399 = vunpack.c.l.b16 %v885
      %v1400 = vunpack.c.l.b16 %v886
      %v1401 = vpack.c.b16 %v1049, %v1385
      %v1402 = vpack.c.b16 %v1051, %v1386
      %v1403 = vpack.c.b16 %v1053, %v1387
      %v1404 = vpack.c.b16 %v1055, %v1388
      %v1405 = vpack.c.b16 %v1057, %v1389
      %v1406 = vpack.c.b16 %v1059, %v1390
      %v1407 = vpack.c.b16 %v1061, %v1391
      %v1408 = vpack.c.b16 %v1063, %v1392
      %v1409 = vpack.c.b16 %v1065, %v1393
      %v1410 = vpack.c.b16 %v1067, %v1394
      %v1411 = vpack.c.b16 %v1069, %v1395
      %v1412 = vpack.c.b16 %v1071, %v1396
      %v1413 = vpack.c.b16 %v1073, %v1397
      %v1414 = vpack.c.b16 %v1075, %v1398
      %v1415 = vpack.c.b16 %v1077, %v1399
      %v1416 = vpack.c.b16 %v1079, %v1400
      %vm1417 = vcmask 1046528
      %v1418 = vrot.slane %v1401, 1
      %v1419 = vrot.slane %v1144, 1
      %v1420 = vsel %vm1417, %v1418, %v1419
      %v1421 = vrot.slane %v1402, 1
      %v1422 = vrot.slane %v1145, 1
      %v1423 = vsel %vm1417, %v1421, %v1422
      %v1424 = vrot.slane %v1403, 1
      %v1425 = vrot.slane %v1146, 1
      %v1426 = vsel %vm1417, %v1424, %v1425
      %v1427 = vrot.slane %v1404, 1
      %v1428 = vrot.slane %v1147, 1
      %v1429 = vsel %vm1417, %v1427, %v1428
      %v1430 = vrot.slane %v1405, 1
      %v1431 = vrot.slane %v1148, 1
      %v1432 = vsel %vm1417, %v1430, %v1431
      %v1433 = vrot.slane %v1406, 1
      %v1434 = vrot.slane %v1149, 1
      %v1435 = vsel %vm1417, %v1433, %v1434
      %v1436 = vrot.slane %v1407, 1
      %v1437 = vrot.slane %v1150, 1
      %v1438 = vsel %vm1417, %v1436, %v1437
      %v1439 = vrot.slane %v1408, 1
      %v1440 = vrot.slane %v1151, 1
      %v1441 = vsel %vm1417, %v1439, %v1440
      %v1442 = vrot.slane %v1409, 1
      %v1443 = vrot.slane %v1152, 1
      %v1444 = vsel %vm1417, %v1442, %v1443
      %v1445 = vrot.slane %v1410, 1
      %v1446 = vrot.slane %v1153, 1
      %v1447 = vsel %vm1417, %v1445, %v1446
      %v1448 = vrot.slane %v1411, 1
      %v1449 = vrot.slane %v1154, 1
      %v1450 = vsel %vm1417, %v1448, %v1449
      %v1451 = vrot.slane %v1412, 1
      %v1452 = vrot.slane %v1155, 1
      %v1453 = vsel %vm1417, %v1451, %v1452
      %v1454 = vrot.slane %v1413, 1
      %v1455 = vrot.slane %v1156, 1
      %v1456 = vsel %vm1417, %v1454, %v1455
      %v1457 = vrot.slane %v1414, 1
      %v1458 = vrot.slane %v1157, 1
      %v1459 = vsel %vm1417, %v1457, %v1458
      %v1460 = vrot.slane %v1415, 1
      %v1461 = vrot.slane %v1158, 1
      %v1462 = vsel %vm1417, %v1460, %v1461
      %v1463 = vrot.slane %v1416, 1
      %v1464 = vrot.slane %v1159, 1
      %v1465 = vsel %vm1417, %v1463, %v1464
      %v1514 = vunpack.c.l.b16 %v887
      %v1515 = vunpack.c.l.b16 %v888
      %v1516 = vunpack.c.l.b16 %v889
      %v1517 = vunpack.c.l.b16 %v890
      %v1518 = vunpack.c.l.b16 %v891
      %v1519 = vunpack.c.l.b16 %v892
      %v1520 = vunpack.c.l.b16 %v893
      %v1521 = vunpack.c.l.b16 %v894
      %v1522 = vunpack.c.l.b16 %v895
      %v1523 = vunpack.c.l.b16 %v896
      %v1524 = vunpack.c.l.b16 %v897
      %v1525 = vunpack.c.l.b16 %v898
      %v1526 = vunpack.c.l.b16 %v899
      %v1527 = vunpack.c.l.b16 %v900
      %v1528 = vunpack.c.l.b16 %v901
      %v1529 = vunpack.c.l.b16 %v902
      %v1530 = vunpack.c.l.b16 %v903
      %v1531 = vunpack.c.l.b16 %v904
      %v1532 = vunpack.c.l.b16 %v905
      %v1533 = vunpack.c.l.b16 %v906
      %v1534 = vunpack.c.l.b16 %v907
      %v1535 = vunpack.c.l.b16 %v908
      %v1536 = vunpack.c.l.b16 %v909
      %v1537 = vunpack.c.l.b16 %v910
      %v1538 = vunpack.c.l.b16 %v911
      %v1539 = vunpack.c.l.b16 %v912
      %v1540 = vunpack.c.l.b16 %v913
      %v1541 = vunpack.c.l.b16 %v914
      %v1542 = vunpack.c.l.b16 %v915
      %v1543 = vunpack.c.l.b16 %v916
      %v1544 = vunpack.c.l.b16 %v917
      %v1545 = vunpack.c.l.b16 %v918
      %v1546 = vpack.c.b16 %v1515, %v1514
      %v1547 = vpack.c.b16 %v1517, %v1516
      %v1548 = vpack.c.b16 %v1519, %v1518
      %v1549 = vpack.c.b16 %v1521, %v1520
      %v1550 = vpack.c.b16 %v1523, %v1522
      %v1551 = vpack.c.b16 %v1525, %v1524
      %v1552 = vpack.c.b16 %v1527, %v1526
      %v1553 = vpack.c.b16 %v1529, %v1528
      %v1554 = vpack.c.b16 %v1531, %v1530
      %v1555 = vpack.c.b16 %v1533, %v1532
      %v1556 = vpack.c.b16 %v1535, %v1534
      %v1557 = vpack.c.b16 %v1537, %v1536
      %v1558 = vpack.c.b16 %v1539, %v1538
      %v1559 = vpack.c.b16 %v1541, %v1540
      %v1560 = vpack.c.b16 %v1543, %v1542
      %v1561 = vpack.c.b16 %v1545, %v1544
      %v1594 = vunpack.c.l.b16 %v919
      %v1595 = vunpack.c.l.b16 %v920
      %v1596 = vunpack.c.l.b16 %v921
      %v1597 = vunpack.c.l.b16 %v922
      %v1598 = vunpack.c.l.b16 %v923
      %v1599 = vunpack.c.l.b16 %v924
      %v1600 = vunpack.c.l.b16 %v925
      %v1601 = vunpack.c.l.b16 %v926
      %v1602 = vunpack.c.l.b16 %v927
      %v1603 = vunpack.c.l.b16 %v928
      %v1604 = vunpack.c.l.b16 %v929
      %v1605 = vunpack.c.l.b16 %v930
      %v1606 = vunpack.c.l.b16 %v931
      %v1607 = vunpack.c.l.b16 %v932
      %v1608 = vunpack.c.l.b16 %v933
      %v1609 = vunpack.c.l.b16 %v934
      %v1610 = vpack.c.b16 %v1594, %v1594
      %v1611 = vpack.c.b16 %v1595, %v1595
      %v1612 = vpack.c.b16 %v1596, %v1596
      %v1613 = vpack.c.b16 %v1597, %v1597
      %v1614 = vpack.c.b16 %v1598, %v1598
      %v1615 = vpack.c.b16 %v1599, %v1599
      %v1616 = vpack.c.b16 %v1600, %v1600
      %v1617 = vpack.c.b16 %v1601, %v1601
      %v1618 = vpack.c.b16 %v1602, %v1602
      %v1619 = vpack.c.b16 %v1603, %v1603
      %v1620 = vpack.c.b16 %v1604, %v1604
      %v1621 = vpack.c.b16 %v1605, %v1605
      %v1622 = vpack.c.b16 %v1606, %v1606
      %v1623 = vpack.c.b16 %v1607, %v1607
      %v1624 = vpack.c.b16 %v1608, %v1608
      %v1625 = vpack.c.b16 %v1609, %v1609
      %v1627 = vshrl.u32 %v1546, 16
      %v1629 = vshll.u32 %v1546, 16
      %v1631 = vrot.slane %v1629, 1
      %v1632 = vor.u32 %v1627, %v1631
      %v1634 = vshll.u32 %v1610, 16
      %v1636 = vrot.slane %v1634, 1
      %v1637 = vsel %vm1160, %v1632, %v1636
      %v1639 = vshrl.u32 %v1547, 16
      %v1641 = vshll.u32 %v1547, 16
      %v1643 = vrot.slane %v1641, 1
      %v1644 = vor.u32 %v1639, %v1643
      %v1646 = vshll.u32 %v1611, 16
      %v1648 = vrot.slane %v1646, 1
      %v1649 = vsel %vm1160, %v1644, %v1648
      %v1651 = vshrl.u32 %v1548, 16
      %v1653 = vshll.u32 %v1548, 16
      %v1655 = vrot.slane %v1653, 1
      %v1656 = vor.u32 %v1651, %v1655
      %v1658 = vshll.u32 %v1612, 16
      %v1660 = vrot.slane %v1658, 1
      %v1661 = vsel %vm1160, %v1656, %v1660
      %v1663 = vshrl.u32 %v1549, 16
      %v1665 = vshll.u32 %v1549, 16
      %v1667 = vrot.slane %v1665, 1
      %v1668 = vor.u32 %v1663, %v1667
      %v1670 = vshll.u32 %v1613, 16
      %v1672 = vrot.slane %v1670, 1
      %v1673 = vsel %vm1160, %v1668, %v1672
      %v1675 = vshrl.u32 %v1550, 16
      %v1677 = vshll.u32 %v1550, 16
      %v1679 = vrot.slane %v1677, 1
      %v1680 = vor.u32 %v1675, %v1679
      %v1682 = vshll.u32 %v1614, 16
      %v1684 = vrot.slane %v1682, 1
      %v1685 = vsel %vm1160, %v1680, %v1684
      %v1687 = vshrl.u32 %v1551, 16
      %v1689 = vshll.u32 %v1551, 16
      %v1691 = vrot.slane %v1689, 1
      %v1692 = vor.u32 %v1687, %v1691
      %v1694 = vshll.u32 %v1615, 16
      %v1696 = vrot.slane %v1694, 1
      %v1697 = vsel %vm1160, %v1692, %v1696
      %v1699 = vshrl.u32 %v1552, 16
      %v1701 = vshll.u32 %v1552, 16
      %v1703 = vrot.slane %v1701, 1
      %v1704 = vor.u32 %v1699, %v1703
      %v1706 = vshll.u32 %v1616, 16
      %v1708 = vrot.slane %v1706, 1
      %v1709 = vsel %vm1160, %v1704, %v1708
      %v1711 = vshrl.u32 %v1553, 16
      %v1713 = vshll.u32 %v1553, 16
      %v1715 = vrot.slane %v1713, 1
      %v1716 = vor.u32 %v1711, %v1715
      %v1718 = vshll.u32 %v1617, 16
      %v1720 = vrot.slane %v1718, 1
      %v1721 = vsel %vm1160, %v1716, %v1720
      %v1723 = vshrl.u32 %v1554, 16
      %v1725 = vshll.u32 %v1554, 16
      %v1727 = vrot.slane %v1725, 1
      %v1728 = vor.u32 %v1723, %v1727
      %v1730 = vshll.u32 %v1618, 16
      %v1732 = vrot.slane %v1730, 1
      %v1733 = vsel %vm1160, %v1728, %v1732
      %v1735 = vshrl.u32 %v1555, 16
      %v1737 = vshll.u32 %v1555, 16
      %v1739 = vrot.slane %v1737, 1
      %v1740 = vor.u32 %v1735, %v1739
      %v1742 = vshll.u32 %v1619, 16
      %v1744 = vrot.slane %v1742, 1
      %v1745 = vsel %vm1160, %v1740, %v1744
      %v1747 = vshrl.u32 %v1556, 16
      %v1749 = vshll.u32 %v1556, 16
      %v1751 = vrot.slane %v1749, 1
      %v1752 = vor.u32 %v1747, %v1751
      %v1754 = vshll.u32 %v1620, 16
      %v1756 = vrot.slane %v1754, 1
      %v1757 = vsel %vm1160, %v1752, %v1756
      %v1759 = vshrl.u32 %v1557, 16
      %v1761 = vshll.u32 %v1557, 16
      %v1763 = vrot.slane %v1761, 1
      %v1764 = vor.u32 %v1759, %v1763
      %v1766 = vshll.u32 %v1621, 16
      %v1768 = vrot.slane %v1766, 1
      %v1769 = vsel %vm1160, %v1764, %v1768
      %v1771 = vshrl.u32 %v1558, 16
      %v1773 = vshll.u32 %v1558, 16
      %v1775 = vrot.slane %v1773, 1
      %v1776 = vor.u32 %v1771, %v1775
      %v1778 = vshll.u32 %v1622, 16
      %v1780 = vrot.slane %v1778, 1
      %v1781 = vsel %vm1160, %v1776, %v1780
      %v1783 = vshrl.u32 %v1559, 16
      %v1785 = vshll.u32 %v1559, 16
      %v1787 = vrot.slane %v1785, 1
      %v1788 = vor.u32 %v1783, %v1787
      %v1790 = vshll.u32 %v1623, 16
      %v1792 = vrot.slane %v1790, 1
      %v1793 = vsel %vm1160, %v1788, %v1792
      %v1795 = vshrl.u32 %v1560, 16
      %v1797 = vshll.u32 %v1560, 16
      %v1799 = vrot.slane %v1797, 1
      %v1800 = vor.u32 %v1795, %v1799
      %v1802 = vshll.u32 %v1624, 16
      %v1804 = vrot.slane %v1802, 1
      %v1805 = vsel %vm1160, %v1800, %v1804
      %v1807 = vshrl.u32 %v1561, 16
      %v1809 = vshll.u32 %v1561, 16
      %v1811 = vrot.slane %v1809, 1
      %v1812 = vor.u32 %v1807, %v1811
      %v1814 = vshll.u32 %v1625, 16
      %v1816 = vrot.slane %v1814, 1
      %v1817 = vsel %vm1160, %v1812, %v1816
      %v1850 = vunpack.c.l.b16 %v935
      %v1851 = vunpack.c.l.b16 %v936
      %v1852 = vunpack.c.l.b16 %v937
      %v1853 = vunpack.c.l.b16 %v938
      %v1854 = vunpack.c.l.b16 %v939
      %v1855 = vunpack.c.l.b16 %v940
      %v1856 = vunpack.c.l.b16 %v941
      %v1857 = vunpack.c.l.b16 %v942
      %v1858 = vunpack.c.l.b16 %v943
      %v1859 = vunpack.c.l.b16 %v944
      %v1860 = vunpack.c.l.b16 %v945
      %v1861 = vunpack.c.l.b16 %v946
      %v1862 = vunpack.c.l.b16 %v947
      %v1863 = vunpack.c.l.b16 %v948
      %v1864 = vunpack.c.l.b16 %v949
      %v1865 = vunpack.c.l.b16 %v950
      %v1866 = vpack.c.b16 %v1515, %v1850
      %v1867 = vpack.c.b16 %v1517, %v1851
      %v1868 = vpack.c.b16 %v1519, %v1852
      %v1869 = vpack.c.b16 %v1521, %v1853
      %v1870 = vpack.c.b16 %v1523, %v1854
      %v1871 = vpack.c.b16 %v1525, %v1855
      %v1872 = vpack.c.b16 %v1527, %v1856
      %v1873 = vpack.c.b16 %v1529, %v1857
      %v1874 = vpack.c.b16 %v1531, %v1858
      %v1875 = vpack.c.b16 %v1533, %v1859
      %v1876 = vpack.c.b16 %v1535, %v1860
      %v1877 = vpack.c.b16 %v1537, %v1861
      %v1878 = vpack.c.b16 %v1539, %v1862
      %v1879 = vpack.c.b16 %v1541, %v1863
      %v1880 = vpack.c.b16 %v1543, %v1864
      %v1881 = vpack.c.b16 %v1545, %v1865
      %v1882 = vrot.slane %v1866, 1
      %v1883 = vrot.slane %v1610, 1
      %v1884 = vsel %vm1417, %v1882, %v1883
      %v1885 = vrot.slane %v1867, 1
      %v1886 = vrot.slane %v1611, 1
      %v1887 = vsel %vm1417, %v1885, %v1886
      %v1888 = vrot.slane %v1868, 1
      %v1889 = vrot.slane %v1612, 1
      %v1890 = vsel %vm1417, %v1888, %v1889
      %v1891 = vrot.slane %v1869, 1
      %v1892 = vrot.slane %v1613, 1
      %v1893 = vsel %vm1417, %v1891, %v1892
      %v1894 = vrot.slane %v1870, 1
      %v1895 = vrot.slane %v1614, 1
      %v1896 = vsel %vm1417, %v1894, %v1895
      %v1897 = vrot.slane %v1871, 1
      %v1898 = vrot.slane %v1615, 1
      %v1899 = vsel %vm1417, %v1897, %v1898
      %v1900 = vrot.slane %v1872, 1
      %v1901 = vrot.slane %v1616, 1
      %v1902 = vsel %vm1417, %v1900, %v1901
      %v1903 = vrot.slane %v1873, 1
      %v1904 = vrot.slane %v1617, 1
      %v1905 = vsel %vm1417, %v1903, %v1904
      %v1906 = vrot.slane %v1874, 1
      %v1907 = vrot.slane %v1618, 1
      %v1908 = vsel %vm1417, %v1906, %v1907
      %v1909 = vrot.slane %v1875, 1
      %v1910 = vrot.slane %v1619, 1
      %v1911 = vsel %vm1417, %v1909, %v1910
      %v1912 = vrot.slane %v1876, 1
      %v1913 = vrot.slane %v1620, 1
      %v1914 = vsel %vm1417, %v1912, %v1913
      %v1915 = vrot.slane %v1877, 1
      %v1916 = vrot.slane %v1621, 1
      %v1917 = vsel %vm1417, %v1915, %v1916
      %v1918 = vrot.slane %v1878, 1
      %v1919 = vrot.slane %v1622, 1
      %v1920 = vsel %vm1417, %v1918, %v1919
      %v1921 = vrot.slane %v1879, 1
      %v1922 = vrot.slane %v1623, 1
      %v1923 = vsel %vm1417, %v1921, %v1922
      %v1924 = vrot.slane %v1880, 1
      %v1925 = vrot.slane %v1624, 1
      %v1926 = vsel %vm1417, %v1924, %v1925
      %v1927 = vrot.slane %v1881, 1
      %v1928 = vrot.slane %v1625, 1
      %v1929 = vsel %vm1417, %v1927, %v1928
      %v1978 = vunpack.c.l.b16 %v952
      %v1979 = vunpack.c.l.b16 %v953
      %v1980 = vunpack.c.l.b16 %v954
      %v1981 = vunpack.c.l.b16 %v955
      %v1982 = vunpack.c.l.b16 %v956
      %v1983 = vunpack.c.l.b16 %v957
      %v1984 = vunpack.c.l.b16 %v958
      %v1985 = vunpack.c.l.b16 %v959
      %v1986 = vunpack.c.l.b16 %v960
      %v1987 = vunpack.c.l.b16 %v961
      %v1988 = vunpack.c.l.b16 %v962
      %v1989 = vunpack.c.l.b16 %v963
      %v1990 = vunpack.c.l.b16 %v964
      %v1991 = vunpack.c.l.b16 %v965
      %v1992 = vunpack.c.l.b16 %v966
      %v1993 = vunpack.c.l.b16 %v967
      %v1994 = vunpack.c.l.b16 %v968
      %v1995 = vunpack.c.l.b16 %v969
      %v1996 = vunpack.c.l.b16 %v970
      %v1997 = vunpack.c.l.b16 %v971
      %v1998 = vunpack.c.l.b16 %v972
      %v1999 = vunpack.c.l.b16 %v973
      %v2000 = vunpack.c.l.b16 %v974
      %v2001 = vunpack.c.l.b16 %v975
      %v2002 = vunpack.c.l.b16 %v976
      %v2003 = vunpack.c.l.b16 %v977
      %v2004 = vunpack.c.l.b16 %v978
      %v2005 = vunpack.c.l.b16 %v979
      %v2006 = vunpack.c.l.b16 %v980
      %v2007 = vunpack.c.l.b16 %v981
      %v2008 = vunpack.c.l.b16 %v982
      %v2009 = vunpack.c.l.b16 %v983
      %v2010 = vpack.c.b16 %v1979, %v1978
      %v2011 = vpack.c.b16 %v1981, %v1980
      %v2012 = vpack.c.b16 %v1983, %v1982
      %v2013 = vpack.c.b16 %v1985, %v1984
      %v2014 = vpack.c.b16 %v1987, %v1986
      %v2015 = vpack.c.b16 %v1989, %v1988
      %v2016 = vpack.c.b16 %v1991, %v1990
      %v2017 = vpack.c.b16 %v1993, %v1992
      %v2018 = vpack.c.b16 %v1995, %v1994
      %v2019 = vpack.c.b16 %v1997, %v1996
      %v2020 = vpack.c.b16 %v1999, %v1998
      %v2021 = vpack.c.b16 %v2001, %v2000
      %v2022 = vpack.c.b16 %v2003, %v2002
      %v2023 = vpack.c.b16 %v2005, %v2004
      %v2024 = vpack.c.b16 %v2007, %v2006
      %v2025 = vpack.c.b16 %v2009, %v2008
      %v2058 = vunpack.c.l.b16 %v984
      %v2059 = vunpack.c.l.b16 %v985
      %v2060 = vunpack.c.l.b16 %v986
      %v2061 = vunpack.c.l.b16 %v987
      %v2062 = vunpack.c.l.b16 %v988
      %v2063 = vunpack.c.l.b16 %v989
      %v2064 = vunpack.c.l.b16 %v990
      %v2065 = vunpack.c.l.b16 %v991
      %v2066 = vunpack.c.l.b16 %v992
      %v2067 = vunpack.c.l.b16 %v993
      %v2068 = vunpack.c.l.b16 %v994
      %v2069 = vunpack.c.l.b16 %v995
      %v2070 = vunpack.c.l.b16 %v996
      %v2071 = vunpack.c.l.b16 %v997
      %v2072 = vunpack.c.l.b16 %v998
      %v2073 = vunpack.c.l.b16 %v999
      %v2074 = vpack.c.b16 %v2058, %v2058
      %v2075 = vpack.c.b16 %v2059, %v2059
      %v2076 = vpack.c.b16 %v2060, %v2060
      %v2077 = vpack.c.b16 %v2061, %v2061
      %v2078 = vpack.c.b16 %v2062, %v2062
      %v2079 = vpack.c.b16 %v2063, %v2063
      %v2080 = vpack.c.b16 %v2064, %v2064
      %v2081 = vpack.c.b16 %v2065, %v2065
      %v2082 = vpack.c.b16 %v2066, %v2066
      %v2083 = vpack.c.b16 %v2067, %v2067
      %v2084 = vpack.c.b16 %v2068, %v2068
      %v2085 = vpack.c.b16 %v2069, %v2069
      %v2086 = vpack.c.b16 %v2070, %v2070
      %v2087 = vpack.c.b16 %v2071, %v2071
      %v2088 = vpack.c.b16 %v2072, %v2072
      %v2089 = vpack.c.b16 %v2073, %v2073
      %v2091 = vshrl.u32 %v2010, 16
      %v2093 = vshll.u32 %v2010, 16
      %v2095 = vrot.slane %v2093, 1
      %v2096 = vor.u32 %v2091, %v2095
      %v2098 = vshll.u32 %v2074, 16
      %v2100 = vrot.slane %v2098, 1
      %v2101 = vsel %vm1160, %v2096, %v2100
      %v2103 = vshrl.u32 %v2011, 16
      %v2105 = vshll.u32 %v2011, 16
      %v2107 = vrot.slane %v2105, 1
      %v2108 = vor.u32 %v2103, %v2107
      %v2110 = vshll.u32 %v2075, 16
      %v2112 = vrot.slane %v2110, 1
      %v2113 = vsel %vm1160, %v2108, %v2112
      %v2115 = vshrl.u32 %v2012, 16
      %v2117 = vshll.u32 %v2012, 16
      %v2119 = vrot.slane %v2117, 1
      %v2120 = vor.u32 %v2115, %v2119
      %v2122 = vshll.u32 %v2076, 16
      %v2124 = vrot.slane %v2122, 1
      %v2125 = vsel %vm1160, %v2120, %v2124
      %v2127 = vshrl.u32 %v2013, 16
      %v2129 = vshll.u32 %v2013, 16
      %v2131 = vrot.slane %v2129, 1
      %v2132 = vor.u32 %v2127, %v2131
      %v2134 = vshll.u32 %v2077, 16
      %v2136 = vrot.slane %v2134, 1
      %v2137 = vsel %vm1160, %v2132, %v2136
      %v2139 = vshrl.u32 %v2014, 16
      %v2141 = vshll.u32 %v2014, 16
      %v2143 = vrot.slane %v2141, 1
      %v2144 = vor.u32 %v2139, %v2143
      %v2146 = vshll.u32 %v2078, 16
      %v2148 = vrot.slane %v2146, 1
      %v2149 = vsel %vm1160, %v2144, %v2148
      %v2151 = vshrl.u32 %v2015, 16
      %v2153 = vshll.u32 %v2015, 16
      %v2155 = vrot.slane %v2153, 1
      %v2156 = vor.u32 %v2151, %v2155
      %v2158 = vshll.u32 %v2079, 16
      %v2160 = vrot.slane %v2158, 1
      %v2161 = vsel %vm1160, %v2156, %v2160
      %v2163 = vshrl.u32 %v2016, 16
      %v2165 = vshll.u32 %v2016, 16
      %v2167 = vrot.slane %v2165, 1
      %v2168 = vor.u32 %v2163, %v2167
      %v2170 = vshll.u32 %v2080, 16
      %v2172 = vrot.slane %v2170, 1
      %v2173 = vsel %vm1160, %v2168, %v2172
      %v2175 = vshrl.u32 %v2017, 16
      %v2177 = vshll.u32 %v2017, 16
      %v2179 = vrot.slane %v2177, 1
      %v2180 = vor.u32 %v2175, %v2179
      %v2182 = vshll.u32 %v2081, 16
      %v2184 = vrot.slane %v2182, 1
      %v2185 = vsel %vm1160, %v2180, %v2184
      %v2187 = vshrl.u32 %v2018, 16
      %v2189 = vshll.u32 %v2018, 16
      %v2191 = vrot.slane %v2189, 1
      %v2192 = vor.u32 %v2187, %v2191
      %v2194 = vshll.u32 %v2082, 16
      %v2196 = vrot.slane %v2194, 1
      %v2197 = vsel %vm1160, %v2192, %v2196
      %v2199 = vshrl.u32 %v2019, 16
      %v2201 = vshll.u32 %v2019, 16
      %v2203 = vrot.slane %v2201, 1
      %v2204 = vor.u32 %v2199, %v2203
      %v2206 = vshll.u32 %v2083, 16
      %v2208 = vrot.slane %v2206, 1
      %v2209 = vsel %vm1160, %v2204, %v2208
      %v2211 = vshrl.u32 %v2020, 16
      %v2213 = vshll.u32 %v2020, 16
      %v2215 = vrot.slane %v2213, 1
      %v2216 = vor.u32 %v2211, %v2215
      %v2218 = vshll.u32 %v2084, 16
      %v2220 = vrot.slane %v2218, 1
      %v2221 = vsel %vm1160, %v2216, %v2220
      %v2223 = vshrl.u32 %v2021, 16
      %v2225 = vshll.u32 %v2021, 16
      %v2227 = vrot.slane %v2225, 1
      %v2228 = vor.u32 %v2223, %v2227
      %v2230 = vshll.u32 %v2085, 16
      %v2232 = vrot.slane %v2230, 1
      %v2233 = vsel %vm1160, %v2228, %v2232
      %v2235 = vshrl.u32 %v2022, 16
      %v2237 = vshll.u32 %v2022, 16
      %v2239 = vrot.slane %v2237, 1
      %v2240 = vor.u32 %v2235, %v2239
      %v2242 = vshll.u32 %v2086, 16
      %v2244 = vrot.slane %v2242, 1
      %v2245 = vsel %vm1160, %v2240, %v2244
      %v2247 = vshrl.u32 %v2023, 16
      %v2249 = vshll.u32 %v2023, 16
      %v2251 = vrot.slane %v2249, 1
      %v2252 = vor.u32 %v2247, %v2251
      %v2254 = vshll.u32 %v2087, 16
      %v2256 = vrot.slane %v2254, 1
      %v2257 = vsel %vm1160, %v2252, %v2256
      %v2259 = vshrl.u32 %v2024, 16
      %v2261 = vshll.u32 %v2024, 16
      %v2263 = vrot.slane %v2261, 1
      %v2264 = vor.u32 %v2259, %v2263
      %v2266 = vshll.u32 %v2088, 16
      %v2268 = vrot.slane %v2266, 1
      %v2269 = vsel %vm1160, %v2264, %v2268
      %v2271 = vshrl.u32 %v2025, 16
      %v2273 = vshll.u32 %v2025, 16
      %v2275 = vrot.slane %v2273, 1
      %v2276 = vor.u32 %v2271, %v2275
      %v2278 = vshll.u32 %v2089, 16
      %v2280 = vrot.slane %v2278, 1
      %v2281 = vsel %vm1160, %v2276, %v2280
      %v2314 = vunpack.c.l.b16 %v1000
      %v2315 = vunpack.c.l.b16 %v1001
      %v2316 = vunpack.c.l.b16 %v1002
      %v2317 = vunpack.c.l.b16 %v1003
      %v2318 = vunpack.c.l.b16 %v1004
      %v2319 = vunpack.c.l.b16 %v1005
      %v2320 = vunpack.c.l.b16 %v1006
      %v2321 = vunpack.c.l.b16 %v1007
      %v2322 = vunpack.c.l.b16 %v1008
      %v2323 = vunpack.c.l.b16 %v1009
      %v2324 = vunpack.c.l.b16 %v1010
      %v2325 = vunpack.c.l.b16 %v1011
      %v2326 = vunpack.c.l.b16 %v1012
      %v2327 = vunpack.c.l.b16 %v1013
      %v2328 = vunpack.c.l.b16 %v1014
      %v2329 = vunpack.c.l.b16 %v1015
      %v2330 = vpack.c.b16 %v1979, %v2314
      %v2331 = vpack.c.b16 %v1981, %v2315
      %v2332 = vpack.c.b16 %v1983, %v2316
      %v2333 = vpack.c.b16 %v1985, %v2317
      %v2334 = vpack.c.b16 %v1987, %v2318
      %v2335 = vpack.c.b16 %v1989, %v2319
      %v2336 = vpack.c.b16 %v1991, %v2320
      %v2337 = vpack.c.b16 %v1993, %v2321
      %v2338 = vpack.c.b16 %v1995, %v2322
      %v2339 = vpack.c.b16 %v1997, %v2323
      %v2340 = vpack.c.b16 %v1999, %v2324
      %v2341 = vpack.c.b16 %v2001, %v2325
      %v2342 = vpack.c.b16 %v2003, %v2326
      %v2343 = vpack.c.b16 %v2005, %v2327
      %v2344 = vpack.c.b16 %v2007, %v2328
      %v2345 = vpack.c.b16 %v2009, %v2329
      %v2346 = vrot.slane %v2330, 1
      %v2347 = vrot.slane %v2074, 1
      %v2348 = vsel %vm1417, %v2346, %v2347
      %v2349 = vrot.slane %v2331, 1
      %v2350 = vrot.slane %v2075, 1
      %v2351 = vsel %vm1417, %v2349, %v2350
      %v2352 = vrot.slane %v2332, 1
      %v2353 = vrot.slane %v2076, 1
      %v2354 = vsel %vm1417, %v2352, %v2353
      %v2355 = vrot.slane %v2333, 1
      %v2356 = vrot.slane %v2077, 1
      %v2357 = vsel %vm1417, %v2355, %v2356
      %v2358 = vrot.slane %v2334, 1
      %v2359 = vrot.slane %v2078, 1
      %v2360 = vsel %vm1417, %v2358, %v2359
      %v2361 = vrot.slane %v2335, 1
      %v2362 = vrot.slane %v2079, 1
      %v2363 = vsel %vm1417, %v2361, %v2362
      %v2364 = vrot.slane %v2336, 1
      %v2365 = vrot.slane %v2080, 1
      %v2366 = vsel %vm1417, %v2364, %v2365
      %v2367 = vrot.slane %v2337, 1
      %v2368 = vrot.slane %v2081, 1
      %v2369 = vsel %vm1417, %v2367, %v2368
      %v2370 = vrot.slane %v2338, 1
      %v2371 = vrot.slane %v2082, 1
      %v2372 = vsel %vm1417, %v2370, %v2371
      %v2373 = vrot.slane %v2339, 1
      %v2374 = vrot.slane %v2083, 1
      %v2375 = vsel %vm1417, %v2373, %v2374
      %v2376 = vrot.slane %v2340, 1
      %v2377 = vrot.slane %v2084, 1
      %v2378 = vsel %vm1417, %v2376, %v2377
      %v2379 = vrot.slane %v2341, 1
      %v2380 = vrot.slane %v2085, 1
      %v2381 = vsel %vm1417, %v2379, %v2380
      %v2382 = vrot.slane %v2342, 1
      %v2383 = vrot.slane %v2086, 1
      %v2384 = vsel %vm1417, %v2382, %v2383
      %v2385 = vrot.slane %v2343, 1
      %v2386 = vrot.slane %v2087, 1
      %v2387 = vsel %vm1417, %v2385, %v2386
      %v2388 = vrot.slane %v2344, 1
      %v2389 = vrot.slane %v2088, 1
      %v2390 = vsel %vm1417, %v2388, %v2389
      %v2391 = vrot.slane %v2345, 1
      %v2392 = vrot.slane %v2089, 1
      %v2393 = vsel %vm1417, %v2391, %v2392
      %v2410 = vld [vmem:[%s3] sm:$0xf]
      %v2411 = vld [vmem:[%s3 + $0x4] sm:$0xf]
      %v2412 = vld [vmem:[%s3 + $0x8] sm:$0xf]
      %v2413 = vld [vmem:[%s3 + $0xc] sm:$0xf]
      %v2414 = vld [vmem:[%s3 + $0x10] sm:$0xf]
      %v2415 = vld [vmem:[%s3 + $0x14] sm:$0xf]
      %v2416 = vld [vmem:[%s3 + $0x18] sm:$0xf]
      %v2417 = vld [vmem:[%s3 + $0x1c] sm:$0xf]
      %v2418 = vld [vmem:[%s3 + $0x20] sm:$0xf]
      %v2419 = vld [vmem:[%s3 + $0x24] sm:$0xf]
      %v2420 = vld [vmem:[%s3 + $0x28] sm:$0xf]
      %v2421 = vld [vmem:[%s3 + $0x2c] sm:$0xf]
      %v2422 = vld [vmem:[%s3 + $0x30] sm:$0xf]
      %v2423 = vld [vmem:[%s3 + $0x34] sm:$0xf]
      %v2424 = vld [vmem:[%s3 + $0x38] sm:$0xf]
      %v2425 = vld [vmem:[%s3 + $0x3c] sm:$0xf]
      %v2426 = vld [vmem:[%s3 + $0x40] sm:$0xf]
      %v2427 = vld [vmem:[%s3 + $0x44] sm:$0xf]
      %v2428 = vld [vmem:[%s3 + $0x48] sm:$0xf]
      %v2429 = vld [vmem:[%s3 + $0x4c] sm:$0xf]
      %v2430 = vld [vmem:[%s3 + $0x50] sm:$0xf]
      %v2431 = vld [vmem:[%s3 + $0x54] sm:$0xf]
      %v2432 = vld [vmem:[%s3 + $0x58] sm:$0xf]
      %v2433 = vld [vmem:[%s3 + $0x5c] sm:$0xf]
      %v2434 = vld [vmem:[%s3 + $0x60] sm:$0xf]
      %v2435 = vld [vmem:[%s3 + $0x64] sm:$0xf]
      %v2436 = vld [vmem:[%s3 + $0x68] sm:$0xf]
      %v2437 = vld [vmem:[%s3 + $0x6c] sm:$0xf]
      %v2438 = vld [vmem:[%s3 + $0x70] sm:$0xf]
      %v2439 = vld [vmem:[%s3 + $0x74] sm:$0xf]
      %v2440 = vld [vmem:[%s3 + $0x78] sm:$0xf]
      %v2441 = vld [vmem:[%s3 + $0x7c] sm:$0xf]
      %v2442 = vld [vmem:[%s3 + $0x80] sm:$0xf]
      %v2443 = vld [vmem:[%s3 + $0x84] sm:$0xf]
      %v2444 = vld [vmem:[%s3 + $0x88] sm:$0xf]
      %v2445 = vld [vmem:[%s3 + $0x8c] sm:$0xf]
      %v2446 = vld [vmem:[%s3 + $0x90] sm:$0xf]
      %v2447 = vld [vmem:[%s3 + $0x94] sm:$0xf]
      %v2448 = vld [vmem:[%s3 + $0x98] sm:$0xf]
      %v2449 = vld [vmem:[%s3 + $0x9c] sm:$0xf]
      %v2450 = vld [vmem:[%s3 + $0xa0] sm:$0xf]
      %v2451 = vld [vmem:[%s3 + $0xa4] sm:$0xf]
      %v2452 = vld [vmem:[%s3 + $0xa8] sm:$0xf]
      %v2453 = vld [vmem:[%s3 + $0xac] sm:$0xf]
      %v2454 = vld [vmem:[%s3 + $0xb0] sm:$0xf]
      %v2455 = vld [vmem:[%s3 + $0xb4] sm:$0xf]
      %v2456 = vld [vmem:[%s3 + $0xb8] sm:$0xf]
      %v2457 = vld [vmem:[%s3 + $0xbc] sm:$0xf]
      %v2458 = vld [vmem:[%s3 + $0xc0] sm:$0xf]
      %v2459 = vld [vmem:[%s3 + $0xc4] sm:$0xf]
      %v2460 = vld [vmem:[%s3 + $0xc8] sm:$0xf]
      %v2461 = vld [vmem:[%s3 + $0xcc] sm:$0xf]
      %v2462 = vld [vmem:[%s3 + $0xd0] sm:$0xf]
      %v2463 = vld [vmem:[%s3 + $0xd4] sm:$0xf]
      %v2464 = vld [vmem:[%s3 + $0xd8] sm:$0xf]
      %v2465 = vld [vmem:[%s3 + $0xdc] sm:$0xf]
      %v2466 = vld [vmem:[%s3 + $0xe0] sm:$0xf]
      %v2467 = vld [vmem:[%s3 + $0xe4] sm:$0xf]
      %v2468 = vld [vmem:[%s3 + $0xe8] sm:$0xf]
      %v2469 = vld [vmem:[%s3 + $0xec] sm:$0xf]
      %v2470 = vld [vmem:[%s3 + $0xf0] sm:$0xf]
      %v2471 = vld [vmem:[%s3 + $0xf4] sm:$0xf]
      %v2472 = vld [vmem:[%s3 + $0xf8] sm:$0xf]
      %v2473 = vld [vmem:[%s3 + $0xfc] sm:$0xf]
      %v2474 = vld [vmem:[%s3 + $0x100] sm:$0xf]
      %v2475 = vld [vmem:[%s3 + $0x104] sm:$0xf]
      %v2476 = vld [vmem:[%s3 + $0x108] sm:$0xf]
      %v2477 = vld [vmem:[%s3 + $0x10c] sm:$0xf]
      %v2478 = vld [vmem:[%s3 + $0x110] sm:$0xf]
      %v2479 = vld [vmem:[%s3 + $0x114] sm:$0xf]
      %v2480 = vld [vmem:[%s3 + $0x118] sm:$0xf]
      %v2481 = vld [vmem:[%s3 + $0x11c] sm:$0xf]
      %v2482 = vld [vmem:[%s3 + $0x120] sm:$0xf]
      %v2483 = vld [vmem:[%s3 + $0x124] sm:$0xf]
      %v2484 = vld [vmem:[%s3 + $0x128] sm:$0xf]
      %v2485 = vld [vmem:[%s3 + $0x12c] sm:$0xf]
      %v2486 = vld [vmem:[%s3 + $0x130] sm:$0xf]
      %v2487 = vld [vmem:[%s3 + $0x134] sm:$0xf]
      %v2488 = vld [vmem:[%s3 + $0x138] sm:$0xf]
      %v2489 = vld [vmem:[%s3 + $0x13c] sm:$0xf]
      %v2490 = vld [vmem:[%s3 + $0x140] sm:$0xf]
      %v2491 = vld [vmem:[%s3 + $0x144] sm:$0xf]
      %v2492 = vld [vmem:[%s3 + $0x148] sm:$0xf]
      %v2493 = vld [vmem:[%s3 + $0x14c] sm:$0xf]
      %v2494 = vld [vmem:[%s3 + $0x150] sm:$0xf]
      %v2495 = vld [vmem:[%s3 + $0x154] sm:$0xf]
      %v2496 = vld [vmem:[%s3 + $0x158] sm:$0xf]
      %v2497 = vld [vmem:[%s3 + $0x15c] sm:$0xf]
      %v2498 = vld [vmem:[%s3 + $0x160] sm:$0xf]
      %v2499 = vld [vmem:[%s3 + $0x164] sm:$0xf]
      %v2500 = vld [vmem:[%s3 + $0x168] sm:$0xf]
      %v2501 = vld [vmem:[%s3 + $0x16c] sm:$0xf]
      %v2502 = vld [vmem:[%s3 + $0x170] sm:$0xf]
      %v2503 = vld [vmem:[%s3 + $0x174] sm:$0xf]
      %v2504 = vld [vmem:[%s3 + $0x178] sm:$0xf]
      %v2505 = vld [vmem:[%s3 + $0x17c] sm:$0xf]
      %v2506 = vld [vmem:[%s3 + $0x180] sm:$0xf]
      %v2507 = vld [vmem:[%s3 + $0x184] sm:$0xf]
      %v2508 = vld [vmem:[%s3 + $0x188] sm:$0xf]
      %v2509 = vld [vmem:[%s3 + $0x18c] sm:$0xf]
      %v2510 = vld [vmem:[%s3 + $0x190] sm:$0xf]
      %v2511 = vld [vmem:[%s3 + $0x194] sm:$0xf]
      %v2512 = vld [vmem:[%s3 + $0x198] sm:$0xf]
      %v2513 = vld [vmem:[%s3 + $0x19c] sm:$0xf]
      %v2514 = vld [vmem:[%s3 + $0x1a0] sm:$0xf]
      %v2515 = vld [vmem:[%s3 + $0x1a4] sm:$0xf]
      %v2516 = vld [vmem:[%s3 + $0x1a8] sm:$0xf]
      %v2517 = vld [vmem:[%s3 + $0x1ac] sm:$0xf]
      %v2518 = vld [vmem:[%s3 + $0x1b0] sm:$0xf]
      %v2519 = vld [vmem:[%s3 + $0x1b4] sm:$0xf]
      %v2520 = vld [vmem:[%s3 + $0x1b8] sm:$0xf]
      %v2521 = vld [vmem:[%s3 + $0x1bc] sm:$0xf]
      %v2522 = vld [vmem:[%s3 + $0x1c0] sm:$0xf]
      %v2523 = vld [vmem:[%s3 + $0x1c4] sm:$0xf]
      %v2524 = vld [vmem:[%s3 + $0x1c8] sm:$0xf]
      %v2525 = vld [vmem:[%s3 + $0x1cc] sm:$0xf]
      %v2526 = vld [vmem:[%s3 + $0x1d0] sm:$0xf]
      %v2527 = vld [vmem:[%s3 + $0x1d4] sm:$0xf]
      %v2528 = vld [vmem:[%s3 + $0x1d8] sm:$0xf]
      %v2529 = vld [vmem:[%s3 + $0x1dc] sm:$0xf]
      %v2530 = vld [vmem:[%s3 + $0x1e0] sm:$0xf]
      %v2531 = vld [vmem:[%s3 + $0x1e4] sm:$0xf]
      %v2532 = vld [vmem:[%s3 + $0x1e8] sm:$0xf]
      %v2533 = vld [vmem:[%s3 + $0x1ec] sm:$0xf]
      %v2534 = vld [vmem:[%s3 + $0x1f0] sm:$0xf]
      %v2535 = vld [vmem:[%s3 + $0x1f4] sm:$0xf]
      %v2536 = vld [vmem:[%s3 + $0x1f8] sm:$0xf]
      %v2537 = vld [vmem:[%s3 + $0x1fc] sm:$0xf]
      %v2538 = vld [vmem:[%s3 + $0x200] sm:$0xf]
      %v2539 = vld [vmem:[%s3 + $0x204] sm:$0xf]
      %v2540 = vld [vmem:[%s3 + $0x208] sm:$0xf]
      %v2541 = vld [vmem:[%s3 + $0x20c] sm:$0xf]
      %v2542 = vld [vmem:[%s3 + $0x210] sm:$0xf]
      %v2543 = vld [vmem:[%s3 + $0x214] sm:$0xf]
      %v2544 = vld [vmem:[%s3 + $0x218] sm:$0xf]
      %v2545 = vld [vmem:[%s3 + $0x21c] sm:$0xf]
      %v2546 = vld [vmem:[%s3 + $0x220] sm:$0xf]
      %v2547 = vld [vmem:[%s3 + $0x224] sm:$0xf]
      %v2548 = vld [vmem:[%s3 + $0x228] sm:$0xf]
      %v2549 = vld [vmem:[%s3 + $0x22c] sm:$0xf]
      %v2550 = vld [vmem:[%s3 + $0x230] sm:$0xf]
      %v2551 = vld [vmem:[%s3 + $0x234] sm:$0xf]
      %v2552 = vld [vmem:[%s3 + $0x238] sm:$0xf]
      %v2553 = vld [vmem:[%s3 + $0x23c] sm:$0xf]
      %v2554 = vld [vmem:[%s4] sm:$0x1]
      %v2556 = vperm.slane %v2554, 0
      %v2702 = vunpack.c.l.b16 %v2410
      %v2703 = vunpack.c.l.b16 %v2411
      %v2704 = vunpack.c.l.b16 %v2412
      %v2705 = vunpack.c.l.b16 %v2413
      %v2706 = vunpack.c.l.b16 %v2414
      %v2707 = vunpack.c.l.b16 %v2415
      %v2708 = vunpack.c.l.b16 %v2416
      %v2709 = vunpack.c.l.b16 %v2417
      %v2710 = vunpack.c.l.b16 %v2418
      %v2711 = vunpack.c.l.b16 %v2419
      %v2712 = vunpack.c.l.b16 %v2420
      %v2713 = vunpack.c.l.b16 %v2421
      %v2714 = vunpack.c.l.b16 %v2422
      %v2715 = vunpack.c.l.b16 %v2423
      %v2716 = vunpack.c.l.b16 %v2424
      %v2717 = vunpack.c.l.b16 %v2425
      %v2718 = vunpack.c.l.b16 %v2426
      %v2719 = vunpack.c.l.b16 %v2427
      %v2720 = vunpack.c.l.b16 %v2428
      %v2721 = vunpack.c.l.b16 %v2429
      %v2722 = vunpack.c.l.b16 %v2430
      %v2723 = vunpack.c.l.b16 %v2431
      %v2724 = vunpack.c.l.b16 %v2432
      %v2725 = vunpack.c.l.b16 %v2433
      %v2726 = vunpack.c.l.b16 %v2434
      %v2727 = vunpack.c.l.b16 %v2435
      %v2728 = vunpack.c.l.b16 %v2436
      %v2729 = vunpack.c.l.b16 %v2437
      %v2730 = vunpack.c.l.b16 %v2438
      %v2731 = vunpack.c.l.b16 %v2439
      %v2732 = vunpack.c.l.b16 %v2440
      %v2733 = vunpack.c.l.b16 %v2441
      %v2734 = vunpack.c.l.b16 %v2442
      %v2735 = vunpack.c.l.b16 %v2443
      %v2736 = vunpack.c.l.b16 %v2444
      %v2737 = vunpack.c.l.b16 %v2445
      %v2738 = vunpack.c.l.b16 %v2446
      %v2739 = vunpack.c.l.b16 %v2447
      %v2740 = vunpack.c.l.b16 %v2448
      %v2741 = vunpack.c.l.b16 %v2449
      %v2742 = vunpack.c.l.b16 %v2450
      %v2743 = vunpack.c.l.b16 %v2451
      %v2744 = vunpack.c.l.b16 %v2452
      %v2745 = vunpack.c.l.b16 %v2453
      %v2746 = vunpack.c.l.b16 %v2454
      %v2747 = vunpack.c.l.b16 %v2455
      %v2748 = vunpack.c.l.b16 %v2456
      %v2749 = vunpack.c.l.b16 %v2457
      %v2750 = vunpack.c.l.b16 %v2458
      %v2751 = vunpack.c.l.b16 %v2459
      %v2752 = vunpack.c.l.b16 %v2460
      %v2753 = vunpack.c.l.b16 %v2461
      %v2754 = vunpack.c.l.b16 %v2462
      %v2755 = vunpack.c.l.b16 %v2463
      %v2756 = vunpack.c.l.b16 %v2464
      %v2757 = vunpack.c.l.b16 %v2465
      %v2758 = vunpack.c.l.b16 %v2466
      %v2759 = vunpack.c.l.b16 %v2467
      %v2760 = vunpack.c.l.b16 %v2468
      %v2761 = vunpack.c.l.b16 %v2469
      %v2762 = vunpack.c.l.b16 %v2470
      %v2763 = vunpack.c.l.b16 %v2471
      %v2764 = vunpack.c.l.b16 %v2472
      %v2765 = vunpack.c.l.b16 %v2473
      %v2766 = vunpack.c.l.b16 %v2474
      %v2767 = vunpack.c.l.b16 %v2475
      %v2768 = vunpack.c.l.b16 %v2476
      %v2769 = vunpack.c.l.b16 %v2477
      %v2770 = vunpack.c.l.b16 %v2478
      %v2771 = vunpack.c.l.b16 %v2479
      %v2772 = vunpack.c.l.b16 %v2480
      %v2773 = vunpack.c.l.b16 %v2481
      %v2774 = vunpack.c.l.b16 %v2482
      %v2775 = vunpack.c.l.b16 %v2483
      %v2776 = vunpack.c.l.b16 %v2484
      %v2777 = vunpack.c.l.b16 %v2485
      %v2778 = vunpack.c.l.b16 %v2486
      %v2779 = vunpack.c.l.b16 %v2487
      %v2780 = vunpack.c.l.b16 %v2488
      %v2781 = vunpack.c.l.b16 %v2489
      %v2782 = vunpack.c.l.b16 %v2490
      %v2783 = vunpack.c.l.b16 %v2491
      %v2784 = vunpack.c.l.b16 %v2492
      %v2785 = vunpack.c.l.b16 %v2493
      %v2786 = vunpack.c.l.b16 %v2494
      %v2787 = vunpack.c.l.b16 %v2495
      %v2788 = vunpack.c.l.b16 %v2496
      %v2789 = vunpack.c.l.b16 %v2497
      %v2790 = vunpack.c.l.b16 %v2498
      %v2791 = vunpack.c.l.b16 %v2499
      %v2792 = vunpack.c.l.b16 %v2500
      %v2793 = vunpack.c.l.b16 %v2501
      %v2794 = vunpack.c.l.b16 %v2502
      %v2795 = vunpack.c.l.b16 %v2503
      %v2796 = vunpack.c.l.b16 %v2504
      %v2797 = vunpack.c.l.b16 %v2505
      %v2798 = vunpack.c.l.b16 %v2506
      %v2799 = vunpack.c.l.b16 %v2507
      %v2800 = vunpack.c.l.b16 %v2508
      %v2801 = vunpack.c.l.b16 %v2509
      %v2802 = vunpack.c.l.b16 %v2510
      %v2803 = vunpack.c.l.b16 %v2511
      %v2804 = vunpack.c.l.b16 %v2512
      %v2805 = vunpack.c.l.b16 %v2513
      %v2806 = vunpack.c.l.b16 %v2514
      %v2807 = vunpack.c.l.b16 %v2515
      %v2808 = vunpack.c.l.b16 %v2516
      %v2809 = vunpack.c.l.b16 %v2517
      %v2810 = vunpack.c.l.b16 %v2518
      %v2811 = vunpack.c.l.b16 %v2519
      %v2812 = vunpack.c.l.b16 %v2520
      %v2813 = vunpack.c.l.b16 %v2521
      %v2814 = vunpack.c.l.b16 %v2522
      %v2815 = vunpack.c.l.b16 %v2523
      %v2816 = vunpack.c.l.b16 %v2524
      %v2817 = vunpack.c.l.b16 %v2525
      %v2818 = vunpack.c.l.b16 %v2526
      %v2819 = vunpack.c.l.b16 %v2527
      %v2820 = vunpack.c.l.b16 %v2528
      %v2821 = vunpack.c.l.b16 %v2529
      %v2822 = vunpack.c.l.b16 %v2530
      %v2823 = vunpack.c.l.b16 %v2531
      %v2824 = vunpack.c.l.b16 %v2532
      %v2825 = vunpack.c.l.b16 %v2533
      %v2826 = vunpack.c.l.b16 %v2534
      %v2827 = vunpack.c.l.b16 %v2535
      %v2828 = vunpack.c.l.b16 %v2536
      %v2829 = vunpack.c.l.b16 %v2537
      %v2830 = vunpack.c.l.b16 %v2538
      %v2831 = vunpack.c.l.b16 %v2539
      %v2832 = vunpack.c.l.b16 %v2540
      %v2833 = vunpack.c.l.b16 %v2541
      %v2834 = vunpack.c.l.b16 %v2542
      %v2835 = vunpack.c.l.b16 %v2543
      %v2836 = vunpack.c.l.b16 %v2544
      %v2837 = vunpack.c.l.b16 %v2545
      %v2838 = vunpack.c.l.b16 %v2546
      %v2839 = vunpack.c.l.b16 %v2547
      %v2840 = vunpack.c.l.b16 %v2548
      %v2841 = vunpack.c.l.b16 %v2549
      %v2842 = vunpack.c.l.b16 %v2550
      %v2843 = vunpack.c.l.b16 %v2551
      %v2844 = vunpack.c.l.b16 %v2552
      %v2845 = vunpack.c.l.b16 %v2553
      %v2846 = vpack.c.b16 %v2703, %v2702
      %v2847 = vpack.c.b16 %v2705, %v2704
      %v2848 = vpack.c.b16 %v2707, %v2706
      %v2849 = vpack.c.b16 %v2709, %v2708
      %v2850 = vpack.c.b16 %v2711, %v2710
      %v2851 = vpack.c.b16 %v2713, %v2712
      %v2852 = vpack.c.b16 %v2715, %v2714
      %v2853 = vpack.c.b16 %v2717, %v2716
      %v2854 = vpack.c.b16 %v2719, %v2718
      %v2855 = vpack.c.b16 %v2721, %v2720
      %v2856 = vpack.c.b16 %v2723, %v2722
      %v2857 = vpack.c.b16 %v2725, %v2724
      %v2858 = vpack.c.b16 %v2727, %v2726
      %v2859 = vpack.c.b16 %v2729, %v2728
      %v2860 = vpack.c.b16 %v2731, %v2730
      %v2861 = vpack.c.b16 %v2733, %v2732
      %v2862 = vpack.c.b16 %v2735, %v2734
      %v2863 = vpack.c.b16 %v2737, %v2736
      %v2864 = vpack.c.b16 %v2739, %v2738
      %v2865 = vpack.c.b16 %v2741, %v2740
      %v2866 = vpack.c.b16 %v2743, %v2742
      %v2867 = vpack.c.b16 %v2745, %v2744
      %v2868 = vpack.c.b16 %v2747, %v2746
      %v2869 = vpack.c.b16 %v2749, %v2748
      %v2870 = vpack.c.b16 %v2751, %v2750
      %v2871 = vpack.c.b16 %v2753, %v2752
      %v2872 = vpack.c.b16 %v2755, %v2754
      %v2873 = vpack.c.b16 %v2757, %v2756
      %v2874 = vpack.c.b16 %v2759, %v2758
      %v2875 = vpack.c.b16 %v2761, %v2760
      %v2876 = vpack.c.b16 %v2763, %v2762
      %v2877 = vpack.c.b16 %v2765, %v2764
      %v2878 = vpack.c.b16 %v2767, %v2766
      %v2879 = vpack.c.b16 %v2769, %v2768
      %v2880 = vpack.c.b16 %v2771, %v2770
      %v2881 = vpack.c.b16 %v2773, %v2772
      %v2882 = vpack.c.b16 %v2775, %v2774
      %v2883 = vpack.c.b16 %v2777, %v2776
      %v2884 = vpack.c.b16 %v2779, %v2778
      %v2885 = vpack.c.b16 %v2781, %v2780
      %v2886 = vpack.c.b16 %v2783, %v2782
      %v2887 = vpack.c.b16 %v2785, %v2784
      %v2888 = vpack.c.b16 %v2787, %v2786
      %v2889 = vpack.c.b16 %v2789, %v2788
      %v2890 = vpack.c.b16 %v2791, %v2790
      %v2891 = vpack.c.b16 %v2793, %v2792
      %v2892 = vpack.c.b16 %v2795, %v2794
      %v2893 = vpack.c.b16 %v2797, %v2796
      %v2894 = vpack.c.b16 %v2799, %v2798
      %v2895 = vpack.c.b16 %v2801, %v2800
      %v2896 = vpack.c.b16 %v2803, %v2802
      %v2897 = vpack.c.b16 %v2805, %v2804
      %v2898 = vpack.c.b16 %v2807, %v2806
      %v2899 = vpack.c.b16 %v2809, %v2808
      %v2900 = vpack.c.b16 %v2811, %v2810
      %v2901 = vpack.c.b16 %v2813, %v2812
      %v2902 = vpack.c.b16 %v2815, %v2814
      %v2903 = vpack.c.b16 %v2817, %v2816
      %v2904 = vpack.c.b16 %v2819, %v2818
      %v2905 = vpack.c.b16 %v2821, %v2820
      %v2906 = vpack.c.b16 %v2823, %v2822
      %v2907 = vpack.c.b16 %v2825, %v2824
      %v2908 = vpack.c.b16 %v2827, %v2826
      %v2909 = vpack.c.b16 %v2829, %v2828
      %v2910 = vpack.c.b16 %v2831, %v2830
      %v2911 = vpack.c.b16 %v2833, %v2832
      %v2912 = vpack.c.b16 %v2835, %v2834
      %v2913 = vpack.c.b16 %v2837, %v2836
      %v2914 = vpack.c.b16 %v2839, %v2838
      %v2915 = vpack.c.b16 %v2841, %v2840
      %v2916 = vpack.c.b16 %v2843, %v2842
      %v2917 = vpack.c.b16 %v2845, %v2844
      %2990 = vmatpush.bf16.msra.mxu0 %v2853
      %2991 = vmatpush.bf16.msra.mxu0 %v2852
      %2992 = vmatpush.bf16.msra.mxu0 %v2851
      %2993 = vmatpush.bf16.msra.mxu0 %v2850
      %2994 = vmatpush.bf16.msra.mxu0 %v2849
      %2995 = vmatpush.bf16.msra.mxu0 %v2848
      %2996 = vmatpush.bf16.msra.mxu0 %v2847
      %2997 = vmatpush.bf16.msra.mxu0 %v2846
      %2998 = vmatmul.bf16.gmra.mxu0 %v1080
      %v2999 = vpop.f32.mrf.mxu0
      %v3000 = vadd.f32 %v2556, %v2999
      %v3001 = vpop.f32.mrf.mxu0
      %v3002 = vadd.f32 %v2556, %v3001
      %3003 = vmatmul.bf16.gmra.mxu0 %v1081
      %v3004 = vpop.f32.mrf.mxu0
      %v3005 = vadd.f32 %v2556, %v3004
      %v3006 = vpop.f32.mrf.mxu0
      %v3007 = vadd.f32 %v2556, %v3006
      %3008 = vmatmul.bf16.gmra.mxu0 %v1082
      %v3009 = vpop.f32.mrf.mxu0
      %v3010 = vadd.f32 %v2556, %v3009
      %v3011 = vpop.f32.mrf.mxu0
      %v3012 = vadd.f32 %v2556, %v3011
      %3013 = vmatmul.bf16.gmra.mxu0 %v1083
      %v3014 = vpop.f32.mrf.mxu0
      %v3015 = vadd.f32 %v2556, %v3014
      %v3016 = vpop.f32.mrf.mxu0
      %v3017 = vadd.f32 %v2556, %v3016
      %3018 = vmatmul.bf16.gmra.mxu0 %v1084
      %v3019 = vpop.f32.mrf.mxu0
      %v3020 = vadd.f32 %v2556, %v3019
      %v3021 = vpop.f32.mrf.mxu0
      %v3022 = vadd.f32 %v2556, %v3021
      %3023 = vmatmul.bf16.gmra.mxu0 %v1085
      %v3024 = vpop.f32.mrf.mxu0
      %v3025 = vadd.f32 %v2556, %v3024
      %v3026 = vpop.f32.mrf.mxu0
      %v3027 = vadd.f32 %v2556, %v3026
      %3028 = vmatmul.bf16.gmra.mxu0 %v1086
      %v3029 = vpop.f32.mrf.mxu0
      %v3030 = vadd.f32 %v2556, %v3029
      %v3031 = vpop.f32.mrf.mxu0
      %v3032 = vadd.f32 %v2556, %v3031
      %3033 = vmatmul.bf16.gmra.mxu0 %v1087
      %v3034 = vpop.f32.mrf.mxu0
      %v3035 = vadd.f32 %v2556, %v3034
      %v3036 = vpop.f32.mrf.mxu0
      %v3037 = vadd.f32 %v2556, %v3036
      %3038 = vmatmul.bf16.gmra.mxu0 %v1088
      %v3039 = vpop.f32.mrf.mxu0
      %v3040 = vadd.f32 %v2556, %v3039
      %v3041 = vpop.f32.mrf.mxu0
      %v3042 = vadd.f32 %v2556, %v3041
      %3043 = vmatmul.bf16.gmra.mxu0 %v1089
      %v3044 = vpop.f32.mrf.mxu0
      %v3045 = vadd.f32 %v2556, %v3044
      %v3046 = vpop.f32.mrf.mxu0
      %v3047 = vadd.f32 %v2556, %v3046
      %3048 = vmatmul.bf16.gmra.mxu0 %v1090
      %v3049 = vpop.f32.mrf.mxu0
      %v3050 = vadd.f32 %v2556, %v3049
      %v3051 = vpop.f32.mrf.mxu0
      %v3052 = vadd.f32 %v2556, %v3051
      %3053 = vmatmul.bf16.gmra.mxu0 %v1091
      %v3054 = vpop.f32.mrf.mxu0
      %v3055 = vadd.f32 %v2556, %v3054
      %v3056 = vpop.f32.mrf.mxu0
      %v3057 = vadd.f32 %v2556, %v3056
      %3058 = vmatmul.bf16.gmra.mxu0 %v1092
      %v3059 = vpop.f32.mrf.mxu0
      %v3060 = vadd.f32 %v2556, %v3059
      %v3061 = vpop.f32.mrf.mxu0
      %v3062 = vadd.f32 %v2556, %v3061
      %3063 = vmatmul.bf16.gmra.mxu0 %v1093
      %v3064 = vpop.f32.mrf.mxu0
      %v3065 = vadd.f32 %v2556, %v3064
      %v3066 = vpop.f32.mrf.mxu0
      %v3067 = vadd.f32 %v2556, %v3066
      %3068 = vmatmul.bf16.gmra.mxu0 %v1094
      %v3069 = vpop.f32.mrf.mxu0
      %v3070 = vadd.f32 %v2556, %v3069
      %v3071 = vpop.f32.mrf.mxu0
      %v3072 = vadd.f32 %v2556, %v3071
      %3073 = vmatmul.bf16.gmra.mxu0 %v1095
      %v3074 = vpop.f32.mrf.mxu0
      %v3075 = vadd.f32 %v2556, %v3074
      %v3076 = vpop.f32.mrf.mxu0
      %v3077 = vadd.f32 %v2556, %v3076
      %3078 = vdwg.mxu0
      %3079 = vmatpush.bf16.msra.mxu0 %v2861
      %3080 = vmatpush.bf16.msra.mxu0 %v2860
      %3081 = vmatpush.bf16.msra.mxu0 %v2859
      %3082 = vmatpush.bf16.msra.mxu0 %v2858
      %3083 = vmatpush.bf16.msra.mxu0 %v2857
      %3084 = vmatpush.bf16.msra.mxu0 %v2856
      %3085 = vmatpush.bf16.msra.mxu0 %v2855
      %3086 = vmatpush.bf16.msra.mxu0 %v2854
      %3087 = vmatmul.bf16.gmra.mxu0 %v1172
      %v3088 = vpop.f32.mrf.mxu0
      %v3089 = vadd.f32 %v3000, %v3088
      %v3090 = vpop.f32.mrf.mxu0
      %v3091 = vadd.f32 %v3002, %v3090
      %3092 = vmatmul.bf16.gmra.mxu0 %v1184
      %v3093 = vpop.f32.mrf.mxu0
      %v3094 = vadd.f32 %v3005, %v3093
      %v3095 = vpop.f32.mrf.mxu0
      %v3096 = vadd.f32 %v3007, %v3095
      %3097 = vmatmul.bf16.gmra.mxu0 %v1196
      %v3098 = vpop.f32.mrf.mxu0
      %v3099 = vadd.f32 %v3010, %v3098
      %v3100 = vpop.f32.mrf.mxu0
      %v3101 = vadd.f32 %v3012, %v3100
      %3102 = vmatmul.bf16.gmra.mxu0 %v1208
      %v3103 = vpop.f32.mrf.mxu0
      %v3104 = vadd.f32 %v3015, %v3103
      %v3105 = vpop.f32.mrf.mxu0
      %v3106 = vadd.f32 %v3017, %v3105
      %3107 = vmatmul.bf16.gmra.mxu0 %v1220
      %v3108 = vpop.f32.mrf.mxu0
      %v3109 = vadd.f32 %v3020, %v3108
      %v3110 = vpop.f32.mrf.mxu0
      %v3111 = vadd.f32 %v3022, %v3110
      %3112 = vmatmul.bf16.gmra.mxu0 %v1232
      %v3113 = vpop.f32.mrf.mxu0
      %v3114 = vadd.f32 %v3025, %v3113
      %v3115 = vpop.f32.mrf.mxu0
      %v3116 = vadd.f32 %v3027, %v3115
      %3117 = vmatmul.bf16.gmra.mxu0 %v1244
      %v3118 = vpop.f32.mrf.mxu0
      %v3119 = vadd.f32 %v3030, %v3118
      %v3120 = vpop.f32.mrf.mxu0
      %v3121 = vadd.f32 %v3032, %v3120
      %3122 = vmatmul.bf16.gmra.mxu0 %v1256
      %v3123 = vpop.f32.mrf.mxu0
      %v3124 = vadd.f32 %v3035, %v3123
      %v3125 = vpop.f32.mrf.mxu0
      %v3126 = vadd.f32 %v3037, %v3125
      %3127 = vmatmul.bf16.gmra.mxu0 %v1268
      %v3128 = vpop.f32.mrf.mxu0
      %v3129 = vadd.f32 %v3040, %v3128
      %v3130 = vpop.f32.mrf.mxu0
      %v3131 = vadd.f32 %v3042, %v3130
      %3132 = vmatmul.bf16.gmra.mxu0 %v1280
      %v3133 = vpop.f32.mrf.mxu0
      %v3134 = vadd.f32 %v3045, %v3133
      %v3135 = vpop.f32.mrf.mxu0
      %v3136 = vadd.f32 %v3047, %v3135
      %3137 = vmatmul.bf16.gmra.mxu0 %v1292
      %v3138 = vpop.f32.mrf.mxu0
      %v3139 = vadd.f32 %v3050, %v3138
      %v3140 = vpop.f32.mrf.mxu0
      %v3141 = vadd.f32 %v3052, %v3140
      %3142 = vmatmul.bf16.gmra.mxu0 %v1304
      %v3143 = vpop.f32.mrf.mxu0
      %v3144 = vadd.f32 %v3055, %v3143
      %v3145 = vpop.f32.mrf.mxu0
      %v3146 = vadd.f32 %v3057, %v3145
      %3147 = vmatmul.bf16.gmra.mxu0 %v1316
      %v3148 = vpop.f32.mrf.mxu0
      %v3149 = vadd.f32 %v3060, %v3148
      %v3150 = vpop.f32.mrf.mxu0
      %v3151 = vadd.f32 %v3062, %v3150
      %3152 = vmatmul.bf16.gmra.mxu0 %v1328
      %v3153 = vpop.f32.mrf.mxu0
      %v3154 = vadd.f32 %v3065, %v3153
      %v3155 = vpop.f32.mrf.mxu0
      %v3156 = vadd.f32 %v3067, %v3155
      %3157 = vmatmul.bf16.gmra.mxu0 %v1340
      %v3158 = vpop.f32.mrf.mxu0
      %v3159 = vadd.f32 %v3070, %v3158
      %v3160 = vpop.f32.mrf.mxu0
      %v3161 = vadd.f32 %v3072, %v3160
      %3162 = vmatmul.bf16.gmra.mxu0 %v1352
      %v3163 = vpop.f32.mrf.mxu0
      %v3164 = vadd.f32 %v3075, %v3163
      %v3165 = vpop.f32.mrf.mxu0
      %v3166 = vadd.f32 %v3077, %v3165
      %3167 = vdwg.mxu0
      %3168 = vmatpush.bf16.msra.mxu0 %v2869
      %3169 = vmatpush.bf16.msra.mxu0 %v2868
      %3170 = vmatpush.bf16.msra.mxu0 %v2867
      %3171 = vmatpush.bf16.msra.mxu0 %v2866
      %3172 = vmatpush.bf16.msra.mxu0 %v2865
      %3173 = vmatpush.bf16.msra.mxu0 %v2864
      %3174 = vmatpush.bf16.msra.mxu0 %v2863
      %3175 = vmatpush.bf16.msra.mxu0 %v2862
      %3176 = vmatmul.bf16.gmra.mxu0 %v1420
      %v3177 = vpop.f32.mrf.mxu0
      %v3178 = vadd.f32 %v3089, %v3177
      %v3179 = vpop.f32.mrf.mxu0
      %v3180 = vadd.f32 %v3091, %v3179
      %3181 = vmatmul.bf16.gmra.mxu0 %v1423
      %v3182 = vpop.f32.mrf.mxu0
      %v3183 = vadd.f32 %v3094, %v3182
      %v3184 = vpop.f32.mrf.mxu0
      %v3185 = vadd.f32 %v3096, %v3184
      %3186 = vmatmul.bf16.gmra.mxu0 %v1426
      %v3187 = vpop.f32.mrf.mxu0
      %v3188 = vadd.f32 %v3099, %v3187
      %v3189 = vpop.f32.mrf.mxu0
      %v3190 = vadd.f32 %v3101, %v3189
      %3191 = vmatmul.bf16.gmra.mxu0 %v1429
      %v3192 = vpop.f32.mrf.mxu0
      %v3193 = vadd.f32 %v3104, %v3192
      %v3194 = vpop.f32.mrf.mxu0
      %v3195 = vadd.f32 %v3106, %v3194
      %3196 = vmatmul.bf16.gmra.mxu0 %v1432
      %v3197 = vpop.f32.mrf.mxu0
      %v3198 = vadd.f32 %v3109, %v3197
      %v3199 = vpop.f32.mrf.mxu0
      %v3200 = vadd.f32 %v3111, %v3199
      %3201 = vmatmul.bf16.gmra.mxu0 %v1435
      %v3202 = vpop.f32.mrf.mxu0
      %v3203 = vadd.f32 %v3114, %v3202
      %v3204 = vpop.f32.mrf.mxu0
      %v3205 = vadd.f32 %v3116, %v3204
      %3206 = vmatmul.bf16.gmra.mxu0 %v1438
      %v3207 = vpop.f32.mrf.mxu0
      %v3208 = vadd.f32 %v3119, %v3207
      %v3209 = vpop.f32.mrf.mxu0
      %v3210 = vadd.f32 %v3121, %v3209
      %3211 = vmatmul.bf16.gmra.mxu0 %v1441
      %v3212 = vpop.f32.mrf.mxu0
      %v3213 = vadd.f32 %v3124, %v3212
      %v3214 = vpop.f32.mrf.mxu0
      %v3215 = vadd.f32 %v3126, %v3214
      %3216 = vmatmul.bf16.gmra.mxu0 %v1444
      %v3217 = vpop.f32.mrf.mxu0
      %v3218 = vadd.f32 %v3129, %v3217
      %v3219 = vpop.f32.mrf.mxu0
      %v3220 = vadd.f32 %v3131, %v3219
      %3221 = vmatmul.bf16.gmra.mxu0 %v1447
      %v3222 = vpop.f32.mrf.mxu0
      %v3223 = vadd.f32 %v3134, %v3222
      %v3224 = vpop.f32.mrf.mxu0
      %v3225 = vadd.f32 %v3136, %v3224
      %3226 = vmatmul.bf16.gmra.mxu0 %v1450
      %v3227 = vpop.f32.mrf.mxu0
      %v3228 = vadd.f32 %v3139, %v3227
      %v3229 = vpop.f32.mrf.mxu0
      %v3230 = vadd.f32 %v3141, %v3229
      %3231 = vmatmul.bf16.gmra.mxu0 %v1453
      %v3232 = vpop.f32.mrf.mxu0
      %v3233 = vadd.f32 %v3144, %v3232
      %v3234 = vpop.f32.mrf.mxu0
      %v3235 = vadd.f32 %v3146, %v3234
      %3236 = vmatmul.bf16.gmra.mxu0 %v1456
      %v3237 = vpop.f32.mrf.mxu0
      %v3238 = vadd.f32 %v3149, %v3237
      %v3239 = vpop.f32.mrf.mxu0
      %v3240 = vadd.f32 %v3151, %v3239
      %3241 = vmatmul.bf16.gmra.mxu0 %v1459
      %v3242 = vpop.f32.mrf.mxu0
      %v3243 = vadd.f32 %v3154, %v3242
      %v3244 = vpop.f32.mrf.mxu0
      %v3245 = vadd.f32 %v3156, %v3244
      %3246 = vmatmul.bf16.gmra.mxu0 %v1462
      %v3247 = vpop.f32.mrf.mxu0
      %v3248 = vadd.f32 %v3159, %v3247
      %v3249 = vpop.f32.mrf.mxu0
      %v3250 = vadd.f32 %v3161, %v3249
      %3251 = vmatmul.bf16.gmra.mxu0 %v1465
      %v3252 = vpop.f32.mrf.mxu0
      %v3253 = vadd.f32 %v3164, %v3252
      %v3254 = vpop.f32.mrf.mxu0
      %v3255 = vadd.f32 %v3166, %v3254
      %3256 = vdwg.mxu0
      %3257 = vmatpush.bf16.msra.mxu0 %v2877
      %3258 = vmatpush.bf16.msra.mxu0 %v2876
      %3259 = vmatpush.bf16.msra.mxu0 %v2875
      %3260 = vmatpush.bf16.msra.mxu0 %v2874
      %3261 = vmatpush.bf16.msra.mxu0 %v2873
      %3262 = vmatpush.bf16.msra.mxu0 %v2872
      %3263 = vmatpush.bf16.msra.mxu0 %v2871
      %3264 = vmatpush.bf16.msra.mxu0 %v2870
      %3265 = vmatmul.bf16.gmra.mxu0 %v1546
      %v3266 = vpop.f32.mrf.mxu0
      %v3267 = vadd.f32 %v3178, %v3266
      %v3268 = vpop.f32.mrf.mxu0
      %v3269 = vadd.f32 %v3180, %v3268
      %3270 = vmatmul.bf16.gmra.mxu0 %v1547
      %v3271 = vpop.f32.mrf.mxu0
      %v3272 = vadd.f32 %v3183, %v3271
      %v3273 = vpop.f32.mrf.mxu0
      %v3274 = vadd.f32 %v3185, %v3273
      %3275 = vmatmul.bf16.gmra.mxu0 %v1548
      %v3276 = vpop.f32.mrf.mxu0
      %v3277 = vadd.f32 %v3188, %v3276
      %v3278 = vpop.f32.mrf.mxu0
      %v3279 = vadd.f32 %v3190, %v3278
      %3280 = vmatmul.bf16.gmra.mxu0 %v1549
      %v3281 = vpop.f32.mrf.mxu0
      %v3282 = vadd.f32 %v3193, %v3281
      %v3283 = vpop.f32.mrf.mxu0
      %v3284 = vadd.f32 %v3195, %v3283
      %3285 = vmatmul.bf16.gmra.mxu0 %v1550
      %v3286 = vpop.f32.mrf.mxu0
      %v3287 = vadd.f32 %v3198, %v3286
      %v3288 = vpop.f32.mrf.mxu0
      %v3289 = vadd.f32 %v3200, %v3288
      %3290 = vmatmul.bf16.gmra.mxu0 %v1551
      %v3291 = vpop.f32.mrf.mxu0
      %v3292 = vadd.f32 %v3203, %v3291
      %v3293 = vpop.f32.mrf.mxu0
      %v3294 = vadd.f32 %v3205, %v3293
      %3295 = vmatmul.bf16.gmra.mxu0 %v1552
      %v3296 = vpop.f32.mrf.mxu0
      %v3297 = vadd.f32 %v3208, %v3296
      %v3298 = vpop.f32.mrf.mxu0
      %v3299 = vadd.f32 %v3210, %v3298
      %3300 = vmatmul.bf16.gmra.mxu0 %v1553
      %v3301 = vpop.f32.mrf.mxu0
      %v3302 = vadd.f32 %v3213, %v3301
      %v3303 = vpop.f32.mrf.mxu0
      %v3304 = vadd.f32 %v3215, %v3303
      %3305 = vmatmul.bf16.gmra.mxu0 %v1554
      %v3306 = vpop.f32.mrf.mxu0
      %v3307 = vadd.f32 %v3218, %v3306
      %v3308 = vpop.f32.mrf.mxu0
      %v3309 = vadd.f32 %v3220, %v3308
      %3310 = vmatmul.bf16.gmra.mxu0 %v1555
      %v3311 = vpop.f32.mrf.mxu0
      %v3312 = vadd.f32 %v3223, %v3311
      %v3313 = vpop.f32.mrf.mxu0
      %v3314 = vadd.f32 %v3225, %v3313
      %3315 = vmatmul.bf16.gmra.mxu0 %v1556
      %v3316 = vpop.f32.mrf.mxu0
      %v3317 = vadd.f32 %v3228, %v3316
      %v3318 = vpop.f32.mrf.mxu0
      %v3319 = vadd.f32 %v3230, %v3318
      %3320 = vmatmul.bf16.gmra.mxu0 %v1557
      %v3321 = vpop.f32.mrf.mxu0
      %v3322 = vadd.f32 %v3233, %v3321
      %v3323 = vpop.f32.mrf.mxu0
      %v3324 = vadd.f32 %v3235, %v3323
      %3325 = vmatmul.bf16.gmra.mxu0 %v1558
      %v3326 = vpop.f32.mrf.mxu0
      %v3327 = vadd.f32 %v3238, %v3326
      %v3328 = vpop.f32.mrf.mxu0
      %v3329 = vadd.f32 %v3240, %v3328
      %3330 = vmatmul.bf16.gmra.mxu0 %v1559
      %v3331 = vpop.f32.mrf.mxu0
      %v3332 = vadd.f32 %v3243, %v3331
      %v3333 = vpop.f32.mrf.mxu0
      %v3334 = vadd.f32 %v3245, %v3333
      %3335 = vmatmul.bf16.gmra.mxu0 %v1560
      %v3336 = vpop.f32.mrf.mxu0
      %v3337 = vadd.f32 %v3248, %v3336
      %v3338 = vpop.f32.mrf.mxu0
      %v3339 = vadd.f32 %v3250, %v3338
      %3340 = vmatmul.bf16.gmra.mxu0 %v1561
      %v3341 = vpop.f32.mrf.mxu0
      %v3342 = vadd.f32 %v3253, %v3341
      %v3343 = vpop.f32.mrf.mxu0
      %v3344 = vadd.f32 %v3255, %v3343
      %3345 = vdwg.mxu0
      %3346 = vmatpush.bf16.msra.mxu0 %v2885
      %3347 = vmatpush.bf16.msra.mxu0 %v2884
      %3348 = vmatpush.bf16.msra.mxu0 %v2883
      %3349 = vmatpush.bf16.msra.mxu0 %v2882
      %3350 = vmatpush.bf16.msra.mxu0 %v2881
      %3351 = vmatpush.bf16.msra.mxu0 %v2880
      %3352 = vmatpush.bf16.msra.mxu0 %v2879
      %3353 = vmatpush.bf16.msra.mxu0 %v2878
      %3354 = vmatmul.bf16.gmra.mxu0 %v1637
      %v3355 = vpop.f32.mrf.mxu0
      %v3356 = vadd.f32 %v3267, %v3355
      %v3357 = vpop.f32.mrf.mxu0
      %v3358 = vadd.f32 %v3269, %v3357
      %3359 = vmatmul.bf16.gmra.mxu0 %v1649
      %v3360 = vpop.f32.mrf.mxu0
      %v3361 = vadd.f32 %v3272, %v3360
      %v3362 = vpop.f32.mrf.mxu0
      %v3363 = vadd.f32 %v3274, %v3362
      %3364 = vmatmul.bf16.gmra.mxu0 %v1661
      %v3365 = vpop.f32.mrf.mxu0
      %v3366 = vadd.f32 %v3277, %v3365
      %v3367 = vpop.f32.mrf.mxu0
      %v3368 = vadd.f32 %v3279, %v3367
      %3369 = vmatmul.bf16.gmra.mxu0 %v1673
      %v3370 = vpop.f32.mrf.mxu0
      %v3371 = vadd.f32 %v3282, %v3370
      %v3372 = vpop.f32.mrf.mxu0
      %v3373 = vadd.f32 %v3284, %v3372
      %3374 = vmatmul.bf16.gmra.mxu0 %v1685
      %v3375 = vpop.f32.mrf.mxu0
      %v3376 = vadd.f32 %v3287, %v3375
      %v3377 = vpop.f32.mrf.mxu0
      %v3378 = vadd.f32 %v3289, %v3377
      %3379 = vmatmul.bf16.gmra.mxu0 %v1697
      %v3380 = vpop.f32.mrf.mxu0
      %v3381 = vadd.f32 %v3292, %v3380
      %v3382 = vpop.f32.mrf.mxu0
      %v3383 = vadd.f32 %v3294, %v3382
      %3384 = vmatmul.bf16.gmra.mxu0 %v1709
      %v3385 = vpop.f32.mrf.mxu0
      %v3386 = vadd.f32 %v3297, %v3385
      %v3387 = vpop.f32.mrf.mxu0
      %v3388 = vadd.f32 %v3299, %v3387
      %3389 = vmatmul.bf16.gmra.mxu0 %v1721
      %v3390 = vpop.f32.mrf.mxu0
      %v3391 = vadd.f32 %v3302, %v3390
      %v3392 = vpop.f32.mrf.mxu0
      %v3393 = vadd.f32 %v3304, %v3392
      %3394 = vmatmul.bf16.gmra.mxu0 %v1733
      %v3395 = vpop.f32.mrf.mxu0
      %v3396 = vadd.f32 %v3307, %v3395
      %v3397 = vpop.f32.mrf.mxu0
      %v3398 = vadd.f32 %v3309, %v3397
      %3399 = vmatmul.bf16.gmra.mxu0 %v1745
      %v3400 = vpop.f32.mrf.mxu0
      %v3401 = vadd.f32 %v3312, %v3400
      %v3402 = vpop.f32.mrf.mxu0
      %v3403 = vadd.f32 %v3314, %v3402
      %3404 = vmatmul.bf16.gmra.mxu0 %v1757
      %v3405 = vpop.f32.mrf.mxu0
      %v3406 = vadd.f32 %v3317, %v3405
      %v3407 = vpop.f32.mrf.mxu0
      %v3408 = vadd.f32 %v3319, %v3407
      %3409 = vmatmul.bf16.gmra.mxu0 %v1769
      %v3410 = vpop.f32.mrf.mxu0
      %v3411 = vadd.f32 %v3322, %v3410
      %v3412 = vpop.f32.mrf.mxu0
      %v3413 = vadd.f32 %v3324, %v3412
      %3414 = vmatmul.bf16.gmra.mxu0 %v1781
      %v3415 = vpop.f32.mrf.mxu0
      %v3416 = vadd.f32 %v3327, %v3415
      %v3417 = vpop.f32.mrf.mxu0
      %v3418 = vadd.f32 %v3329, %v3417
      %3419 = vmatmul.bf16.gmra.mxu0 %v1793
      %v3420 = vpop.f32.mrf.mxu0
      %v3421 = vadd.f32 %v3332, %v3420
      %v3422 = vpop.f32.mrf.mxu0
      %v3423 = vadd.f32 %v3334, %v3422
      %3424 = vmatmul.bf16.gmra.mxu0 %v1805
      %v3425 = vpop.f32.mrf.mxu0
      %v3426 = vadd.f32 %v3337, %v3425
      %v3427 = vpop.f32.mrf.mxu0
      %v3428 = vadd.f32 %v3339, %v3427
      %3429 = vmatmul.bf16.gmra.mxu0 %v1817
      %v3430 = vpop.f32.mrf.mxu0
      %v3431 = vadd.f32 %v3342, %v3430
      %v3432 = vpop.f32.mrf.mxu0
      %v3433 = vadd.f32 %v3344, %v3432
      %3434 = vdwg.mxu0
      %3435 = vmatpush.bf16.msra.mxu0 %v2893
      %3436 = vmatpush.bf16.msra.mxu0 %v2892
      %3437 = vmatpush.bf16.msra.mxu0 %v2891
      %3438 = vmatpush.bf16.msra.mxu0 %v2890
      %3439 = vmatpush.bf16.msra.mxu0 %v2889
      %3440 = vmatpush.bf16.msra.mxu0 %v2888
      %3441 = vmatpush.bf16.msra.mxu0 %v2887
      %3442 = vmatpush.bf16.msra.mxu0 %v2886
      %3443 = vmatmul.bf16.gmra.mxu0 %v1884
      %v3444 = vpop.f32.mrf.mxu0
      %v3445 = vadd.f32 %v3356, %v3444
      %v3446 = vpop.f32.mrf.mxu0
      %v3447 = vadd.f32 %v3358, %v3446
      %3448 = vmatmul.bf16.gmra.mxu0 %v1887
      %v3449 = vpop.f32.mrf.mxu0
      %v3450 = vadd.f32 %v3361, %v3449
      %v3451 = vpop.f32.mrf.mxu0
      %v3452 = vadd.f32 %v3363, %v3451
      %3453 = vmatmul.bf16.gmra.mxu0 %v1890
      %v3454 = vpop.f32.mrf.mxu0
      %v3455 = vadd.f32 %v3366, %v3454
      %v3456 = vpop.f32.mrf.mxu0
      %v3457 = vadd.f32 %v3368, %v3456
      %3458 = vmatmul.bf16.gmra.mxu0 %v1893
      %v3459 = vpop.f32.mrf.mxu0
      %v3460 = vadd.f32 %v3371, %v3459
      %v3461 = vpop.f32.mrf.mxu0
      %v3462 = vadd.f32 %v3373, %v3461
      %3463 = vmatmul.bf16.gmra.mxu0 %v1896
      %v3464 = vpop.f32.mrf.mxu0
      %v3465 = vadd.f32 %v3376, %v3464
      %v3466 = vpop.f32.mrf.mxu0
      %v3467 = vadd.f32 %v3378, %v3466
      %3468 = vmatmul.bf16.gmra.mxu0 %v1899
      %v3469 = vpop.f32.mrf.mxu0
      %v3470 = vadd.f32 %v3381, %v3469
      %v3471 = vpop.f32.mrf.mxu0
      %v3472 = vadd.f32 %v3383, %v3471
      %3473 = vmatmul.bf16.gmra.mxu0 %v1902
      %v3474 = vpop.f32.mrf.mxu0
      %v3475 = vadd.f32 %v3386, %v3474
      %v3476 = vpop.f32.mrf.mxu0
      %v3477 = vadd.f32 %v3388, %v3476
      %3478 = vmatmul.bf16.gmra.mxu0 %v1905
      %v3479 = vpop.f32.mrf.mxu0
      %v3480 = vadd.f32 %v3391, %v3479
      %v3481 = vpop.f32.mrf.mxu0
      %v3482 = vadd.f32 %v3393, %v3481
      %3483 = vmatmul.bf16.gmra.mxu0 %v1908
      %v3484 = vpop.f32.mrf.mxu0
      %v3485 = vadd.f32 %v3396, %v3484
      %v3486 = vpop.f32.mrf.mxu0
      %v3487 = vadd.f32 %v3398, %v3486
      %3488 = vmatmul.bf16.gmra.mxu0 %v1911
      %v3489 = vpop.f32.mrf.mxu0
      %v3490 = vadd.f32 %v3401, %v3489
      %v3491 = vpop.f32.mrf.mxu0
      %v3492 = vadd.f32 %v3403, %v3491
      %3493 = vmatmul.bf16.gmra.mxu0 %v1914
      %v3494 = vpop.f32.mrf.mxu0
      %v3495 = vadd.f32 %v3406, %v3494
      %v3496 = vpop.f32.mrf.mxu0
      %v3497 = vadd.f32 %v3408, %v3496
      %3498 = vmatmul.bf16.gmra.mxu0 %v1917
      %v3499 = vpop.f32.mrf.mxu0
      %v3500 = vadd.f32 %v3411, %v3499
      %v3501 = vpop.f32.mrf.mxu0
      %v3502 = vadd.f32 %v3413, %v3501
      %3503 = vmatmul.bf16.gmra.mxu0 %v1920
      %v3504 = vpop.f32.mrf.mxu0
      %v3505 = vadd.f32 %v3416, %v3504
      %v3506 = vpop.f32.mrf.mxu0
      %v3507 = vadd.f32 %v3418, %v3506
      %3508 = vmatmul.bf16.gmra.mxu0 %v1923
      %v3509 = vpop.f32.mrf.mxu0
      %v3510 = vadd.f32 %v3421, %v3509
      %v3511 = vpop.f32.mrf.mxu0
      %v3512 = vadd.f32 %v3423, %v3511
      %3513 = vmatmul.bf16.gmra.mxu0 %v1926
      %v3514 = vpop.f32.mrf.mxu0
      %v3515 = vadd.f32 %v3426, %v3514
      %v3516 = vpop.f32.mrf.mxu0
      %v3517 = vadd.f32 %v3428, %v3516
      %3518 = vmatmul.bf16.gmra.mxu0 %v1929
      %v3519 = vpop.f32.mrf.mxu0
      %v3520 = vadd.f32 %v3431, %v3519
      %v3521 = vpop.f32.mrf.mxu0
      %v3522 = vadd.f32 %v3433, %v3521
      %3523 = vdwg.mxu0
      %3524 = vmatpush.bf16.msra.mxu0 %v2901
      %3525 = vmatpush.bf16.msra.mxu0 %v2900
      %3526 = vmatpush.bf16.msra.mxu0 %v2899
      %3527 = vmatpush.bf16.msra.mxu0 %v2898
      %3528 = vmatpush.bf16.msra.mxu0 %v2897
      %3529 = vmatpush.bf16.msra.mxu0 %v2896
      %3530 = vmatpush.bf16.msra.mxu0 %v2895
      %3531 = vmatpush.bf16.msra.mxu0 %v2894
      %3532 = vmatmul.bf16.gmra.mxu0 %v2010
      %v3533 = vpop.f32.mrf.mxu0
      %v3534 = vadd.f32 %v3445, %v3533
      %v3535 = vpop.f32.mrf.mxu0
      %v3536 = vadd.f32 %v3447, %v3535
      %3537 = vmatmul.bf16.gmra.mxu0 %v2011
      %v3538 = vpop.f32.mrf.mxu0
      %v3539 = vadd.f32 %v3450, %v3538
      %v3540 = vpop.f32.mrf.mxu0
      %v3541 = vadd.f32 %v3452, %v3540
      %3542 = vmatmul.bf16.gmra.mxu0 %v2012
      %v3543 = vpop.f32.mrf.mxu0
      %v3544 = vadd.f32 %v3455, %v3543
      %v3545 = vpop.f32.mrf.mxu0
      %v3546 = vadd.f32 %v3457, %v3545
      %3547 = vmatmul.bf16.gmra.mxu0 %v2013
      %v3548 = vpop.f32.mrf.mxu0
      %v3549 = vadd.f32 %v3460, %v3548
      %v3550 = vpop.f32.mrf.mxu0
      %v3551 = vadd.f32 %v3462, %v3550
      %3552 = vmatmul.bf16.gmra.mxu0 %v2014
      %v3553 = vpop.f32.mrf.mxu0
      %v3554 = vadd.f32 %v3465, %v3553
      %v3555 = vpop.f32.mrf.mxu0
      %v3556 = vadd.f32 %v3467, %v3555
      %3557 = vmatmul.bf16.gmra.mxu0 %v2015
      %v3558 = vpop.f32.mrf.mxu0
      %v3559 = vadd.f32 %v3470, %v3558
      %v3560 = vpop.f32.mrf.mxu0
      %v3561 = vadd.f32 %v3472, %v3560
      %3562 = vmatmul.bf16.gmra.mxu0 %v2016
      %v3563 = vpop.f32.mrf.mxu0
      %v3564 = vadd.f32 %v3475, %v3563
      %v3565 = vpop.f32.mrf.mxu0
      %v3566 = vadd.f32 %v3477, %v3565
      %3567 = vmatmul.bf16.gmra.mxu0 %v2017
      %v3568 = vpop.f32.mrf.mxu0
      %v3569 = vadd.f32 %v3480, %v3568
      %v3570 = vpop.f32.mrf.mxu0
      %v3571 = vadd.f32 %v3482, %v3570
      %3572 = vmatmul.bf16.gmra.mxu0 %v2018
      %v3573 = vpop.f32.mrf.mxu0
      %v3574 = vadd.f32 %v3485, %v3573
      %v3575 = vpop.f32.mrf.mxu0
      %v3576 = vadd.f32 %v3487, %v3575
      %3577 = vmatmul.bf16.gmra.mxu0 %v2019
      %v3578 = vpop.f32.mrf.mxu0
      %v3579 = vadd.f32 %v3490, %v3578
      %v3580 = vpop.f32.mrf.mxu0
      %v3581 = vadd.f32 %v3492, %v3580
      %3582 = vmatmul.bf16.gmra.mxu0 %v2020
      %v3583 = vpop.f32.mrf.mxu0
      %v3584 = vadd.f32 %v3495, %v3583
      %v3585 = vpop.f32.mrf.mxu0
      %v3586 = vadd.f32 %v3497, %v3585
      %3587 = vmatmul.bf16.gmra.mxu0 %v2021
      %v3588 = vpop.f32.mrf.mxu0
      %v3589 = vadd.f32 %v3500, %v3588
      %v3590 = vpop.f32.mrf.mxu0
      %v3591 = vadd.f32 %v3502, %v3590
      %3592 = vmatmul.bf16.gmra.mxu0 %v2022
      %v3593 = vpop.f32.mrf.mxu0
      %v3594 = vadd.f32 %v3505, %v3593
      %v3595 = vpop.f32.mrf.mxu0
      %v3596 = vadd.f32 %v3507, %v3595
      %3597 = vmatmul.bf16.gmra.mxu0 %v2023
      %v3598 = vpop.f32.mrf.mxu0
      %v3599 = vadd.f32 %v3510, %v3598
      %v3600 = vpop.f32.mrf.mxu0
      %v3601 = vadd.f32 %v3512, %v3600
      %3602 = vmatmul.bf16.gmra.mxu0 %v2024
      %v3603 = vpop.f32.mrf.mxu0
      %v3604 = vadd.f32 %v3515, %v3603
      %v3605 = vpop.f32.mrf.mxu0
      %v3606 = vadd.f32 %v3517, %v3605
      %3607 = vmatmul.bf16.gmra.mxu0 %v2025
      %v3608 = vpop.f32.mrf.mxu0
      %v3609 = vadd.f32 %v3520, %v3608
      %v3610 = vpop.f32.mrf.mxu0
      %v3611 = vadd.f32 %v3522, %v3610
      %3612 = vdwg.mxu0
      %3613 = vmatpush.bf16.msra.mxu0 %v2909
      %3614 = vmatpush.bf16.msra.mxu0 %v2908
      %3615 = vmatpush.bf16.msra.mxu0 %v2907
      %3616 = vmatpush.bf16.msra.mxu0 %v2906
      %3617 = vmatpush.bf16.msra.mxu0 %v2905
      %3618 = vmatpush.bf16.msra.mxu0 %v2904
      %3619 = vmatpush.bf16.msra.mxu0 %v2903
      %3620 = vmatpush.bf16.msra.mxu0 %v2902
      %3621 = vmatmul.bf16.gmra.mxu0 %v2101
      %v3622 = vpop.f32.mrf.mxu0
      %v3623 = vadd.f32 %v3534, %v3622
      %v3624 = vpop.f32.mrf.mxu0
      %v3625 = vadd.f32 %v3536, %v3624
      %3626 = vmatmul.bf16.gmra.mxu0 %v2113
      %v3627 = vpop.f32.mrf.mxu0
      %v3628 = vadd.f32 %v3539, %v3627
      %v3629 = vpop.f32.mrf.mxu0
      %v3630 = vadd.f32 %v3541, %v3629
      %3631 = vmatmul.bf16.gmra.mxu0 %v2125
      %v3632 = vpop.f32.mrf.mxu0
      %v3633 = vadd.f32 %v3544, %v3632
      %v3634 = vpop.f32.mrf.mxu0
      %v3635 = vadd.f32 %v3546, %v3634
      %3636 = vmatmul.bf16.gmra.mxu0 %v2137
      %v3637 = vpop.f32.mrf.mxu0
      %v3638 = vadd.f32 %v3549, %v3637
      %v3639 = vpop.f32.mrf.mxu0
      %v3640 = vadd.f32 %v3551, %v3639
      %3641 = vmatmul.bf16.gmra.mxu0 %v2149
      %v3642 = vpop.f32.mrf.mxu0
      %v3643 = vadd.f32 %v3554, %v3642
      %v3644 = vpop.f32.mrf.mxu0
      %v3645 = vadd.f32 %v3556, %v3644
      %3646 = vmatmul.bf16.gmra.mxu0 %v2161
      %v3647 = vpop.f32.mrf.mxu0
      %v3648 = vadd.f32 %v3559, %v3647
      %v3649 = vpop.f32.mrf.mxu0
      %v3650 = vadd.f32 %v3561, %v3649
      %3651 = vmatmul.bf16.gmra.mxu0 %v2173
      %v3652 = vpop.f32.mrf.mxu0
      %v3653 = vadd.f32 %v3564, %v3652
      %v3654 = vpop.f32.mrf.mxu0
      %v3655 = vadd.f32 %v3566, %v3654
      %3656 = vmatmul.bf16.gmra.mxu0 %v2185
      %v3657 = vpop.f32.mrf.mxu0
      %v3658 = vadd.f32 %v3569, %v3657
      %v3659 = vpop.f32.mrf.mxu0
      %v3660 = vadd.f32 %v3571, %v3659
      %3661 = vmatmul.bf16.gmra.mxu0 %v2197
      %v3662 = vpop.f32.mrf.mxu0
      %v3663 = vadd.f32 %v3574, %v3662
      %v3664 = vpop.f32.mrf.mxu0
      %v3665 = vadd.f32 %v3576, %v3664
      %3666 = vmatmul.bf16.gmra.mxu0 %v2209
      %v3667 = vpop.f32.mrf.mxu0
      %v3668 = vadd.f32 %v3579, %v3667
      %v3669 = vpop.f32.mrf.mxu0
      %v3670 = vadd.f32 %v3581, %v3669
      %3671 = vmatmul.bf16.gmra.mxu0 %v2221
      %v3672 = vpop.f32.mrf.mxu0
      %v3673 = vadd.f32 %v3584, %v3672
      %v3674 = vpop.f32.mrf.mxu0
      %v3675 = vadd.f32 %v3586, %v3674
      %3676 = vmatmul.bf16.gmra.mxu0 %v2233
      %v3677 = vpop.f32.mrf.mxu0
      %v3678 = vadd.f32 %v3589, %v3677
      %v3679 = vpop.f32.mrf.mxu0
      %v3680 = vadd.f32 %v3591, %v3679
      %3681 = vmatmul.bf16.gmra.mxu0 %v2245
      %v3682 = vpop.f32.mrf.mxu0
      %v3683 = vadd.f32 %v3594, %v3682
      %v3684 = vpop.f32.mrf.mxu0
      %v3685 = vadd.f32 %v3596, %v3684
      %3686 = vmatmul.bf16.gmra.mxu0 %v2257
      %v3687 = vpop.f32.mrf.mxu0
      %v3688 = vadd.f32 %v3599, %v3687
      %v3689 = vpop.f32.mrf.mxu0
      %v3690 = vadd.f32 %v3601, %v3689
      %3691 = vmatmul.bf16.gmra.mxu0 %v2269
      %v3692 = vpop.f32.mrf.mxu0
      %v3693 = vadd.f32 %v3604, %v3692
      %v3694 = vpop.f32.mrf.mxu0
      %v3695 = vadd.f32 %v3606, %v3694
      %3696 = vmatmul.bf16.gmra.mxu0 %v2281
      %v3697 = vpop.f32.mrf.mxu0
      %v3698 = vadd.f32 %v3609, %v3697
      %v3699 = vpop.f32.mrf.mxu0
      %v3700 = vadd.f32 %v3611, %v3699
      %3701 = vdwg.mxu0
      %3702 = vmatpush.bf16.msra.mxu0 %v2917
      %3703 = vmatpush.bf16.msra.mxu0 %v2916
      %3704 = vmatpush.bf16.msra.mxu0 %v2915
      %3705 = vmatpush.bf16.msra.mxu0 %v2914
      %3706 = vmatpush.bf16.msra.mxu0 %v2913
      %3707 = vmatpush.bf16.msra.mxu0 %v2912
      %3708 = vmatpush.bf16.msra.mxu0 %v2911
      %3709 = vmatpush.bf16.msra.mxu0 %v2910
      %3710 = vmatmul.bf16.gmra.mxu0 %v2348
      %v3711 = vpop.f32.mrf.mxu0
      %v3712 = vadd.f32 %v3623, %v3711
      %v3713 = vpop.f32.mrf.mxu0
      %v3714 = vadd.f32 %v3625, %v3713
      %3715 = vmatmul.bf16.gmra.mxu0 %v2351
      %v3716 = vpop.f32.mrf.mxu0
      %v3717 = vadd.f32 %v3628, %v3716
      %v3718 = vpop.f32.mrf.mxu0
      %v3719 = vadd.f32 %v3630, %v3718
      %3720 = vmatmul.bf16.gmra.mxu0 %v2354
      %v3721 = vpop.f32.mrf.mxu0
      %v3722 = vadd.f32 %v3633, %v3721
      %v3723 = vpop.f32.mrf.mxu0
      %v3724 = vadd.f32 %v3635, %v3723
      %3725 = vmatmul.bf16.gmra.mxu0 %v2357
      %v3726 = vpop.f32.mrf.mxu0
      %v3727 = vadd.f32 %v3638, %v3726
      %v3728 = vpop.f32.mrf.mxu0
      %v3729 = vadd.f32 %v3640, %v3728
      %3730 = vmatmul.bf16.gmra.mxu0 %v2360
      %v3731 = vpop.f32.mrf.mxu0
      %v3732 = vadd.f32 %v3643, %v3731
      %v3733 = vpop.f32.mrf.mxu0
      %v3734 = vadd.f32 %v3645, %v3733
      %3735 = vmatmul.bf16.gmra.mxu0 %v2363
      %v3736 = vpop.f32.mrf.mxu0
      %v3737 = vadd.f32 %v3648, %v3736
      %v3738 = vpop.f32.mrf.mxu0
      %v3739 = vadd.f32 %v3650, %v3738
      %3740 = vmatmul.bf16.gmra.mxu0 %v2366
      %v3741 = vpop.f32.mrf.mxu0
      %v3742 = vadd.f32 %v3653, %v3741
      %v3743 = vpop.f32.mrf.mxu0
      %v3744 = vadd.f32 %v3655, %v3743
      %3745 = vmatmul.bf16.gmra.mxu0 %v2369
      %v3746 = vpop.f32.mrf.mxu0
      %v3747 = vadd.f32 %v3658, %v3746
      %v3748 = vpop.f32.mrf.mxu0
      %v3749 = vadd.f32 %v3660, %v3748
      %3750 = vmatmul.bf16.gmra.mxu0 %v2372
      %v3751 = vpop.f32.mrf.mxu0
      %v3752 = vadd.f32 %v3663, %v3751
      %v3753 = vpop.f32.mrf.mxu0
      %v3754 = vadd.f32 %v3665, %v3753
      %3755 = vmatmul.bf16.gmra.mxu0 %v2375
      %v3756 = vpop.f32.mrf.mxu0
      %v3757 = vadd.f32 %v3668, %v3756
      %v3758 = vpop.f32.mrf.mxu0
      %v3759 = vadd.f32 %v3670, %v3758
      %3760 = vmatmul.bf16.gmra.mxu0 %v2378
      %v3761 = vpop.f32.mrf.mxu0
      %v3762 = vadd.f32 %v3673, %v3761
      %v3763 = vpop.f32.mrf.mxu0
      %v3764 = vadd.f32 %v3675, %v3763
      %3765 = vmatmul.bf16.gmra.mxu0 %v2381
      %v3766 = vpop.f32.mrf.mxu0
      %v3767 = vadd.f32 %v3678, %v3766
      %v3768 = vpop.f32.mrf.mxu0
      %v3769 = vadd.f32 %v3680, %v3768
      %3770 = vmatmul.bf16.gmra.mxu0 %v2384
      %v3771 = vpop.f32.mrf.mxu0
      %v3772 = vadd.f32 %v3683, %v3771
      %v3773 = vpop.f32.mrf.mxu0
      %v3774 = vadd.f32 %v3685, %v3773
      %3775 = vmatmul.bf16.gmra.mxu0 %v2387
      %v3776 = vpop.f32.mrf.mxu0
      %v3777 = vadd.f32 %v3688, %v3776
      %v3778 = vpop.f32.mrf.mxu0
      %v3779 = vadd.f32 %v3690, %v3778
      %3780 = vmatmul.bf16.gmra.mxu0 %v2390
      %v3781 = vpop.f32.mrf.mxu0
      %v3782 = vadd.f32 %v3693, %v3781
      %v3783 = vpop.f32.mrf.mxu0
      %v3784 = vadd.f32 %v3695, %v3783
      %3785 = vmatmul.bf16.gmra.mxu0 %v2393
      %v3786 = vpop.f32.mrf.mxu0
      %v3787 = vadd.f32 %v3698, %v3786
      %v3788 = vpop.f32.mrf.mxu0
      %v3789 = vadd.f32 %v3700, %v3788
      %3790 = vdwg.mxu0
      %3791 = vst [vmem:[%s258] sm:$0xff] %v3712
      %3792 = vst [vmem:[%s258 + $0x8] sm:$0xff] %v3714
      %3793 = vst [vmem:[%s258 + $0x10] sm:$0xff] %v3717
      %3794 = vst [vmem:[%s258 + $0x18] sm:$0xff] %v3719
      %3795 = vst [vmem:[%s258 + $0x20] sm:$0xff] %v3722
      %3796 = vst [vmem:[%s258 + $0x28] sm:$0xff] %v3724
      %3797 = vst [vmem:[%s258 + $0x30] sm:$0xff] %v3727
      %3798 = vst [vmem:[%s258 + $0x38] sm:$0xff] %v3729
      %3799 = vst [vmem:[%s258 + $0x40] sm:$0xff] %v3732
      %3800 = vst [vmem:[%s258 + $0x48] sm:$0xff] %v3734
      %3801 = vst [vmem:[%s258 + $0x50] sm:$0xff] %v3737
      %3802 = vst [vmem:[%s258 + $0x58] sm:$0xff] %v3739
      %3803 = vst [vmem:[%s258 + $0x60] sm:$0xff] %v3742
      %3804 = vst [vmem:[%s258 + $0x68] sm:$0xff] %v3744
      %3805 = vst [vmem:[%s258 + $0x70] sm:$0xff] %v3747
      %3806 = vst [vmem:[%s258 + $0x78] sm:$0xff] %v3749
      %3807 = vst [vmem:[%s258 + $0x80] sm:$0xff] %v3752
      %3808 = vst [vmem:[%s258 + $0x88] sm:$0xff] %v3754
      %3809 = vst [vmem:[%s258 + $0x90] sm:$0xff] %v3757
      %3810 = vst [vmem:[%s258 + $0x98] sm:$0xff] %v3759
      %3811 = vst [vmem:[%s258 + $0xa0] sm:$0xff] %v3762
      %3812 = vst [vmem:[%s258 + $0xa8] sm:$0xff] %v3764
      %3813 = vst [vmem:[%s258 + $0xb0] sm:$0xff] %v3767
      %3814 = vst [vmem:[%s258 + $0xb8] sm:$0xff] %v3769
      %3815 = vst [vmem:[%s258 + $0xc0] sm:$0xff] %v3772
      %3816 = vst [vmem:[%s258 + $0xc8] sm:$0xff] %v3774
      %3817 = vst [vmem:[%s258 + $0xd0] sm:$0xff] %v3777
      %3818 = vst [vmem:[%s258 + $0xd8] sm:$0xff] %v3779
      %3819 = vst [vmem:[%s258 + $0xe0] sm:$0xff] %v3782
      %3820 = vst [vmem:[%s258 + $0xe8] sm:$0xff] %v3784
      %3821 = vst [vmem:[%s258 + $0xf0] sm:$0xff] %v3787
      %3822 = vst [vmem:[%s258 + $0xf8] sm:$0xff] %v3789
      %v3823 = vadd.f32 %v3712, %v3714
      %v3824 = vadd.f32 %v3823, %v3717
      %v3825 = vadd.f32 %v3824, %v3719
      %v3826 = vadd.f32 %v3825, %v3722
      %v3827 = vadd.f32 %v3826, %v3724
      %v3828 = vadd.f32 %v3827, %v3727
      %v3829 = vadd.f32 %v3828, %v3729
      %v3830 = vadd.f32 %v3829, %v3732
      %v3831 = vadd.f32 %v3830, %v3734
      %v3832 = vadd.f32 %v3831, %v3737
      %v3833 = vadd.f32 %v3832, %v3739
      %v3834 = vadd.f32 %v3833, %v3742
      %v3835 = vadd.f32 %v3834, %v3744
      %v3836 = vadd.f32 %v3835, %v3747
      %v3837 = vadd.f32 %v3836, %v3749
      %v3838 = vadd.f32 %v3837, %v3752
      %v3839 = vadd.f32 %v3838, %v3754
      %v3840 = vadd.f32 %v3839, %v3757
      %v3841 = vadd.f32 %v3840, %v3759
      %v3842 = vadd.f32 %v3841, %v3762
      %v3843 = vadd.f32 %v3842, %v3764
      %v3844 = vadd.f32 %v3843, %v3767
      %v3845 = vadd.f32 %v3844, %v3769
      %v3846 = vadd.f32 %v3845, %v3772
      %v3847 = vadd.f32 %v3846, %v3774
      %v3848 = vadd.f32 %v3847, %v3777
      %v3849 = vadd.f32 %v3848, %v3779
      %v3850 = vadd.f32 %v3849, %v3782
      %v3851 = vadd.f32 %v3850, %v3784
      %v3852 = vadd.f32 %v3851, %v3787
      %v3853 = vadd.f32 %v3852, %v3789
      %v3854 = vrot.slane %v3853, 4
      %v3855 = vadd.f32 %v3853, %v3854
      %v3856 = vrot.slane %v3855, 2
      %v3857 = vadd.f32 %v3855, %v3856
      %v3858 = vrot.slane %v3857, 1
      %v3859 = vadd.f32 %v3857, %v3858
      %3860 = vst [vmem:[%s262] sm:$0x1] %v3859
      %v3861 = vmul.f32 %v3712, %v3712
      %v3862 = vmul.f32 %v3714, %v3714
      %v3863 = vmul.f32 %v3717, %v3717
      %v3864 = vmul.f32 %v3719, %v3719
      %v3865 = vmul.f32 %v3722, %v3722
      %v3866 = vmul.f32 %v3724, %v3724
      %v3867 = vmul.f32 %v3727, %v3727
      %v3868 = vmul.f32 %v3729, %v3729
      %v3869 = vmul.f32 %v3732, %v3732
      %v3870 = vmul.f32 %v3734, %v3734
      %v3871 = vmul.f32 %v3737, %v3737
      %v3872 = vmul.f32 %v3739, %v3739
      %v3873 = vmul.f32 %v3742, %v3742
      %v3874 = vmul.f32 %v3744, %v3744
      %v3875 = vmul.f32 %v3747, %v3747
      %v3876 = vmul.f32 %v3749, %v3749
      %v3877 = vmul.f32 %v3752, %v3752
      %v3878 = vmul.f32 %v3754, %v3754
      %v3879 = vmul.f32 %v3757, %v3757
      %v3880 = vmul.f32 %v3759, %v3759
      %v3881 = vmul.f32 %v3762, %v3762
      %v3882 = vmul.f32 %v3764, %v3764
      %v3883 = vmul.f32 %v3767, %v3767
      %v3884 = vmul.f32 %v3769, %v3769
      %v3885 = vmul.f32 %v3772, %v3772
      %v3886 = vmul.f32 %v3774, %v3774
      %v3887 = vmul.f32 %v3777, %v3777
      %v3888 = vmul.f32 %v3779, %v3779
      %v3889 = vmul.f32 %v3782, %v3782
      %v3890 = vmul.f32 %v3784, %v3784
      %v3891 = vmul.f32 %v3787, %v3787
      %v3892 = vmul.f32 %v3789, %v3789
      %v3893 = vadd.f32 %v3861, %v3862
      %v3894 = vadd.f32 %v3893, %v3863
      %v3895 = vadd.f32 %v3894, %v3864
      %v3896 = vadd.f32 %v3895, %v3865
      %v3897 = vadd.f32 %v3896, %v3866
      %v3898 = vadd.f32 %v3897, %v3867
      %v3899 = vadd.f32 %v3898, %v3868
      %v3900 = vadd.f32 %v3899, %v3869
      %v3901 = vadd.f32 %v3900, %v3870
      %v3902 = vadd.f32 %v3901, %v3871
      %v3903 = vadd.f32 %v3902, %v3872
      %v3904 = vadd.f32 %v3903, %v3873
      %v3905 = vadd.f32 %v3904, %v3874
      %v3906 = vadd.f32 %v3905, %v3875
      %v3907 = vadd.f32 %v3906, %v3876
      %v3908 = vadd.f32 %v3907, %v3877
      %v3909 = vadd.f32 %v3908, %v3878
      %v3910 = vadd.f32 %v3909, %v3879
      %v3911 = vadd.f32 %v3910, %v3880
      %v3912 = vadd.f32 %v3911, %v3881
      %v3913 = vadd.f32 %v3912, %v3882
      %v3914 = vadd.f32 %v3913, %v3883
      %v3915 = vadd.f32 %v3914, %v3884
      %v3916 = vadd.f32 %v3915, %v3885
      %v3917 = vadd.f32 %v3916, %v3886
      %v3918 = vadd.f32 %v3917, %v3887
      %v3919 = vadd.f32 %v3918, %v3888
      %v3920 = vadd.f32 %v3919, %v3889
      %v3921 = vadd.f32 %v3920, %v3890
      %v3922 = vadd.f32 %v3921, %v3891
      %v3923 = vadd.f32 %v3922, %v3892
      %v3924 = vrot.slane %v3923, 4
      %v3925 = vadd.f32 %v3923, %v3924
      %v3926 = vrot.slane %v3925, 2
      %v3927 = vadd.f32 %v3925, %v3926
      %v3928 = vrot.slane %v3927, 1
      %v3929 = vadd.f32 %v3927, %v3928
      %3930 = vst [vmem:[%s262 + $0x1] sm:$0x1] %v3929
      %p3931 = scmp.lt.s32.totalorder %s18, 1
      %s3932 = scalar_select %p3931, %s18, 1
      %s3933 = smul.addr %s3932, 32
      %s3934 = smul.addr %s3933, 8
      %s3935 = scalar_lea.vmem %s5, %s3934
      %p3936 = scmp.lt.s32.totalorder %s18, 1
      %s3937 = scalar_select %p3936, %s18, 1
      %s3938 = smul.addr %s3937, 2
      %s3939 = scalar_lea.vmem %s6, %s3938
      // Predicated region
      $region41: #{double_conv_bn_forward.3} parent=39 // pred_check
        %p3940 = pneg %p146
      $region42: #{double_conv_bn_forward.3} parent=39 // pred_check_branch
        %3942 = sbr.rel (%p3940) target = $region44
      $region43: #{double_conv_bn_forward.3} parent=39 // pred_region
        _
      $region44: #{double_conv_bn_forward.3} parent=39 // pred_fallthru
        _
      // Predicated region
      $region45: #{double_conv_bn_forward.3} parent=39 // pred_check
        %p3943 = pneg %p172
      $region46: #{double_conv_bn_forward.3} parent=39 // pred_check_branch
        %3945 = sbr.rel (%p3943) target = $region48
      $region47: #{double_conv_bn_forward.3} parent=39 // pred_region
        _
      $region48: #{double_conv_bn_forward.3} parent=39 // pred_fallthru
        _
    $region40: #{double_conv_bn_forward.3} parent=5 // pred_fallthru
      _
    %p3946 = scmp.le.s32.totalorder 2, %s13
    // Predicated region
    $region49: #{double_conv_bn_forward.3} parent=5 // pred_check
      %p3947 = pneg %p3946
    $region50: #{double_conv_bn_forward.3} parent=5 // pred_check_branch
      %3949 = sbr.rel (%p3947) target = $region52
    $region51: #{double_conv_bn_forward.3} parent=5 // pred_region
      %s3950 = ssub.s32 %s13, 2
      // Predicated region
      $region53: #{double_conv_bn_forward.3} parent=51 // pred_check
        %p3951 = pneg %p152
      $region54: #{double_conv_bn_forward.3} parent=51 // pred_check_branch
        %3953 = sbr.rel (%p3951) target = $region56
      $region55: #{double_conv_bn_forward.3} parent=51 // pred_region
        %p3954 = scmp.lt.s32.totalorder %s19, 1
        %s3955 = scalar_select %p3954, %s19, 1
        %s3956 = smul.addr %s3955, 32
        %s3957 = smul.addr %s3956, 8
        %s3958 = scalar_lea.vmem %s5, %s3957
      $region56: #{double_conv_bn_forward.3} parent=51 // pred_fallthru
        _
      // Predicated region
      $region57: #{double_conv_bn_forward.3} parent=51 // pred_check
        %p3959 = pneg %p178
      $region58: #{double_conv_bn_forward.3} parent=51 // pred_check_branch
        %3961 = sbr.rel (%p3959) target = $region60
      $region59: #{double_conv_bn_forward.3} parent=51 // pred_region
        %p3962 = scmp.lt.s32.totalorder %s19, 1
        %s3963 = scalar_select %p3962, %s19, 1
        %s3964 = smul.addr %s3963, 2
        %s3965 = scalar_lea.vmem %s6, %s3964
      $region60: #{double_conv_bn_forward.3} parent=51 // pred_fallthru
        _
    $region52: #{double_conv_bn_forward.3} parent=5 // pred_fallthru
      _
  $region6: #{double_conv_bn_forward.3} parent=0 // loop_footer
    %s17 = sadd.s32 1, %s13
  $region7: #{double_conv_bn_forward.3} parent=0 // loop_footer_branch
    %12 = sbr.rel target = $region3
  $region8: #{double_conv_bn_forward.3} parent=0 // loop_exit
    _

// kernel: double_conv_bn_forward.4
$region0: #{double_conv_bn_forward.4}
  #allocation0 [shape = 'u32[]', space=smem, size = 0x4, offset = 0x4, fixed_abs, tag = 'smem constant byte address 0x4 - core index']
  #allocation1 [shape = 'u32[72,128]{1,0:T(1,128)}', space=vmem, size = 0x9000, scoped, tag = 'internal scratch']
  #allocation2 [shape = 'bf16[18,18,128]{2,1,0:T(8,128)(2,1)}', space=vmem, size = 0x1b000, scoped, tag = 'scratch operand']
  %s0 = inlined_call_operand.vmem [shape: f32[2,16,16,128], index: 0, kind: input, shape index: {}]
  %s1 = inlined_call_operand.vmem [shape: f32[1,128], index: 1, kind: input, shape index: {}]
  %s2 = inlined_call_operand.vmem [shape: f32[1,128], index: 2, kind: input, shape index: {}]
  %s3 = inlined_call_operand.vmem [shape: bf16[3,3,128,128], index: 3, kind: input, shape index: {}]
  %s4 = inlined_call_operand.vmem [shape: f32[1,128], index: 4, kind: input, shape index: {}]
  %s5 = inlined_call_operand.vmem [shape: f32[2,16,16,128], index: 5, kind: output, shape index: {0}]
  %s6 = inlined_call_operand.vmem [shape: f32[2,2,128], index: 6, kind: output, shape index: {1}]
  %7 = xla_tuple %s5, %s6
  %s8 = sld [smem:[#allocation0]]
  $region61: #{double_conv_bn_forward.4} parent=0
    _
  %s10 = ssub.s32 1, %s8
  %s11 = scalar_select 0, %s10, %s8
  loop: start=0, step=1, limit=4
  $region2: #{double_conv_bn_forward.4} parent=0 // loop_pre_header
    _
  $region3: #{double_conv_bn_forward.4} parent=0 // loop_header
    %s13 = sphi 0, %s17
    %p14 = scmp.ge.s32.totalorder %s13, 4
    %s23 = sphi 0, %s25
    %s26 = sphi 0, %s23
    %s27 = sphi 0, %s26
    %s43 = sphi 0, %s27
    %s47 = sphi 0, %s47
    %s49 = sphi 0, %s47
    %s50 = sphi 0, %s49
    %s64 = sphi 0, %s50
    %s68 = sphi 0, %s68
    %s70 = sphi 0, %s68
    %s71 = sphi 0, %s70
    %s85 = sphi 0, %s71
    %s89 = sphi 0, %s89
    %s91 = sphi 0, %s89
    %s92 = sphi 0, %s91
    %s106 = sphi 0, %s92
    %s110 = sphi 0, %s110
    %s112 = sphi 0, %s110
    %s113 = sphi 0, %s112
    %s127 = sphi 0, %s113
    %s133 = sphi 0, %s135
    %s136 = sphi 0, %s133
    %s137 = sphi 0, %s136
    %s153 = sphi 0, %s137
    %s159 = sphi 0, %s161
    %s162 = sphi 0, %s159
    %s163 = sphi 0, %s162
    %s179 = sphi 0, %s163
  $region4: #{double_conv_bn_forward.4} parent=0 // loop_header_branch
    %16 = sbr.rel (%p14) target = $region8
  $region5: #{double_conv_bn_forward.4} parent=0 // loop_body
    %s18 = ssub.s32 %s13, 1
    %s19 = ssub.s32 %s13, 2
    %s20 = sadd.s32 %s13, 1
    %s21 = ssub.s32 %s13, %s20
    %p22 = scmp.eq.s32.totalorder %s21, 0
    %s24 = sadd.s32 %s23, 1
    %s25 = scalar_select %p22, %s23, %s24
    %p28 = pneg %p22
    %p29 = scmp.eq.s32.totalorder %s13, 1
    %p30 = por %p28, %p29
    %p31 = scmp.ne.s32.totalorder %s23, %s26
    %p32 = scmp.eq.s32.totalorder %s13, 0
    %p33 = por %p31, %p32
    %p34 = scmp.ne.s32.totalorder %s23, %s26
    %p35 = scmp.eq.s32.totalorder %s18, 1
    %p36 = por %p34, %p35
    %p37 = scmp.ne.s32.totalorder %s26, %s27
    %p38 = scmp.eq.s32.totalorder %s18, 0
    %p39 = por %p37, %p38
    %p40 = scmp.ne.s32.totalorder %s26, %s27
    %p41 = scmp.eq.s32.totalorder %s19, 1
    %p42 = por %p40, %p41
    %p44 = scmp.ne.s32.totalorder %s27, %s43
    %p45 = scmp.eq.s32.totalorder %s19, 0
    %p46 = por %p44, %p45
    %s48 = sadd.s32 %s47, 1
    %p51 = scmp.eq.s32.totalorder %s13, 1
    %p52 = scmp.ne.s32.totalorder %s47, %s49
    %p53 = scmp.eq.s32.totalorder %s13, 0
    %p54 = por %p52, %p53
    %p55 = scmp.ne.s32.totalorder %s47, %s49
    %p56 = scmp.eq.s32.totalorder %s18, 1
    %p57 = por %p55, %p56
    %p58 = scmp.ne.s32.totalorder %s49, %s50
    %p59 = scmp.eq.s32.totalorder %s18, 0
    %p60 = por %p58, %p59
    %p61 = scmp.ne.s32.totalorder %s49, %s50
    %p62 = scmp.eq.s32.totalorder %s19, 1
    %p63 = por %p61, %p62
    %p65 = scmp.ne.s32.totalorder %s50, %s64
    %p66 = scmp.eq.s32.totalorder %s19, 0
    %p67 = por %p65, %p66
    %s69 = sadd.s32 %s68, 1
    %p72 = scmp.eq.s32.totalorder %s13, 1
    %p73 = scmp.ne.s32.totalorder %s68, %s70
    %p74 = scmp.eq.s32.totalorder %s13, 0
    %p75 = por %p73, %p74
    %p76 = scmp.ne.s32.totalorder %s68, %s70
    %p77 = scmp.eq.s32.totalorder %s18, 1
    %p78 = por %p76, %p77
    %p79 = scmp.ne.s32.totalorder %s70, %s71
    %p80 = scmp.eq.s32.totalorder %s18, 0
    %p81 = por %p79, %p80
    %p82 = scmp.ne.s32.totalorder %s70, %s71
    %p83 = scmp.eq.s32.totalorder %s19, 1
    %p84 = por %p82, %p83
    %p86 = scmp.ne.s32.totalorder %s71, %s85
    %p87 = scmp.eq.s32.totalorder %s19, 0
    %p88 = por %p86, %p87
    %s90 = sadd.s32 %s89, 1
    %p93 = scmp.eq.s32.totalorder %s13, 1
    %p94 = scmp.ne.s32.totalorder %s89, %s91
    %p95 = scmp.eq.s32.totalorder %s13, 0
    %p96 = por %p94, %p95
    %p97 = scmp.ne.s32.totalorder %s89, %s91
    %p98 = scmp.eq.s32.totalorder %s18, 1
    %p99 = por %p97, %p98
    %p100 = scmp.ne.s32.totalorder %s91, %s92
    %p101 = scmp.eq.s32.totalorder %s18, 0
    %p102 = por %p100, %p101
    %p103 = scmp.ne.s32.totalorder %s91, %s92
    %p104 = scmp.eq.s32.totalorder %s19, 1
    %p105 = por %p103, %p104
    %p107 = scmp.ne.s32.totalorder %s92, %s106
    %p108 = scmp.eq.s32.totalorder %s19, 0
    %p109 = por %p107, %p108
    %s111 = sadd.s32 %s110, 1
    %p114 = scmp.eq.s32.totalorder %s13, 1
    %p115 = scmp.ne.s32.totalorder %s110, %s112
    %p116 = scmp.eq.s32.totalorder %s13, 0
    %p117 = por %p115, %p116
    %p118 = scmp.ne.s32.totalorder %s110, %s112
    %p119 = scmp.eq.s32.totalorder %s18, 1
    %p120 = por %p118, %p119
    %p121 = scmp.ne.s32.totalorder %s112, %s113
    %p122 = scmp.eq.s32.totalorder %s18, 0
    %p123 = por %p121, %p122
    %p124 = scmp.ne.s32.totalorder %s112, %s113
    %p125 = scmp.eq.s32.totalorder %s19, 1
    %p126 = por %p124, %p125
    %p128 = scmp.ne.s32.totalorder %s113, %s127
    %p129 = scmp.eq.s32.totalorder %s19, 0
    %p130 = por %p128, %p129
    %s131 = ssub.s32 %s13, %s20
    %p132 = scmp.eq.s32.totalorder %s131, 0
    %s134 = sadd.s32 %s133, 1
    %s135 = scalar_select %p132, %s133, %s134
    %p138 = pneg %p132
    %p139 = scmp.eq.s32.totalorder %s13, 1
    %p140 = por %p138, %p139
    %p141 = scmp.ne.s32.totalorder %s133, %s136
    %p142 = scmp.eq.s32.totalorder %s13, 0
    %p143 = por %p141, %p142
    %p144 = scmp.ne.s32.totalorder %s133, %s136
    %p145 = scmp.eq.s32.totalorder %s18, 1
    %p146 = por %p144, %p145
    %p147 = scmp.ne.s32.totalorder %s136, %s137
    %p148 = scmp.eq.s32.totalorder %s18, 0
    %p149 = por %p147, %p148
    %p150 = scmp.ne.s32.totalorder %s136, %s137
    %p151 = scmp.eq.s32.totalorder %s19, 1
    %p152 = por %p150, %p151
    %p154 = scmp.ne.s32.totalorder %s137, %s153
    %p155 = scmp.eq.s32.totalorder %s19, 0
    %p156 = por %p154, %p155
    %s157 = ssub.s32 %s13, %s20
    %p158 = scmp.eq.s32.totalorder %s157, 0
    %s160 = sadd.s32 %s159, 1
    %s161 = scalar_select %p158, %s159, %s160
    %p164 = pneg %p158
    %p165 = scmp.eq.s32.totalorder %s13, 1
    %p166 = por %p164, %p165
    %p167 = scmp.ne.s32.totalorder %s159, %s162
    %p168 = scmp.eq.s32.totalorder %s13, 0
    %p169 = por %p167, %p168
    %p170 = scmp.ne.s32.totalorder %s159, %s162
    %p171 = scmp.eq.s32.totalorder %s18, 1
    %p172 = por %p170, %p171
    %p173 = scmp.ne.s32.totalorder %s162, %s163
    %p174 = scmp.eq.s32.totalorder %s18, 0
    %p175 = por %p173, %p174
    %p176 = scmp.ne.s32.totalorder %s162, %s163
    %p177 = scmp.eq.s32.totalorder %s19, 1
    %p178 = por %p176, %p177
    %p180 = scmp.ne.s32.totalorder %s163, %s179
    %p181 = scmp.eq.s32.totalorder %s19, 0
    %p182 = por %p180, %p181
    %p183 = scmp.le.s32.totalorder 1, %s13
    %p184 = scmp.lt.s32.totalorder %s13, 3
    %p185 = pnand %p183, %p184
    %p186 = pneg %p185
    // Predicated region
    $region9: #{double_conv_bn_forward.4} parent=5 // pred_check
      _
    $region10: #{double_conv_bn_forward.4} parent=5 // pred_check_branch
      %188 = sbr.rel (%p185) target = $region12
    $region11: #{double_conv_bn_forward.4} parent=5 // pred_region
      %s189 = ssub.s32 %s13, 1
      // Predicated region
      $region13: #{double_conv_bn_forward.4} parent=11 // pred_check
        %p190 = pneg %p60
      $region14: #{double_conv_bn_forward.4} parent=11 // pred_check_branch
        %192 = sbr.rel (%p190) target = $region16
      $region15: #{double_conv_bn_forward.4} parent=11 // pred_region
        _
      $region16: #{double_conv_bn_forward.4} parent=11 // pred_fallthru
        _
      // Predicated region
      $region17: #{double_conv_bn_forward.4} parent=11 // pred_check
        %p193 = pneg %p81
      $region18: #{double_conv_bn_forward.4} parent=11 // pred_check_branch
        %195 = sbr.rel (%p193) target = $region20
      $region19: #{double_conv_bn_forward.4} parent=11 // pred_region
        _
      $region20: #{double_conv_bn_forward.4} parent=11 // pred_fallthru
        _
      // Predicated region
      $region21: #{double_conv_bn_forward.4} parent=11 // pred_check
        %p196 = pneg %p102
      $region22: #{double_conv_bn_forward.4} parent=11 // pred_check_branch
        %198 = sbr.rel (%p196) target = $region24
      $region23: #{double_conv_bn_forward.4} parent=11 // pred_region
        _
      $region24: #{double_conv_bn_forward.4} parent=11 // pred_fallthru
        _
      // Predicated region
      $region25: #{double_conv_bn_forward.4} parent=11 // pred_check
        %p199 = pneg %p123
      $region26: #{double_conv_bn_forward.4} parent=11 // pred_check_branch
        %201 = sbr.rel (%p199) target = $region28
      $region27: #{double_conv_bn_forward.4} parent=11 // pred_region
        _
      $region28: #{double_conv_bn_forward.4} parent=11 // pred_fallthru
        _
    $region12: #{double_conv_bn_forward.4} parent=5 // pred_fallthru
      _
    %p202 = scmp.lt.s32.totalorder %s13, 2
    // Predicated region
    $region29: #{double_conv_bn_forward.4} parent=5 // pred_check
      %p203 = pneg %p202
    $region30: #{double_conv_bn_forward.4} parent=5 // pred_check_branch
      %205 = sbr.rel (%p203) target = $region32
    $region31: #{double_conv_bn_forward.4} parent=5 // pred_region
      // Predicated region
      $region33: #{double_conv_bn_forward.4} parent=31 // pred_check
        %p206 = pneg %p33
      $region34: #{double_conv_bn_forward.4} parent=31 // pred_check_branch
        %208 = sbr.rel (%p206) target = $region36
      $region35: #{double_conv_bn_forward.4} parent=31 // pred_region
        %p209 = scmp.lt.s32.totalorder %s13, 1
        %s210 = scalar_select %p209, %s13, 1
        %s211 = smul.addr %s210, 32
        %s212 = smul.addr %s211, 8
        %s213 = scalar_lea.vmem %s0, %s212
      $region36: #{double_conv_bn_forward.4} parent=31 // pred_fallthru
        _
    $region32: #{double_conv_bn_forward.4} parent=5 // pred_fallthru
      _
    %p214 = scmp.le.s32.totalorder 1, %s13
    %p215 = scmp.lt.s32.totalorder %s13, 3
    %p216 = pnand %p214, %p215
    %p217 = pneg %p216
    // Predicated region
    $region37: #{double_conv_bn_forward.4} parent=5 // pred_check
      _
    $region38: #{double_conv_bn_forward.4} parent=5 // pred_check_branch
      %219 = sbr.rel (%p216) target = $region40
    $region39: #{double_conv_bn_forward.4} parent=5 // pred_region
      %s220 = ssub.s32 %s13, 1
      %p221 = scmp.lt.s32.totalorder %s18, 1
      %s222 = scalar_select %p221, %s18, 1
      %s223 = smul.addr %s222, 32
      %s224 = smul.addr %s223, 8
      %s225 = scalar_lea.vmem %s0, %s224
      %p226 = pneg %p39
      %p227 = pneg %p36
      %p228 = pneg %p60
      %p229 = pneg %p57
      %p230 = pneg %p81
      %p231 = pneg %p78
      %p232 = pneg %p102
      %p233 = pneg %p99
      %p234 = pneg %p123
      %p235 = pneg %p120
      %p236 = pneg %p149
      %p237 = pneg %p146
      %p238 = scmp.lt.s32.totalorder %s18, 1
      %s239 = scalar_select %p238, %s18, 1
      %s240 = smul.addr %s239, 32
      %s241 = smul.addr %s240, 8
      %s242 = scalar_lea.vmem %s5, %s241
      %p243 = pneg %p175
      %p244 = pneg %p172
      %p245 = scmp.lt.s32.totalorder %s18, 1
      %s246 = scalar_select %p245, %s18, 1
      %s247 = smul.addr %s246, 2
      %s248 = scalar_lea.vmem %s6, %s247
      %p249 = scmp.lt.s32.totalorder %s18, 1
      %s250 = scalar_select %p249, %s18, 1
      %s251 = smul.addr %s250, 32
      %s252 = smul.addr %s251, 8
      %s253 = scalar_lea.vmem %s0, %s252
      %p254 = scmp.lt.s32.totalorder %s18, 1
      %s255 = scalar_select %p254, %s18, 1
      %s256 = smul.addr %s255, 32
      %s257 = smul.addr %s256, 8
      %s258 = scalar_lea.vmem %s5, %s257
      %p259 = scmp.lt.s32.totalorder %s18, 1
      %s260 = scalar_select %p259, %s18, 1
      %s261 = smul.addr %s260, 2
      %s262 = scalar_lea.vmem %s6, %s261
      %v264 = vld [vmem:[%s253] sm:$0xff]
      %v265 = vld [vmem:[%s253 + $0x8] sm:$0xff]
      %v266 = vld [vmem:[%s253 + $0x10] sm:$0xff]
      %v267 = vld [vmem:[%s253 + $0x18] sm:$0xff]
      %v268 = vld [vmem:[%s253 + $0x20] sm:$0xff]
      %v269 = vld [vmem:[%s253 + $0x28] sm:$0xff]
      %v270 = vld [vmem:[%s253 + $0x30] sm:$0xff]
      %v271 = vld [vmem:[%s253 + $0x38] sm:$0xff]
      %v272 = vld [vmem:[%s253 + $0x40] sm:$0xff]
      %v273 = vld [vmem:[%s253 + $0x48] sm:$0xff]
      %v274 = vld [vmem:[%s253 + $0x50] sm:$0xff]
      %v275 = vld [vmem:[%s253 + $0x58] sm:$0xff]
      %v276 = vld [vmem:[%s253 + $0x60] sm:$0xff]
      %v277 = vld [vmem:[%s253 + $0x68] sm:$0xff]
      %v278 = vld [vmem:[%s253 + $0x70] sm:$0xff]
      %v279 = vld [vmem:[%s253 + $0x78] sm:$0xff]
      %v280 = vld [vmem:[%s253 + $0x80] sm:$0xff]
      %v281 = vld [vmem:[%s253 + $0x88] sm:$0xff]
      %v282 = vld [vmem:[%s253 + $0x90] sm:$0xff]
      %v283 = vld [vmem:[%s253 + $0x98] sm:$0xff]
      %v284 = vld [vmem:[%s253 + $0xa0] sm:$0xff]
      %v285 = vld [vmem:[%s253 + $0xa8] sm:$0xff]
      %v286 = vld [vmem:[%s253 + $0xb0] sm:$0xff]
      %v287 = vld [vmem:[%s253 + $0xb8] sm:$0xff]
      %v288 = vld [vmem:[%s253 + $0xc0] sm:$0xff]
      %v289 = vld [vmem:[%s253 + $0xc8] sm:$0xff]
      %v290 = vld [vmem:[%s253 + $0xd0] sm:$0xff]
      %v291 = vld [vmem:[%s253 + $0xd8] sm:$0xff]
      %v292 = vld [vmem:[%s253 + $0xe0] sm:$0xff]
      %v293 = vld [vmem:[%s253 + $0xe8] sm:$0xff]
      %v294 = vld [vmem:[%s253 + $0xf0] sm:$0xff]
      %v295 = vld [vmem:[%s253 + $0xf8] sm:$0xff]
      %v296 = vld [vmem:[%s1] sm:$0x1]
      %v298 = vperm.slane %v296, 0
      %v300 = vmul.f32 %v264, %v298
      %v301 = vmul.f32 %v265, %v298
      %v302 = vmul.f32 %v266, %v298
      %v303 = vmul.f32 %v267, %v298
      %v304 = vmul.f32 %v268, %v298
      %v305 = vmul.f32 %v269, %v298
      %v306 = vmul.f32 %v270, %v298
      %v307 = vmul.f32 %v271, %v298
      %v308 = vmul.f32 %v272, %v298
      %v309 = vmul.f32 %v273, %v298
      %v310 = vmul.f32 %v274, %v298
      %v311 = vmul.f32 %v275, %v298
      %v312 = vmul.f32 %v276, %v298
      %v313 = vmul.f32 %v277, %v298
      %v314 = vmul.f32 %v278, %v298
      %v315 = vmul.f32 %v279, %v298
      %v316 = vmul.f32 %v280, %v298
      %v317 = vmul.f32 %v281, %v298
      %v318 = vmul.f32 %v282, %v298
      %v319 = vmul.f32 %v283, %v298
      %v320 = vmul.f32 %v284, %v298
      %v321 = vmul.f32 %v285, %v298
      %v322 = vmul.f32 %v286, %v298
      %v323 = vmul.f32 %v287, %v298
      %v324 = vmul.f32 %v288, %v298
      %v325 = vmul.f32 %v289, %v298
      %v326 = vmul.f32 %v290, %v298
      %v327 = vmul.f32 %v291, %v298
      %v328 = vmul.f32 %v292, %v298
      %v329 = vmul.f32 %v293, %v298
      %v330 = vmul.f32 %v294, %v298
      %v331 = vmul.f32 %v295, %v298
      %v332 = vld [vmem:[%s2] sm:$0x1]
      %v334 = vperm.slane %v332, 0
      %v336 = vadd.f32 %v300, %v334
      %v337 = vadd.f32 %v301, %v334
      %v338 = vadd.f32 %v302, %v334
      %v339 = vadd.f32 %v303, %v334
      %v340 = vadd.f32 %v304, %v334
      %v341 = vadd.f32 %v305, %v334
      %v342 = vadd.f32 %v306, %v334
      %v343 = vadd.f32 %v307, %v334
      %v344 = vadd.f32 %v308, %v334
      %v345 = vadd.f32 %v309, %v334
      %v346 = vadd.f32 %v310, %v334
      %v347 = vadd.f32 %v311, %v334
      %v348 = vadd.f32 %v312, %v334
      %v349 = vadd.f32 %v313, %v334
      %v350 = vadd.f32 %v314, %v334
      %v351 = vadd.f32 %v315, %v334
      %v352 = vadd.f32 %v316, %v334
      %v353 = vadd.f32 %v317, %v334
      %v354 = vadd.f32 %v318, %v334
      %v355 = vadd.f32 %v319, %v334
      %v356 = vadd.f32 %v320, %v334
      %v357 = vadd.f32 %v321, %v334
      %v358 = vadd.f32 %v322, %v334
      %v359 = vadd.f32 %v323, %v334
      %v360 = vadd.f32 %v324, %v334
      %v361 = vadd.f32 %v325, %v334
      %v362 = vadd.f32 %v326, %v334
      %v363 = vadd.f32 %v327, %v334
      %v364 = vadd.f32 %v328, %v334
      %v365 = vadd.f32 %v329, %v334
      %v366 = vadd.f32 %v330, %v334
      %v367 = vadd.f32 %v331, %v334
      %v368 = vmax.f32 %v336, 0.0
      %v369 = vmax.f32 %v337, 0.0
      %v370 = vmax.f32 %v338, 0.0
      %v371 = vmax.f32 %v339, 0.0
      %v372 = vmax.f32 %v340, 0.0
      %v373 = vmax.f32 %v341, 0.0
      %v374 = vmax.f32 %v342, 0.0
      %v375 = vmax.f32 %v343, 0.0
      %v376 = vmax.f32 %v344, 0.0
      %v377 = vmax.f32 %v345, 0.0
      %v378 = vmax.f32 %v346, 0.0
      %v379 = vmax.f32 %v347, 0.0
      %v380 = vmax.f32 %v348, 0.0
      %v381 = vmax.f32 %v349, 0.0
      %v382 = vmax.f32 %v350, 0.0
      %v383 = vmax.f32 %v351, 0.0
      %v384 = vmax.f32 %v352, 0.0
      %v385 = vmax.f32 %v353, 0.0
      %v386 = vmax.f32 %v354, 0.0
      %v387 = vmax.f32 %v355, 0.0
      %v388 = vmax.f32 %v356, 0.0
      %v389 = vmax.f32 %v357, 0.0
      %v390 = vmax.f32 %v358, 0.0
      %v391 = vmax.f32 %v359, 0.0
      %v392 = vmax.f32 %v360, 0.0
      %v393 = vmax.f32 %v361, 0.0
      %v394 = vmax.f32 %v362, 0.0
      %v395 = vmax.f32 %v363, 0.0
      %v396 = vmax.f32 %v364, 0.0
      %v397 = vmax.f32 %v365, 0.0
      %v398 = vmax.f32 %v366, 0.0
      %v399 = vmax.f32 %v367, 0.0
      %v400 = vpack.c.bf16 %v368, %v368
      %v401 = vpack.c.bf16 %v369, %v369
      %v402 = vpack.c.bf16 %v370, %v370
      %v403 = vpack.c.bf16 %v371, %v371
      %v404 = vpack.c.bf16 %v372, %v372
      %v405 = vpack.c.bf16 %v373, %v373
      %v406 = vpack.c.bf16 %v374, %v374
      %v407 = vpack.c.bf16 %v375, %v375
      %v408 = vpack.c.bf16 %v376, %v376
      %v409 = vpack.c.bf16 %v377, %v377
      %v410 = vpack.c.bf16 %v378, %v378
      %v411 = vpack.c.bf16 %v379, %v379
      %v412 = vpack.c.bf16 %v380, %v380
      %v413 = vpack.c.bf16 %v381, %v381
      %v414 = vpack.c.bf16 %v382, %v382
      %v415 = vpack.c.bf16 %v383, %v383
      %v416 = vpack.c.bf16 %v384, %v384
      %v417 = vpack.c.bf16 %v385, %v385
      %v418 = vpack.c.bf16 %v386, %v386
      %v419 = vpack.c.bf16 %v387, %v387
      %v420 = vpack.c.bf16 %v388, %v388
      %v421 = vpack.c.bf16 %v389, %v389
      %v422 = vpack.c.bf16 %v390, %v390
      %v423 = vpack.c.bf16 %v391, %v391
      %v424 = vpack.c.bf16 %v392, %v392
      %v425 = vpack.c.bf16 %v393, %v393
      %v426 = vpack.c.bf16 %v394, %v394
      %v427 = vpack.c.bf16 %v395, %v395
      %v428 = vpack.c.bf16 %v396, %v396
      %v429 = vpack.c.bf16 %v397, %v397
      %v430 = vpack.c.bf16 %v398, %v398
      %v431 = vpack.c.bf16 %v399, %v399
      %432 = vst [vmem:[#allocation2] sm:$0xf] 0
      %433 = vst [vmem:[#allocation2 + $0x4] sm:$0xf] 0
      %434 = vst [vmem:[#allocation2 + $0x8] sm:$0x1] 0
      %435 = vst [vmem:[#allocation2 + $0xc] sm:$0xf] 0
      %436 = vst [vmem:[#allocation2 + $0x10] sm:$0xf] 0
      %437 = vst [vmem:[#allocation2 + $0x14] sm:$0x1] 0
      %438 = vst [vmem:[#allocation2 + $0x18] sm:$0xf] 0
      %439 = vst [vmem:[#allocation2 + $0x1c] sm:$0xf] 0
      %440 = vst [vmem:[#allocation2 + $0x20] sm:$0x1] 0
      %441 = vst [vmem:[#allocation2 + $0x24] sm:$0xf] 0
      %442 = vst [vmem:[#allocation2 + $0x28] sm:$0xf] 0
      %443 = vst [vmem:[#allocation2 + $0x2c] sm:$0x1] 0
      %444 = vst [vmem:[#allocation2 + $0x30] sm:$0xf] 0
      %445 = vst [vmem:[#allocation2 + $0x34] sm:$0xf] 0
      %446 = vst [vmem:[#allocation2 + $0x38] sm:$0x1] 0
      %447 = vst [vmem:[#allocation2 + $0x3c] sm:$0xf] 0
      %448 = vst [vmem:[#allocation2 + $0x40] sm:$0xf] 0
      %449 = vst [vmem:[#allocation2 + $0x44] sm:$0x1] 0
      %450 = vst [vmem:[#allocation2 + $0x48] sm:$0xf] 0
      %451 = vst [vmem:[#allocation2 + $0x4c] sm:$0xf] 0
      %452 = vst [vmem:[#allocation2 + $0x50] sm:$0x1] 0
      %453 = vst [vmem:[#allocation2 + $0x54] sm:$0xf] 0
      %454 = vst [vmem:[#allocation2 + $0x58] sm:$0xf] 0
      %455 = vst [vmem:[#allocation2 + $0x5c] sm:$0x1] 0
      %456 = vst [vmem:[#allocation2 + $0x60] sm:$0xf] 0
      %457 = vst [vmem:[#allocation2 + $0x64] sm:$0xf] 0
      %458 = vst [vmem:[#allocation2 + $0x68] sm:$0x1] 0
      %459 = vst [vmem:[#allocation2 + $0x6c] sm:$0xf] 0
      %460 = vst [vmem:[#allocation2 + $0x70] sm:$0xf] 0
      %461 = vst [vmem:[#allocation2 + $0x74] sm:$0x1] 0
      %462 = vst [vmem:[#allocation2 + $0x78] sm:$0xf] 0
      %463 = vst [vmem:[#allocation2 + $0x7c] sm:$0xf] 0
      %464 = vst [vmem:[#allocation2 + $0x80] sm:$0x1] 0
      %465 = vst [vmem:[#allocation2 + $0x84] sm:$0xf] 0
      %466 = vst [vmem:[#allocation2 + $0x88] sm:$0xf] 0
      %467 = vst [vmem:[#allocation2 + $0x8c] sm:$0x1] 0
      %468 = vst [vmem:[#allocation2 + $0x90] sm:$0xf] 0
      %469 = vst [vmem:[#allocation2 + $0x94] sm:$0xf] 0
      %470 = vst [vmem:[#allocation2 + $0x98] sm:$0x1] 0
      %471 = vst [vmem:[#allocation2 + $0x9c] sm:$0xf] 0
      %472 = vst [vmem:[#allocation2 + $0xa0] sm:$0xf] 0
      %473 = vst [vmem:[#allocation2 + $0xa4] sm:$0x1] 0
      %474 = vst [vmem:[#allocation2 + $0xa8] sm:$0xf] 0
      %475 = vst [vmem:[#allocation2 + $0xac] sm:$0xf] 0
      %476 = vst [vmem:[#allocation2 + $0xb0] sm:$0x1] 0
      %477 = vst [vmem:[#allocation2 + $0xb4] sm:$0xf] 0
      %478 = vst [vmem:[#allocation2 + $0xb8] sm:$0xf] 0
      %479 = vst [vmem:[#allocation2 + $0xbc] sm:$0x1] 0
      %480 = vst [vmem:[#allocation2 + $0xc0] sm:$0xf] 0
      %481 = vst [vmem:[#allocation2 + $0xc4] sm:$0xf] 0
      %482 = vst [vmem:[#allocation2 + $0xc8] sm:$0x1] 0
      %483 = vst [vmem:[#allocation2 + $0xcc] sm:$0xf] 0
      %484 = vst [vmem:[#allocation2 + $0xd0] sm:$0xf] 0
      %485 = vst [vmem:[#allocation2 + $0xd4] sm:$0x1] 0
      %vm486 = vsmask.f32 256
      %vm487 = vsmask.f32 4368
      %vm488 = vmor %vm486, %vm487
      %v490 = vshrl.u32 %v400, 16
      %v492 = vrot.slane %v490, 7
      %v493 = vshll.u32 %v400, 16
      %v495 = vor.u32 %v492, %v493
      %v496 = vrot.slane %v492, 4
      %v498 = vshrl.u32 %v401, 16
      %v500 = vrot.slane %v498, 7
      %v501 = vshll.u32 %v401, 16
      %v503 = vor.u32 %v500, %v501
      %v504 = vsel %vm488, %v496, %v503
      %v505 = vrot.slane %v500, 4
      %v507 = vshrl.u32 %v402, 16
      %v509 = vrot.slane %v507, 7
      %v510 = vshll.u32 %v402, 16
      %v512 = vor.u32 %v509, %v510
      %v513 = vrot.slane %v509, 4
      %v515 = vshrl.u32 %v403, 16
      %v517 = vrot.slane %v515, 7
      %v518 = vshll.u32 %v403, 16
      %v520 = vor.u32 %v517, %v518
      %v521 = vsel %vm488, %v513, %v520
      %v522 = vrot.slane %v517, 4
      %v524 = vshrl.u32 %v404, 16
      %v526 = vrot.slane %v524, 7
      %v527 = vshll.u32 %v404, 16
      %v529 = vor.u32 %v526, %v527
      %v530 = vrot.slane %v526, 4
      %v532 = vshrl.u32 %v405, 16
      %v534 = vrot.slane %v532, 7
      %v535 = vshll.u32 %v405, 16
      %v537 = vor.u32 %v534, %v535
      %v538 = vsel %vm488, %v530, %v537
      %v539 = vrot.slane %v534, 4
      %v541 = vshrl.u32 %v406, 16
      %v543 = vrot.slane %v541, 7
      %v544 = vshll.u32 %v406, 16
      %v546 = vor.u32 %v543, %v544
      %v547 = vrot.slane %v543, 4
      %v549 = vshrl.u32 %v407, 16
      %v551 = vrot.slane %v549, 7
      %v552 = vshll.u32 %v407, 16
      %v554 = vor.u32 %v551, %v552
      %v555 = vsel %vm488, %v547, %v554
      %v556 = vrot.slane %v551, 4
      %v558 = vshrl.u32 %v408, 16
      %v560 = vrot.slane %v558, 7
      %v561 = vshll.u32 %v408, 16
      %v563 = vor.u32 %v560, %v561
      %v564 = vrot.slane %v560, 4
      %v566 = vshrl.u32 %v409, 16
      %v568 = vrot.slane %v566, 7
      %v569 = vshll.u32 %v409, 16
      %v571 = vor.u32 %v568, %v569
      %v572 = vsel %vm488, %v564, %v571
      %v573 = vrot.slane %v568, 4
      %v575 = vshrl.u32 %v410, 16
      %v577 = vrot.slane %v575, 7
      %v578 = vshll.u32 %v410, 16
      %v580 = vor.u32 %v577, %v578
      %v581 = vrot.slane %v577, 4
      %v583 = vshrl.u32 %v411, 16
      %v585 = vrot.slane %v583, 7
      %v586 = vshll.u32 %v411, 16
      %v588 = vor.u32 %v585, %v586
      %v589 = vsel %vm488, %v581, %v588
      %v590 = vrot.slane %v585, 4
      %v592 = vshrl.u32 %v412, 16
      %v594 = vrot.slane %v592, 7
      %v595 = vshll.u32 %v412, 16
      %v597 = vor.u32 %v594, %v595
      %v598 = vrot.slane %v594, 4
      %v600 = vshrl.u32 %v413, 16
      %v602 = vrot.slane %v600, 7
      %v603 = vshll.u32 %v413, 16
      %v605 = vor.u32 %v602, %v603
      %v606 = vsel %vm488, %v598, %v605
      %v607 = vrot.slane %v602, 4
      %v609 = vshrl.u32 %v414, 16
      %v611 = vrot.slane %v609, 7
      %v612 = vshll.u32 %v414, 16
      %v614 = vor.u32 %v611, %v612
      %v615 = vrot.slane %v611, 4
      %v617 = vshrl.u32 %v415, 16
      %v619 = vrot.slane %v617, 7
      %v620 = vshll.u32 %v415, 16
      %v622 = vor.u32 %v619, %v620
      %v623 = vsel %vm488, %v615, %v622
      %v624 = vrot.slane %v619, 4
      %v626 = vshrl.u32 %v416, 16
      %v628 = vrot.slane %v626, 7
      %v629 = vshll.u32 %v416, 16
      %v631 = vor.u32 %v628, %v629
      %v632 = vrot.slane %v628, 4
      %v634 = vshrl.u32 %v417, 16
      %v636 = vrot.slane %v634, 7
      %v637 = vshll.u32 %v417, 16
      %v639 = vor.u32 %v636, %v637
      %v640 = vsel %vm488, %v632, %v639
      %v641 = vrot.slane %v636, 4
      %v643 = vshrl.u32 %v418, 16
      %v645 = vrot.slane %v643, 7
      %v646 = vshll.u32 %v418, 16
      %v648 = vor.u32 %v645, %v646
      %v649 = vrot.slane %v645, 4
      %v651 = vshrl.u32 %v419, 16
      %v653 = vrot.slane %v651, 7
      %v654 = vshll.u32 %v419, 16
      %v656 = vor.u32 %v653, %v654
      %v657 = vsel %vm488, %v649, %v656
      %v658 = vrot.slane %v653, 4
      %v660 = vshrl.u32 %v420, 16
      %v662 = vrot.slane %v660, 7
      %v663 = vshll.u32 %v420, 16
      %v665 = vor.u32 %v662, %v663
      %v666 = vrot.slane %v662, 4
      %v668 = vshrl.u32 %v421, 16
      %v670 = vrot.slane %v668, 7
      %v671 = vshll.u32 %v421, 16
      %v673 = vor.u32 %v670, %v671
      %v674 = vsel %vm488, %v666, %v673
      %v675 = vrot.slane %v670, 4
      %v677 = vshrl.u32 %v422, 16
      %v679 = vrot.slane %v677, 7
      %v680 = vshll.u32 %v422, 16
      %v682 = vor.u32 %v679, %v680
      %v683 = vrot.slane %v679, 4
      %v685 = vshrl.u32 %v423, 16
      %v687 = vrot.slane %v685, 7
      %v688 = vshll.u32 %v423, 16
      %v690 = vor.u32 %v687, %v688
      %v691 = vsel %vm488, %v683, %v690
      %v692 = vrot.slane %v687, 4
      %v694 = vshrl.u32 %v424, 16
      %v696 = vrot.slane %v694, 7
      %v697 = vshll.u32 %v424, 16
      %v699 = vor.u32 %v696, %v697
      %v700 = vrot.slane %v696, 4
      %v702 = vshrl.u32 %v425, 16
      %v704 = vrot.slane %v702, 7
      %v705 = vshll.u32 %v425, 16
      %v707 = vor.u32 %v704, %v705
      %v708 = vsel %vm488, %v700, %v707
      %v709 = vrot.slane %v704, 4
      %v711 = vshrl.u32 %v426, 16
      %v713 = vrot.slane %v711, 7
      %v714 = vshll.u32 %v426, 16
      %v716 = vor.u32 %v713, %v714
      %v717 = vrot.slane %v713, 4
      %v719 = vshrl.u32 %v427, 16
      %v721 = vrot.slane %v719, 7
      %v722 = vshll.u32 %v427, 16
      %v724 = vor.u32 %v721, %v722
      %v725 = vsel %vm488, %v717, %v724
      %v726 = vrot.slane %v721, 4
      %v728 = vshrl.u32 %v428, 16
      %v730 = vrot.slane %v728, 7
      %v731 = vshll.u32 %v428, 16
      %v733 = vor.u32 %v730, %v731
      %v734 = vrot.slane %v730, 4
      %v736 = vshrl.u32 %v429, 16
      %v738 = vrot.slane %v736, 7
      %v739 = vshll.u32 %v429, 16
      %v741 = vor.u32 %v738, %v739
      %v742 = vsel %vm488, %v734, %v741
      %v743 = vrot.slane %v738, 4
      %v745 = vshrl.u32 %v430, 16
      %v747 = vrot.slane %v745, 7
      %v748 = vshll.u32 %v430, 16
      %v750 = vor.u32 %v747, %v748
      %v751 = vrot.slane %v747, 4
      %v753 = vshrl.u32 %v431, 16
      %v755 = vrot.slane %v753, 7
      %v756 = vshll.u32 %v431, 16
      %v758 = vor.u32 %v755, %v756
      %v759 = vsel %vm488, %v751, %v758
      %v760 = vrot.slane %v755, 4
      %s809 = scalar_lea.vmem [#allocation2], 12
      %vm810 = vcmask 1043456
      %vm811 = vsmask.f32 7938
      %vm812 = vmand %vm810, %vm811
      %v813 = vld [vmem:[%s809] sm:$0xf]
      %v814 = vsel %vm812, %v495, %v813
      %815 = vst [vmem:[%s809] sm:$0xf] %v814
      %816 = vst [vmem:[%s809 + $0x4] sm:$0xf] %v504
      %vm817 = vcmask 1040384
      %vm818 = vmand %vm817, %vm486
      %v819 = vld [vmem:[%s809 + $0x8] sm:$0x1]
      %v820 = vsel %vm818, %v505, %v819
      %821 = vst [vmem:[%s809 + $0x8] sm:$0x1] %v820
      %v822 = vld [vmem:[%s809 + $0xc] sm:$0xf]
      %v823 = vsel %vm812, %v512, %v822
      %824 = vst [vmem:[%s809 + $0xc] sm:$0xf] %v823
      %825 = vst [vmem:[%s809 + $0x10] sm:$0xf] %v521
      %v826 = vld [vmem:[%s809 + $0x14] sm:$0x1]
      %v827 = vsel %vm818, %v522, %v826
      %828 = vst [vmem:[%s809 + $0x14] sm:$0x1] %v827
      %v829 = vld [vmem:[%s809 + $0x18] sm:$0xf]
      %v830 = vsel %vm812, %v529, %v829
      %831 = vst [vmem:[%s809 + $0x18] sm:$0xf] %v830
      %832 = vst [vmem:[%s809 + $0x1c] sm:$0xf] %v538
      %v833 = vld [vmem:[%s809 + $0x20] sm:$0x1]
      %v834 = vsel %vm818, %v539, %v833
      %835 = vst [vmem:[%s809 + $0x20] sm:$0x1] %v834
      %v836 = vld [vmem:[%s809 + $0x24] sm:$0xf]
      %v837 = vsel %vm812, %v546, %v836
      %838 = vst [vmem:[%s809 + $0x24] sm:$0xf] %v837
      %839 = vst [vmem:[%s809 + $0x28] sm:$0xf] %v555
      %v840 = vld [vmem:[%s809 + $0x2c] sm:$0x1]
      %v841 = vsel %vm818, %v556, %v840
      %842 = vst [vmem:[%s809 + $0x2c] sm:$0x1] %v841
      %v843 = vld [vmem:[%s809 + $0x30] sm:$0xf]
      %v844 = vsel %vm812, %v563, %v843
      %845 = vst [vmem:[%s809 + $0x30] sm:$0xf] %v844
      %846 = vst [vmem:[%s809 + $0x34] sm:$0xf] %v572
      %v847 = vld [vmem:[%s809 + $0x38] sm:$0x1]
      %v848 = vsel %vm818, %v573, %v847
      %849 = vst [vmem:[%s809 + $0x38] sm:$0x1] %v848
      %v850 = vld [vmem:[%s809 + $0x3c] sm:$0xf]
      %v851 = vsel %vm812, %v580, %v850
      %852 = vst [vmem:[%s809 + $0x3c] sm:$0xf] %v851
      %853 = vst [vmem:[%s809 + $0x40] sm:$0xf] %v589
      %v854 = vld [vmem:[%s809 + $0x44] sm:$0x1]
      %v855 = vsel %vm818, %v590, %v854
      %856 = vst [vmem:[%s809 + $0x44] sm:$0x1] %v855
      %v857 = vld [vmem:[%s809 + $0x48] sm:$0xf]
      %v858 = vsel %vm812, %v597, %v857
      %859 = vst [vmem:[%s809 + $0x48] sm:$0xf] %v858
      %860 = vst [vmem:[%s809 + $0x4c] sm:$0xf] %v606
      %v861 = vld [vmem:[%s809 + $0x50] sm:$0x1]
      %v862 = vsel %vm818, %v607, %v861
      %863 = vst [vmem:[%s809 + $0x50] sm:$0x1] %v862
      %v864 = vld [vmem:[%s809 + $0x54] sm:$0xf]
      %v865 = vsel %vm812, %v614, %v864
      %866 = vst [vmem:[%s809 + $0x54] sm:$0xf] %v865
      %867 = vst [vmem:[%s809 + $0x58] sm:$0xf] %v623
      %v868 = vld [vmem:[%s809 + $0x5c] sm:$0x1]
      %v869 = vsel %vm818, %v624, %v868
      %870 = vst [vmem:[%s809 + $0x5c] sm:$0x1] %v869
      %v871 = vld [vmem:[%s809 + $0x60] sm:$0xf]
      %v872 = vsel %vm812, %v631, %v871
      %873 = vst [vmem:[%s809 + $0x60] sm:$0xf] %v872
      %874 = vst [vmem:[%s809 + $0x64] sm:$0xf] %v640
      %v875 = vld [vmem:[%s809 + $0x68] sm:$0x1]
      %v876 = vsel %vm818, %v641, %v875
      %877 = vst [vmem:[%s809 + $0x68] sm:$0x1] %v876
      %v878 = vld [vmem:[%s809 + $0x6c] sm:$0xf]
      %v879 = vsel %vm812, %v648, %v878
      %880 = vst [vmem:[%s809 + $0x6c] sm:$0xf] %v879
      %881 = vst [vmem:[%s809 + $0x70] sm:$0xf] %v657
      %v882 = vld [vmem:[%s809 + $0x74] sm:$0x1]
      %v883 = vsel %vm818, %v658, %v882
      %884 = vst [vmem:[%s809 + $0x74] sm:$0x1] %v883
      %v885 = vld [vmem:[%s809 + $0x78] sm:$0xf]
      %v886 = vsel %vm812, %v665, %v885
      %887 = vst [vmem:[%s809 + $0x78] sm:$0xf] %v886
      %888 = vst [vmem:[%s809 + $0x7c] sm:$0xf] %v674
      %v889 = vld [vmem:[%s809 + $0x80] sm:$0x1]
      %v890 = vsel %vm818, %v675, %v889
      %891 = vst [vmem:[%s809 + $0x80] sm:$0x1] %v890
      %v892 = vld [vmem:[%s809 + $0x84] sm:$0xf]
      %v893 = vsel %vm812, %v682, %v892
      %894 = vst [vmem:[%s809 + $0x84] sm:$0xf] %v893
      %895 = vst [vmem:[%s809 + $0x88] sm:$0xf] %v691
      %v896 = vld [vmem:[%s809 + $0x8c] sm:$0x1]
      %v897 = vsel %vm818, %v692, %v896
      %898 = vst [vmem:[%s809 + $0x8c] sm:$0x1] %v897
      %v899 = vld [vmem:[%s809 + $0x90] sm:$0xf]
      %v900 = vsel %vm812, %v699, %v899
      %901 = vst [vmem:[%s809 + $0x90] sm:$0xf] %v900
      %902 = vst [vmem:[%s809 + $0x94] sm:$0xf] %v708
      %v903 = vld [vmem:[%s809 + $0x98] sm:$0x1]
      %v904 = vsel %vm818, %v709, %v903
      %905 = vst [vmem:[%s809 + $0x98] sm:$0x1] %v904
      %v906 = vld [vmem:[%s809 + $0x9c] sm:$0xf]
      %v907 = vsel %vm812, %v716, %v906
      %908 = vst [vmem:[%s809 + $0x9c] sm:$0xf] %v907
      %909 = vst [vmem:[%s809 + $0xa0] sm:$0xf] %v725
      %v910 = vld [vmem:[%s809 + $0xa4] sm:$0x1]
      %v911 = vsel %vm818, %v726, %v910
      %912 = vst [vmem:[%s809 + $0xa4] sm:$0x1] %v911
      %v913 = vld [vmem:[%s809 + $0xa8] sm:$0xf]
      %v914 = vsel %vm812, %v733, %v913
      %915 = vst [vmem:[%s809 + $0xa8] sm:$0xf] %v914
      %916 = vst [vmem:[%s809 + $0xac] sm:$0xf] %v742
      %v917 = vld [vmem:[%s809 + $0xb0] sm:$0x1]
      %v918 = vsel %vm818, %v743, %v917
      %919 = vst [vmem:[%s809 + $0xb0] sm:$0x1] %v918
      %v920 = vld [vmem:[%s809 + $0xb4] sm:$0xf]
      %v921 = vsel %vm812, %v750, %v920
      %922 = vst [vmem:[%s809 + $0xb4] sm:$0xf] %v921
      %923 = vst [vmem:[%s809 + $0xb8] sm:$0xf] %v759
      %v924 = vld [vmem:[%s809 + $0xbc] sm:$0x1]
      %v925 = vsel %vm818, %v760, %v924
      %926 = vst [vmem:[%s809 + $0xbc] sm:$0x1] %v925
      %v927 = vld [vmem:[#allocation2] sm:$0xf]
      %v928 = vld [vmem:[#allocation2 + $0x4] sm:$0xf]
      %v929 = vld [vmem:[#allocation2 + $0xc] sm:$0xf]
      %v930 = vld [vmem:[#allocation2 + $0x10] sm:$0xf]
      %v931 = vld [vmem:[#allocation2 + $0x18] sm:$0xf]
      %v932 = vld [vmem:[#allocation2 + $0x1c] sm:$0xf]
      %v933 = vld [vmem:[#allocation2 + $0x24] sm:$0xf]
      %v934 = vld [vmem:[#allocation2 + $0x28] sm:$0xf]
      %v935 = vld [vmem:[#allocation2 + $0x30] sm:$0xf]
      %v936 = vld [vmem:[#allocation2 + $0x34] sm:$0xf]
      %v937 = vld [vmem:[#allocation2 + $0x3c] sm:$0xf]
      %v938 = vld [vmem:[#allocation2 + $0x40] sm:$0xf]
      %v939 = vld [vmem:[#allocation2 + $0x48] sm:$0xf]
      %v940 = vld [vmem:[#allocation2 + $0x4c] sm:$0xf]
      %v941 = vld [vmem:[#allocation2 + $0x54] sm:$0xf]
      %v942 = vld [vmem:[#allocation2 + $0x58] sm:$0xf]
      %v943 = vld [vmem:[#allocation2 + $0x60] sm:$0xf]
      %v944 = vld [vmem:[#allocation2 + $0x64] sm:$0xf]
      %v945 = vld [vmem:[#allocation2 + $0x6c] sm:$0xf]
      %v946 = vld [vmem:[#allocation2 + $0x70] sm:$0xf]
      %v947 = vld [vmem:[#allocation2 + $0x78] sm:$0xf]
      %v948 = vld [vmem:[#allocation2 + $0x7c] sm:$0xf]
      %v949 = vld [vmem:[#allocation2 + $0x84] sm:$0xf]
      %v950 = vld [vmem:[#allocation2 + $0x88] sm:$0xf]
      %v951 = vld [vmem:[#allocation2 + $0x90] sm:$0xf]
      %v952 = vld [vmem:[#allocation2 + $0x94] sm:$0xf]
      %v953 = vld [vmem:[#allocation2 + $0x9c] sm:$0xf]
      %v954 = vld [vmem:[#allocation2 + $0xa0] sm:$0xf]
      %v955 = vld [vmem:[#allocation2 + $0xa8] sm:$0xf]
      %v956 = vld [vmem:[#allocation2 + $0xac] sm:$0xf]
      %v957 = vld [vmem:[#allocation2 + $0xb4] sm:$0xf]
      %v958 = vld [vmem:[#allocation2 + $0xb8] sm:$0xf]
      %v959 = vld [vmem:[#allocation2 + $0x8] sm:$0x1]
      %v960 = vld [vmem:[#allocation2 + $0x14] sm:$0x1]
      %v961 = vld [vmem:[#allocation2 + $0x20] sm:$0x1]
      %v962 = vld [vmem:[#allocation2 + $0x2c] sm:$0x1]
      %v963 = vld [vmem:[#allocation2 + $0x38] sm:$0x1]
      %v964 = vld [vmem:[#allocation2 + $0x44] sm:$0x1]
      %v965 = vld [vmem:[#allocation2 + $0x50] sm:$0x1]
      %v966 = vld [vmem:[#allocation2 + $0x5c] sm:$0x1]
      %v967 = vld [vmem:[#allocation2 + $0x68] sm:$0x1]
      %v968 = vld [vmem:[#allocation2 + $0x74] sm:$0x1]
      %v969 = vld [vmem:[#allocation2 + $0x80] sm:$0x1]
      %v970 = vld [vmem:[#allocation2 + $0x8c] sm:$0x1]
      %v971 = vld [vmem:[#allocation2 + $0x98] sm:$0x1]
      %v972 = vld [vmem:[#allocation2 + $0xa4] sm:$0x1]
      %v973 = vld [vmem:[#allocation2 + $0xb0] sm:$0x1]
      %v974 = vld [vmem:[#allocation2 + $0xbc] sm:$0x1]
      %v975 = vld [vmem:[#allocation2] sm:$0xe]
      %v976 = vld [vmem:[#allocation2 + $0xc] sm:$0xe]
      %v977 = vld [vmem:[#allocation2 + $0x18] sm:$0xe]
      %v978 = vld [vmem:[#allocation2 + $0x24] sm:$0xe]
      %v979 = vld [vmem:[#allocation2 + $0x30] sm:$0xe]
      %v980 = vld [vmem:[#allocation2 + $0x3c] sm:$0xe]
      %v981 = vld [vmem:[#allocation2 + $0x48] sm:$0xe]
      %v982 = vld [vmem:[#allocation2 + $0x54] sm:$0xe]
      %v983 = vld [vmem:[#allocation2 + $0x60] sm:$0xe]
      %v984 = vld [vmem:[#allocation2 + $0x6c] sm:$0xe]
      %v985 = vld [vmem:[#allocation2 + $0x78] sm:$0xe]
      %v986 = vld [vmem:[#allocation2 + $0x84] sm:$0xe]
      %v987 = vld [vmem:[#allocation2 + $0x90] sm:$0xe]
      %v988 = vld [vmem:[#allocation2 + $0x9c] sm:$0xe]
      %v989 = vld [vmem:[#allocation2 + $0xa8] sm:$0xe]
      %v990 = vld [vmem:[#allocation2 + $0xb4] sm:$0xe]
      %v991 = vld [vmem:[%s809] sm:$0xf]
      %v992 = vld [vmem:[%s809 + $0x4] sm:$0xf]
      %v993 = vld [vmem:[%s809 + $0xc] sm:$0xf]
      %v994 = vld [vmem:[%s809 + $0x10] sm:$0xf]
      %v995 = vld [vmem:[%s809 + $0x18] sm:$0xf]
      %v996 = vld [vmem:[%s809 + $0x1c] sm:$0xf]
      %v997 = vld [vmem:[%s809 + $0x24] sm:$0xf]
      %v998 = vld [vmem:[%s809 + $0x28] sm:$0xf]
      %v999 = vld [vmem:[%s809 + $0x30] sm:$0xf]
      %v1000 = vld [vmem:[%s809 + $0x34] sm:$0xf]
      %v1001 = vld [vmem:[%s809 + $0x3c] sm:$0xf]
      %v1002 = vld [vmem:[%s809 + $0x40] sm:$0xf]
      %v1003 = vld [vmem:[%s809 + $0x48] sm:$0xf]
      %v1004 = vld [vmem:[%s809 + $0x4c] sm:$0xf]
      %v1005 = vld [vmem:[%s809 + $0x54] sm:$0xf]
      %v1006 = vld [vmem:[%s809 + $0x58] sm:$0xf]
      %v1007 = vld [vmem:[%s809 + $0x60] sm:$0xf]
      %v1008 = vld [vmem:[%s809 + $0x64] sm:$0xf]
      %v1009 = vld [vmem:[%s809 + $0x6c] sm:$0xf]
      %v1010 = vld [vmem:[%s809 + $0x70] sm:$0xf]
      %v1011 = vld [vmem:[%s809 + $0x78] sm:$0xf]
      %v1012 = vld [vmem:[%s809 + $0x7c] sm:$0xf]
      %v1013 = vld [vmem:[%s809 + $0x84] sm:$0xf]
      %v1014 = vld [vmem:[%s809 + $0x88] sm:$0xf]
      %v1015 = vld [vmem:[%s809 + $0x90] sm:$0xf]
      %v1016 = vld [vmem:[%s809 + $0x94] sm:$0xf]
      %v1017 = vld [vmem:[%s809 + $0x9c] sm:$0xf]
      %v1018 = vld [vmem:[%s809 + $0xa0] sm:$0xf]
      %v1019 = vld [vmem:[%s809 + $0xa8] sm:$0xf]
      %v1020 = vld [vmem:[%s809 + $0xac] sm:$0xf]
      %v1021 = vld [vmem:[%s809 + $0xb4] sm:$0xf]
      %v1022 = vld [vmem:[%s809 + $0xb8] sm:$0xf]
      %v1023 = vld [vmem:[%s809 + $0x8] sm:$0x1]
      %v1024 = vld [vmem:[%s809 + $0x14] sm:$0x1]
      %v1025 = vld [vmem:[%s809 + $0x20] sm:$0x1]
      %v1026 = vld [vmem:[%s809 + $0x2c] sm:$0x1]
      %v1027 = vld [vmem:[%s809 + $0x38] sm:$0x1]
      %v1028 = vld [vmem:[%s809 + $0x44] sm:$0x1]
      %v1029 = vld [vmem:[%s809 + $0x50] sm:$0x1]
      %v1030 = vld [vmem:[%s809 + $0x5c] sm:$0x1]
      %v1031 = vld [vmem:[%s809 + $0x68] sm:$0x1]
      %v1032 = vld [vmem:[%s809 + $0x74] sm:$0x1]
      %v1033 = vld [vmem:[%s809 + $0x80] sm:$0x1]
      %v1034 = vld [vmem:[%s809 + $0x8c] sm:$0x1]
      %v1035 = vld [vmem:[%s809 + $0x98] sm:$0x1]
      %v1036 = vld [vmem:[%s809 + $0xa4] sm:$0x1]
      %v1037 = vld [vmem:[%s809 + $0xb0] sm:$0x1]
      %v1038 = vld [vmem:[%s809 + $0xbc] sm:$0x1]
      %v1039 = vld [vmem:[%s809] sm:$0xe]
      %v1040 = vld [vmem:[%s809 + $0xc] sm:$0xe]
      %v1041 = vld [vmem:[%s809 + $0x18] sm:$0xe]
      %v1042 = vld [vmem:[%s809 + $0x24] sm:$0xe]
      %v1043 = vld [vmem:[%s809 + $0x30] sm:$0xe]
      %v1044 = vld [vmem:[%s809 + $0x3c] sm:$0xe]
      %v1045 = vld [vmem:[%s809 + $0x48] sm:$0xe]
      %v1046 = vld [vmem:[%s809 + $0x54] sm:$0xe]
      %v1047 = vld [vmem:[%s809 + $0x60] sm:$0xe]
      %v1048 = vld [vmem:[%s809 + $0x6c] sm:$0xe]
      %v1049 = vld [vmem:[%s809 + $0x78] sm:$0xe]
      %v1050 = vld [vmem:[%s809 + $0x84] sm:$0xe]
      %v1051 = vld [vmem:[%s809 + $0x90] sm:$0xe]
      %v1052 = vld [vmem:[%s809 + $0x9c] sm:$0xe]
      %v1053 = vld [vmem:[%s809 + $0xa8] sm:$0xe]
      %v1054 = vld [vmem:[%s809 + $0xb4] sm:$0xe]
      %s1055 = scalar_lea.vmem [#allocation2], 24
      %v1056 = vld [vmem:[%s1055] sm:$0xf]
      %v1057 = vld [vmem:[%s1055 + $0x4] sm:$0xf]
      %v1058 = vld [vmem:[%s1055 + $0xc] sm:$0xf]
      %v1059 = vld [vmem:[%s1055 + $0x10] sm:$0xf]
      %v1060 = vld [vmem:[%s1055 + $0x18] sm:$0xf]
      %v1061 = vld [vmem:[%s1055 + $0x1c] sm:$0xf]
      %v1062 = vld [vmem:[%s1055 + $0x24] sm:$0xf]
      %v1063 = vld [vmem:[%s1055 + $0x28] sm:$0xf]
      %v1064 = vld [vmem:[%s1055 + $0x30] sm:$0xf]
      %v1065 = vld [vmem:[%s1055 + $0x34] sm:$0xf]
      %v1066 = vld [vmem:[%s1055 + $0x3c] sm:$0xf]
      %v1067 = vld [vmem:[%s1055 + $0x40] sm:$0xf]
      %v1068 = vld [vmem:[%s1055 + $0x48] sm:$0xf]
      %v1069 = vld [vmem:[%s1055 + $0x4c] sm:$0xf]
      %v1070 = vld [vmem:[%s1055 + $0x54] sm:$0xf]
      %v1071 = vld [vmem:[%s1055 + $0x58] sm:$0xf]
      %v1072 = vld [vmem:[%s1055 + $0x60] sm:$0xf]
      %v1073 = vld [vmem:[%s1055 + $0x64] sm:$0xf]
      %v1074 = vld [vmem:[%s1055 + $0x6c] sm:$0xf]
      %v1075 = vld [vmem:[%s1055 + $0x70] sm:$0xf]
      %v1076 = vld [vmem:[%s1055 + $0x78] sm:$0xf]
      %v1077 = vld [vmem:[%s1055 + $0x7c] sm:$0xf]
      %v1078 = vld [vmem:[%s1055 + $0x84] sm:$0xf]
      %v1079 = vld [vmem:[%s1055 + $0x88] sm:$0xf]
      %v1080 = vld [vmem:[%s1055 + $0x90] sm:$0xf]
      %v1081 = vld [vmem:[%s1055 + $0x94] sm:$0xf]
      %v1082 = vld [vmem:[%s1055 + $0x9c] sm:$0xf]
      %v1083 = vld [vmem:[%s1055 + $0xa0] sm:$0xf]
      %v1084 = vld [vmem:[%s1055 + $0xa8] sm:$0xf]
      %v1085 = vld [vmem:[%s1055 + $0xac] sm:$0xf]
      %v1086 = vld [vmem:[%s1055 + $0xb4] sm:$0xf]
      %v1087 = vld [vmem:[%s1055 + $0xb8] sm:$0xf]
      %v1088 = vld [vmem:[%s1055 + $0x8] sm:$0x1]
      %v1089 = vld [vmem:[%s1055 + $0x14] sm:$0x1]
      %v1090 = vld [vmem:[%s1055 + $0x20] sm:$0x1]
      %v1091 = vld [vmem:[%s1055 + $0x2c] sm:$0x1]
      %v1092 = vld [vmem:[%s1055 + $0x38] sm:$0x1]
      %v1093 = vld [vmem:[%s1055 + $0x44] sm:$0x1]
      %v1094 = vld [vmem:[%s1055 + $0x50] sm:$0x1]
      %v1095 = vld [vmem:[%s1055 + $0x5c] sm:$0x1]
      %v1096 = vld [vmem:[%s1055 + $0x68] sm:$0x1]
      %v1097 = vld [vmem:[%s1055 + $0x74] sm:$0x1]
      %v1098 = vld [vmem:[%s1055 + $0x80] sm:$0x1]
      %v1099 = vld [vmem:[%s1055 + $0x8c] sm:$0x1]
      %v1100 = vld [vmem:[%s1055 + $0x98] sm:$0x1]
      %v1101 = vld [vmem:[%s1055 + $0xa4] sm:$0x1]
      %v1102 = vld [vmem:[%s1055 + $0xb0] sm:$0x1]
      %v1103 = vld [vmem:[%s1055 + $0xbc] sm:$0x1]
      %v1104 = vld [vmem:[%s1055] sm:$0xe]
      %v1105 = vld [vmem:[%s1055 + $0xc] sm:$0xe]
      %v1106 = vld [vmem:[%s1055 + $0x18] sm:$0xe]
      %v1107 = vld [vmem:[%s1055 + $0x24] sm:$0xe]
      %v1108 = vld [vmem:[%s1055 + $0x30] sm:$0xe]
      %v1109 = vld [vmem:[%s1055 + $0x3c] sm:$0xe]
      %v1110 = vld [vmem:[%s1055 + $0x48] sm:$0xe]
      %v1111 = vld [vmem:[%s1055 + $0x54] sm:$0xe]
      %v1112 = vld [vmem:[%s1055 + $0x60] sm:$0xe]
      %v1113 = vld [vmem:[%s1055 + $0x6c] sm:$0xe]
      %v1114 = vld [vmem:[%s1055 + $0x78] sm:$0xe]
      %v1115 = vld [vmem:[%s1055 + $0x84] sm:$0xe]
      %v1116 = vld [vmem:[%s1055 + $0x90] sm:$0xe]
      %v1117 = vld [vmem:[%s1055 + $0x9c] sm:$0xe]
      %v1118 = vld [vmem:[%s1055 + $0xa8] sm:$0xe]
      %v1119 = vld [vmem:[%s1055 + $0xb4] sm:$0xe]
      %v1152 = vunpack.c.l.b16 %v927
      %v1153 = vunpack.c.l.b16 %v928
      %v1154 = vunpack.c.l.b16 %v929
      %v1155 = vunpack.c.l.b16 %v930
      %v1156 = vunpack.c.l.b16 %v931
      %v1157 = vunpack.c.l.b16 %v932
      %v1158 = vunpack.c.l.b16 %v933
      %v1159 = vunpack.c.l.b16 %v934
      %v1160 = vunpack.c.l.b16 %v935
      %v1161 = vunpack.c.l.b16 %v936
      %v1162 = vunpack.c.l.b16 %v937
      %v1163 = vunpack.c.l.b16 %v938
      %v1164 = vunpack.c.l.b16 %v939
      %v1165 = vunpack.c.l.b16 %v940
      %v1166 = vunpack.c.l.b16 %v941
      %v1167 = vunpack.c.l.b16 %v942
      %v1168 = vunpack.c.l.b16 %v943
      %v1169 = vunpack.c.l.b16 %v944
      %v1170 = vunpack.c.l.b16 %v945
      %v1171 = vunpack.c.l.b16 %v946
      %v1172 = vunpack.c.l.b16 %v947
      %v1173 = vunpack.c.l.b16 %v948
      %v1174 = vunpack.c.l.b16 %v949
      %v1175 = vunpack.c.l.b16 %v950
      %v1176 = vunpack.c.l.b16 %v951
      %v1177 = vunpack.c.l.b16 %v952
      %v1178 = vunpack.c.l.b16 %v953
      %v1179 = vunpack.c.l.b16 %v954
      %v1180 = vunpack.c.l.b16 %v955
      %v1181 = vunpack.c.l.b16 %v956
      %v1182 = vunpack.c.l.b16 %v957
      %v1183 = vunpack.c.l.b16 %v958
      %v1184 = vpack.c.b16 %v1153, %v1152
      %v1185 = vpack.c.b16 %v1155, %v1154
      %v1186 = vpack.c.b16 %v1157, %v1156
      %v1187 = vpack.c.b16 %v1159, %v1158
      %v1188 = vpack.c.b16 %v1161, %v1160
      %v1189 = vpack.c.b16 %v1163, %v1162
      %v1190 = vpack.c.b16 %v1165, %v1164
      %v1191 = vpack.c.b16 %v1167, %v1166
      %v1192 = vpack.c.b16 %v1169, %v1168
      %v1193 = vpack.c.b16 %v1171, %v1170
      %v1194 = vpack.c.b16 %v1173, %v1172
      %v1195 = vpack.c.b16 %v1175, %v1174
      %v1196 = vpack.c.b16 %v1177, %v1176
      %v1197 = vpack.c.b16 %v1179, %v1178
      %v1198 = vpack.c.b16 %v1181, %v1180
      %v1199 = vpack.c.b16 %v1183, %v1182
      %v1232 = vunpack.c.l.b16 %v959
      %v1233 = vunpack.c.l.b16 %v960
      %v1234 = vunpack.c.l.b16 %v961
      %v1235 = vunpack.c.l.b16 %v962
      %v1236 = vunpack.c.l.b16 %v963
      %v1237 = vunpack.c.l.b16 %v964
      %v1238 = vunpack.c.l.b16 %v965
      %v1239 = vunpack.c.l.b16 %v966
      %v1240 = vunpack.c.l.b16 %v967
      %v1241 = vunpack.c.l.b16 %v968
      %v1242 = vunpack.c.l.b16 %v969
      %v1243 = vunpack.c.l.b16 %v970
      %v1244 = vunpack.c.l.b16 %v971
      %v1245 = vunpack.c.l.b16 %v972
      %v1246 = vunpack.c.l.b16 %v973
      %v1247 = vunpack.c.l.b16 %v974
      %v1248 = vpack.c.b16 %v1232, %v1232
      %v1249 = vpack.c.b16 %v1233, %v1233
      %v1250 = vpack.c.b16 %v1234, %v1234
      %v1251 = vpack.c.b16 %v1235, %v1235
      %v1252 = vpack.c.b16 %v1236, %v1236
      %v1253 = vpack.c.b16 %v1237, %v1237
      %v1254 = vpack.c.b16 %v1238, %v1238
      %v1255 = vpack.c.b16 %v1239, %v1239
      %v1256 = vpack.c.b16 %v1240, %v1240
      %v1257 = vpack.c.b16 %v1241, %v1241
      %v1258 = vpack.c.b16 %v1242, %v1242
      %v1259 = vpack.c.b16 %v1243, %v1243
      %v1260 = vpack.c.b16 %v1244, %v1244
      %v1261 = vpack.c.b16 %v1245, %v1245
      %v1262 = vpack.c.b16 %v1246, %v1246
      %v1263 = vpack.c.b16 %v1247, %v1247
      %vm1264 = vsmask.f32 7424
      %v1266 = vshrl.u32 %v1184, 16
      %v1268 = vshll.u32 %v1184, 16
      %v1270 = vrot.slane %v1268, 1
      %v1271 = vor.u32 %v1266, %v1270
      %v1273 = vshll.u32 %v1248, 16
      %v1275 = vrot.slane %v1273, 1
      %v1276 = vsel %vm1264, %v1271, %v1275
      %v1278 = vshrl.u32 %v1185, 16
      %v1280 = vshll.u32 %v1185, 16
      %v1282 = vrot.slane %v1280, 1
      %v1283 = vor.u32 %v1278, %v1282
      %v1285 = vshll.u32 %v1249, 16
      %v1287 = vrot.slane %v1285, 1
      %v1288 = vsel %vm1264, %v1283, %v1287
      %v1290 = vshrl.u32 %v1186, 16
      %v1292 = vshll.u32 %v1186, 16
      %v1294 = vrot.slane %v1292, 1
      %v1295 = vor.u32 %v1290, %v1294
      %v1297 = vshll.u32 %v1250, 16
      %v1299 = vrot.slane %v1297, 1
      %v1300 = vsel %vm1264, %v1295, %v1299
      %v1302 = vshrl.u32 %v1187, 16
      %v1304 = vshll.u32 %v1187, 16
      %v1306 = vrot.slane %v1304, 1
      %v1307 = vor.u32 %v1302, %v1306
      %v1309 = vshll.u32 %v1251, 16
      %v1311 = vrot.slane %v1309, 1
      %v1312 = vsel %vm1264, %v1307, %v1311
      %v1314 = vshrl.u32 %v1188, 16
      %v1316 = vshll.u32 %v1188, 16
      %v1318 = vrot.slane %v1316, 1
      %v1319 = vor.u32 %v1314, %v1318
      %v1321 = vshll.u32 %v1252, 16
      %v1323 = vrot.slane %v1321, 1
      %v1324 = vsel %vm1264, %v1319, %v1323
      %v1326 = vshrl.u32 %v1189, 16
      %v1328 = vshll.u32 %v1189, 16
      %v1330 = vrot.slane %v1328, 1
      %v1331 = vor.u32 %v1326, %v1330
      %v1333 = vshll.u32 %v1253, 16
      %v1335 = vrot.slane %v1333, 1
      %v1336 = vsel %vm1264, %v1331, %v1335
      %v1338 = vshrl.u32 %v1190, 16
      %v1340 = vshll.u32 %v1190, 16
      %v1342 = vrot.slane %v1340, 1
      %v1343 = vor.u32 %v1338, %v1342
      %v1345 = vshll.u32 %v1254, 16
      %v1347 = vrot.slane %v1345, 1
      %v1348 = vsel %vm1264, %v1343, %v1347
      %v1350 = vshrl.u32 %v1191, 16
      %v1352 = vshll.u32 %v1191, 16
      %v1354 = vrot.slane %v1352, 1
      %v1355 = vor.u32 %v1350, %v1354
      %v1357 = vshll.u32 %v1255, 16
      %v1359 = vrot.slane %v1357, 1
      %v1360 = vsel %vm1264, %v1355, %v1359
      %v1362 = vshrl.u32 %v1192, 16
      %v1364 = vshll.u32 %v1192, 16
      %v1366 = vrot.slane %v1364, 1
      %v1367 = vor.u32 %v1362, %v1366
      %v1369 = vshll.u32 %v1256, 16
      %v1371 = vrot.slane %v1369, 1
      %v1372 = vsel %vm1264, %v1367, %v1371
      %v1374 = vshrl.u32 %v1193, 16
      %v1376 = vshll.u32 %v1193, 16
      %v1378 = vrot.slane %v1376, 1
      %v1379 = vor.u32 %v1374, %v1378
      %v1381 = vshll.u32 %v1257, 16
      %v1383 = vrot.slane %v1381, 1
      %v1384 = vsel %vm1264, %v1379, %v1383
      %v1386 = vshrl.u32 %v1194, 16
      %v1388 = vshll.u32 %v1194, 16
      %v1390 = vrot.slane %v1388, 1
      %v1391 = vor.u32 %v1386, %v1390
      %v1393 = vshll.u32 %v1258, 16
      %v1395 = vrot.slane %v1393, 1
      %v1396 = vsel %vm1264, %v1391, %v1395
      %v1398 = vshrl.u32 %v1195, 16
      %v1400 = vshll.u32 %v1195, 16
      %v1402 = vrot.slane %v1400, 1
      %v1403 = vor.u32 %v1398, %v1402
      %v1405 = vshll.u32 %v1259, 16
      %v1407 = vrot.slane %v1405, 1
      %v1408 = vsel %vm1264, %v1403, %v1407
      %v1410 = vshrl.u32 %v1196, 16
      %v1412 = vshll.u32 %v1196, 16
      %v1414 = vrot.slane %v1412, 1
      %v1415 = vor.u32 %v1410, %v1414
      %v1417 = vshll.u32 %v1260, 16
      %v1419 = vrot.slane %v1417, 1
      %v1420 = vsel %vm1264, %v1415, %v1419
      %v1422 = vshrl.u32 %v1197, 16
      %v1424 = vshll.u32 %v1197, 16
      %v1426 = vrot.slane %v1424, 1
      %v1427 = vor.u32 %v1422, %v1426
      %v1429 = vshll.u32 %v1261, 16
      %v1431 = vrot.slane %v1429, 1
      %v1432 = vsel %vm1264, %v1427, %v1431
      %v1434 = vshrl.u32 %v1198, 16
      %v1436 = vshll.u32 %v1198, 16
      %v1438 = vrot.slane %v1436, 1
      %v1439 = vor.u32 %v1434, %v1438
      %v1441 = vshll.u32 %v1262, 16
      %v1443 = vrot.slane %v1441, 1
      %v1444 = vsel %vm1264, %v1439, %v1443
      %v1446 = vshrl.u32 %v1199, 16
      %v1448 = vshll.u32 %v1199, 16
      %v1450 = vrot.slane %v1448, 1
      %v1451 = vor.u32 %v1446, %v1450
      %v1453 = vshll.u32 %v1263, 16
      %v1455 = vrot.slane %v1453, 1
      %v1456 = vsel %vm1264, %v1451, %v1455
      %v1489 = vunpack.c.l.b16 %v975
      %v1490 = vunpack.c.l.b16 %v976
      %v1491 = vunpack.c.l.b16 %v977
      %v1492 = vunpack.c.l.b16 %v978
      %v1493 = vunpack.c.l.b16 %v979
      %v1494 = vunpack.c.l.b16 %v980
      %v1495 = vunpack.c.l.b16 %v981
      %v1496 = vunpack.c.l.b16 %v982
      %v1497 = vunpack.c.l.b16 %v983
      %v1498 = vunpack.c.l.b16 %v984
      %v1499 = vunpack.c.l.b16 %v985
      %v1500 = vunpack.c.l.b16 %v986
      %v1501 = vunpack.c.l.b16 %v987
      %v1502 = vunpack.c.l.b16 %v988
      %v1503 = vunpack.c.l.b16 %v989
      %v1504 = vunpack.c.l.b16 %v990
      %v1505 = vpack.c.b16 %v1153, %v1489
      %v1506 = vpack.c.b16 %v1155, %v1490
      %v1507 = vpack.c.b16 %v1157, %v1491
      %v1508 = vpack.c.b16 %v1159, %v1492
      %v1509 = vpack.c.b16 %v1161, %v1493
      %v1510 = vpack.c.b16 %v1163, %v1494
      %v1511 = vpack.c.b16 %v1165, %v1495
      %v1512 = vpack.c.b16 %v1167, %v1496
      %v1513 = vpack.c.b16 %v1169, %v1497
      %v1514 = vpack.c.b16 %v1171, %v1498
      %v1515 = vpack.c.b16 %v1173, %v1499
      %v1516 = vpack.c.b16 %v1175, %v1500
      %v1517 = vpack.c.b16 %v1177, %v1501
      %v1518 = vpack.c.b16 %v1179, %v1502
      %v1519 = vpack.c.b16 %v1181, %v1503
      %v1520 = vpack.c.b16 %v1183, %v1504
      %vm1521 = vcmask 1046528
      %v1522 = vrot.slane %v1505, 1
      %v1523 = vrot.slane %v1248, 1
      %v1524 = vsel %vm1521, %v1522, %v1523
      %v1525 = vrot.slane %v1506, 1
      %v1526 = vrot.slane %v1249, 1
      %v1527 = vsel %vm1521, %v1525, %v1526
      %v1528 = vrot.slane %v1507, 1
      %v1529 = vrot.slane %v1250, 1
      %v1530 = vsel %vm1521, %v1528, %v1529
      %v1531 = vrot.slane %v1508, 1
      %v1532 = vrot.slane %v1251, 1
      %v1533 = vsel %vm1521, %v1531, %v1532
      %v1534 = vrot.slane %v1509, 1
      %v1535 = vrot.slane %v1252, 1
      %v1536 = vsel %vm1521, %v1534, %v1535
      %v1537 = vrot.slane %v1510, 1
      %v1538 = vrot.slane %v1253, 1
      %v1539 = vsel %vm1521, %v1537, %v1538
      %v1540 = vrot.slane %v1511, 1
      %v1541 = vrot.slane %v1254, 1
      %v1542 = vsel %vm1521, %v1540, %v1541
      %v1543 = vrot.slane %v1512, 1
      %v1544 = vrot.slane %v1255, 1
      %v1545 = vsel %vm1521, %v1543, %v1544
      %v1546 = vrot.slane %v1513, 1
      %v1547 = vrot.slane %v1256, 1
      %v1548 = vsel %vm1521, %v1546, %v1547
      %v1549 = vrot.slane %v1514, 1
      %v1550 = vrot.slane %v1257, 1
      %v1551 = vsel %vm1521, %v1549, %v1550
      %v1552 = vrot.slane %v1515, 1
      %v1553 = vrot.slane %v1258, 1
      %v1554 = vsel %vm1521, %v1552, %v1553
      %v1555 = vrot.slane %v1516, 1
      %v1556 = vrot.slane %v1259, 1
      %v1557 = vsel %vm1521, %v1555, %v1556
      %v1558 = vrot.slane %v1517, 1
      %v1559 = vrot.slane %v1260, 1
      %v1560 = vsel %vm1521, %v1558, %v1559
      %v1561 = vrot.slane %v1518, 1
      %v1562 = vrot.slane %v1261, 1
      %v1563 = vsel %vm1521, %v1561, %v1562
      %v1564 = vrot.slane %v1519, 1
      %v1565 = vrot.slane %v1262, 1
      %v1566 = vsel %vm1521, %v1564, %v1565
      %v1567 = vrot.slane %v1520, 1
      %v1568 = vrot.slane %v1263, 1
      %v1569 = vsel %vm1521, %v1567, %v1568
      %v1618 = vunpack.c.l.b16 %v991
      %v1619 = vunpack.c.l.b16 %v992
      %v1620 = vunpack.c.l.b16 %v993
      %v1621 = vunpack.c.l.b16 %v994
      %v1622 = vunpack.c.l.b16 %v995
      %v1623 = vunpack.c.l.b16 %v996
      %v1624 = vunpack.c.l.b16 %v997
      %v1625 = vunpack.c.l.b16 %v998
      %v1626 = vunpack.c.l.b16 %v999
      %v1627 = vunpack.c.l.b16 %v1000
      %v1628 = vunpack.c.l.b16 %v1001
      %v1629 = vunpack.c.l.b16 %v1002
      %v1630 = vunpack.c.l.b16 %v1003
      %v1631 = vunpack.c.l.b16 %v1004
      %v1632 = vunpack.c.l.b16 %v1005
      %v1633 = vunpack.c.l.b16 %v1006
      %v1634 = vunpack.c.l.b16 %v1007
      %v1635 = vunpack.c.l.b16 %v1008
      %v1636 = vunpack.c.l.b16 %v1009
      %v1637 = vunpack.c.l.b16 %v1010
      %v1638 = vunpack.c.l.b16 %v1011
      %v1639 = vunpack.c.l.b16 %v1012
      %v1640 = vunpack.c.l.b16 %v1013
      %v1641 = vunpack.c.l.b16 %v1014
      %v1642 = vunpack.c.l.b16 %v1015
      %v1643 = vunpack.c.l.b16 %v1016
      %v1644 = vunpack.c.l.b16 %v1017
      %v1645 = vunpack.c.l.b16 %v1018
      %v1646 = vunpack.c.l.b16 %v1019
      %v1647 = vunpack.c.l.b16 %v1020
      %v1648 = vunpack.c.l.b16 %v1021
      %v1649 = vunpack.c.l.b16 %v1022
      %v1650 = vpack.c.b16 %v1619, %v1618
      %v1651 = vpack.c.b16 %v1621, %v1620
      %v1652 = vpack.c.b16 %v1623, %v1622
      %v1653 = vpack.c.b16 %v1625, %v1624
      %v1654 = vpack.c.b16 %v1627, %v1626
      %v1655 = vpack.c.b16 %v1629, %v1628
      %v1656 = vpack.c.b16 %v1631, %v1630
      %v1657 = vpack.c.b16 %v1633, %v1632
      %v1658 = vpack.c.b16 %v1635, %v1634
      %v1659 = vpack.c.b16 %v1637, %v1636
      %v1660 = vpack.c.b16 %v1639, %v1638
      %v1661 = vpack.c.b16 %v1641, %v1640
      %v1662 = vpack.c.b16 %v1643, %v1642
      %v1663 = vpack.c.b16 %v1645, %v1644
      %v1664 = vpack.c.b16 %v1647, %v1646
      %v1665 = vpack.c.b16 %v1649, %v1648
      %v1698 = vunpack.c.l.b16 %v1023
      %v1699 = vunpack.c.l.b16 %v1024
      %v1700 = vunpack.c.l.b16 %v1025
      %v1701 = vunpack.c.l.b16 %v1026
      %v1702 = vunpack.c.l.b16 %v1027
      %v1703 = vunpack.c.l.b16 %v1028
      %v1704 = vunpack.c.l.b16 %v1029
      %v1705 = vunpack.c.l.b16 %v1030
      %v1706 = vunpack.c.l.b16 %v1031
      %v1707 = vunpack.c.l.b16 %v1032
      %v1708 = vunpack.c.l.b16 %v1033
      %v1709 = vunpack.c.l.b16 %v1034
      %v1710 = vunpack.c.l.b16 %v1035
      %v1711 = vunpack.c.l.b16 %v1036
      %v1712 = vunpack.c.l.b16 %v1037
      %v1713 = vunpack.c.l.b16 %v1038
      %v1714 = vpack.c.b16 %v1698, %v1698
      %v1715 = vpack.c.b16 %v1699, %v1699
      %v1716 = vpack.c.b16 %v1700, %v1700
      %v1717 = vpack.c.b16 %v1701, %v1701
      %v1718 = vpack.c.b16 %v1702, %v1702
      %v1719 = vpack.c.b16 %v1703, %v1703
      %v1720 = vpack.c.b16 %v1704, %v1704
      %v1721 = vpack.c.b16 %v1705, %v1705
      %v1722 = vpack.c.b16 %v1706, %v1706
      %v1723 = vpack.c.b16 %v1707, %v1707
      %v1724 = vpack.c.b16 %v1708, %v1708
      %v1725 = vpack.c.b16 %v1709, %v1709
      %v1726 = vpack.c.b16 %v1710, %v1710
      %v1727 = vpack.c.b16 %v1711, %v1711
      %v1728 = vpack.c.b16 %v1712, %v1712
      %v1729 = vpack.c.b16 %v1713, %v1713
      %v1731 = vshrl.u32 %v1650, 16
      %v1733 = vshll.u32 %v1650, 16
      %v1735 = vrot.slane %v1733, 1
      %v1736 = vor.u32 %v1731, %v1735
      %v1738 = vshll.u32 %v1714, 16
      %v1740 = vrot.slane %v1738, 1
      %v1741 = vsel %vm1264, %v1736, %v1740
      %v1743 = vshrl.u32 %v1651, 16
      %v1745 = vshll.u32 %v1651, 16
      %v1747 = vrot.slane %v1745, 1
      %v1748 = vor.u32 %v1743, %v1747
      %v1750 = vshll.u32 %v1715, 16
      %v1752 = vrot.slane %v1750, 1
      %v1753 = vsel %vm1264, %v1748, %v1752
      %v1755 = vshrl.u32 %v1652, 16
      %v1757 = vshll.u32 %v1652, 16
      %v1759 = vrot.slane %v1757, 1
      %v1760 = vor.u32 %v1755, %v1759
      %v1762 = vshll.u32 %v1716, 16
      %v1764 = vrot.slane %v1762, 1
      %v1765 = vsel %vm1264, %v1760, %v1764
      %v1767 = vshrl.u32 %v1653, 16
      %v1769 = vshll.u32 %v1653, 16
      %v1771 = vrot.slane %v1769, 1
      %v1772 = vor.u32 %v1767, %v1771
      %v1774 = vshll.u32 %v1717, 16
      %v1776 = vrot.slane %v1774, 1
      %v1777 = vsel %vm1264, %v1772, %v1776
      %v1779 = vshrl.u32 %v1654, 16
      %v1781 = vshll.u32 %v1654, 16
      %v1783 = vrot.slane %v1781, 1
      %v1784 = vor.u32 %v1779, %v1783
      %v1786 = vshll.u32 %v1718, 16
      %v1788 = vrot.slane %v1786, 1
      %v1789 = vsel %vm1264, %v1784, %v1788
      %v1791 = vshrl.u32 %v1655, 16
      %v1793 = vshll.u32 %v1655, 16
      %v1795 = vrot.slane %v1793, 1
      %v1796 = vor.u32 %v1791, %v1795
      %v1798 = vshll.u32 %v1719, 16
      %v1800 = vrot.slane %v1798, 1
      %v1801 = vsel %vm1264, %v1796, %v1800
      %v1803 = vshrl.u32 %v1656, 16
      %v1805 = vshll.u32 %v1656, 16
      %v1807 = vrot.slane %v1805, 1
      %v1808 = vor.u32 %v1803, %v1807
      %v1810 = vshll.u32 %v1720, 16
      %v1812 = vrot.slane %v1810, 1
      %v1813 = vsel %vm1264, %v1808, %v1812
      %v1815 = vshrl.u32 %v1657, 16
      %v1817 = vshll.u32 %v1657, 16
      %v1819 = vrot.slane %v1817, 1
      %v1820 = vor.u32 %v1815, %v1819
      %v1822 = vshll.u32 %v1721, 16
      %v1824 = vrot.slane %v1822, 1
      %v1825 = vsel %vm1264, %v1820, %v1824
      %v1827 = vshrl.u32 %v1658, 16
      %v1829 = vshll.u32 %v1658, 16
      %v1831 = vrot.slane %v1829, 1
      %v1832 = vor.u32 %v1827, %v1831
      %v1834 = vshll.u32 %v1722, 16
      %v1836 = vrot.slane %v1834, 1
      %v1837 = vsel %vm1264, %v1832, %v1836
      %v1839 = vshrl.u32 %v1659, 16
      %v1841 = vshll.u32 %v1659, 16
      %v1843 = vrot.slane %v1841, 1
      %v1844 = vor.u32 %v1839, %v1843
      %v1846 = vshll.u32 %v1723, 16
      %v1848 = vrot.slane %v1846, 1
      %v1849 = vsel %vm1264, %v1844, %v1848
      %v1851 = vshrl.u32 %v1660, 16
      %v1853 = vshll.u32 %v1660, 16
      %v1855 = vrot.slane %v1853, 1
      %v1856 = vor.u32 %v1851, %v1855
      %v1858 = vshll.u32 %v1724, 16
      %v1860 = vrot.slane %v1858, 1
      %v1861 = vsel %vm1264, %v1856, %v1860
      %v1863 = vshrl.u32 %v1661, 16
      %v1865 = vshll.u32 %v1661, 16
      %v1867 = vrot.slane %v1865, 1
      %v1868 = vor.u32 %v1863, %v1867
      %v1870 = vshll.u32 %v1725, 16
      %v1872 = vrot.slane %v1870, 1
      %v1873 = vsel %vm1264, %v1868, %v1872
      %v1875 = vshrl.u32 %v1662, 16
      %v1877 = vshll.u32 %v1662, 16
      %v1879 = vrot.slane %v1877, 1
      %v1880 = vor.u32 %v1875, %v1879
      %v1882 = vshll.u32 %v1726, 16
      %v1884 = vrot.slane %v1882, 1
      %v1885 = vsel %vm1264, %v1880, %v1884
      %v1887 = vshrl.u32 %v1663, 16
      %v1889 = vshll.u32 %v1663, 16
      %v1891 = vrot.slane %v1889, 1
      %v1892 = vor.u32 %v1887, %v1891
      %v1894 = vshll.u32 %v1727, 16
      %v1896 = vrot.slane %v1894, 1
      %v1897 = vsel %vm1264, %v1892, %v1896
      %v1899 = vshrl.u32 %v1664, 16
      %v1901 = vshll.u32 %v1664, 16
      %v1903 = vrot.slane %v1901, 1
      %v1904 = vor.u32 %v1899, %v1903
      %v1906 = vshll.u32 %v1728, 16
      %v1908 = vrot.slane %v1906, 1
      %v1909 = vsel %vm1264, %v1904, %v1908
      %v1911 = vshrl.u32 %v1665, 16
      %v1913 = vshll.u32 %v1665, 16
      %v1915 = vrot.slane %v1913, 1
      %v1916 = vor.u32 %v1911, %v1915
      %v1918 = vshll.u32 %v1729, 16
      %v1920 = vrot.slane %v1918, 1
      %v1921 = vsel %vm1264, %v1916, %v1920
      %v1954 = vunpack.c.l.b16 %v1039
      %v1955 = vunpack.c.l.b16 %v1040
      %v1956 = vunpack.c.l.b16 %v1041
      %v1957 = vunpack.c.l.b16 %v1042
      %v1958 = vunpack.c.l.b16 %v1043
      %v1959 = vunpack.c.l.b16 %v1044
      %v1960 = vunpack.c.l.b16 %v1045
      %v1961 = vunpack.c.l.b16 %v1046
      %v1962 = vunpack.c.l.b16 %v1047
      %v1963 = vunpack.c.l.b16 %v1048
      %v1964 = vunpack.c.l.b16 %v1049
      %v1965 = vunpack.c.l.b16 %v1050
      %v1966 = vunpack.c.l.b16 %v1051
      %v1967 = vunpack.c.l.b16 %v1052
      %v1968 = vunpack.c.l.b16 %v1053
      %v1969 = vunpack.c.l.b16 %v1054
      %v1970 = vpack.c.b16 %v1619, %v1954
      %v1971 = vpack.c.b16 %v1621, %v1955
      %v1972 = vpack.c.b16 %v1623, %v1956
      %v1973 = vpack.c.b16 %v1625, %v1957
      %v1974 = vpack.c.b16 %v1627, %v1958
      %v1975 = vpack.c.b16 %v1629, %v1959
      %v1976 = vpack.c.b16 %v1631, %v1960
      %v1977 = vpack.c.b16 %v1633, %v1961
      %v1978 = vpack.c.b16 %v1635, %v1962
      %v1979 = vpack.c.b16 %v1637, %v1963
      %v1980 = vpack.c.b16 %v1639, %v1964
      %v1981 = vpack.c.b16 %v1641, %v1965
      %v1982 = vpack.c.b16 %v1643, %v1966
      %v1983 = vpack.c.b16 %v1645, %v1967
      %v1984 = vpack.c.b16 %v1647, %v1968
      %v1985 = vpack.c.b16 %v1649, %v1969
      %v1986 = vrot.slane %v1970, 1
      %v1987 = vrot.slane %v1714, 1
      %v1988 = vsel %vm1521, %v1986, %v1987
      %v1989 = vrot.slane %v1971, 1
      %v1990 = vrot.slane %v1715, 1
      %v1991 = vsel %vm1521, %v1989, %v1990
      %v1992 = vrot.slane %v1972, 1
      %v1993 = vrot.slane %v1716, 1
      %v1994 = vsel %vm1521, %v1992, %v1993
      %v1995 = vrot.slane %v1973, 1
      %v1996 = vrot.slane %v1717, 1
      %v1997 = vsel %vm1521, %v1995, %v1996
      %v1998 = vrot.slane %v1974, 1
      %v1999 = vrot.slane %v1718, 1
      %v2000 = vsel %vm1521, %v1998, %v1999
      %v2001 = vrot.slane %v1975, 1
      %v2002 = vrot.slane %v1719, 1
      %v2003 = vsel %vm1521, %v2001, %v2002
      %v2004 = vrot.slane %v1976, 1
      %v2005 = vrot.slane %v1720, 1
      %v2006 = vsel %vm1521, %v2004, %v2005
      %v2007 = vrot.slane %v1977, 1
      %v2008 = vrot.slane %v1721, 1
      %v2009 = vsel %vm1521, %v2007, %v2008
      %v2010 = vrot.slane %v1978, 1
      %v2011 = vrot.slane %v1722, 1
      %v2012 = vsel %vm1521, %v2010, %v2011
      %v2013 = vrot.slane %v1979, 1
      %v2014 = vrot.slane %v1723, 1
      %v2015 = vsel %vm1521, %v2013, %v2014
      %v2016 = vrot.slane %v1980, 1
      %v2017 = vrot.slane %v1724, 1
      %v2018 = vsel %vm1521, %v2016, %v2017
      %v2019 = vrot.slane %v1981, 1
      %v2020 = vrot.slane %v1725, 1
      %v2021 = vsel %vm1521, %v2019, %v2020
      %v2022 = vrot.slane %v1982, 1
      %v2023 = vrot.slane %v1726, 1
      %v2024 = vsel %vm1521, %v2022, %v2023
      %v2025 = vrot.slane %v1983, 1
      %v2026 = vrot.slane %v1727, 1
      %v2027 = vsel %vm1521, %v2025, %v2026
      %v2028 = vrot.slane %v1984, 1
      %v2029 = vrot.slane %v1728, 1
      %v2030 = vsel %vm1521, %v2028, %v2029
      %v2031 = vrot.slane %v1985, 1
      %v2032 = vrot.slane %v1729, 1
      %v2033 = vsel %vm1521, %v2031, %v2032
      %v2082 = vunpack.c.l.b16 %v1056
      %v2083 = vunpack.c.l.b16 %v1057
      %v2084 = vunpack.c.l.b16 %v1058
      %v2085 = vunpack.c.l.b16 %v1059
      %v2086 = vunpack.c.l.b16 %v1060
      %v2087 = vunpack.c.l.b16 %v1061
      %v2088 = vunpack.c.l.b16 %v1062
      %v2089 = vunpack.c.l.b16 %v1063
      %v2090 = vunpack.c.l.b16 %v1064
      %v2091 = vunpack.c.l.b16 %v1065
      %v2092 = vunpack.c.l.b16 %v1066
      %v2093 = vunpack.c.l.b16 %v1067
      %v2094 = vunpack.c.l.b16 %v1068
      %v2095 = vunpack.c.l.b16 %v1069
      %v2096 = vunpack.c.l.b16 %v1070
      %v2097 = vunpack.c.l.b16 %v1071
      %v2098 = vunpack.c.l.b16 %v1072
      %v2099 = vunpack.c.l.b16 %v1073
      %v2100 = vunpack.c.l.b16 %v1074
      %v2101 = vunpack.c.l.b16 %v1075
      %v2102 = vunpack.c.l.b16 %v1076
      %v2103 = vunpack.c.l.b16 %v1077
      %v2104 = vunpack.c.l.b16 %v1078
      %v2105 = vunpack.c.l.b16 %v1079
      %v2106 = vunpack.c.l.b16 %v1080
      %v2107 = vunpack.c.l.b16 %v1081
      %v2108 = vunpack.c.l.b16 %v1082
      %v2109 = vunpack.c.l.b16 %v1083
      %v2110 = vunpack.c.l.b16 %v1084
      %v2111 = vunpack.c.l.b16 %v1085
      %v2112 = vunpack.c.l.b16 %v1086
      %v2113 = vunpack.c.l.b16 %v1087
      %v2114 = vpack.c.b16 %v2083, %v2082
      %v2115 = vpack.c.b16 %v2085, %v2084
      %v2116 = vpack.c.b16 %v2087, %v2086
      %v2117 = vpack.c.b16 %v2089, %v2088
      %v2118 = vpack.c.b16 %v2091, %v2090
      %v2119 = vpack.c.b16 %v2093, %v2092
      %v2120 = vpack.c.b16 %v2095, %v2094
      %v2121 = vpack.c.b16 %v2097, %v2096
      %v2122 = vpack.c.b16 %v2099, %v2098
      %v2123 = vpack.c.b16 %v2101, %v2100
      %v2124 = vpack.c.b16 %v2103, %v2102
      %v2125 = vpack.c.b16 %v2105, %v2104
      %v2126 = vpack.c.b16 %v2107, %v2106
      %v2127 = vpack.c.b16 %v2109, %v2108
      %v2128 = vpack.c.b16 %v2111, %v2110
      %v2129 = vpack.c.b16 %v2113, %v2112
      %v2162 = vunpack.c.l.b16 %v1088
      %v2163 = vunpack.c.l.b16 %v1089
      %v2164 = vunpack.c.l.b16 %v1090
      %v2165 = vunpack.c.l.b16 %v1091
      %v2166 = vunpack.c.l.b16 %v1092
      %v2167 = vunpack.c.l.b16 %v1093
      %v2168 = vunpack.c.l.b16 %v1094
      %v2169 = vunpack.c.l.b16 %v1095
      %v2170 = vunpack.c.l.b16 %v1096
      %v2171 = vunpack.c.l.b16 %v1097
      %v2172 = vunpack.c.l.b16 %v1098
      %v2173 = vunpack.c.l.b16 %v1099
      %v2174 = vunpack.c.l.b16 %v1100
      %v2175 = vunpack.c.l.b16 %v1101
      %v2176 = vunpack.c.l.b16 %v1102
      %v2177 = vunpack.c.l.b16 %v1103
      %v2178 = vpack.c.b16 %v2162, %v2162
      %v2179 = vpack.c.b16 %v2163, %v2163
      %v2180 = vpack.c.b16 %v2164, %v2164
      %v2181 = vpack.c.b16 %v2165, %v2165
      %v2182 = vpack.c.b16 %v2166, %v2166
      %v2183 = vpack.c.b16 %v2167, %v2167
      %v2184 = vpack.c.b16 %v2168, %v2168
      %v2185 = vpack.c.b16 %v2169, %v2169
      %v2186 = vpack.c.b16 %v2170, %v2170
      %v2187 = vpack.c.b16 %v2171, %v2171
      %v2188 = vpack.c.b16 %v2172, %v2172
      %v2189 = vpack.c.b16 %v2173, %v2173
      %v2190 = vpack.c.b16 %v2174, %v2174
      %v2191 = vpack.c.b16 %v2175, %v2175
      %v2192 = vpack.c.b16 %v2176, %v2176
      %v2193 = vpack.c.b16 %v2177, %v2177
      %v2195 = vshrl.u32 %v2114, 16
      %v2197 = vshll.u32 %v2114, 16
      %v2199 = vrot.slane %v2197, 1
      %v2200 = vor.u32 %v2195, %v2199
      %v2202 = vshll.u32 %v2178, 16
      %v2204 = vrot.slane %v2202, 1
      %v2205 = vsel %vm1264, %v2200, %v2204
      %v2207 = vshrl.u32 %v2115, 16
      %v2209 = vshll.u32 %v2115, 16
      %v2211 = vrot.slane %v2209, 1
      %v2212 = vor.u32 %v2207, %v2211
      %v2214 = vshll.u32 %v2179, 16
      %v2216 = vrot.slane %v2214, 1
      %v2217 = vsel %vm1264, %v2212, %v2216
      %v2219 = vshrl.u32 %v2116, 16
      %v2221 = vshll.u32 %v2116, 16
      %v2223 = vrot.slane %v2221, 1
      %v2224 = vor.u32 %v2219, %v2223
      %v2226 = vshll.u32 %v2180, 16
      %v2228 = vrot.slane %v2226, 1
      %v2229 = vsel %vm1264, %v2224, %v2228
      %v2231 = vshrl.u32 %v2117, 16
      %v2233 = vshll.u32 %v2117, 16
      %v2235 = vrot.slane %v2233, 1
      %v2236 = vor.u32 %v2231, %v2235
      %v2238 = vshll.u32 %v2181, 16
      %v2240 = vrot.slane %v2238, 1
      %v2241 = vsel %vm1264, %v2236, %v2240
      %v2243 = vshrl.u32 %v2118, 16
      %v2245 = vshll.u32 %v2118, 16
      %v2247 = vrot.slane %v2245, 1
      %v2248 = vor.u32 %v2243, %v2247
      %v2250 = vshll.u32 %v2182, 16
      %v2252 = vrot.slane %v2250, 1
      %v2253 = vsel %vm1264, %v2248, %v2252
      %v2255 = vshrl.u32 %v2119, 16
      %v2257 = vshll.u32 %v2119, 16
      %v2259 = vrot.slane %v2257, 1
      %v2260 = vor.u32 %v2255, %v2259
      %v2262 = vshll.u32 %v2183, 16
      %v2264 = vrot.slane %v2262, 1
      %v2265 = vsel %vm1264, %v2260, %v2264
      %v2267 = vshrl.u32 %v2120, 16
      %v2269 = vshll.u32 %v2120, 16
      %v2271 = vrot.slane %v2269, 1
      %v2272 = vor.u32 %v2267, %v2271
      %v2274 = vshll.u32 %v2184, 16
      %v2276 = vrot.slane %v2274, 1
      %v2277 = vsel %vm1264, %v2272, %v2276
      %v2279 = vshrl.u32 %v2121, 16
      %v2281 = vshll.u32 %v2121, 16
      %v2283 = vrot.slane %v2281, 1
      %v2284 = vor.u32 %v2279, %v2283
      %v2286 = vshll.u32 %v2185, 16
      %v2288 = vrot.slane %v2286, 1
      %v2289 = vsel %vm1264, %v2284, %v2288
      %v2291 = vshrl.u32 %v2122, 16
      %v2293 = vshll.u32 %v2122, 16
      %v2295 = vrot.slane %v2293, 1
      %v2296 = vor.u32 %v2291, %v2295
      %v2298 = vshll.u32 %v2186, 16
      %v2300 = vrot.slane %v2298, 1
      %v2301 = vsel %vm1264, %v2296, %v2300
      %v2303 = vshrl.u32 %v2123, 16
      %v2305 = vshll.u32 %v2123, 16
      %v2307 = vrot.slane %v2305, 1
      %v2308 = vor.u32 %v2303, %v2307
      %v2310 = vshll.u32 %v2187, 16
      %v2312 = vrot.slane %v2310, 1
      %v2313 = vsel %vm1264, %v2308, %v2312
      %v2315 = vshrl.u32 %v2124, 16
      %v2317 = vshll.u32 %v2124, 16
      %v2319 = vrot.slane %v2317, 1
      %v2320 = vor.u32 %v2315, %v2319
      %v2322 = vshll.u32 %v2188, 16
      %v2324 = vrot.slane %v2322, 1
      %v2325 = vsel %vm1264, %v2320, %v2324
      %v2327 = vshrl.u32 %v2125, 16
      %v2329 = vshll.u32 %v2125, 16
      %v2331 = vrot.slane %v2329, 1
      %v2332 = vor.u32 %v2327, %v2331
      %v2334 = vshll.u32 %v2189, 16
      %v2336 = vrot.slane %v2334, 1
      %v2337 = vsel %vm1264, %v2332, %v2336
      %v2339 = vshrl.u32 %v2126, 16
      %v2341 = vshll.u32 %v2126, 16
      %v2343 = vrot.slane %v2341, 1
      %v2344 = vor.u32 %v2339, %v2343
      %v2346 = vshll.u32 %v2190, 16
      %v2348 = vrot.slane %v2346, 1
      %v2349 = vsel %vm1264, %v2344, %v2348
      %v2351 = vshrl.u32 %v2127, 16
      %v2353 = vshll.u32 %v2127, 16
      %v2355 = vrot.slane %v2353, 1
      %v2356 = vor.u32 %v2351, %v2355
      %v2358 = vshll.u32 %v2191, 16
      %v2360 = vrot.slane %v2358, 1
      %v2361 = vsel %vm1264, %v2356, %v2360
      %v2363 = vshrl.u32 %v2128, 16
      %v2365 = vshll.u32 %v2128, 16
      %v2367 = vrot.slane %v2365, 1
      %v2368 = vor.u32 %v2363, %v2367
      %v2370 = vshll.u32 %v2192, 16
      %v2372 = vrot.slane %v2370, 1
      %v2373 = vsel %vm1264, %v2368, %v2372
      %v2375 = vshrl.u32 %v2129, 16
      %v2377 = vshll.u32 %v2129, 16
      %v2379 = vrot.slane %v2377, 1
      %v2380 = vor.u32 %v2375, %v2379
      %v2382 = vshll.u32 %v2193, 16
      %v2384 = vrot.slane %v2382, 1
      %v2385 = vsel %vm1264, %v2380, %v2384
      %v2418 = vunpack.c.l.b16 %v1104
      %v2419 = vunpack.c.l.b16 %v1105
      %v2420 = vunpack.c.l.b16 %v1106
      %v2421 = vunpack.c.l.b16 %v1107
      %v2422 = vunpack.c.l.b16 %v1108
      %v2423 = vunpack.c.l.b16 %v1109
      %v2424 = vunpack.c.l.b16 %v1110
      %v2425 = vunpack.c.l.b16 %v1111
      %v2426 = vunpack.c.l.b16 %v1112
      %v2427 = vunpack.c.l.b16 %v1113
      %v2428 = vunpack.c.l.b16 %v1114
      %v2429 = vunpack.c.l.b16 %v1115
      %v2430 = vunpack.c.l.b16 %v1116
      %v2431 = vunpack.c.l.b16 %v1117
      %v2432 = vunpack.c.l.b16 %v1118
      %v2433 = vunpack.c.l.b16 %v1119
      %v2434 = vpack.c.b16 %v2083, %v2418
      %v2435 = vpack.c.b16 %v2085, %v2419
      %v2436 = vpack.c.b16 %v2087, %v2420
      %v2437 = vpack.c.b16 %v2089, %v2421
      %v2438 = vpack.c.b16 %v2091, %v2422
      %v2439 = vpack.c.b16 %v2093, %v2423
      %v2440 = vpack.c.b16 %v2095, %v2424
      %v2441 = vpack.c.b16 %v2097, %v2425
      %v2442 = vpack.c.b16 %v2099, %v2426
      %v2443 = vpack.c.b16 %v2101, %v2427
      %v2444 = vpack.c.b16 %v2103, %v2428
      %v2445 = vpack.c.b16 %v2105, %v2429
      %v2446 = vpack.c.b16 %v2107, %v2430
      %v2447 = vpack.c.b16 %v2109, %v2431
      %v2448 = vpack.c.b16 %v2111, %v2432
      %v2449 = vpack.c.b16 %v2113, %v2433
      %v2450 = vrot.slane %v2434, 1
      %v2451 = vrot.slane %v2178, 1
      %v2452 = vsel %vm1521, %v2450, %v2451
      %v2453 = vrot.slane %v2435, 1
      %v2454 = vrot.slane %v2179, 1
      %v2455 = vsel %vm1521, %v2453, %v2454
      %v2456 = vrot.slane %v2436, 1
      %v2457 = vrot.slane %v2180, 1
      %v2458 = vsel %vm1521, %v2456, %v2457
      %v2459 = vrot.slane %v2437, 1
      %v2460 = vrot.slane %v2181, 1
      %v2461 = vsel %vm1521, %v2459, %v2460
      %v2462 = vrot.slane %v2438, 1
      %v2463 = vrot.slane %v2182, 1
      %v2464 = vsel %vm1521, %v2462, %v2463
      %v2465 = vrot.slane %v2439, 1
      %v2466 = vrot.slane %v2183, 1
      %v2467 = vsel %vm1521, %v2465, %v2466
      %v2468 = vrot.slane %v2440, 1
      %v2469 = vrot.slane %v2184, 1
      %v2470 = vsel %vm1521, %v2468, %v2469
      %v2471 = vrot.slane %v2441, 1
      %v2472 = vrot.slane %v2185, 1
      %v2473 = vsel %vm1521, %v2471, %v2472
      %v2474 = vrot.slane %v2442, 1
      %v2475 = vrot.slane %v2186, 1
      %v2476 = vsel %vm1521, %v2474, %v2475
      %v2477 = vrot.slane %v2443, 1
      %v2478 = vrot.slane %v2187, 1
      %v2479 = vsel %vm1521, %v2477, %v2478
      %v2480 = vrot.slane %v2444, 1
      %v2481 = vrot.slane %v2188, 1
      %v2482 = vsel %vm1521, %v2480, %v2481
      %v2483 = vrot.slane %v2445, 1
      %v2484 = vrot.slane %v2189, 1
      %v2485 = vsel %vm1521, %v2483, %v2484
      %v2486 = vrot.slane %v2446, 1
      %v2487 = vrot.slane %v2190, 1
      %v2488 = vsel %vm1521, %v2486, %v2487
      %v2489 = vrot.slane %v2447, 1
      %v2490 = vrot.slane %v2191, 1
      %v2491 = vsel %vm1521, %v2489, %v2490
      %v2492 = vrot.slane %v2448, 1
      %v2493 = vrot.slane %v2192, 1
      %v2494 = vsel %vm1521, %v2492, %v2493
      %v2495 = vrot.slane %v2449, 1
      %v2496 = vrot.slane %v2193, 1
      %v2497 = vsel %vm1521, %v2495, %v2496
      %v2514 = vld [vmem:[%s3] sm:$0xf]
      %v2515 = vld [vmem:[%s3 + $0x4] sm:$0xf]
      %v2516 = vld [vmem:[%s3 + $0x8] sm:$0xf]
      %v2517 = vld [vmem:[%s3 + $0xc] sm:$0xf]
      %v2518 = vld [vmem:[%s3 + $0x10] sm:$0xf]
      %v2519 = vld [vmem:[%s3 + $0x14] sm:$0xf]
      %v2520 = vld [vmem:[%s3 + $0x18] sm:$0xf]
      %v2521 = vld [vmem:[%s3 + $0x1c] sm:$0xf]
      %v2522 = vld [vmem:[%s3 + $0x20] sm:$0xf]
      %v2523 = vld [vmem:[%s3 + $0x24] sm:$0xf]
      %v2524 = vld [vmem:[%s3 + $0x28] sm:$0xf]
      %v2525 = vld [vmem:[%s3 + $0x2c] sm:$0xf]
      %v2526 = vld [vmem:[%s3 + $0x30] sm:$0xf]
      %v2527 = vld [vmem:[%s3 + $0x34] sm:$0xf]
      %v2528 = vld [vmem:[%s3 + $0x38] sm:$0xf]
      %v2529 = vld [vmem:[%s3 + $0x3c] sm:$0xf]
      %v2530 = vld [vmem:[%s3 + $0x40] sm:$0xf]
      %v2531 = vld [vmem:[%s3 + $0x44] sm:$0xf]
      %v2532 = vld [vmem:[%s3 + $0x48] sm:$0xf]
      %v2533 = vld [vmem:[%s3 + $0x4c] sm:$0xf]
      %v2534 = vld [vmem:[%s3 + $0x50] sm:$0xf]
      %v2535 = vld [vmem:[%s3 + $0x54] sm:$0xf]
      %v2536 = vld [vmem:[%s3 + $0x58] sm:$0xf]
      %v2537 = vld [vmem:[%s3 + $0x5c] sm:$0xf]
      %v2538 = vld [vmem:[%s3 + $0x60] sm:$0xf]
      %v2539 = vld [vmem:[%s3 + $0x64] sm:$0xf]
      %v2540 = vld [vmem:[%s3 + $0x68] sm:$0xf]
      %v2541 = vld [vmem:[%s3 + $0x6c] sm:$0xf]
      %v2542 = vld [vmem:[%s3 + $0x70] sm:$0xf]
      %v2543 = vld [vmem:[%s3 + $0x74] sm:$0xf]
      %v2544 = vld [vmem:[%s3 + $0x78] sm:$0xf]
      %v2545 = vld [vmem:[%s3 + $0x7c] sm:$0xf]
      %v2546 = vld [vmem:[%s3 + $0x80] sm:$0xf]
      %v2547 = vld [vmem:[%s3 + $0x84] sm:$0xf]
      %v2548 = vld [vmem:[%s3 + $0x88] sm:$0xf]
      %v2549 = vld [vmem:[%s3 + $0x8c] sm:$0xf]
      %v2550 = vld [vmem:[%s3 + $0x90] sm:$0xf]
      %v2551 = vld [vmem:[%s3 + $0x94] sm:$0xf]
      %v2552 = vld [vmem:[%s3 + $0x98] sm:$0xf]
      %v2553 = vld [vmem:[%s3 + $0x9c] sm:$0xf]
      %v2554 = vld [vmem:[%s3 + $0xa0] sm:$0xf]
      %v2555 = vld [vmem:[%s3 + $0xa4] sm:$0xf]
      %v2556 = vld [vmem:[%s3 + $0xa8] sm:$0xf]
      %v2557 = vld [vmem:[%s3 + $0xac] sm:$0xf]
      %v2558 = vld [vmem:[%s3 + $0xb0] sm:$0xf]
      %v2559 = vld [vmem:[%s3 + $0xb4] sm:$0xf]
      %v2560 = vld [vmem:[%s3 + $0xb8] sm:$0xf]
      %v2561 = vld [vmem:[%s3 + $0xbc] sm:$0xf]
      %v2562 = vld [vmem:[%s3 + $0xc0] sm:$0xf]
      %v2563 = vld [vmem:[%s3 + $0xc4] sm:$0xf]
      %v2564 = vld [vmem:[%s3 + $0xc8] sm:$0xf]
      %v2565 = vld [vmem:[%s3 + $0xcc] sm:$0xf]
      %v2566 = vld [vmem:[%s3 + $0xd0] sm:$0xf]
      %v2567 = vld [vmem:[%s3 + $0xd4] sm:$0xf]
      %v2568 = vld [vmem:[%s3 + $0xd8] sm:$0xf]
      %v2569 = vld [vmem:[%s3 + $0xdc] sm:$0xf]
      %v2570 = vld [vmem:[%s3 + $0xe0] sm:$0xf]
      %v2571 = vld [vmem:[%s3 + $0xe4] sm:$0xf]
      %v2572 = vld [vmem:[%s3 + $0xe8] sm:$0xf]
      %v2573 = vld [vmem:[%s3 + $0xec] sm:$0xf]
      %v2574 = vld [vmem:[%s3 + $0xf0] sm:$0xf]
      %v2575 = vld [vmem:[%s3 + $0xf4] sm:$0xf]
      %v2576 = vld [vmem:[%s3 + $0xf8] sm:$0xf]
      %v2577 = vld [vmem:[%s3 + $0xfc] sm:$0xf]
      %v2578 = vld [vmem:[%s3 + $0x100] sm:$0xf]
      %v2579 = vld [vmem:[%s3 + $0x104] sm:$0xf]
      %v2580 = vld [vmem:[%s3 + $0x108] sm:$0xf]
      %v2581 = vld [vmem:[%s3 + $0x10c] sm:$0xf]
      %v2582 = vld [vmem:[%s3 + $0x110] sm:$0xf]
      %v2583 = vld [vmem:[%s3 + $0x114] sm:$0xf]
      %v2584 = vld [vmem:[%s3 + $0x118] sm:$0xf]
      %v2585 = vld [vmem:[%s3 + $0x11c] sm:$0xf]
      %v2586 = vld [vmem:[%s3 + $0x120] sm:$0xf]
      %v2587 = vld [vmem:[%s3 + $0x124] sm:$0xf]
      %v2588 = vld [vmem:[%s3 + $0x128] sm:$0xf]
      %v2589 = vld [vmem:[%s3 + $0x12c] sm:$0xf]
      %v2590 = vld [vmem:[%s3 + $0x130] sm:$0xf]
      %v2591 = vld [vmem:[%s3 + $0x134] sm:$0xf]
      %v2592 = vld [vmem:[%s3 + $0x138] sm:$0xf]
      %v2593 = vld [vmem:[%s3 + $0x13c] sm:$0xf]
      %v2594 = vld [vmem:[%s3 + $0x140] sm:$0xf]
      %v2595 = vld [vmem:[%s3 + $0x144] sm:$0xf]
      %v2596 = vld [vmem:[%s3 + $0x148] sm:$0xf]
      %v2597 = vld [vmem:[%s3 + $0x14c] sm:$0xf]
      %v2598 = vld [vmem:[%s3 + $0x150] sm:$0xf]
      %v2599 = vld [vmem:[%s3 + $0x154] sm:$0xf]
      %v2600 = vld [vmem:[%s3 + $0x158] sm:$0xf]
      %v2601 = vld [vmem:[%s3 + $0x15c] sm:$0xf]
      %v2602 = vld [vmem:[%s3 + $0x160] sm:$0xf]
      %v2603 = vld [vmem:[%s3 + $0x164] sm:$0xf]
      %v2604 = vld [vmem:[%s3 + $0x168] sm:$0xf]
      %v2605 = vld [vmem:[%s3 + $0x16c] sm:$0xf]
      %v2606 = vld [vmem:[%s3 + $0x170] sm:$0xf]
      %v2607 = vld [vmem:[%s3 + $0x174] sm:$0xf]
      %v2608 = vld [vmem:[%s3 + $0x178] sm:$0xf]
      %v2609 = vld [vmem:[%s3 + $0x17c] sm:$0xf]
      %v2610 = vld [vmem:[%s3 + $0x180] sm:$0xf]
      %v2611 = vld [vmem:[%s3 + $0x184] sm:$0xf]
      %v2612 = vld [vmem:[%s3 + $0x188] sm:$0xf]
      %v2613 = vld [vmem:[%s3 + $0x18c] sm:$0xf]
      %v2614 = vld [vmem:[%s3 + $0x190] sm:$0xf]
      %v2615 = vld [vmem:[%s3 + $0x194] sm:$0xf]
      %v2616 = vld [vmem:[%s3 + $0x198] sm:$0xf]
      %v2617 = vld [vmem:[%s3 + $0x19c] sm:$0xf]
      %v2618 = vld [vmem:[%s3 + $0x1a0] sm:$0xf]
      %v2619 = vld [vmem:[%s3 + $0x1a4] sm:$0xf]
      %v2620 = vld [vmem:[%s3 + $0x1a8] sm:$0xf]
      %v2621 = vld [vmem:[%s3 + $0x1ac] sm:$0xf]
      %v2622 = vld [vmem:[%s3 + $0x1b0] sm:$0xf]
      %v2623 = vld [vmem:[%s3 + $0x1b4] sm:$0xf]
      %v2624 = vld [vmem:[%s3 + $0x1b8] sm:$0xf]
      %v2625 = vld [vmem:[%s3 + $0x1bc] sm:$0xf]
      %v2626 = vld [vmem:[%s3 + $0x1c0] sm:$0xf]
      %v2627 = vld [vmem:[%s3 + $0x1c4] sm:$0xf]
      %v2628 = vld [vmem:[%s3 + $0x1c8] sm:$0xf]
      %v2629 = vld [vmem:[%s3 + $0x1cc] sm:$0xf]
      %v2630 = vld [vmem:[%s3 + $0x1d0] sm:$0xf]
      %v2631 = vld [vmem:[%s3 + $0x1d4] sm:$0xf]
      %v2632 = vld [vmem:[%s3 + $0x1d8] sm:$0xf]
      %v2633 = vld [vmem:[%s3 + $0x1dc] sm:$0xf]
      %v2634 = vld [vmem:[%s3 + $0x1e0] sm:$0xf]
      %v2635 = vld [vmem:[%s3 + $0x1e4] sm:$0xf]
      %v2636 = vld [vmem:[%s3 + $0x1e8] sm:$0xf]
      %v2637 = vld [vmem:[%s3 + $0x1ec] sm:$0xf]
      %v2638 = vld [vmem:[%s3 + $0x1f0] sm:$0xf]
      %v2639 = vld [vmem:[%s3 + $0x1f4] sm:$0xf]
      %v2640 = vld [vmem:[%s3 + $0x1f8] sm:$0xf]
      %v2641 = vld [vmem:[%s3 + $0x1fc] sm:$0xf]
      %v2642 = vld [vmem:[%s3 + $0x200] sm:$0xf]
      %v2643 = vld [vmem:[%s3 + $0x204] sm:$0xf]
      %v2644 = vld [vmem:[%s3 + $0x208] sm:$0xf]
      %v2645 = vld [vmem:[%s3 + $0x20c] sm:$0xf]
      %v2646 = vld [vmem:[%s3 + $0x210] sm:$0xf]
      %v2647 = vld [vmem:[%s3 + $0x214] sm:$0xf]
      %v2648 = vld [vmem:[%s3 + $0x218] sm:$0xf]
      %v2649 = vld [vmem:[%s3 + $0x21c] sm:$0xf]
      %v2650 = vld [vmem:[%s3 + $0x220] sm:$0xf]
      %v2651 = vld [vmem:[%s3 + $0x224] sm:$0xf]
      %v2652 = vld [vmem:[%s3 + $0x228] sm:$0xf]
      %v2653 = vld [vmem:[%s3 + $0x22c] sm:$0xf]
      %v2654 = vld [vmem:[%s3 + $0x230] sm:$0xf]
      %v2655 = vld [vmem:[%s3 + $0x234] sm:$0xf]
      %v2656 = vld [vmem:[%s3 + $0x238] sm:$0xf]
      %v2657 = vld [vmem:[%s3 + $0x23c] sm:$0xf]
      %v2658 = vld [vmem:[%s4] sm:$0x1]
      %v2660 = vperm.slane %v2658, 0
      %v2806 = vunpack.c.l.b16 %v2514
      %v2807 = vunpack.c.l.b16 %v2515
      %v2808 = vunpack.c.l.b16 %v2516
      %v2809 = vunpack.c.l.b16 %v2517
      %v2810 = vunpack.c.l.b16 %v2518
      %v2811 = vunpack.c.l.b16 %v2519
      %v2812 = vunpack.c.l.b16 %v2520
      %v2813 = vunpack.c.l.b16 %v2521
      %v2814 = vunpack.c.l.b16 %v2522
      %v2815 = vunpack.c.l.b16 %v2523
      %v2816 = vunpack.c.l.b16 %v2524
      %v2817 = vunpack.c.l.b16 %v2525
      %v2818 = vunpack.c.l.b16 %v2526
      %v2819 = vunpack.c.l.b16 %v2527
      %v2820 = vunpack.c.l.b16 %v2528
      %v2821 = vunpack.c.l.b16 %v2529
      %v2822 = vunpack.c.l.b16 %v2530
      %v2823 = vunpack.c.l.b16 %v2531
      %v2824 = vunpack.c.l.b16 %v2532
      %v2825 = vunpack.c.l.b16 %v2533
      %v2826 = vunpack.c.l.b16 %v2534
      %v2827 = vunpack.c.l.b16 %v2535
      %v2828 = vunpack.c.l.b16 %v2536
      %v2829 = vunpack.c.l.b16 %v2537
      %v2830 = vunpack.c.l.b16 %v2538
      %v2831 = vunpack.c.l.b16 %v2539
      %v2832 = vunpack.c.l.b16 %v2540
      %v2833 = vunpack.c.l.b16 %v2541
      %v2834 = vunpack.c.l.b16 %v2542
      %v2835 = vunpack.c.l.b16 %v2543
      %v2836 = vunpack.c.l.b16 %v2544
      %v2837 = vunpack.c.l.b16 %v2545
      %v2838 = vunpack.c.l.b16 %v2546
      %v2839 = vunpack.c.l.b16 %v2547
      %v2840 = vunpack.c.l.b16 %v2548
      %v2841 = vunpack.c.l.b16 %v2549
      %v2842 = vunpack.c.l.b16 %v2550
      %v2843 = vunpack.c.l.b16 %v2551
      %v2844 = vunpack.c.l.b16 %v2552
      %v2845 = vunpack.c.l.b16 %v2553
      %v2846 = vunpack.c.l.b16 %v2554
      %v2847 = vunpack.c.l.b16 %v2555
      %v2848 = vunpack.c.l.b16 %v2556
      %v2849 = vunpack.c.l.b16 %v2557
      %v2850 = vunpack.c.l.b16 %v2558
      %v2851 = vunpack.c.l.b16 %v2559
      %v2852 = vunpack.c.l.b16 %v2560
      %v2853 = vunpack.c.l.b16 %v2561
      %v2854 = vunpack.c.l.b16 %v2562
      %v2855 = vunpack.c.l.b16 %v2563
      %v2856 = vunpack.c.l.b16 %v2564
      %v2857 = vunpack.c.l.b16 %v2565
      %v2858 = vunpack.c.l.b16 %v2566
      %v2859 = vunpack.c.l.b16 %v2567
      %v2860 = vunpack.c.l.b16 %v2568
      %v2861 = vunpack.c.l.b16 %v2569
      %v2862 = vunpack.c.l.b16 %v2570
      %v2863 = vunpack.c.l.b16 %v2571
      %v2864 = vunpack.c.l.b16 %v2572
      %v2865 = vunpack.c.l.b16 %v2573
      %v2866 = vunpack.c.l.b16 %v2574
      %v2867 = vunpack.c.l.b16 %v2575
      %v2868 = vunpack.c.l.b16 %v2576
      %v2869 = vunpack.c.l.b16 %v2577
      %v2870 = vunpack.c.l.b16 %v2578
      %v2871 = vunpack.c.l.b16 %v2579
      %v2872 = vunpack.c.l.b16 %v2580
      %v2873 = vunpack.c.l.b16 %v2581
      %v2874 = vunpack.c.l.b16 %v2582
      %v2875 = vunpack.c.l.b16 %v2583
      %v2876 = vunpack.c.l.b16 %v2584
      %v2877 = vunpack.c.l.b16 %v2585
      %v2878 = vunpack.c.l.b16 %v2586
      %v2879 = vunpack.c.l.b16 %v2587
      %v2880 = vunpack.c.l.b16 %v2588
      %v2881 = vunpack.c.l.b16 %v2589
      %v2882 = vunpack.c.l.b16 %v2590
      %v2883 = vunpack.c.l.b16 %v2591
      %v2884 = vunpack.c.l.b16 %v2592
      %v2885 = vunpack.c.l.b16 %v2593
      %v2886 = vunpack.c.l.b16 %v2594
      %v2887 = vunpack.c.l.b16 %v2595
      %v2888 = vunpack.c.l.b16 %v2596
      %v2889 = vunpack.c.l.b16 %v2597
      %v2890 = vunpack.c.l.b16 %v2598
      %v2891 = vunpack.c.l.b16 %v2599
      %v2892 = vunpack.c.l.b16 %v2600
      %v2893 = vunpack.c.l.b16 %v2601
      %v2894 = vunpack.c.l.b16 %v2602
      %v2895 = vunpack.c.l.b16 %v2603
      %v2896 = vunpack.c.l.b16 %v2604
      %v2897 = vunpack.c.l.b16 %v2605
      %v2898 = vunpack.c.l.b16 %v2606
      %v2899 = vunpack.c.l.b16 %v2607
      %v2900 = vunpack.c.l.b16 %v2608
      %v2901 = vunpack.c.l.b16 %v2609
      %v2902 = vunpack.c.l.b16 %v2610
      %v2903 = vunpack.c.l.b16 %v2611
      %v2904 = vunpack.c.l.b16 %v2612
      %v2905 = vunpack.c.l.b16 %v2613
      %v2906 = vunpack.c.l.b16 %v2614
      %v2907 = vunpack.c.l.b16 %v2615
      %v2908 = vunpack.c.l.b16 %v2616
      %v2909 = vunpack.c.l.b16 %v2617
      %v2910 = vunpack.c.l.b16 %v2618
      %v2911 = vunpack.c.l.b16 %v2619
      %v2912 = vunpack.c.l.b16 %v2620
      %v2913 = vunpack.c.l.b16 %v2621
      %v2914 = vunpack.c.l.b16 %v2622
      %v2915 = vunpack.c.l.b16 %v2623
      %v2916 = vunpack.c.l.b16 %v2624
      %v2917 = vunpack.c.l.b16 %v2625
      %v2918 = vunpack.c.l.b16 %v2626
      %v2919 = vunpack.c.l.b16 %v2627
      %v2920 = vunpack.c.l.b16 %v2628
      %v2921 = vunpack.c.l.b16 %v2629
      %v2922 = vunpack.c.l.b16 %v2630
      %v2923 = vunpack.c.l.b16 %v2631
      %v2924 = vunpack.c.l.b16 %v2632
      %v2925 = vunpack.c.l.b16 %v2633
      %v2926 = vunpack.c.l.b16 %v2634
      %v2927 = vunpack.c.l.b16 %v2635
      %v2928 = vunpack.c.l.b16 %v2636
      %v2929 = vunpack.c.l.b16 %v2637
      %v2930 = vunpack.c.l.b16 %v2638
      %v2931 = vunpack.c.l.b16 %v2639
      %v2932 = vunpack.c.l.b16 %v2640
      %v2933 = vunpack.c.l.b16 %v2641
      %v2934 = vunpack.c.l.b16 %v2642
      %v2935 = vunpack.c.l.b16 %v2643
      %v2936 = vunpack.c.l.b16 %v2644
      %v2937 = vunpack.c.l.b16 %v2645
      %v2938 = vunpack.c.l.b16 %v2646
      %v2939 = vunpack.c.l.b16 %v2647
      %v2940 = vunpack.c.l.b16 %v2648
      %v2941 = vunpack.c.l.b16 %v2649
      %v2942 = vunpack.c.l.b16 %v2650
      %v2943 = vunpack.c.l.b16 %v2651
      %v2944 = vunpack.c.l.b16 %v2652
      %v2945 = vunpack.c.l.b16 %v2653
      %v2946 = vunpack.c.l.b16 %v2654
      %v2947 = vunpack.c.l.b16 %v2655
      %v2948 = vunpack.c.l.b16 %v2656
      %v2949 = vunpack.c.l.b16 %v2657
      %v2950 = vpack.c.b16 %v2807, %v2806
      %v2951 = vpack.c.b16 %v2809, %v2808
      %v2952 = vpack.c.b16 %v2811, %v2810
      %v2953 = vpack.c.b16 %v2813, %v2812
      %v2954 = vpack.c.b16 %v2815, %v2814
      %v2955 = vpack.c.b16 %v2817, %v2816
      %v2956 = vpack.c.b16 %v2819, %v2818
      %v2957 = vpack.c.b16 %v2821, %v2820
      %v2958 = vpack.c.b16 %v2823, %v2822
      %v2959 = vpack.c.b16 %v2825, %v2824
      %v2960 = vpack.c.b16 %v2827, %v2826
      %v2961 = vpack.c.b16 %v2829, %v2828
      %v2962 = vpack.c.b16 %v2831, %v2830
      %v2963 = vpack.c.b16 %v2833, %v2832
      %v2964 = vpack.c.b16 %v2835, %v2834
      %v2965 = vpack.c.b16 %v2837, %v2836
      %v2966 = vpack.c.b16 %v2839, %v2838
      %v2967 = vpack.c.b16 %v2841, %v2840
      %v2968 = vpack.c.b16 %v2843, %v2842
      %v2969 = vpack.c.b16 %v2845, %v2844
      %v2970 = vpack.c.b16 %v2847, %v2846
      %v2971 = vpack.c.b16 %v2849, %v2848
      %v2972 = vpack.c.b16 %v2851, %v2850
      %v2973 = vpack.c.b16 %v2853, %v2852
      %v2974 = vpack.c.b16 %v2855, %v2854
      %v2975 = vpack.c.b16 %v2857, %v2856
      %v2976 = vpack.c.b16 %v2859, %v2858
      %v2977 = vpack.c.b16 %v2861, %v2860
      %v2978 = vpack.c.b16 %v2863, %v2862
      %v2979 = vpack.c.b16 %v2865, %v2864
      %v2980 = vpack.c.b16 %v2867, %v2866
      %v2981 = vpack.c.b16 %v2869, %v2868
      %v2982 = vpack.c.b16 %v2871, %v2870
      %v2983 = vpack.c.b16 %v2873, %v2872
      %v2984 = vpack.c.b16 %v2875, %v2874
      %v2985 = vpack.c.b16 %v2877, %v2876
      %v2986 = vpack.c.b16 %v2879, %v2878
      %v2987 = vpack.c.b16 %v2881, %v2880
      %v2988 = vpack.c.b16 %v2883, %v2882
      %v2989 = vpack.c.b16 %v2885, %v2884
      %v2990 = vpack.c.b16 %v2887, %v2886
      %v2991 = vpack.c.b16 %v2889, %v2888
      %v2992 = vpack.c.b16 %v2891, %v2890
      %v2993 = vpack.c.b16 %v2893, %v2892
      %v2994 = vpack.c.b16 %v2895, %v2894
      %v2995 = vpack.c.b16 %v2897, %v2896
      %v2996 = vpack.c.b16 %v2899, %v2898
      %v2997 = vpack.c.b16 %v2901, %v2900
      %v2998 = vpack.c.b16 %v2903, %v2902
      %v2999 = vpack.c.b16 %v2905, %v2904
      %v3000 = vpack.c.b16 %v2907, %v2906
      %v3001 = vpack.c.b16 %v2909, %v2908
      %v3002 = vpack.c.b16 %v2911, %v2910
      %v3003 = vpack.c.b16 %v2913, %v2912
      %v3004 = vpack.c.b16 %v2915, %v2914
      %v3005 = vpack.c.b16 %v2917, %v2916
      %v3006 = vpack.c.b16 %v2919, %v2918
      %v3007 = vpack.c.b16 %v2921, %v2920
      %v3008 = vpack.c.b16 %v2923, %v2922
      %v3009 = vpack.c.b16 %v2925, %v2924
      %v3010 = vpack.c.b16 %v2927, %v2926
      %v3011 = vpack.c.b16 %v2929, %v2928
      %v3012 = vpack.c.b16 %v2931, %v2930
      %v3013 = vpack.c.b16 %v2933, %v2932
      %v3014 = vpack.c.b16 %v2935, %v2934
      %v3015 = vpack.c.b16 %v2937, %v2936
      %v3016 = vpack.c.b16 %v2939, %v2938
      %v3017 = vpack.c.b16 %v2941, %v2940
      %v3018 = vpack.c.b16 %v2943, %v2942
      %v3019 = vpack.c.b16 %v2945, %v2944
      %v3020 = vpack.c.b16 %v2947, %v2946
      %v3021 = vpack.c.b16 %v2949, %v2948
      %3094 = vmatpush.bf16.msra.mxu0 %v2957
      %3095 = vmatpush.bf16.msra.mxu0 %v2956
      %3096 = vmatpush.bf16.msra.mxu0 %v2955
      %3097 = vmatpush.bf16.msra.mxu0 %v2954
      %3098 = vmatpush.bf16.msra.mxu0 %v2953
      %3099 = vmatpush.bf16.msra.mxu0 %v2952
      %3100 = vmatpush.bf16.msra.mxu0 %v2951
      %3101 = vmatpush.bf16.msra.mxu0 %v2950
      %3102 = vmatmul.bf16.gmra.mxu0 %v1184
      %v3103 = vpop.f32.mrf.mxu0
      %v3104 = vadd.f32 %v2660, %v3103
      %v3105 = vpop.f32.mrf.mxu0
      %v3106 = vadd.f32 %v2660, %v3105
      %3107 = vmatmul.bf16.gmra.mxu0 %v1185
      %v3108 = vpop.f32.mrf.mxu0
      %v3109 = vadd.f32 %v2660, %v3108
      %v3110 = vpop.f32.mrf.mxu0
      %v3111 = vadd.f32 %v2660, %v3110
      %3112 = vmatmul.bf16.gmra.mxu0 %v1186
      %v3113 = vpop.f32.mrf.mxu0
      %v3114 = vadd.f32 %v2660, %v3113
      %v3115 = vpop.f32.mrf.mxu0
      %v3116 = vadd.f32 %v2660, %v3115
      %3117 = vmatmul.bf16.gmra.mxu0 %v1187
      %v3118 = vpop.f32.mrf.mxu0
      %v3119 = vadd.f32 %v2660, %v3118
      %v3120 = vpop.f32.mrf.mxu0
      %v3121 = vadd.f32 %v2660, %v3120
      %3122 = vmatmul.bf16.gmra.mxu0 %v1188
      %v3123 = vpop.f32.mrf.mxu0
      %v3124 = vadd.f32 %v2660, %v3123
      %v3125 = vpop.f32.mrf.mxu0
      %v3126 = vadd.f32 %v2660, %v3125
      %3127 = vmatmul.bf16.gmra.mxu0 %v1189
      %v3128 = vpop.f32.mrf.mxu0
      %v3129 = vadd.f32 %v2660, %v3128
      %v3130 = vpop.f32.mrf.mxu0
      %v3131 = vadd.f32 %v2660, %v3130
      %3132 = vmatmul.bf16.gmra.mxu0 %v1190
      %v3133 = vpop.f32.mrf.mxu0
      %v3134 = vadd.f32 %v2660, %v3133
      %v3135 = vpop.f32.mrf.mxu0
      %v3136 = vadd.f32 %v2660, %v3135
      %3137 = vmatmul.bf16.gmra.mxu0 %v1191
      %v3138 = vpop.f32.mrf.mxu0
      %v3139 = vadd.f32 %v2660, %v3138
      %v3140 = vpop.f32.mrf.mxu0
      %v3141 = vadd.f32 %v2660, %v3140
      %3142 = vmatmul.bf16.gmra.mxu0 %v1192
      %v3143 = vpop.f32.mrf.mxu0
      %v3144 = vadd.f32 %v2660, %v3143
      %v3145 = vpop.f32.mrf.mxu0
      %v3146 = vadd.f32 %v2660, %v3145
      %3147 = vmatmul.bf16.gmra.mxu0 %v1193
      %v3148 = vpop.f32.mrf.mxu0
      %v3149 = vadd.f32 %v2660, %v3148
      %v3150 = vpop.f32.mrf.mxu0
      %v3151 = vadd.f32 %v2660, %v3150
      %3152 = vmatmul.bf16.gmra.mxu0 %v1194
      %v3153 = vpop.f32.mrf.mxu0
      %v3154 = vadd.f32 %v2660, %v3153
      %v3155 = vpop.f32.mrf.mxu0
      %v3156 = vadd.f32 %v2660, %v3155
      %3157 = vmatmul.bf16.gmra.mxu0 %v1195
      %v3158 = vpop.f32.mrf.mxu0
      %v3159 = vadd.f32 %v2660, %v3158
      %v3160 = vpop.f32.mrf.mxu0
      %v3161 = vadd.f32 %v2660, %v3160
      %3162 = vmatmul.bf16.gmra.mxu0 %v1196
      %v3163 = vpop.f32.mrf.mxu0
      %v3164 = vadd.f32 %v2660, %v3163
      %v3165 = vpop.f32.mrf.mxu0
      %v3166 = vadd.f32 %v2660, %v3165
      %3167 = vmatmul.bf16.gmra.mxu0 %v1197
      %v3168 = vpop.f32.mrf.mxu0
      %v3169 = vadd.f32 %v2660, %v3168
      %v3170 = vpop.f32.mrf.mxu0
      %v3171 = vadd.f32 %v2660, %v3170
      %3172 = vmatmul.bf16.gmra.mxu0 %v1198
      %v3173 = vpop.f32.mrf.mxu0
      %v3174 = vadd.f32 %v2660, %v3173
      %v3175 = vpop.f32.mrf.mxu0
      %v3176 = vadd.f32 %v2660, %v3175
      %3177 = vmatmul.bf16.gmra.mxu0 %v1199
      %v3178 = vpop.f32.mrf.mxu0
      %v3179 = vadd.f32 %v2660, %v3178
      %v3180 = vpop.f32.mrf.mxu0
      %v3181 = vadd.f32 %v2660, %v3180
      %3182 = vdwg.mxu0
      %3183 = vmatpush.bf16.msra.mxu0 %v2965
      %3184 = vmatpush.bf16.msra.mxu0 %v2964
      %3185 = vmatpush.bf16.msra.mxu0 %v2963
      %3186 = vmatpush.bf16.msra.mxu0 %v2962
      %3187 = vmatpush.bf16.msra.mxu0 %v2961
      %3188 = vmatpush.bf16.msra.mxu0 %v2960
      %3189 = vmatpush.bf16.msra.mxu0 %v2959
      %3190 = vmatpush.bf16.msra.mxu0 %v2958
      %3191 = vmatmul.bf16.gmra.mxu0 %v1276
      %v3192 = vpop.f32.mrf.mxu0
      %v3193 = vadd.f32 %v3104, %v3192
      %v3194 = vpop.f32.mrf.mxu0
      %v3195 = vadd.f32 %v3106, %v3194
      %3196 = vmatmul.bf16.gmra.mxu0 %v1288
      %v3197 = vpop.f32.mrf.mxu0
      %v3198 = vadd.f32 %v3109, %v3197
      %v3199 = vpop.f32.mrf.mxu0
      %v3200 = vadd.f32 %v3111, %v3199
      %3201 = vmatmul.bf16.gmra.mxu0 %v1300
      %v3202 = vpop.f32.mrf.mxu0
      %v3203 = vadd.f32 %v3114, %v3202
      %v3204 = vpop.f32.mrf.mxu0
      %v3205 = vadd.f32 %v3116, %v3204
      %3206 = vmatmul.bf16.gmra.mxu0 %v1312
      %v3207 = vpop.f32.mrf.mxu0
      %v3208 = vadd.f32 %v3119, %v3207
      %v3209 = vpop.f32.mrf.mxu0
      %v3210 = vadd.f32 %v3121, %v3209
      %3211 = vmatmul.bf16.gmra.mxu0 %v1324
      %v3212 = vpop.f32.mrf.mxu0
      %v3213 = vadd.f32 %v3124, %v3212
      %v3214 = vpop.f32.mrf.mxu0
      %v3215 = vadd.f32 %v3126, %v3214
      %3216 = vmatmul.bf16.gmra.mxu0 %v1336
      %v3217 = vpop.f32.mrf.mxu0
      %v3218 = vadd.f32 %v3129, %v3217
      %v3219 = vpop.f32.mrf.mxu0
      %v3220 = vadd.f32 %v3131, %v3219
      %3221 = vmatmul.bf16.gmra.mxu0 %v1348
      %v3222 = vpop.f32.mrf.mxu0
      %v3223 = vadd.f32 %v3134, %v3222
      %v3224 = vpop.f32.mrf.mxu0
      %v3225 = vadd.f32 %v3136, %v3224
      %3226 = vmatmul.bf16.gmra.mxu0 %v1360
      %v3227 = vpop.f32.mrf.mxu0
      %v3228 = vadd.f32 %v3139, %v3227
      %v3229 = vpop.f32.mrf.mxu0
      %v3230 = vadd.f32 %v3141, %v3229
      %3231 = vmatmul.bf16.gmra.mxu0 %v1372
      %v3232 = vpop.f32.mrf.mxu0
      %v3233 = vadd.f32 %v3144, %v3232
      %v3234 = vpop.f32.mrf.mxu0
      %v3235 = vadd.f32 %v3146, %v3234
      %3236 = vmatmul.bf16.gmra.mxu0 %v1384
      %v3237 = vpop.f32.mrf.mxu0
      %v3238 = vadd.f32 %v3149, %v3237
      %v3239 = vpop.f32.mrf.mxu0
      %v3240 = vadd.f32 %v3151, %v3239
      %3241 = vmatmul.bf16.gmra.mxu0 %v1396
      %v3242 = vpop.f32.mrf.mxu0
      %v3243 = vadd.f32 %v3154, %v3242
      %v3244 = vpop.f32.mrf.mxu0
      %v3245 = vadd.f32 %v3156, %v3244
      %3246 = vmatmul.bf16.gmra.mxu0 %v1408
      %v3247 = vpop.f32.mrf.mxu0
      %v3248 = vadd.f32 %v3159, %v3247
      %v3249 = vpop.f32.mrf.mxu0
      %v3250 = vadd.f32 %v3161, %v3249
      %3251 = vmatmul.bf16.gmra.mxu0 %v1420
      %v3252 = vpop.f32.mrf.mxu0
      %v3253 = vadd.f32 %v3164, %v3252
      %v3254 = vpop.f32.mrf.mxu0
      %v3255 = vadd.f32 %v3166, %v3254
      %3256 = vmatmul.bf16.gmra.mxu0 %v1432
      %v3257 = vpop.f32.mrf.mxu0
      %v3258 = vadd.f32 %v3169, %v3257
      %v3259 = vpop.f32.mrf.mxu0
      %v3260 = vadd.f32 %v3171, %v3259
      %3261 = vmatmul.bf16.gmra.mxu0 %v1444
      %v3262 = vpop.f32.mrf.mxu0
      %v3263 = vadd.f32 %v3174, %v3262
      %v3264 = vpop.f32.mrf.mxu0
      %v3265 = vadd.f32 %v3176, %v3264
      %3266 = vmatmul.bf16.gmra.mxu0 %v1456
      %v3267 = vpop.f32.mrf.mxu0
      %v3268 = vadd.f32 %v3179, %v3267
      %v3269 = vpop.f32.mrf.mxu0
      %v3270 = vadd.f32 %v3181, %v3269
      %3271 = vdwg.mxu0
      %3272 = vmatpush.bf16.msra.mxu0 %v2973
      %3273 = vmatpush.bf16.msra.mxu0 %v2972
      %3274 = vmatpush.bf16.msra.mxu0 %v2971
      %3275 = vmatpush.bf16.msra.mxu0 %v2970
      %3276 = vmatpush.bf16.msra.mxu0 %v2969
      %3277 = vmatpush.bf16.msra.mxu0 %v2968
      %3278 = vmatpush.bf16.msra.mxu0 %v2967
      %3279 = vmatpush.bf16.msra.mxu0 %v2966
      %3280 = vmatmul.bf16.gmra.mxu0 %v1524
      %v3281 = vpop.f32.mrf.mxu0
      %v3282 = vadd.f32 %v3193, %v3281
      %v3283 = vpop.f32.mrf.mxu0
      %v3284 = vadd.f32 %v3195, %v3283
      %3285 = vmatmul.bf16.gmra.mxu0 %v1527
      %v3286 = vpop.f32.mrf.mxu0
      %v3287 = vadd.f32 %v3198, %v3286
      %v3288 = vpop.f32.mrf.mxu0
      %v3289 = vadd.f32 %v3200, %v3288
      %3290 = vmatmul.bf16.gmra.mxu0 %v1530
      %v3291 = vpop.f32.mrf.mxu0
      %v3292 = vadd.f32 %v3203, %v3291
      %v3293 = vpop.f32.mrf.mxu0
      %v3294 = vadd.f32 %v3205, %v3293
      %3295 = vmatmul.bf16.gmra.mxu0 %v1533
      %v3296 = vpop.f32.mrf.mxu0
      %v3297 = vadd.f32 %v3208, %v3296
      %v3298 = vpop.f32.mrf.mxu0
      %v3299 = vadd.f32 %v3210, %v3298
      %3300 = vmatmul.bf16.gmra.mxu0 %v1536
      %v3301 = vpop.f32.mrf.mxu0
      %v3302 = vadd.f32 %v3213, %v3301
      %v3303 = vpop.f32.mrf.mxu0
      %v3304 = vadd.f32 %v3215, %v3303
      %3305 = vmatmul.bf16.gmra.mxu0 %v1539
      %v3306 = vpop.f32.mrf.mxu0
      %v3307 = vadd.f32 %v3218, %v3306
      %v3308 = vpop.f32.mrf.mxu0
      %v3309 = vadd.f32 %v3220, %v3308
      %3310 = vmatmul.bf16.gmra.mxu0 %v1542
      %v3311 = vpop.f32.mrf.mxu0
      %v3312 = vadd.f32 %v3223, %v3311
      %v3313 = vpop.f32.mrf.mxu0
      %v3314 = vadd.f32 %v3225, %v3313
      %3315 = vmatmul.bf16.gmra.mxu0 %v1545
      %v3316 = vpop.f32.mrf.mxu0
      %v3317 = vadd.f32 %v3228, %v3316
      %v3318 = vpop.f32.mrf.mxu0
      %v3319 = vadd.f32 %v3230, %v3318
      %3320 = vmatmul.bf16.gmra.mxu0 %v1548
      %v3321 = vpop.f32.mrf.mxu0
      %v3322 = vadd.f32 %v3233, %v3321
      %v3323 = vpop.f32.mrf.mxu0
      %v3324 = vadd.f32 %v3235, %v3323
      %3325 = vmatmul.bf16.gmra.mxu0 %v1551
      %v3326 = vpop.f32.mrf.mxu0
      %v3327 = vadd.f32 %v3238, %v3326
      %v3328 = vpop.f32.mrf.mxu0
      %v3329 = vadd.f32 %v3240, %v3328
      %3330 = vmatmul.bf16.gmra.mxu0 %v1554
      %v3331 = vpop.f32.mrf.mxu0
      %v3332 = vadd.f32 %v3243, %v3331
      %v3333 = vpop.f32.mrf.mxu0
      %v3334 = vadd.f32 %v3245, %v3333
      %3335 = vmatmul.bf16.gmra.mxu0 %v1557
      %v3336 = vpop.f32.mrf.mxu0
      %v3337 = vadd.f32 %v3248, %v3336
      %v3338 = vpop.f32.mrf.mxu0
      %v3339 = vadd.f32 %v3250, %v3338
      %3340 = vmatmul.bf16.gmra.mxu0 %v1560
      %v3341 = vpop.f32.mrf.mxu0
      %v3342 = vadd.f32 %v3253, %v3341
      %v3343 = vpop.f32.mrf.mxu0
      %v3344 = vadd.f32 %v3255, %v3343
      %3345 = vmatmul.bf16.gmra.mxu0 %v1563
      %v3346 = vpop.f32.mrf.mxu0
      %v3347 = vadd.f32 %v3258, %v3346
      %v3348 = vpop.f32.mrf.mxu0
      %v3349 = vadd.f32 %v3260, %v3348
      %3350 = vmatmul.bf16.gmra.mxu0 %v1566
      %v3351 = vpop.f32.mrf.mxu0
      %v3352 = vadd.f32 %v3263, %v3351
      %v3353 = vpop.f32.mrf.mxu0
      %v3354 = vadd.f32 %v3265, %v3353
      %3355 = vmatmul.bf16.gmra.mxu0 %v1569
      %v3356 = vpop.f32.mrf.mxu0
      %v3357 = vadd.f32 %v3268, %v3356
      %v3358 = vpop.f32.mrf.mxu0
      %v3359 = vadd.f32 %v3270, %v3358
      %3360 = vdwg.mxu0
      %3361 = vmatpush.bf16.msra.mxu0 %v2981
      %3362 = vmatpush.bf16.msra.mxu0 %v2980
      %3363 = vmatpush.bf16.msra.mxu0 %v2979
      %3364 = vmatpush.bf16.msra.mxu0 %v2978
      %3365 = vmatpush.bf16.msra.mxu0 %v2977
      %3366 = vmatpush.bf16.msra.mxu0 %v2976
      %3367 = vmatpush.bf16.msra.mxu0 %v2975
      %3368 = vmatpush.bf16.msra.mxu0 %v2974
      %3369 = vmatmul.bf16.gmra.mxu0 %v1650
      %v3370 = vpop.f32.mrf.mxu0
      %v3371 = vadd.f32 %v3282, %v3370
      %v3372 = vpop.f32.mrf.mxu0
      %v3373 = vadd.f32 %v3284, %v3372
      %3374 = vmatmul.bf16.gmra.mxu0 %v1651
      %v3375 = vpop.f32.mrf.mxu0
      %v3376 = vadd.f32 %v3287, %v3375
      %v3377 = vpop.f32.mrf.mxu0
      %v3378 = vadd.f32 %v3289, %v3377
      %3379 = vmatmul.bf16.gmra.mxu0 %v1652
      %v3380 = vpop.f32.mrf.mxu0
      %v3381 = vadd.f32 %v3292, %v3380
      %v3382 = vpop.f32.mrf.mxu0
      %v3383 = vadd.f32 %v3294, %v3382
      %3384 = vmatmul.bf16.gmra.mxu0 %v1653
      %v3385 = vpop.f32.mrf.mxu0
      %v3386 = vadd.f32 %v3297, %v3385
      %v3387 = vpop.f32.mrf.mxu0
      %v3388 = vadd.f32 %v3299, %v3387
      %3389 = vmatmul.bf16.gmra.mxu0 %v1654
      %v3390 = vpop.f32.mrf.mxu0
      %v3391 = vadd.f32 %v3302, %v3390
      %v3392 = vpop.f32.mrf.mxu0
      %v3393 = vadd.f32 %v3304, %v3392
      %3394 = vmatmul.bf16.gmra.mxu0 %v1655
      %v3395 = vpop.f32.mrf.mxu0
      %v3396 = vadd.f32 %v3307, %v3395
      %v3397 = vpop.f32.mrf.mxu0
      %v3398 = vadd.f32 %v3309, %v3397
      %3399 = vmatmul.bf16.gmra.mxu0 %v1656
      %v3400 = vpop.f32.mrf.mxu0
      %v3401 = vadd.f32 %v3312, %v3400
      %v3402 = vpop.f32.mrf.mxu0
      %v3403 = vadd.f32 %v3314, %v3402
      %3404 = vmatmul.bf16.gmra.mxu0 %v1657
      %v3405 = vpop.f32.mrf.mxu0
      %v3406 = vadd.f32 %v3317, %v3405
      %v3407 = vpop.f32.mrf.mxu0
      %v3408 = vadd.f32 %v3319, %v3407
      %3409 = vmatmul.bf16.gmra.mxu0 %v1658
      %v3410 = vpop.f32.mrf.mxu0
      %v3411 = vadd.f32 %v3322, %v3410
      %v3412 = vpop.f32.mrf.mxu0
      %v3413 = vadd.f32 %v3324, %v3412
      %3414 = vmatmul.bf16.gmra.mxu0 %v1659
      %v3415 = vpop.f32.mrf.mxu0
      %v3416 = vadd.f32 %v3327, %v3415
      %v3417 = vpop.f32.mrf.mxu0
      %v3418 = vadd.f32 %v3329, %v3417
      %3419 = vmatmul.bf16.gmra.mxu0 %v1660
      %v3420 = vpop.f32.mrf.mxu0
      %v3421 = vadd.f32 %v3332, %v3420
      %v3422 = vpop.f32.mrf.mxu0
      %v3423 = vadd.f32 %v3334, %v3422
      %3424 = vmatmul.bf16.gmra.mxu0 %v1661
      %v3425 = vpop.f32.mrf.mxu0
      %v3426 = vadd.f32 %v3337, %v3425
      %v3427 = vpop.f32.mrf.mxu0
      %v3428 = vadd.f32 %v3339, %v3427
      %3429 = vmatmul.bf16.gmra.mxu0 %v1662
      %v3430 = vpop.f32.mrf.mxu0
      %v3431 = vadd.f32 %v3342, %v3430
      %v3432 = vpop.f32.mrf.mxu0
      %v3433 = vadd.f32 %v3344, %v3432
      %3434 = vmatmul.bf16.gmra.mxu0 %v1663
      %v3435 = vpop.f32.mrf.mxu0
      %v3436 = vadd.f32 %v3347, %v3435
      %v3437 = vpop.f32.mrf.mxu0
      %v3438 = vadd.f32 %v3349, %v3437
      %3439 = vmatmul.bf16.gmra.mxu0 %v1664
      %v3440 = vpop.f32.mrf.mxu0
      %v3441 = vadd.f32 %v3352, %v3440
      %v3442 = vpop.f32.mrf.mxu0
      %v3443 = vadd.f32 %v3354, %v3442
      %3444 = vmatmul.bf16.gmra.mxu0 %v1665
      %v3445 = vpop.f32.mrf.mxu0
      %v3446 = vadd.f32 %v3357, %v3445
      %v3447 = vpop.f32.mrf.mxu0
      %v3448 = vadd.f32 %v3359, %v3447
      %3449 = vdwg.mxu0
      %3450 = vmatpush.bf16.msra.mxu0 %v2989
      %3451 = vmatpush.bf16.msra.mxu0 %v2988
      %3452 = vmatpush.bf16.msra.mxu0 %v2987
      %3453 = vmatpush.bf16.msra.mxu0 %v2986
      %3454 = vmatpush.bf16.msra.mxu0 %v2985
      %3455 = vmatpush.bf16.msra.mxu0 %v2984
      %3456 = vmatpush.bf16.msra.mxu0 %v2983
      %3457 = vmatpush.bf16.msra.mxu0 %v2982
      %3458 = vmatmul.bf16.gmra.mxu0 %v1741
      %v3459 = vpop.f32.mrf.mxu0
      %v3460 = vadd.f32 %v3371, %v3459
      %v3461 = vpop.f32.mrf.mxu0
      %v3462 = vadd.f32 %v3373, %v3461
      %3463 = vmatmul.bf16.gmra.mxu0 %v1753
      %v3464 = vpop.f32.mrf.mxu0
      %v3465 = vadd.f32 %v3376, %v3464
      %v3466 = vpop.f32.mrf.mxu0
      %v3467 = vadd.f32 %v3378, %v3466
      %3468 = vmatmul.bf16.gmra.mxu0 %v1765
      %v3469 = vpop.f32.mrf.mxu0
      %v3470 = vadd.f32 %v3381, %v3469
      %v3471 = vpop.f32.mrf.mxu0
      %v3472 = vadd.f32 %v3383, %v3471
      %3473 = vmatmul.bf16.gmra.mxu0 %v1777
      %v3474 = vpop.f32.mrf.mxu0
      %v3475 = vadd.f32 %v3386, %v3474
      %v3476 = vpop.f32.mrf.mxu0
      %v3477 = vadd.f32 %v3388, %v3476
      %3478 = vmatmul.bf16.gmra.mxu0 %v1789
      %v3479 = vpop.f32.mrf.mxu0
      %v3480 = vadd.f32 %v3391, %v3479
      %v3481 = vpop.f32.mrf.mxu0
      %v3482 = vadd.f32 %v3393, %v3481
      %3483 = vmatmul.bf16.gmra.mxu0 %v1801
      %v3484 = vpop.f32.mrf.mxu0
      %v3485 = vadd.f32 %v3396, %v3484
      %v3486 = vpop.f32.mrf.mxu0
      %v3487 = vadd.f32 %v3398, %v3486
      %3488 = vmatmul.bf16.gmra.mxu0 %v1813
      %v3489 = vpop.f32.mrf.mxu0
      %v3490 = vadd.f32 %v3401, %v3489
      %v3491 = vpop.f32.mrf.mxu0
      %v3492 = vadd.f32 %v3403, %v3491
      %3493 = vmatmul.bf16.gmra.mxu0 %v1825
      %v3494 = vpop.f32.mrf.mxu0
      %v3495 = vadd.f32 %v3406, %v3494
      %v3496 = vpop.f32.mrf.mxu0
      %v3497 = vadd.f32 %v3408, %v3496
      %3498 = vmatmul.bf16.gmra.mxu0 %v1837
      %v3499 = vpop.f32.mrf.mxu0
      %v3500 = vadd.f32 %v3411, %v3499
      %v3501 = vpop.f32.mrf.mxu0
      %v3502 = vadd.f32 %v3413, %v3501
      %3503 = vmatmul.bf16.gmra.mxu0 %v1849
      %v3504 = vpop.f32.mrf.mxu0
      %v3505 = vadd.f32 %v3416, %v3504
      %v3506 = vpop.f32.mrf.mxu0
      %v3507 = vadd.f32 %v3418, %v3506
      %3508 = vmatmul.bf16.gmra.mxu0 %v1861
      %v3509 = vpop.f32.mrf.mxu0
      %v3510 = vadd.f32 %v3421, %v3509
      %v3511 = vpop.f32.mrf.mxu0
      %v3512 = vadd.f32 %v3423, %v3511
      %3513 = vmatmul.bf16.gmra.mxu0 %v1873
      %v3514 = vpop.f32.mrf.mxu0
      %v3515 = vadd.f32 %v3426, %v3514
      %v3516 = vpop.f32.mrf.mxu0
      %v3517 = vadd.f32 %v3428, %v3516
      %3518 = vmatmul.bf16.gmra.mxu0 %v1885
      %v3519 = vpop.f32.mrf.mxu0
      %v3520 = vadd.f32 %v3431, %v3519
      %v3521 = vpop.f32.mrf.mxu0
      %v3522 = vadd.f32 %v3433, %v3521
      %3523 = vmatmul.bf16.gmra.mxu0 %v1897
      %v3524 = vpop.f32.mrf.mxu0
      %v3525 = vadd.f32 %v3436, %v3524
      %v3526 = vpop.f32.mrf.mxu0
      %v3527 = vadd.f32 %v3438, %v3526
      %3528 = vmatmul.bf16.gmra.mxu0 %v1909
      %v3529 = vpop.f32.mrf.mxu0
      %v3530 = vadd.f32 %v3441, %v3529
      %v3531 = vpop.f32.mrf.mxu0
      %v3532 = vadd.f32 %v3443, %v3531
      %3533 = vmatmul.bf16.gmra.mxu0 %v1921
      %v3534 = vpop.f32.mrf.mxu0
      %v3535 = vadd.f32 %v3446, %v3534
      %v3536 = vpop.f32.mrf.mxu0
      %v3537 = vadd.f32 %v3448, %v3536
      %3538 = vdwg.mxu0
      %3539 = vmatpush.bf16.msra.mxu0 %v2997
      %3540 = vmatpush.bf16.msra.mxu0 %v2996
      %3541 = vmatpush.bf16.msra.mxu0 %v2995
      %3542 = vmatpush.bf16.msra.mxu0 %v2994
      %3543 = vmatpush.bf16.msra.mxu0 %v2993
      %3544 = vmatpush.bf16.msra.mxu0 %v2992
      %3545 = vmatpush.bf16.msra.mxu0 %v2991
      %3546 = vmatpush.bf16.msra.mxu0 %v2990
      %3547 = vmatmul.bf16.gmra.mxu0 %v1988
      %v3548 = vpop.f32.mrf.mxu0
      %v3549 = vadd.f32 %v3460, %v3548
      %v3550 = vpop.f32.mrf.mxu0
      %v3551 = vadd.f32 %v3462, %v3550
      %3552 = vmatmul.bf16.gmra.mxu0 %v1991
      %v3553 = vpop.f32.mrf.mxu0
      %v3554 = vadd.f32 %v3465, %v3553
      %v3555 = vpop.f32.mrf.mxu0
      %v3556 = vadd.f32 %v3467, %v3555
      %3557 = vmatmul.bf16.gmra.mxu0 %v1994
      %v3558 = vpop.f32.mrf.mxu0
      %v3559 = vadd.f32 %v3470, %v3558
      %v3560 = vpop.f32.mrf.mxu0
      %v3561 = vadd.f32 %v3472, %v3560
      %3562 = vmatmul.bf16.gmra.mxu0 %v1997
      %v3563 = vpop.f32.mrf.mxu0
      %v3564 = vadd.f32 %v3475, %v3563
      %v3565 = vpop.f32.mrf.mxu0
      %v3566 = vadd.f32 %v3477, %v3565
      %3567 = vmatmul.bf16.gmra.mxu0 %v2000
      %v3568 = vpop.f32.mrf.mxu0
      %v3569 = vadd.f32 %v3480, %v3568
      %v3570 = vpop.f32.mrf.mxu0
      %v3571 = vadd.f32 %v3482, %v3570
      %3572 = vmatmul.bf16.gmra.mxu0 %v2003
      %v3573 = vpop.f32.mrf.mxu0
      %v3574 = vadd.f32 %v3485, %v3573
      %v3575 = vpop.f32.mrf.mxu0
      %v3576 = vadd.f32 %v3487, %v3575
      %3577 = vmatmul.bf16.gmra.mxu0 %v2006
      %v3578 = vpop.f32.mrf.mxu0
      %v3579 = vadd.f32 %v3490, %v3578
      %v3580 = vpop.f32.mrf.mxu0
      %v3581 = vadd.f32 %v3492, %v3580
      %3582 = vmatmul.bf16.gmra.mxu0 %v2009
      %v3583 = vpop.f32.mrf.mxu0
      %v3584 = vadd.f32 %v3495, %v3583
      %v3585 = vpop.f32.mrf.mxu0
      %v3586 = vadd.f32 %v3497, %v3585
      %3587 = vmatmul.bf16.gmra.mxu0 %v2012
      %v3588 = vpop.f32.mrf.mxu0
      %v3589 = vadd.f32 %v3500, %v3588
      %v3590 = vpop.f32.mrf.mxu0
      %v3591 = vadd.f32 %v3502, %v3590
      %3592 = vmatmul.bf16.gmra.mxu0 %v2015
      %v3593 = vpop.f32.mrf.mxu0
      %v3594 = vadd.f32 %v3505, %v3593
      %v3595 = vpop.f32.mrf.mxu0
      %v3596 = vadd.f32 %v3507, %v3595
      %3597 = vmatmul.bf16.gmra.mxu0 %v2018
      %v3598 = vpop.f32.mrf.mxu0
      %v3599 = vadd.f32 %v3510, %v3598
      %v3600 = vpop.f32.mrf.mxu0
      %v3601 = vadd.f32 %v3512, %v3600
      %3602 = vmatmul.bf16.gmra.mxu0 %v2021
      %v3603 = vpop.f32.mrf.mxu0
      %v3604 = vadd.f32 %v3515, %v3603
      %v3605 = vpop.f32.mrf.mxu0
      %v3606 = vadd.f32 %v3517, %v3605
      %3607 = vmatmul.bf16.gmra.mxu0 %v2024
      %v3608 = vpop.f32.mrf.mxu0
      %v3609 = vadd.f32 %v3520, %v3608
      %v3610 = vpop.f32.mrf.mxu0
      %v3611 = vadd.f32 %v3522, %v3610
      %3612 = vmatmul.bf16.gmra.mxu0 %v2027
      %v3613 = vpop.f32.mrf.mxu0
      %v3614 = vadd.f32 %v3525, %v3613
      %v3615 = vpop.f32.mrf.mxu0
      %v3616 = vadd.f32 %v3527, %v3615
      %3617 = vmatmul.bf16.gmra.mxu0 %v2030
      %v3618 = vpop.f32.mrf.mxu0
      %v3619 = vadd.f32 %v3530, %v3618
      %v3620 = vpop.f32.mrf.mxu0
      %v3621 = vadd.f32 %v3532, %v3620
      %3622 = vmatmul.bf16.gmra.mxu0 %v2033
      %v3623 = vpop.f32.mrf.mxu0
      %v3624 = vadd.f32 %v3535, %v3623
      %v3625 = vpop.f32.mrf.mxu0
      %v3626 = vadd.f32 %v3537, %v3625
      %3627 = vdwg.mxu0
      %3628 = vmatpush.bf16.msra.mxu0 %v3005
      %3629 = vmatpush.bf16.msra.mxu0 %v3004
      %3630 = vmatpush.bf16.msra.mxu0 %v3003
      %3631 = vmatpush.bf16.msra.mxu0 %v3002
      %3632 = vmatpush.bf16.msra.mxu0 %v3001
      %3633 = vmatpush.bf16.msra.mxu0 %v3000
      %3634 = vmatpush.bf16.msra.mxu0 %v2999
      %3635 = vmatpush.bf16.msra.mxu0 %v2998
      %3636 = vmatmul.bf16.gmra.mxu0 %v2114
      %v3637 = vpop.f32.mrf.mxu0
      %v3638 = vadd.f32 %v3549, %v3637
      %v3639 = vpop.f32.mrf.mxu0
      %v3640 = vadd.f32 %v3551, %v3639
      %3641 = vmatmul.bf16.gmra.mxu0 %v2115
      %v3642 = vpop.f32.mrf.mxu0
      %v3643 = vadd.f32 %v3554, %v3642
      %v3644 = vpop.f32.mrf.mxu0
      %v3645 = vadd.f32 %v3556, %v3644
      %3646 = vmatmul.bf16.gmra.mxu0 %v2116
      %v3647 = vpop.f32.mrf.mxu0
      %v3648 = vadd.f32 %v3559, %v3647
      %v3649 = vpop.f32.mrf.mxu0
      %v3650 = vadd.f32 %v3561, %v3649
      %3651 = vmatmul.bf16.gmra.mxu0 %v2117
      %v3652 = vpop.f32.mrf.mxu0
      %v3653 = vadd.f32 %v3564, %v3652
      %v3654 = vpop.f32.mrf.mxu0
      %v3655 = vadd.f32 %v3566, %v3654
      %3656 = vmatmul.bf16.gmra.mxu0 %v2118
      %v3657 = vpop.f32.mrf.mxu0
      %v3658 = vadd.f32 %v3569, %v3657
      %v3659 = vpop.f32.mrf.mxu0
      %v3660 = vadd.f32 %v3571, %v3659
      %3661 = vmatmul.bf16.gmra.mxu0 %v2119
      %v3662 = vpop.f32.mrf.mxu0
      %v3663 = vadd.f32 %v3574, %v3662
      %v3664 = vpop.f32.mrf.mxu0
      %v3665 = vadd.f32 %v3576, %v3664
      %3666 = vmatmul.bf16.gmra.mxu0 %v2120
      %v3667 = vpop.f32.mrf.mxu0
      %v3668 = vadd.f32 %v3579, %v3667
      %v3669 = vpop.f32.mrf.mxu0
      %v3670 = vadd.f32 %v3581, %v3669
      %3671 = vmatmul.bf16.gmra.mxu0 %v2121
      %v3672 = vpop.f32.mrf.mxu0
      %v3673 = vadd.f32 %v3584, %v3672
      %v3674 = vpop.f32.mrf.mxu0
      %v3675 = vadd.f32 %v3586, %v3674
      %3676 = vmatmul.bf16.gmra.mxu0 %v2122
      %v3677 = vpop.f32.mrf.mxu0
      %v3678 = vadd.f32 %v3589, %v3677
      %v3679 = vpop.f32.mrf.mxu0
      %v3680 = vadd.f32 %v3591, %v3679
      %3681 = vmatmul.bf16.gmra.mxu0 %v2123
      %v3682 = vpop.f32.mrf.mxu0
      %v3683 = vadd.f32 %v3594, %v3682
      %v3684 = vpop.f32.mrf.mxu0
      %v3685 = vadd.f32 %v3596, %v3684
      %3686 = vmatmul.bf16.gmra.mxu0 %v2124
      %v3687 = vpop.f32.mrf.mxu0
      %v3688 = vadd.f32 %v3599, %v3687
      %v3689 = vpop.f32.mrf.mxu0
      %v3690 = vadd.f32 %v3601, %v3689
      %3691 = vmatmul.bf16.gmra.mxu0 %v2125
      %v3692 = vpop.f32.mrf.mxu0
      %v3693 = vadd.f32 %v3604, %v3692
      %v3694 = vpop.f32.mrf.mxu0
      %v3695 = vadd.f32 %v3606, %v3694
      %3696 = vmatmul.bf16.gmra.mxu0 %v2126
      %v3697 = vpop.f32.mrf.mxu0
      %v3698 = vadd.f32 %v3609, %v3697
      %v3699 = vpop.f32.mrf.mxu0
      %v3700 = vadd.f32 %v3611, %v3699
      %3701 = vmatmul.bf16.gmra.mxu0 %v2127
      %v3702 = vpop.f32.mrf.mxu0
      %v3703 = vadd.f32 %v3614, %v3702
      %v3704 = vpop.f32.mrf.mxu0
      %v3705 = vadd.f32 %v3616, %v3704
      %3706 = vmatmul.bf16.gmra.mxu0 %v2128
      %v3707 = vpop.f32.mrf.mxu0
      %v3708 = vadd.f32 %v3619, %v3707
      %v3709 = vpop.f32.mrf.mxu0
      %v3710 = vadd.f32 %v3621, %v3709
      %3711 = vmatmul.bf16.gmra.mxu0 %v2129
      %v3712 = vpop.f32.mrf.mxu0
      %v3713 = vadd.f32 %v3624, %v3712
      %v3714 = vpop.f32.mrf.mxu0
      %v3715 = vadd.f32 %v3626, %v3714
      %3716 = vdwg.mxu0
      %3717 = vmatpush.bf16.msra.mxu0 %v3013
      %3718 = vmatpush.bf16.msra.mxu0 %v3012
      %3719 = vmatpush.bf16.msra.mxu0 %v3011
      %3720 = vmatpush.bf16.msra.mxu0 %v3010
      %3721 = vmatpush.bf16.msra.mxu0 %v3009
      %3722 = vmatpush.bf16.msra.mxu0 %v3008
      %3723 = vmatpush.bf16.msra.mxu0 %v3007
      %3724 = vmatpush.bf16.msra.mxu0 %v3006
      %3725 = vmatmul.bf16.gmra.mxu0 %v2205
      %v3726 = vpop.f32.mrf.mxu0
      %v3727 = vadd.f32 %v3638, %v3726
      %v3728 = vpop.f32.mrf.mxu0
      %v3729 = vadd.f32 %v3640, %v3728
      %3730 = vmatmul.bf16.gmra.mxu0 %v2217
      %v3731 = vpop.f32.mrf.mxu0
      %v3732 = vadd.f32 %v3643, %v3731
      %v3733 = vpop.f32.mrf.mxu0
      %v3734 = vadd.f32 %v3645, %v3733
      %3735 = vmatmul.bf16.gmra.mxu0 %v2229
      %v3736 = vpop.f32.mrf.mxu0
      %v3737 = vadd.f32 %v3648, %v3736
      %v3738 = vpop.f32.mrf.mxu0
      %v3739 = vadd.f32 %v3650, %v3738
      %3740 = vmatmul.bf16.gmra.mxu0 %v2241
      %v3741 = vpop.f32.mrf.mxu0
      %v3742 = vadd.f32 %v3653, %v3741
      %v3743 = vpop.f32.mrf.mxu0
      %v3744 = vadd.f32 %v3655, %v3743
      %3745 = vmatmul.bf16.gmra.mxu0 %v2253
      %v3746 = vpop.f32.mrf.mxu0
      %v3747 = vadd.f32 %v3658, %v3746
      %v3748 = vpop.f32.mrf.mxu0
      %v3749 = vadd.f32 %v3660, %v3748
      %3750 = vmatmul.bf16.gmra.mxu0 %v2265
      %v3751 = vpop.f32.mrf.mxu0
      %v3752 = vadd.f32 %v3663, %v3751
      %v3753 = vpop.f32.mrf.mxu0
      %v3754 = vadd.f32 %v3665, %v3753
      %3755 = vmatmul.bf16.gmra.mxu0 %v2277
      %v3756 = vpop.f32.mrf.mxu0
      %v3757 = vadd.f32 %v3668, %v3756
      %v3758 = vpop.f32.mrf.mxu0
      %v3759 = vadd.f32 %v3670, %v3758
      %3760 = vmatmul.bf16.gmra.mxu0 %v2289
      %v3761 = vpop.f32.mrf.mxu0
      %v3762 = vadd.f32 %v3673, %v3761
      %v3763 = vpop.f32.mrf.mxu0
      %v3764 = vadd.f32 %v3675, %v3763
      %3765 = vmatmul.bf16.gmra.mxu0 %v2301
      %v3766 = vpop.f32.mrf.mxu0
      %v3767 = vadd.f32 %v3678, %v3766
      %v3768 = vpop.f32.mrf.mxu0
      %v3769 = vadd.f32 %v3680, %v3768
      %3770 = vmatmul.bf16.gmra.mxu0 %v2313
      %v3771 = vpop.f32.mrf.mxu0
      %v3772 = vadd.f32 %v3683, %v3771
      %v3773 = vpop.f32.mrf.mxu0
      %v3774 = vadd.f32 %v3685, %v3773
      %3775 = vmatmul.bf16.gmra.mxu0 %v2325
      %v3776 = vpop.f32.mrf.mxu0
      %v3777 = vadd.f32 %v3688, %v3776
      %v3778 = vpop.f32.mrf.mxu0
      %v3779 = vadd.f32 %v3690, %v3778
      %3780 = vmatmul.bf16.gmra.mxu0 %v2337
      %v3781 = vpop.f32.mrf.mxu0
      %v3782 = vadd.f32 %v3693, %v3781
      %v3783 = vpop.f32.mrf.mxu0
      %v3784 = vadd.f32 %v3695, %v3783
      %3785 = vmatmul.bf16.gmra.mxu0 %v2349
      %v3786 = vpop.f32.mrf.mxu0
      %v3787 = vadd.f32 %v3698, %v3786
      %v3788 = vpop.f32.mrf.mxu0
      %v3789 = vadd.f32 %v3700, %v3788
      %3790 = vmatmul.bf16.gmra.mxu0 %v2361
      %v3791 = vpop.f32.mrf.mxu0
      %v3792 = vadd.f32 %v3703, %v3791
      %v3793 = vpop.f32.mrf.mxu0
      %v3794 = vadd.f32 %v3705, %v3793
      %3795 = vmatmul.bf16.gmra.mxu0 %v2373
      %v3796 = vpop.f32.mrf.mxu0
      %v3797 = vadd.f32 %v3708, %v3796
      %v3798 = vpop.f32.mrf.mxu0
      %v3799 = vadd.f32 %v3710, %v3798
      %3800 = vmatmul.bf16.gmra.mxu0 %v2385
      %v3801 = vpop.f32.mrf.mxu0
      %v3802 = vadd.f32 %v3713, %v3801
      %v3803 = vpop.f32.mrf.mxu0
      %v3804 = vadd.f32 %v3715, %v3803
      %3805 = vdwg.mxu0
      %3806 = vmatpush.bf16.msra.mxu0 %v3021
      %3807 = vmatpush.bf16.msra.mxu0 %v3020
      %3808 = vmatpush.bf16.msra.mxu0 %v3019
      %3809 = vmatpush.bf16.msra.mxu0 %v3018
      %3810 = vmatpush.bf16.msra.mxu0 %v3017
      %3811 = vmatpush.bf16.msra.mxu0 %v3016
      %3812 = vmatpush.bf16.msra.mxu0 %v3015
      %3813 = vmatpush.bf16.msra.mxu0 %v3014
      %3814 = vmatmul.bf16.gmra.mxu0 %v2452
      %v3815 = vpop.f32.mrf.mxu0
      %v3816 = vadd.f32 %v3727, %v3815
      %v3817 = vpop.f32.mrf.mxu0
      %v3818 = vadd.f32 %v3729, %v3817
      %3819 = vmatmul.bf16.gmra.mxu0 %v2455
      %v3820 = vpop.f32.mrf.mxu0
      %v3821 = vadd.f32 %v3732, %v3820
      %v3822 = vpop.f32.mrf.mxu0
      %v3823 = vadd.f32 %v3734, %v3822
      %3824 = vmatmul.bf16.gmra.mxu0 %v2458
      %v3825 = vpop.f32.mrf.mxu0
      %v3826 = vadd.f32 %v3737, %v3825
      %v3827 = vpop.f32.mrf.mxu0
      %v3828 = vadd.f32 %v3739, %v3827
      %3829 = vmatmul.bf16.gmra.mxu0 %v2461
      %v3830 = vpop.f32.mrf.mxu0
      %v3831 = vadd.f32 %v3742, %v3830
      %v3832 = vpop.f32.mrf.mxu0
      %v3833 = vadd.f32 %v3744, %v3832
      %3834 = vmatmul.bf16.gmra.mxu0 %v2464
      %v3835 = vpop.f32.mrf.mxu0
      %v3836 = vadd.f32 %v3747, %v3835
      %v3837 = vpop.f32.mrf.mxu0
      %v3838 = vadd.f32 %v3749, %v3837
      %3839 = vmatmul.bf16.gmra.mxu0 %v2467
      %v3840 = vpop.f32.mrf.mxu0
      %v3841 = vadd.f32 %v3752, %v3840
      %v3842 = vpop.f32.mrf.mxu0
      %v3843 = vadd.f32 %v3754, %v3842
      %3844 = vmatmul.bf16.gmra.mxu0 %v2470
      %v3845 = vpop.f32.mrf.mxu0
      %v3846 = vadd.f32 %v3757, %v3845
      %v3847 = vpop.f32.mrf.mxu0
      %v3848 = vadd.f32 %v3759, %v3847
      %3849 = vmatmul.bf16.gmra.mxu0 %v2473
      %v3850 = vpop.f32.mrf.mxu0
      %v3851 = vadd.f32 %v3762, %v3850
      %v3852 = vpop.f32.mrf.mxu0
      %v3853 = vadd.f32 %v3764, %v3852
      %3854 = vmatmul.bf16.gmra.mxu0 %v2476
      %v3855 = vpop.f32.mrf.mxu0
      %v3856 = vadd.f32 %v3767, %v3855
      %v3857 = vpop.f32.mrf.mxu0
      %v3858 = vadd.f32 %v3769, %v3857
      %3859 = vmatmul.bf16.gmra.mxu0 %v2479
      %v3860 = vpop.f32.mrf.mxu0
      %v3861 = vadd.f32 %v3772, %v3860
      %v3862 = vpop.f32.mrf.mxu0
      %v3863 = vadd.f32 %v3774, %v3862
      %3864 = vmatmul.bf16.gmra.mxu0 %v2482
      %v3865 = vpop.f32.mrf.mxu0
      %v3866 = vadd.f32 %v3777, %v3865
      %v3867 = vpop.f32.mrf.mxu0
      %v3868 = vadd.f32 %v3779, %v3867
      %3869 = vmatmul.bf16.gmra.mxu0 %v2485
      %v3870 = vpop.f32.mrf.mxu0
      %v3871 = vadd.f32 %v3782, %v3870
      %v3872 = vpop.f32.mrf.mxu0
      %v3873 = vadd.f32 %v3784, %v3872
      %3874 = vmatmul.bf16.gmra.mxu0 %v2488
      %v3875 = vpop.f32.mrf.mxu0
      %v3876 = vadd.f32 %v3787, %v3875
      %v3877 = vpop.f32.mrf.mxu0
      %v3878 = vadd.f32 %v3789, %v3877
      %3879 = vmatmul.bf16.gmra.mxu0 %v2491
      %v3880 = vpop.f32.mrf.mxu0
      %v3881 = vadd.f32 %v3792, %v3880
      %v3882 = vpop.f32.mrf.mxu0
      %v3883 = vadd.f32 %v3794, %v3882
      %3884 = vmatmul.bf16.gmra.mxu0 %v2494
      %v3885 = vpop.f32.mrf.mxu0
      %v3886 = vadd.f32 %v3797, %v3885
      %v3887 = vpop.f32.mrf.mxu0
      %v3888 = vadd.f32 %v3799, %v3887
      %3889 = vmatmul.bf16.gmra.mxu0 %v2497
      %v3890 = vpop.f32.mrf.mxu0
      %v3891 = vadd.f32 %v3802, %v3890
      %v3892 = vpop.f32.mrf.mxu0
      %v3893 = vadd.f32 %v3804, %v3892
      %3894 = vdwg.mxu0
      %3895 = vst [vmem:[%s258] sm:$0xff] %v3816
      %3896 = vst [vmem:[%s258 + $0x8] sm:$0xff] %v3818
      %3897 = vst [vmem:[%s258 + $0x10] sm:$0xff] %v3821
      %3898 = vst [vmem:[%s258 + $0x18] sm:$0xff] %v3823
      %3899 = vst [vmem:[%s258 + $0x20] sm:$0xff] %v3826
      %3900 = vst [vmem:[%s258 + $0x28] sm:$0xff] %v3828
      %3901 = vst [vmem:[%s258 + $0x30] sm:$0xff] %v3831
      %3902 = vst [vmem:[%s258 + $0x38] sm:$0xff] %v3833
      %3903 = vst [vmem:[%s258 + $0x40] sm:$0xff] %v3836
      %3904 = vst [vmem:[%s258 + $0x48] sm:$0xff] %v3838
      %3905 = vst [vmem:[%s258 + $0x50] sm:$0xff] %v3841
      %3906 = vst [vmem:[%s258 + $0x58] sm:$0xff] %v3843
      %3907 = vst [vmem:[%s258 + $0x60] sm:$0xff] %v3846
      %3908 = vst [vmem:[%s258 + $0x68] sm:$0xff] %v3848
      %3909 = vst [vmem:[%s258 + $0x70] sm:$0xff] %v3851
      %3910 = vst [vmem:[%s258 + $0x78] sm:$0xff] %v3853
      %3911 = vst [vmem:[%s258 + $0x80] sm:$0xff] %v3856
      %3912 = vst [vmem:[%s258 + $0x88] sm:$0xff] %v3858
      %3913 = vst [vmem:[%s258 + $0x90] sm:$0xff] %v3861
      %3914 = vst [vmem:[%s258 + $0x98] sm:$0xff] %v3863
      %3915 = vst [vmem:[%s258 + $0xa0] sm:$0xff] %v3866
      %3916 = vst [vmem:[%s258 + $0xa8] sm:$0xff] %v3868
      %3917 = vst [vmem:[%s258 + $0xb0] sm:$0xff] %v3871
      %3918 = vst [vmem:[%s258 + $0xb8] sm:$0xff] %v3873
      %3919 = vst [vmem:[%s258 + $0xc0] sm:$0xff] %v3876
      %3920 = vst [vmem:[%s258 + $0xc8] sm:$0xff] %v3878
      %3921 = vst [vmem:[%s258 + $0xd0] sm:$0xff] %v3881
      %3922 = vst [vmem:[%s258 + $0xd8] sm:$0xff] %v3883
      %3923 = vst [vmem:[%s258 + $0xe0] sm:$0xff] %v3886
      %3924 = vst [vmem:[%s258 + $0xe8] sm:$0xff] %v3888
      %3925 = vst [vmem:[%s258 + $0xf0] sm:$0xff] %v3891
      %3926 = vst [vmem:[%s258 + $0xf8] sm:$0xff] %v3893
      %v3927 = vadd.f32 %v3816, %v3818
      %v3928 = vadd.f32 %v3927, %v3821
      %v3929 = vadd.f32 %v3928, %v3823
      %v3930 = vadd.f32 %v3929, %v3826
      %v3931 = vadd.f32 %v3930, %v3828
      %v3932 = vadd.f32 %v3931, %v3831
      %v3933 = vadd.f32 %v3932, %v3833
      %v3934 = vadd.f32 %v3933, %v3836
      %v3935 = vadd.f32 %v3934, %v3838
      %v3936 = vadd.f32 %v3935, %v3841
      %v3937 = vadd.f32 %v3936, %v3843
      %v3938 = vadd.f32 %v3937, %v3846
      %v3939 = vadd.f32 %v3938, %v3848
      %v3940 = vadd.f32 %v3939, %v3851
      %v3941 = vadd.f32 %v3940, %v3853
      %v3942 = vadd.f32 %v3941, %v3856
      %v3943 = vadd.f32 %v3942, %v3858
      %v3944 = vadd.f32 %v3943, %v3861
      %v3945 = vadd.f32 %v3944, %v3863
      %v3946 = vadd.f32 %v3945, %v3866
      %v3947 = vadd.f32 %v3946, %v3868
      %v3948 = vadd.f32 %v3947, %v3871
      %v3949 = vadd.f32 %v3948, %v3873
      %v3950 = vadd.f32 %v3949, %v3876
      %v3951 = vadd.f32 %v3950, %v3878
      %v3952 = vadd.f32 %v3951, %v3881
      %v3953 = vadd.f32 %v3952, %v3883
      %v3954 = vadd.f32 %v3953, %v3886
      %v3955 = vadd.f32 %v3954, %v3888
      %v3956 = vadd.f32 %v3955, %v3891
      %v3957 = vadd.f32 %v3956, %v3893
      %v3958 = vrot.slane %v3957, 4
      %v3959 = vadd.f32 %v3957, %v3958
      %v3960 = vrot.slane %v3959, 2
      %v3961 = vadd.f32 %v3959, %v3960
      %v3962 = vrot.slane %v3961, 1
      %v3963 = vadd.f32 %v3961, %v3962
      %3964 = vst [vmem:[%s262] sm:$0x1] %v3963
      %v3965 = vmul.f32 %v3816, %v3816
      %v3966 = vmul.f32 %v3818, %v3818
      %v3967 = vmul.f32 %v3821, %v3821
      %v3968 = vmul.f32 %v3823, %v3823
      %v3969 = vmul.f32 %v3826, %v3826
      %v3970 = vmul.f32 %v3828, %v3828
      %v3971 = vmul.f32 %v3831, %v3831
      %v3972 = vmul.f32 %v3833, %v3833
      %v3973 = vmul.f32 %v3836, %v3836
      %v3974 = vmul.f32 %v3838, %v3838
      %v3975 = vmul.f32 %v3841, %v3841
      %v3976 = vmul.f32 %v3843, %v3843
      %v3977 = vmul.f32 %v3846, %v3846
      %v3978 = vmul.f32 %v3848, %v3848
      %v3979 = vmul.f32 %v3851, %v3851
      %v3980 = vmul.f32 %v3853, %v3853
      %v3981 = vmul.f32 %v3856, %v3856
      %v3982 = vmul.f32 %v3858, %v3858
      %v3983 = vmul.f32 %v3861, %v3861
      %v3984 = vmul.f32 %v3863, %v3863
      %v3985 = vmul.f32 %v3866, %v3866
      %v3986 = vmul.f32 %v3868, %v3868
      %v3987 = vmul.f32 %v3871, %v3871
      %v3988 = vmul.f32 %v3873, %v3873
      %v3989 = vmul.f32 %v3876, %v3876
      %v3990 = vmul.f32 %v3878, %v3878
      %v3991 = vmul.f32 %v3881, %v3881
      %v3992 = vmul.f32 %v3883, %v3883
      %v3993 = vmul.f32 %v3886, %v3886
      %v3994 = vmul.f32 %v3888, %v3888
      %v3995 = vmul.f32 %v3891, %v3891
      %v3996 = vmul.f32 %v3893, %v3893
      %v3997 = vadd.f32 %v3965, %v3966
      %v3998 = vadd.f32 %v3997, %v3967
      %v3999 = vadd.f32 %v3998, %v3968
      %v4000 = vadd.f32 %v3999, %v3969
      %v4001 = vadd.f32 %v4000, %v3970
      %v4002 = vadd.f32 %v4001, %v3971
      %v4003 = vadd.f32 %v4002, %v3972
      %v4004 = vadd.f32 %v4003, %v3973
      %v4005 = vadd.f32 %v4004, %v3974
      %v4006 = vadd.f32 %v4005, %v3975
      %v4007 = vadd.f32 %v4006, %v3976
      %v4008 = vadd.f32 %v4007, %v3977
      %v4009 = vadd.f32 %v4008, %v3978
      %v4010 = vadd.f32 %v4009, %v3979
      %v4011 = vadd.f32 %v4010, %v3980
      %v4012 = vadd.f32 %v4011, %v3981
      %v4013 = vadd.f32 %v4012, %v3982
      %v4014 = vadd.f32 %v4013, %v3983
      %v4015 = vadd.f32 %v4014, %v3984
      %v4016 = vadd.f32 %v4015, %v3985
      %v4017 = vadd.f32 %v4016, %v3986
      %v4018 = vadd.f32 %v4017, %v3987
      %v4019 = vadd.f32 %v4018, %v3988
      %v4020 = vadd.f32 %v4019, %v3989
      %v4021 = vadd.f32 %v4020, %v3990
      %v4022 = vadd.f32 %v4021, %v3991
      %v4023 = vadd.f32 %v4022, %v3992
      %v4024 = vadd.f32 %v4023, %v3993
      %v4025 = vadd.f32 %v4024, %v3994
      %v4026 = vadd.f32 %v4025, %v3995
      %v4027 = vadd.f32 %v4026, %v3996
      %v4028 = vrot.slane %v4027, 4
      %v4029 = vadd.f32 %v4027, %v4028
      %v4030 = vrot.slane %v4029, 2
      %v4031 = vadd.f32 %v4029, %v4030
      %v4032 = vrot.slane %v4031, 1
      %v4033 = vadd.f32 %v4031, %v4032
      %4034 = vst [vmem:[%s262 + $0x1] sm:$0x1] %v4033
      %p4035 = scmp.lt.s32.totalorder %s18, 1
      %s4036 = scalar_select %p4035, %s18, 1
      %s4037 = smul.addr %s4036, 32
      %s4038 = smul.addr %s4037, 8
      %s4039 = scalar_lea.vmem %s5, %s4038
      %p4040 = scmp.lt.s32.totalorder %s18, 1
      %s4041 = scalar_select %p4040, %s18, 1
      %s4042 = smul.addr %s4041, 2
      %s4043 = scalar_lea.vmem %s6, %s4042
      // Predicated region
      $region41: #{double_conv_bn_forward.4} parent=39 // pred_check
        %p4044 = pneg %p146
      $region42: #{double_conv_bn_forward.4} parent=39 // pred_check_branch
        %4046 = sbr.rel (%p4044) target = $region44
      $region43: #{double_conv_bn_forward.4} parent=39 // pred_region
        _
      $region44: #{double_conv_bn_forward.4} parent=39 // pred_fallthru
        _
      // Predicated region
      $region45: #{double_conv_bn_forward.4} parent=39 // pred_check
        %p4047 = pneg %p172
      $region46: #{double_conv_bn_forward.4} parent=39 // pred_check_branch
        %4049 = sbr.rel (%p4047) target = $region48
      $region47: #{double_conv_bn_forward.4} parent=39 // pred_region
        _
      $region48: #{double_conv_bn_forward.4} parent=39 // pred_fallthru
        _
    $region40: #{double_conv_bn_forward.4} parent=5 // pred_fallthru
      _
    %p4050 = scmp.le.s32.totalorder 2, %s13
    // Predicated region
    $region49: #{double_conv_bn_forward.4} parent=5 // pred_check
      %p4051 = pneg %p4050
    $region50: #{double_conv_bn_forward.4} parent=5 // pred_check_branch
      %4053 = sbr.rel (%p4051) target = $region52
    $region51: #{double_conv_bn_forward.4} parent=5 // pred_region
      %s4054 = ssub.s32 %s13, 2
      // Predicated region
      $region53: #{double_conv_bn_forward.4} parent=51 // pred_check
        %p4055 = pneg %p152
      $region54: #{double_conv_bn_forward.4} parent=51 // pred_check_branch
        %4057 = sbr.rel (%p4055) target = $region56
      $region55: #{double_conv_bn_forward.4} parent=51 // pred_region
        %p4058 = scmp.lt.s32.totalorder %s19, 1
        %s4059 = scalar_select %p4058, %s19, 1
        %s4060 = smul.addr %s4059, 32
        %s4061 = smul.addr %s4060, 8
        %s4062 = scalar_lea.vmem %s5, %s4061
      $region56: #{double_conv_bn_forward.4} parent=51 // pred_fallthru
        _
      // Predicated region
      $region57: #{double_conv_bn_forward.4} parent=51 // pred_check
        %p4063 = pneg %p178
      $region58: #{double_conv_bn_forward.4} parent=51 // pred_check_branch
        %4065 = sbr.rel (%p4063) target = $region60
      $region59: #{double_conv_bn_forward.4} parent=51 // pred_region
        %p4066 = scmp.lt.s32.totalorder %s19, 1
        %s4067 = scalar_select %p4066, %s19, 1
        %s4068 = smul.addr %s4067, 2
        %s4069 = scalar_lea.vmem %s6, %s4068
      $region60: #{double_conv_bn_forward.4} parent=51 // pred_fallthru
        _
    $region52: #{double_conv_bn_forward.4} parent=5 // pred_fallthru
      _
  $region6: #{double_conv_bn_forward.4} parent=0 // loop_footer
    %s17 = sadd.s32 1, %s13
  $region7: #{double_conv_bn_forward.4} parent=0 // loop_footer_branch
    %12 = sbr.rel target = $region3
  $region8: #{double_conv_bn_forward.4} parent=0 // loop_exit
    _

</llo_original>
